<compile_context>
chip_gen: v7x
topology: tpu7x:2x2x1
jax: 0.10.0
libtpu: 0.0.40
codegen_flags: <defaults>
</compile_context>

<pallas_src>
import jax
import jax.numpy as jnp
from jax.experimental import pallas as pl
from jax.experimental.pallas import tpu as pltpu

_BN_EPS = 1e-5

# Set to jnp.bfloat16 for ~2x MXU throughput on v6e/v7x (weights are stored in
# this dtype, accumulation stays f32 via preferred_element_type) -- kept at f32
# so the kernel stays within the 2e-3 tolerance vs. the f32 reference.
COMPUTE_DTYPE = jnp.float32


# ----------------------------------------------------------------------------- #
# Kernel
# ----------------------------------------------------------------------------- #
def _make_attribute_net_kernel(bb: int, hin: int, compute_dtype):
    """Fused kernel for a block of `bb` images of spatial size `hin` (% 8 == 0)."""
    h0, h1, h2, h3 = hin, hin // 2, hin // 4, hin // 8

    def conv3x3(pad_ref, w_ref, b_ref, h, w):
        """3x3 'same' conv as a single im2col matmul.

        pad_ref : (bb, h+2, w+2, cin) zero-bordered activations (VMEM Ref)
        w_ref   : (9*cin, cout) weights; K index = (dh*3 + dw)*cin + ci
        b_ref   : (1, cout) bias
        returns : (bb*h*w, cout) f32, rows ordered (b, h, w)
        """
        cin = pad_ref.shape[3]
        cols = [pad_ref[:, dh:dh + h, dw:dw + w, :]
                for dh in range(3) for dw in range(3)]
        patches = jnp.concatenate(cols, axis=-1)                # (bb, h, w, 9*cin)
        patches = patches.reshape(bb * h * w, 9 * cin)
        y = jnp.dot(patches.astype(compute_dtype), w_ref[...],
                    preferred_element_type=jnp.float32)
        return y + b_ref[...]

    def maxpool2x2(y, h, w, c):
        """2x2 / stride-2 max pool of (bb*h*w, c), rows ordered (b, h, w)."""
        y = jnp.max(y.reshape(bb * h * w // 2, 2, c), axis=1)       # pool along w
        y = jnp.max(y.reshape(bb * h // 2, 2, w // 2, c), axis=1)   # pool along h
        return y.reshape(bb, h // 2, w // 2, c)

    def write_padded(pad_ref, val):
        """Store `val` into the interior; re-zero only the 1-px border ring.

        Interiors are fully overwritten every step, so only the border needs
        (re)initialization.  No program_id==0 trick: that is unsafe under
        dimension_semantics=("parallel",) on multi-TensorCore chips.
        """
        nb, hp, wp, c = pad_ref.shape
        zrow = jnp.zeros((nb, 1, wp, c), jnp.float32)
        zcol = jnp.zeros((nb, hp, 1, c), jnp.float32)
        pad_ref[:, 0:1, :, :] = zrow
        pad_ref[:, hp - 1:hp, :, :] = zrow
        pad_ref[:, :, 0:1, :] = zcol
        pad_ref[:, :, wp - 1:wp, :] = zcol
        pad_ref[:, 1:hp - 1, 1:wp - 1, :] = val

    def kernel(x_ref, w1, b1, w2, b2, w3, b3, w4, b4, w6, b6, o_ref,
               pad0, pad1, pad2, pad3, pad4):
        # zero-pad the raw input inside the kernel (no wrapper jnp.pad pass)
        write_padded(pad0, x_ref[...])
        # conv1 + folded bn1 + relu + pool : (h0,h0,3)  -> (h1,h1,8)
        y = jnp.maximum(conv3x3(pad0, w1, b1, h0, h0), 0.0)
        write_padded(pad1, maxpool2x2(y, h0, h0, 8))
        # conv2 + bn2 + relu + pool        : (h1,h1,8)  -> (h2,h2,16)
        y = jnp.maximum(conv3x3(pad1, w2, b2, h1, h1), 0.0)
        write_padded(pad2, maxpool2x2(y, h1, h1, 16))
        # conv3 + bn3 + relu + pool        : (h2,h2,16) -> (h3,h3,32)
        y = jnp.maximum(conv3x3(pad2, w3, b3, h2, h2), 0.0)
        write_padded(pad3, maxpool2x2(y, h2, h2, 32))
        # conv4 + bn4 + relu (no pool for patch_size=8) -> (h3,h3,64)
        y = jnp.maximum(conv3x3(pad3, w4, b4, h3, h3), 0.0)
        write_padded(pad4, y.reshape(bb, h3, h3, 64))
        # conv6 (plain conv, no bn / relu)              -> (h3,h3,3)
        y = conv3x3(pad4, w6, b6, h3, h3)                        # (bb*h3*h3, 3)
        o_ref[...] = y.reshape(bb, h3, h3, 3).astype(o_ref.dtype)

    return kernel


# ----------------------------------------------------------------------------- #
# Batch-block sizing (VMEM aware, keeps grid >= 2 for v7x's two TensorCores)
# ----------------------------------------------------------------------------- #
def _padded_vmem_bytes(shape, itemsize=4):
    """Footprint of an f32 buffer after (8,128) tiling of the last two dims."""
    if len(shape) == 1:
        shape = (1,) + tuple(shape)
    lead = 1
    for d in shape[:-2]:
        lead *= d
    sub = -(-shape[-2] // 8) * 8
    lane = -(-shape[-1] // 128) * 128
    return lead * sub * lane * itemsize


def _vmem_estimate(bb, hin):
    h0, h1, h2, h3 = hin, hin // 2, hin // 4, hin // 8
    scratch = [(bb, h0 + 2, h0 + 2, 3), (bb, h1 + 2, h1 + 2, 8),
               (bb, h2 + 2, h2 + 2, 16), (bb, h3 + 2, h3 + 2, 32),
               (bb, h3 + 2, h3 + 2, 64)]
    total = sum(_padded_vmem_bytes(s) for s in scratch)
    total += 2 * _padded_vmem_bytes((bb, h0, h0, 3))      # double-buffered input
    total += 2 * _padded_vmem_bytes((bb, h3, h3, 3))      # double-buffered output
    return total


def _pick_batch_block(n, hin, max_block=16, min_grid=2,
                      vmem_budget=20 * 1024 * 1024):
    """Largest divisor of n with grid >= min_grid that fits the VMEM budget."""
    bb = max(1, min(max_block, n // min_grid if n >= min_grid else n))
    while n % bb:
        bb -= 1
    while bb > 1 and _vmem_estimate(bb, hin) > vmem_budget:
        bb -= 1
        while n % bb:
            bb -= 1
    return bb


# ----------------------------------------------------------------------------- #
# Wrapper
# ----------------------------------------------------------------------------- #
def attribute_net_forward(x, kparams, *, max_batch_block=16):
    """x: (N, 3, H, H) NCHW float32; kparams from prepare_kernel_params()."""
    n, c, hin, win = x.shape
    assert c == 3 and hin == win and hin % 8 == 0
    hout = hin // 8
    h1, h2, h3 = hin // 2, hin // 4, hin // 8

    bb = _pick_batch_block(n, hin, max_block=max_batch_block)
    grid = (n // bb,)

    # NCHW -> NHWC once in XLA (one small pass; padding is done in the kernel).
    # TODO(synk): a general in-kernel (0,2,3,1) transpose would remove this pass
    # but is not reliably lowered by Mosaic, so it stays wrapper-side.
    x_nhwc = jnp.transpose(x, (0, 2, 3, 1)).astype(jnp.float32)

    w1, b1 = kparams["conv1"]
    w2, b2 = kparams["conv2"]
    w3, b3 = kparams["conv3"]
    w4, b4 = kparams["conv4"]
    w6, b6 = kparams["conv6"]

    def param_spec(arr):
        # Constant block index across the grid => fetched once, stays in VMEM.
        return pl.BlockSpec(tuple(arr.shape), lambda i, _nd=arr.ndim: (0,) * _nd)

    flops = 2 * n * (hin * hin * 27 * 8 + h1 * h1 * 72 * 16 +
                     h2 * h2 * 144 * 32 + h3 * h3 * 288 * 64 +
                     h3 * h3 * 576 * 3)
    param_bytes = sum(int(w.size) * w.dtype.itemsize + int(b.size) * b.dtype.itemsize
                      for w, b in kparams.values())
    bytes_accessed = int(x_nhwc.size) * 4 + n * hout * hout * 3 * 4 + param_bytes

    kernel = _make_attribute_net_kernel(bb, hin, COMPUTE_DTYPE)

    out_nhwc = pl.pallas_call(
        kernel,
        out_shape=jax.ShapeDtypeStruct((n, hout, hout, 3), jnp.float32),
        grid_spec=pltpu.PrefetchScalarGridSpec(
            num_scalar_prefetch=0,
            grid=grid,
            in_specs=[
                pl.BlockSpec((bb, hin, hin, 3), lambda i: (i, 0, 0, 0)),
                param_spec(w1), param_spec(b1),
                param_spec(w2), param_spec(b2),
                param_spec(w3), param_spec(b3),
                param_spec(w4), param_spec(b4),
                param_spec(w6), param_spec(b6),
            ],
            out_specs=pl.BlockSpec((bb, hout, hout, 3), lambda i: (i, 0, 0, 0)),
            scratch_shapes=[
                pltpu.VMEM((bb, hin + 2, hin + 2, 3), jnp.float32),   # padded input
                pltpu.VMEM((bb, h1 + 2, h1 + 2, 8), jnp.float32),     # after pool1
                pltpu.VMEM((bb, h2 + 2, h2 + 2, 16), jnp.float32),    # after pool2
                pltpu.VMEM((bb, h3 + 2, h3 + 2, 32), jnp.float32),    # after pool3
                pltpu.VMEM((bb, h3 + 2, h3 + 2, 64), jnp.float32),    # after conv4
            ],
        ),
        compiler_params=pltpu.CompilerParams(
            dimension_semantics=("parallel",),        # batch axis -> both TCs on v7x
            vmem_limit_bytes=32 * 1024 * 1024,
        ),
        cost_estimate=pl.CostEstimate(flops=flops, transcendentals=0,
                                      bytes_accessed=int(bytes_accessed)),
    )(x_nhwc, w1, b1, w2, b2, w3, b3, w4, b4, w6, b6)

    return jnp.transpose(out_nhwc, (0, 3, 1, 2))   # back to NCHW (tiny output)


# ----------------------------------------------------------------------------- #
# Parameter construction / BN folding (plain-JAX glue mirroring nn.Module init)
# ----------------------------------------------------------------------------- #
def init_raw_params(key):
    """PyTorch-style params: OIHW conv weights, biases, eval-mode BN stats."""
    specs = {"conv1": (3, 8), "conv2": (8, 16), "conv3": (16, 32), "conv4": (32, 64)}
    raw = {}
    k = key
    for name, (cin, cout) in specs.items():
        k, k1, k2, k3, k4, k5, k6 = jax.random.split(k, 7)
        std = (2.0 / (cin * 9)) ** 0.5
        w = std * jax.random.normal(k1, (cout, cin, 3, 3), jnp.float32)
        b = 0.1 * jax.random.normal(k2, (cout,), jnp.float32)
        gamma = 1.0 + 0.1 * jax.random.normal(k3, (cout,), jnp.float32)
        beta = 0.1 * jax.random.normal(k4, (cout,), jnp.float32)
        mean = 0.1 * jax.random.normal(k5, (cout,), jnp.float32)
        var = 1.0 + 0.1 * jax.random.uniform(k6, (cout,), jnp.float32)
        raw[name] = (w, b, gamma, beta, mean, var)
    k, k1, k2 = jax.random.split(k, 3)
    cin, cout = 64, 3
    std = (2.0 / (cin * 9)) ** 0.5
    w6 = std * jax.random.normal(k1, (cout, cin, 3, 3), jnp.float32)
    b6 = 0.1 * jax.random.normal(k2, (cout,), jnp.float32)
    raw["conv6"] = (w6, b6)
    return raw


def prepare_kernel_params(raw, eps=_BN_EPS, dtype=COMPUTE_DTYPE):
    """Fold eval-mode BatchNorm into conv weights; OIHW -> (9*cin, cout) im2col."""
    def to_kernel_layout(w_oihw):
        cout, cin = w_oihw.shape[0], w_oihw.shape[1]
        # row index = (dh*3 + dw)*cin + ci  (matches the in-kernel concat order)
        return jnp.transpose(w_oihw, (2, 3, 1, 0)).reshape(9 * cin, cout).astype(dtype)

    out = {}
    for name in ["conv1", "conv2", "conv3", "conv4"]:
        w, b, g, beta, m, v = raw[name]
        scale = g / jnp.sqrt(v + eps)
        w_f = w * scale[:, None, None, None]
        b_f = (b - m) * scale + beta
        out[name] = (to_kernel_layout(w_f), b_f.reshape(1, -1).astype(jnp.float32))
    w6, b6 = raw["conv6"]
    out["conv6"] = (to_kernel_layout(w6), b6.reshape(1, -1).astype(jnp.float32))
    return out


# ----------------------------------------------------------------------------- #
# Plain-JAX reference (mirrors the PyTorch forward, eval-mode BN)
# ----------------------------------------------------------------------------- #
def reference_forward(x, raw, eps=_BN_EPS):
    def conv(z, w, b):
        y = jax.lax.conv_general_dilated(
            z, w, window_strides=(1, 1), padding=((1, 1), (1, 1)),
            dimension_numbers=("NCHW", "OIHW", "NCHW"),
            precision=jax.lax.Precision.HIGHEST)
        return y + b[None, :, None, None]

    def bn(y, g, beta, m, v):
        scale = g / jnp.sqrt(v + eps)
        return (y - m[None, :, None, None]) * scale[None, :, None, None] \
            + beta[None, :, None, None]

    def pool(y):
        return jax.lax.reduce_window(y, -jnp.inf, jax.lax.max,
                                     (1, 1, 2, 2), (1, 1, 2, 2), "VALID")

    y = x
    for i, name in enumerate(["conv1", "conv2", "conv3", "conv4"]):
        w, b, g, beta, m, v = raw[name]
        y = jnp.maximum(bn(conv(y, w, b), g, beta, m, v), 0.0)
        if i < 3:   # patch_size=8 -> pool after conv1..conv3 only
            y = pool(y)
    w6, b6 = raw["conv6"]
    return conv(y, w6, b6)


# TODO(synk): only the default AttributeNet config (layers=5, patch_size=8,
# channels=3, normalize=None) is implemented; the layers==6 and channels==1
# branches and training-mode BatchNorm statistics are not translated.


if __name__ == "__main__":
    batch, channels, spatial = 4, 3, 16

    key = jax.random.PRNGKey(0)
    k_x, k_p = jax.random.split(key)

    x = jax.random.normal(k_x, (batch, channels, spatial, spatial), jnp.float32)
    raw = init_raw_params(k_p)
    kparams = prepare_kernel_params(raw)

    out = jax.jit(attribute_net_forward)(x, kparams)
    out = jax.block_until_ready(out)

    expected = reference_forward(x, raw)
    assert out.shape == (batch, 3, spatial // 8, spatial // 8), out.shape
    max_err = float(jnp.max(jnp.abs(out - expected)))
    assert jnp.allclose(out, expected, atol=2e-3, rtol=2e-3), f"max_err={max_err}"

    print("KERNEL_OK")
</pallas_src>

<mosaic_0001>
module attributes {stable_mosaic.version = 11 : i64} {
  func.func @kernel(%arg0: i32, %arg1: memref<2x16x16x3xf32, #tpu.memory_space<vmem>>, %arg2: memref<27x8xf32, #tpu.memory_space<vmem>>, %arg3: memref<1x8xf32, #tpu.memory_space<vmem>>, %arg4: memref<72x16xf32, #tpu.memory_space<vmem>>, %arg5: memref<1x16xf32, #tpu.memory_space<vmem>>, %arg6: memref<144x32xf32, #tpu.memory_space<vmem>>, %arg7: memref<1x32xf32, #tpu.memory_space<vmem>>, %arg8: memref<288x64xf32, #tpu.memory_space<vmem>>, %arg9: memref<1x64xf32, #tpu.memory_space<vmem>>, %arg10: memref<576x3xf32, #tpu.memory_space<vmem>>, %arg11: memref<1x3xf32, #tpu.memory_space<vmem>>, %arg12: memref<2x2x2x3xf32, #tpu.memory_space<vmem>>, %arg13: memref<2x18x18x3xf32, #tpu.memory_space<vmem>>, %arg14: memref<2x10x10x8xf32, #tpu.memory_space<vmem>>, %arg15: memref<2x6x6x16xf32, #tpu.memory_space<vmem>>, %arg16: memref<2x4x4x32xf32, #tpu.memory_space<vmem>>, %arg17: memref<2x4x4x64xf32, #tpu.memory_space<vmem>>) attributes {dimension_semantics = [#tpu.dimension_semantics<parallel>], iteration_bounds = array<i64: 2>, scalar_prefetch = 0 : i64, scratch_operands = 5 : i64, tpu.core_type = #tpu.core_type<tc>, window_params = [{transform_indices = @transform_0, window_bounds = array<i64: 2, 16, 16, 3>}, {pipeline_mode = #tpu.pipeline_mode<synchronous>, transform_indices = @transform_1, window_bounds = array<i64: 27, 8>}, {pipeline_mode = #tpu.pipeline_mode<synchronous>, transform_indices = @transform_2, window_bounds = array<i64: 1, 8>}, {pipeline_mode = #tpu.pipeline_mode<synchronous>, transform_indices = @transform_3, window_bounds = array<i64: 72, 16>}, {pipeline_mode = #tpu.pipeline_mode<synchronous>, transform_indices = @transform_4, window_bounds = array<i64: 1, 16>}, {pipeline_mode = #tpu.pipeline_mode<synchronous>, transform_indices = @transform_5, window_bounds = array<i64: 144, 32>}, {pipeline_mode = #tpu.pipeline_mode<synchronous>, transform_indices = @transform_6, window_bounds = array<i64: 1, 32>}, {pipeline_mode = #tpu.pipeline_mode<synchronous>, transform_indices = @transform_7, window_bounds = array<i64: 288, 64>}, {pipeline_mode = #tpu.pipeline_mode<synchronous>, transform_indices = @transform_8, window_bounds = array<i64: 1, 64>}, {pipeline_mode = #tpu.pipeline_mode<synchronous>, transform_indices = @transform_9, window_bounds = array<i64: 576, 3>}, {pipeline_mode = #tpu.pipeline_mode<synchronous>, transform_indices = @transform_10, window_bounds = array<i64: 1, 3>}, {transform_indices = @transform_11, window_bounds = array<i64: 2, 2, 2, 3>}]} {
    %c0 = arith.constant 0 : index
    %c0_0 = arith.constant 0 : index
    %c0_1 = arith.constant 0 : index
    %c0_2 = arith.constant 0 : index
    %0 = vector.load %arg1[%c0, %c0_0, %c0_1, %c0_2] : memref<2x16x16x3xf32, #tpu.memory_space<vmem>>, vector<2x16x16x3xf32>
    %cst = arith.constant 0.000000e+00 : f32
    %1 = vector.broadcast %cst : f32 to vector<2x1x18x3xf32>
    %cst_3 = arith.constant 0.000000e+00 : f32
    %2 = vector.broadcast %cst_3 : f32 to vector<2x18x1x3xf32>
    %c0_4 = arith.constant 0 : index
    %c0_5 = arith.constant 0 : index
    %c0_6 = arith.constant 0 : index
    %c0_7 = arith.constant 0 : index
    %3 = vector.load %arg13[%c0_4, %c0_5, %c0_6, %c0_7] : memref<2x18x18x3xf32, #tpu.memory_space<vmem>>, vector<2x1x18x3xf32>
    tpu.vector_store %arg13[%c0_4, %c0_5, %c0_6, %c0_7], %1 {strides = array<i32>} : memref<2x18x18x3xf32, #tpu.memory_space<vmem>>, vector<2x1x18x3xf32>,
    %c0_8 = arith.constant 0 : index
    %c17 = arith.constant 17 : index
    %c0_9 = arith.constant 0 : index
    %c0_10 = arith.constant 0 : index
    %4 = vector.load %arg13[%c0_8, %c17, %c0_9, %c0_10] : memref<2x18x18x3xf32, #tpu.memory_space<vmem>>, vector<2x1x18x3xf32>
    tpu.vector_store %arg13[%c0_8, %c17, %c0_9, %c0_10], %1 {strides = array<i32>} : memref<2x18x18x3xf32, #tpu.memory_space<vmem>>, vector<2x1x18x3xf32>,
    %c0_11 = arith.constant 0 : index
    %c0_12 = arith.constant 0 : index
    %c0_13 = arith.constant 0 : index
    %c0_14 = arith.constant 0 : index
    %5 = vector.load %arg13[%c0_11, %c0_12, %c0_13, %c0_14] : memref<2x18x18x3xf32, #tpu.memory_space<vmem>>, vector<2x18x1x3xf32>
    tpu.vector_store %arg13[%c0_11, %c0_12, %c0_13, %c0_14], %2 {strides = array<i32>} : memref<2x18x18x3xf32, #tpu.memory_space<vmem>>, vector<2x18x1x3xf32>,
    %c0_15 = arith.constant 0 : index
    %c0_16 = arith.constant 0 : index
    %c17_17 = arith.constant 17 : index
    %c0_18 = arith.constant 0 : index
    %6 = vector.load %arg13[%c0_15, %c0_16, %c17_17, %c0_18] : memref<2x18x18x3xf32, #tpu.memory_space<vmem>>, vector<2x18x1x3xf32>
    tpu.vector_store %arg13[%c0_15, %c0_16, %c17_17, %c0_18], %2 {strides = array<i32>} : memref<2x18x18x3xf32, #tpu.memory_space<vmem>>, vector<2x18x1x3xf32>,
    %c0_19 = arith.constant 0 : index
    %c1 = arith.constant 1 : index
    %c1_20 = arith.constant 1 : index
    %c0_21 = arith.constant 0 : index
    %7 = vector.load %arg13[%c0_19, %c1, %c1_20, %c0_21] : memref<2x18x18x3xf32, #tpu.memory_space<vmem>>, vector<2x16x16x3xf32>
    tpu.vector_store %arg13[%c0_19, %c1, %c1_20, %c0_21], %0 {strides = array<i32>} : memref<2x18x18x3xf32, #tpu.memory_space<vmem>>, vector<2x16x16x3xf32>,
    %c0_22 = arith.constant 0 : index
    %c0_23 = arith.constant 0 : index
    %c0_24 = arith.constant 0 : index
    %c0_25 = arith.constant 0 : index
    %8 = vector.load %arg13[%c0_22, %c0_23, %c0_24, %c0_25] : memref<2x18x18x3xf32, #tpu.memory_space<vmem>>, vector<2x16x16x3xf32>
    %c0_26 = arith.constant 0 : index
    %c0_27 = arith.constant 0 : index
    %c1_28 = arith.constant 1 : index
    %c0_29 = arith.constant 0 : index
    %9 = vector.load %arg13[%c0_26, %c0_27, %c1_28, %c0_29] : memref<2x18x18x3xf32, #tpu.memory_space<vmem>>, vector<2x16x16x3xf32>
    %c0_30 = arith.constant 0 : index
    %c0_31 = arith.constant 0 : index
    %c2 = arith.constant 2 : index
    %c0_32 = arith.constant 0 : index
    %10 = vector.load %arg13[%c0_30, %c0_31, %c2, %c0_32] : memref<2x18x18x3xf32, #tpu.memory_space<vmem>>, vector<2x16x16x3xf32>
    %c0_33 = arith.constant 0 : index
    %c1_34 = arith.constant 1 : index
    %c0_35 = arith.constant 0 : index
    %c0_36 = arith.constant 0 : index
    %11 = vector.load %arg13[%c0_33, %c1_34, %c0_35, %c0_36] : memref<2x18x18x3xf32, #tpu.memory_space<vmem>>, vector<2x16x16x3xf32>
    %c0_37 = arith.constant 0 : index
    %c1_38 = arith.constant 1 : index
    %c1_39 = arith.constant 1 : index
    %c0_40 = arith.constant 0 : index
    %12 = vector.load %arg13[%c0_37, %c1_38, %c1_39, %c0_40] : memref<2x18x18x3xf32, #tpu.memory_space<vmem>>, vector<2x16x16x3xf32>
    %c0_41 = arith.constant 0 : index
    %c1_42 = arith.constant 1 : index
    %c2_43 = arith.constant 2 : index
    %c0_44 = arith.constant 0 : index
    %13 = vector.load %arg13[%c0_41, %c1_42, %c2_43, %c0_44] : memref<2x18x18x3xf32, #tpu.memory_space<vmem>>, vector<2x16x16x3xf32>
    %c0_45 = arith.constant 0 : index
    %c2_46 = arith.constant 2 : index
    %c0_47 = arith.constant 0 : index
    %c0_48 = arith.constant 0 : index
    %14 = vector.load %arg13[%c0_45, %c2_46, %c0_47, %c0_48] : memref<2x18x18x3xf32, #tpu.memory_space<vmem>>, vector<2x16x16x3xf32>
    %c0_49 = arith.constant 0 : index
    %c2_50 = arith.constant 2 : index
    %c1_51 = arith.constant 1 : index
    %c0_52 = arith.constant 0 : index
    %15 = vector.load %arg13[%c0_49, %c2_50, %c1_51, %c0_52] : memref<2x18x18x3xf32, #tpu.memory_space<vmem>>, vector<2x16x16x3xf32>
    %c0_53 = arith.constant 0 : index
    %c2_54 = arith.constant 2 : index
    %c2_55 = arith.constant 2 : index
    %c0_56 = arith.constant 0 : index
    %16 = vector.load %arg13[%c0_53, %c2_54, %c2_55, %c0_56] : memref<2x18x18x3xf32, #tpu.memory_space<vmem>>, vector<2x16x16x3xf32>
    %17 = tpu.concatenate %8, %9, %10, %11, %12, %13, %14, %15, %16 in 3 : vector<2x16x16x3xf32>, vector<2x16x16x3xf32>, vector<2x16x16x3xf32>, vector<2x16x16x3xf32>, vector<2x16x16x3xf32>, vector<2x16x16x3xf32>, vector<2x16x16x3xf32>, vector<2x16x16x3xf32>, vector<2x16x16x3xf32> -> vector<2x16x16x27xf32>
    %18 = vector.shape_cast %17 : vector<2x16x16x27xf32> to vector<512x27xf32>
    %c0_57 = arith.constant 0 : index
    %c0_58 = arith.constant 0 : index
    %19 = vector.load %arg2[%c0_57, %c0_58] : memref<27x8xf32, #tpu.memory_space<vmem>>, vector<27x8xf32>
    %cst_59 = arith.constant dense<0.000000e+00> : vector<512x8xf32>
    %20 = tpu.matmul %18, %19, %cst_59 {dimension_numbers = #tpu.dot_dimension_numbers<[1], [0], [0], [1], [0, 0, 1, 1], [], []>} : vector<512x27xf32>, vector<27x8xf32>, vector<512x8xf32> -> vector<512x8xf32>
    %c0_60 = arith.constant 0 : index
    %c0_61 = arith.constant 0 : index
    %21 = vector.load %arg3[%c0_60, %c0_61] : memref<1x8xf32, #tpu.memory_space<vmem>>, vector<1x8xf32>
    %22 = vector.broadcast %21 : vector<1x8xf32> to vector<512x8xf32>
    %23 = arith.addf %20, %22 : vector<512x8xf32>
    %cst_62 = arith.constant 0.000000e+00 : f32
    %24 = vector.broadcast %cst_62 : f32 to vector<512x8xf32>
    %25 = arith.maximumf %23, %24 : vector<512x8xf32>
    %26 = vector.shape_cast %25 : vector<512x8xf32> to vector<256x2x8xf32>
    %cst_63 = arith.constant dense<0xFF800000> : vector<256x8xf32>
    %27 = vector.multi_reduction <maximumf>, %26, %cst_63 [1] : vector<256x2x8xf32> to vector<256x8xf32>
    %28 = vector.shape_cast %27 : vector<256x8xf32> to vector<16x2x8x8xf32>
    %cst_64 = arith.constant dense<0xFF800000> : vector<16x8x8xf32>
    %29 = vector.multi_reduction <maximumf>, %28, %cst_64 [1] : vector<16x2x8x8xf32> to vector<16x8x8xf32>
    %30 = vector.shape_cast %29 : vector<16x8x8xf32> to vector<2x8x8x8xf32>
    %cst_65 = arith.constant 0.000000e+00 : f32
    %31 = vector.broadcast %cst_65 : f32 to vector<2x1x10x8xf32>
    %cst_66 = arith.constant 0.000000e+00 : f32
    %32 = vector.broadcast %cst_66 : f32 to vector<2x10x1x8xf32>
    %c0_67 = arith.constant 0 : index
    %c0_68 = arith.constant 0 : index
    %c0_69 = arith.constant 0 : index
    %c0_70 = arith.constant 0 : index
    %33 = vector.load %arg14[%c0_67, %c0_68, %c0_69, %c0_70] : memref<2x10x10x8xf32, #tpu.memory_space<vmem>>, vector<2x1x10x8xf32>
    tpu.vector_store %arg14[%c0_67, %c0_68, %c0_69, %c0_70], %31 {strides = array<i32>} : memref<2x10x10x8xf32, #tpu.memory_space<vmem>>, vector<2x1x10x8xf32>,
    %c0_71 = arith.constant 0 : index
    %c9 = arith.constant 9 : index
    %c0_72 = arith.constant 0 : index
    %c0_73 = arith.constant 0 : index
    %34 = vector.load %arg14[%c0_71, %c9, %c0_72, %c0_73] : memref<2x10x10x8xf32, #tpu.memory_space<vmem>>, vector<2x1x10x8xf32>
    tpu.vector_store %arg14[%c0_71, %c9, %c0_72, %c0_73], %31 {strides = array<i32>} : memref<2x10x10x8xf32, #tpu.memory_space<vmem>>, vector<2x1x10x8xf32>,
    %c0_74 = arith.constant 0 : index
    %c0_75 = arith.constant 0 : index
    %c0_76 = arith.constant 0 : index
    %c0_77 = arith.constant 0 : index
    %35 = vector.load %arg14[%c0_74, %c0_75, %c0_76, %c0_77] : memref<2x10x10x8xf32, #tpu.memory_space<vmem>>, vector<2x10x1x8xf32>
    tpu.vector_store %arg14[%c0_74, %c0_75, %c0_76, %c0_77], %32 {strides = array<i32>} : memref<2x10x10x8xf32, #tpu.memory_space<vmem>>, vector<2x10x1x8xf32>,
    %c0_78 = arith.constant 0 : index
    %c0_79 = arith.constant 0 : index
    %c9_80 = arith.constant 9 : index
    %c0_81 = arith.constant 0 : index
    %36 = vector.load %arg14[%c0_78, %c0_79, %c9_80, %c0_81] : memref<2x10x10x8xf32, #tpu.memory_space<vmem>>, vector<2x10x1x8xf32>
    tpu.vector_store %arg14[%c0_78, %c0_79, %c9_80, %c0_81], %32 {strides = array<i32>} : memref<2x10x10x8xf32, #tpu.memory_space<vmem>>, vector<2x10x1x8xf32>,
    %c0_82 = arith.constant 0 : index
    %c1_83 = arith.constant 1 : index
    %c1_84 = arith.constant 1 : index
    %c0_85 = arith.constant 0 : index
    %37 = vector.load %arg14[%c0_82, %c1_83, %c1_84, %c0_85] : memref<2x10x10x8xf32, #tpu.memory_space<vmem>>, vector<2x8x8x8xf32>
    tpu.vector_store %arg14[%c0_82, %c1_83, %c1_84, %c0_85], %30 {strides = array<i32>} : memref<2x10x10x8xf32, #tpu.memory_space<vmem>>, vector<2x8x8x8xf32>,
    %c0_86 = arith.constant 0 : index
    %c0_87 = arith.constant 0 : index
    %c0_88 = arith.constant 0 : index
    %c0_89 = arith.constant 0 : index
    %38 = vector.load %arg14[%c0_86, %c0_87, %c0_88, %c0_89] : memref<2x10x10x8xf32, #tpu.memory_space<vmem>>, vector<2x8x8x8xf32>
    %c0_90 = arith.constant 0 : index
    %c0_91 = arith.constant 0 : index
    %c1_92 = arith.constant 1 : index
    %c0_93 = arith.constant 0 : index
    %39 = vector.load %arg14[%c0_90, %c0_91, %c1_92, %c0_93] : memref<2x10x10x8xf32, #tpu.memory_space<vmem>>, vector<2x8x8x8xf32>
    %c0_94 = arith.constant 0 : index
    %c0_95 = arith.constant 0 : index
    %c2_96 = arith.constant 2 : index
    %c0_97 = arith.constant 0 : index
    %40 = vector.load %arg14[%c0_94, %c0_95, %c2_96, %c0_97] : memref<2x10x10x8xf32, #tpu.memory_space<vmem>>, vector<2x8x8x8xf32>
    %c0_98 = arith.constant 0 : index
    %c1_99 = arith.constant 1 : index
    %c0_100 = arith.constant 0 : index
    %c0_101 = arith.constant 0 : index
    %41 = vector.load %arg14[%c0_98, %c1_99, %c0_100, %c0_101] : memref<2x10x10x8xf32, #tpu.memory_space<vmem>>, vector<2x8x8x8xf32>
    %c0_102 = arith.constant 0 : index
    %c1_103 = arith.constant 1 : index
    %c1_104 = arith.constant 1 : index
    %c0_105 = arith.constant 0 : index
    %42 = vector.load %arg14[%c0_102, %c1_103, %c1_104, %c0_105] : memref<2x10x10x8xf32, #tpu.memory_space<vmem>>, vector<2x8x8x8xf32>
    %c0_106 = arith.constant 0 : index
    %c1_107 = arith.constant 1 : index
    %c2_108 = arith.constant 2 : index
    %c0_109 = arith.constant 0 : index
    %43 = vector.load %arg14[%c0_106, %c1_107, %c2_108, %c0_109] : memref<2x10x10x8xf32, #tpu.memory_space<vmem>>, vector<2x8x8x8xf32>
    %c0_110 = arith.constant 0 : index
    %c2_111 = arith.constant 2 : index
    %c0_112 = arith.constant 0 : index
    %c0_113 = arith.constant 0 : index
    %44 = vector.load %arg14[%c0_110, %c2_111, %c0_112, %c0_113] : memref<2x10x10x8xf32, #tpu.memory_space<vmem>>, vector<2x8x8x8xf32>
    %c0_114 = arith.constant 0 : index
    %c2_115 = arith.constant 2 : index
    %c1_116 = arith.constant 1 : index
    %c0_117 = arith.constant 0 : index
    %45 = vector.load %arg14[%c0_114, %c2_115, %c1_116, %c0_117] : memref<2x10x10x8xf32, #tpu.memory_space<vmem>>, vector<2x8x8x8xf32>
    %c0_118 = arith.constant 0 : index
    %c2_119 = arith.constant 2 : index
    %c2_120 = arith.constant 2 : index
    %c0_121 = arith.constant 0 : index
    %46 = vector.load %arg14[%c0_118, %c2_119, %c2_120, %c0_121] : memref<2x10x10x8xf32, #tpu.memory_space<vmem>>, vector<2x8x8x8xf32>
    %47 = tpu.concatenate %38, %39, %40, %41, %42, %43, %44, %45, %46 in 3 : vector<2x8x8x8xf32>, vector<2x8x8x8xf32>, vector<2x8x8x8xf32>, vector<2x8x8x8xf32>, vector<2x8x8x8xf32>, vector<2x8x8x8xf32>, vector<2x8x8x8xf32>, vector<2x8x8x8xf32>, vector<2x8x8x8xf32> -> vector<2x8x8x72xf32>
    %48 = vector.shape_cast %47 : vector<2x8x8x72xf32> to vector<128x72xf32>
    %c0_122 = arith.constant 0 : index
    %c0_123 = arith.constant 0 : index
    %49 = vector.load %arg4[%c0_122, %c0_123] : memref<72x16xf32, #tpu.memory_space<vmem>>, vector<72x16xf32>
    %cst_124 = arith.constant dense<0.000000e+00> : vector<128x16xf32>
    %50 = tpu.matmul %48, %49, %cst_124 {dimension_numbers = #tpu.dot_dimension_numbers<[1], [0], [0], [1], [0, 0, 1, 1], [], []>} : vector<128x72xf32>, vector<72x16xf32>, vector<128x16xf32> -> vector<128x16xf32>
    %c0_125 = arith.constant 0 : index
    %c0_126 = arith.constant 0 : index
    %51 = vector.load %arg5[%c0_125, %c0_126] : memref<1x16xf32, #tpu.memory_space<vmem>>, vector<1x16xf32>
    %52 = vector.broadcast %51 : vector<1x16xf32> to vector<128x16xf32>
    %53 = arith.addf %50, %52 : vector<128x16xf32>
    %cst_127 = arith.constant 0.000000e+00 : f32
    %54 = vector.broadcast %cst_127 : f32 to vector<128x16xf32>
    %55 = arith.maximumf %53, %54 : vector<128x16xf32>
    %56 = vector.shape_cast %55 : vector<128x16xf32> to vector<64x2x16xf32>
    %cst_128 = arith.constant dense<0xFF800000> : vector<64x16xf32>
    %57 = vector.multi_reduction <maximumf>, %56, %cst_128 [1] : vector<64x2x16xf32> to vector<64x16xf32>
    %58 = vector.shape_cast %57 : vector<64x16xf32> to vector<8x2x4x16xf32>
    %cst_129 = arith.constant dense<0xFF800000> : vector<8x4x16xf32>
    %59 = vector.multi_reduction <maximumf>, %58, %cst_129 [1] : vector<8x2x4x16xf32> to vector<8x4x16xf32>
    %60 = vector.shape_cast %59 : vector<8x4x16xf32> to vector<2x4x4x16xf32>
    %cst_130 = arith.constant 0.000000e+00 : f32
    %61 = vector.broadcast %cst_130 : f32 to vector<2x1x6x16xf32>
    %cst_131 = arith.constant 0.000000e+00 : f32
    %62 = vector.broadcast %cst_131 : f32 to vector<2x6x1x16xf32>
    %c0_132 = arith.constant 0 : index
    %c0_133 = arith.constant 0 : index
    %c0_134 = arith.constant 0 : index
    %c0_135 = arith.constant 0 : index
    %63 = vector.load %arg15[%c0_132, %c0_133, %c0_134, %c0_135] : memref<2x6x6x16xf32, #tpu.memory_space<vmem>>, vector<2x1x6x16xf32>
    tpu.vector_store %arg15[%c0_132, %c0_133, %c0_134, %c0_135], %61 {strides = array<i32>} : memref<2x6x6x16xf32, #tpu.memory_space<vmem>>, vector<2x1x6x16xf32>,
    %c0_136 = arith.constant 0 : index
    %c5 = arith.constant 5 : index
    %c0_137 = arith.constant 0 : index
    %c0_138 = arith.constant 0 : index
    %64 = vector.load %arg15[%c0_136, %c5, %c0_137, %c0_138] : memref<2x6x6x16xf32, #tpu.memory_space<vmem>>, vector<2x1x6x16xf32>
    tpu.vector_store %arg15[%c0_136, %c5, %c0_137, %c0_138], %61 {strides = array<i32>} : memref<2x6x6x16xf32, #tpu.memory_space<vmem>>, vector<2x1x6x16xf32>,
    %c0_139 = arith.constant 0 : index
    %c0_140 = arith.constant 0 : index
    %c0_141 = arith.constant 0 : index
    %c0_142 = arith.constant 0 : index
    %65 = vector.load %arg15[%c0_139, %c0_140, %c0_141, %c0_142] : memref<2x6x6x16xf32, #tpu.memory_space<vmem>>, vector<2x6x1x16xf32>
    tpu.vector_store %arg15[%c0_139, %c0_140, %c0_141, %c0_142], %62 {strides = array<i32>} : memref<2x6x6x16xf32, #tpu.memory_space<vmem>>, vector<2x6x1x16xf32>,
    %c0_143 = arith.constant 0 : index
    %c0_144 = arith.constant 0 : index
    %c5_145 = arith.constant 5 : index
    %c0_146 = arith.constant 0 : index
    %66 = vector.load %arg15[%c0_143, %c0_144, %c5_145, %c0_146] : memref<2x6x6x16xf32, #tpu.memory_space<vmem>>, vector<2x6x1x16xf32>
    tpu.vector_store %arg15[%c0_143, %c0_144, %c5_145, %c0_146], %62 {strides = array<i32>} : memref<2x6x6x16xf32, #tpu.memory_space<vmem>>, vector<2x6x1x16xf32>,
    %c0_147 = arith.constant 0 : index
    %c1_148 = arith.constant 1 : index
    %c1_149 = arith.constant 1 : index
    %c0_150 = arith.constant 0 : index
    %67 = vector.load %arg15[%c0_147, %c1_148, %c1_149, %c0_150] : memref<2x6x6x16xf32, #tpu.memory_space<vmem>>, vector<2x4x4x16xf32>
    tpu.vector_store %arg15[%c0_147, %c1_148, %c1_149, %c0_150], %60 {strides = array<i32>} : memref<2x6x6x16xf32, #tpu.memory_space<vmem>>, vector<2x4x4x16xf32>,
    %c0_151 = arith.constant 0 : index
    %c0_152 = arith.constant 0 : index
    %c0_153 = arith.constant 0 : index
    %c0_154 = arith.constant 0 : index
    %68 = vector.load %arg15[%c0_151, %c0_152, %c0_153, %c0_154] : memref<2x6x6x16xf32, #tpu.memory_space<vmem>>, vector<2x4x4x16xf32>
    %c0_155 = arith.constant 0 : index
    %c0_156 = arith.constant 0 : index
    %c1_157 = arith.constant 1 : index
    %c0_158 = arith.constant 0 : index
    %69 = vector.load %arg15[%c0_155, %c0_156, %c1_157, %c0_158] : memref<2x6x6x16xf32, #tpu.memory_space<vmem>>, vector<2x4x4x16xf32>
    %c0_159 = arith.constant 0 : index
    %c0_160 = arith.constant 0 : index
    %c2_161 = arith.constant 2 : index
    %c0_162 = arith.constant 0 : index
    %70 = vector.load %arg15[%c0_159, %c0_160, %c2_161, %c0_162] : memref<2x6x6x16xf32, #tpu.memory_space<vmem>>, vector<2x4x4x16xf32>
    %c0_163 = arith.constant 0 : index
    %c1_164 = arith.constant 1 : index
    %c0_165 = arith.constant 0 : index
    %c0_166 = arith.constant 0 : index
    %71 = vector.load %arg15[%c0_163, %c1_164, %c0_165, %c0_166] : memref<2x6x6x16xf32, #tpu.memory_space<vmem>>, vector<2x4x4x16xf32>
    %c0_167 = arith.constant 0 : index
    %c1_168 = arith.constant 1 : index
    %c1_169 = arith.constant 1 : index
    %c0_170 = arith.constant 0 : index
    %72 = vector.load %arg15[%c0_167, %c1_168, %c1_169, %c0_170] : memref<2x6x6x16xf32, #tpu.memory_space<vmem>>, vector<2x4x4x16xf32>
    %c0_171 = arith.constant 0 : index
    %c1_172 = arith.constant 1 : index
    %c2_173 = arith.constant 2 : index
    %c0_174 = arith.constant 0 : index
    %73 = vector.load %arg15[%c0_171, %c1_172, %c2_173, %c0_174] : memref<2x6x6x16xf32, #tpu.memory_space<vmem>>, vector<2x4x4x16xf32>
    %c0_175 = arith.constant 0 : index
    %c2_176 = arith.constant 2 : index
    %c0_177 = arith.constant 0 : index
    %c0_178 = arith.constant 0 : index
    %74 = vector.load %arg15[%c0_175, %c2_176, %c0_177, %c0_178] : memref<2x6x6x16xf32, #tpu.memory_space<vmem>>, vector<2x4x4x16xf32>
    %c0_179 = arith.constant 0 : index
    %c2_180 = arith.constant 2 : index
    %c1_181 = arith.constant 1 : index
    %c0_182 = arith.constant 0 : index
    %75 = vector.load %arg15[%c0_179, %c2_180, %c1_181, %c0_182] : memref<2x6x6x16xf32, #tpu.memory_space<vmem>>, vector<2x4x4x16xf32>
    %c0_183 = arith.constant 0 : index
    %c2_184 = arith.constant 2 : index
    %c2_185 = arith.constant 2 : index
    %c0_186 = arith.constant 0 : index
    %76 = vector.load %arg15[%c0_183, %c2_184, %c2_185, %c0_186] : memref<2x6x6x16xf32, #tpu.memory_space<vmem>>, vector<2x4x4x16xf32>
    %77 = tpu.concatenate %68, %69, %70, %71, %72, %73, %74, %75, %76 in 3 : vector<2x4x4x16xf32>, vector<2x4x4x16xf32>, vector<2x4x4x16xf32>, vector<2x4x4x16xf32>, vector<2x4x4x16xf32>, vector<2x4x4x16xf32>, vector<2x4x4x16xf32>, vector<2x4x4x16xf32>, vector<2x4x4x16xf32> -> vector<2x4x4x144xf32>
    %78 = vector.shape_cast %77 : vector<2x4x4x144xf32> to vector<32x144xf32>
    %c0_187 = arith.constant 0 : index
    %c0_188 = arith.constant 0 : index
    %79 = vector.load %arg6[%c0_187, %c0_188] : memref<144x32xf32, #tpu.memory_space<vmem>>, vector<144x32xf32>
    %cst_189 = arith.constant dense<0.000000e+00> : vector<32x32xf32>
    %80 = tpu.matmul %78, %79, %cst_189 {dimension_numbers = #tpu.dot_dimension_numbers<[1], [0], [0], [1], [0, 0, 1, 1], [], []>} : vector<32x144xf32>, vector<144x32xf32>, vector<32x32xf32> -> vector<32x32xf32>
    %c0_190 = arith.constant 0 : index
    %c0_191 = arith.constant 0 : index
    %81 = vector.load %arg7[%c0_190, %c0_191] : memref<1x32xf32, #tpu.memory_space<vmem>>, vector<1x32xf32>
    %82 = vector.broadcast %81 : vector<1x32xf32> to vector<32x32xf32>
    %83 = arith.addf %80, %82 : vector<32x32xf32>
    %cst_192 = arith.constant 0.000000e+00 : f32
    %84 = vector.broadcast %cst_192 : f32 to vector<32x32xf32>
    %85 = arith.maximumf %83, %84 : vector<32x32xf32>
    %86 = vector.shape_cast %85 : vector<32x32xf32> to vector<16x2x32xf32>
    %cst_193 = arith.constant dense<0xFF800000> : vector<16x32xf32>
    %87 = vector.multi_reduction <maximumf>, %86, %cst_193 [1] : vector<16x2x32xf32> to vector<16x32xf32>
    %88 = vector.shape_cast %87 : vector<16x32xf32> to vector<4x2x2x32xf32>
    %cst_194 = arith.constant dense<0xFF800000> : vector<4x2x32xf32>
    %89 = vector.multi_reduction <maximumf>, %88, %cst_194 [1] : vector<4x2x2x32xf32> to vector<4x2x32xf32>
    %90 = vector.shape_cast %89 : vector<4x2x32xf32> to vector<2x2x2x32xf32>
    %cst_195 = arith.constant 0.000000e+00 : f32
    %91 = vector.broadcast %cst_195 : f32 to vector<2x1x4x32xf32>
    %cst_196 = arith.constant 0.000000e+00 : f32
    %92 = vector.broadcast %cst_196 : f32 to vector<2x4x1x32xf32>
    %c0_197 = arith.constant 0 : index
    %c0_198 = arith.constant 0 : index
    %c0_199 = arith.constant 0 : index
    %c0_200 = arith.constant 0 : index
    %93 = vector.load %arg16[%c0_197, %c0_198, %c0_199, %c0_200] : memref<2x4x4x32xf32, #tpu.memory_space<vmem>>, vector<2x1x4x32xf32>
    tpu.vector_store %arg16[%c0_197, %c0_198, %c0_199, %c0_200], %91 {strides = array<i32>} : memref<2x4x4x32xf32, #tpu.memory_space<vmem>>, vector<2x1x4x32xf32>,
    %c0_201 = arith.constant 0 : index
    %c3 = arith.constant 3 : index
    %c0_202 = arith.constant 0 : index
    %c0_203 = arith.constant 0 : index
    %94 = vector.load %arg16[%c0_201, %c3, %c0_202, %c0_203] : memref<2x4x4x32xf32, #tpu.memory_space<vmem>>, vector<2x1x4x32xf32>
    tpu.vector_store %arg16[%c0_201, %c3, %c0_202, %c0_203], %91 {strides = array<i32>} : memref<2x4x4x32xf32, #tpu.memory_space<vmem>>, vector<2x1x4x32xf32>,
    %c0_204 = arith.constant 0 : index
    %c0_205 = arith.constant 0 : index
    %c0_206 = arith.constant 0 : index
    %c0_207 = arith.constant 0 : index
    %95 = vector.load %arg16[%c0_204, %c0_205, %c0_206, %c0_207] : memref<2x4x4x32xf32, #tpu.memory_space<vmem>>, vector<2x4x1x32xf32>
    tpu.vector_store %arg16[%c0_204, %c0_205, %c0_206, %c0_207], %92 {strides = array<i32>} : memref<2x4x4x32xf32, #tpu.memory_space<vmem>>, vector<2x4x1x32xf32>,
    %c0_208 = arith.constant 0 : index
    %c0_209 = arith.constant 0 : index
    %c3_210 = arith.constant 3 : index
    %c0_211 = arith.constant 0 : index
    %96 = vector.load %arg16[%c0_208, %c0_209, %c3_210, %c0_211] : memref<2x4x4x32xf32, #tpu.memory_space<vmem>>, vector<2x4x1x32xf32>
    tpu.vector_store %arg16[%c0_208, %c0_209, %c3_210, %c0_211], %92 {strides = array<i32>} : memref<2x4x4x32xf32, #tpu.memory_space<vmem>>, vector<2x4x1x32xf32>,
    %c0_212 = arith.constant 0 : index
    %c1_213 = arith.constant 1 : index
    %c1_214 = arith.constant 1 : index
    %c0_215 = arith.constant 0 : index
    %97 = vector.load %arg16[%c0_212, %c1_213, %c1_214, %c0_215] : memref<2x4x4x32xf32, #tpu.memory_space<vmem>>, vector<2x2x2x32xf32>
    tpu.vector_store %arg16[%c0_212, %c1_213, %c1_214, %c0_215], %90 {strides = array<i32>} : memref<2x4x4x32xf32, #tpu.memory_space<vmem>>, vector<2x2x2x32xf32>,
    %c0_216 = arith.constant 0 : index
    %c0_217 = arith.constant 0 : index
    %c0_218 = arith.constant 0 : index
    %c0_219 = arith.constant 0 : index
    %98 = vector.load %arg16[%c0_216, %c0_217, %c0_218, %c0_219] : memref<2x4x4x32xf32, #tpu.memory_space<vmem>>, vector<2x2x2x32xf32>
    %c0_220 = arith.constant 0 : index
    %c0_221 = arith.constant 0 : index
    %c1_222 = arith.constant 1 : index
    %c0_223 = arith.constant 0 : index
    %99 = vector.load %arg16[%c0_220, %c0_221, %c1_222, %c0_223] : memref<2x4x4x32xf32, #tpu.memory_space<vmem>>, vector<2x2x2x32xf32>
    %c0_224 = arith.constant 0 : index
    %c0_225 = arith.constant 0 : index
    %c2_226 = arith.constant 2 : index
    %c0_227 = arith.constant 0 : index
    %100 = vector.load %arg16[%c0_224, %c0_225, %c2_226, %c0_227] : memref<2x4x4x32xf32, #tpu.memory_space<vmem>>, vector<2x2x2x32xf32>
    %c0_228 = arith.constant 0 : index
    %c1_229 = arith.constant 1 : index
    %c0_230 = arith.constant 0 : index
    %c0_231 = arith.constant 0 : index
    %101 = vector.load %arg16[%c0_228, %c1_229, %c0_230, %c0_231] : memref<2x4x4x32xf32, #tpu.memory_space<vmem>>, vector<2x2x2x32xf32>
    %c0_232 = arith.constant 0 : index
    %c1_233 = arith.constant 1 : index
    %c1_234 = arith.constant 1 : index
    %c0_235 = arith.constant 0 : index
    %102 = vector.load %arg16[%c0_232, %c1_233, %c1_234, %c0_235] : memref<2x4x4x32xf32, #tpu.memory_space<vmem>>, vector<2x2x2x32xf32>
    %c0_236 = arith.constant 0 : index
    %c1_237 = arith.constant 1 : index
    %c2_238 = arith.constant 2 : index
    %c0_239 = arith.constant 0 : index
    %103 = vector.load %arg16[%c0_236, %c1_237, %c2_238, %c0_239] : memref<2x4x4x32xf32, #tpu.memory_space<vmem>>, vector<2x2x2x32xf32>
    %c0_240 = arith.constant 0 : index
    %c2_241 = arith.constant 2 : index
    %c0_242 = arith.constant 0 : index
    %c0_243 = arith.constant 0 : index
    %104 = vector.load %arg16[%c0_240, %c2_241, %c0_242, %c0_243] : memref<2x4x4x32xf32, #tpu.memory_space<vmem>>, vector<2x2x2x32xf32>
    %c0_244 = arith.constant 0 : index
    %c2_245 = arith.constant 2 : index
    %c1_246 = arith.constant 1 : index
    %c0_247 = arith.constant 0 : index
    %105 = vector.load %arg16[%c0_244, %c2_245, %c1_246, %c0_247] : memref<2x4x4x32xf32, #tpu.memory_space<vmem>>, vector<2x2x2x32xf32>
    %c0_248 = arith.constant 0 : index
    %c2_249 = arith.constant 2 : index
    %c2_250 = arith.constant 2 : index
    %c0_251 = arith.constant 0 : index
    %106 = vector.load %arg16[%c0_248, %c2_249, %c2_250, %c0_251] : memref<2x4x4x32xf32, #tpu.memory_space<vmem>>, vector<2x2x2x32xf32>
    %107 = tpu.concatenate %98, %99, %100, %101, %102, %103, %104, %105, %106 in 3 : vector<2x2x2x32xf32>, vector<2x2x2x32xf32>, vector<2x2x2x32xf32>, vector<2x2x2x32xf32>, vector<2x2x2x32xf32>, vector<2x2x2x32xf32>, vector<2x2x2x32xf32>, vector<2x2x2x32xf32>, vector<2x2x2x32xf32> -> vector<2x2x2x288xf32>
    %108 = vector.shape_cast %107 : vector<2x2x2x288xf32> to vector<8x288xf32>
    %c0_252 = arith.constant 0 : index
    %c0_253 = arith.constant 0 : index
    %109 = vector.load %arg8[%c0_252, %c0_253] : memref<288x64xf32, #tpu.memory_space<vmem>>, vector<288x64xf32>
    %cst_254 = arith.constant dense<0.000000e+00> : vector<8x64xf32>
    %110 = tpu.matmul %108, %109, %cst_254 {dimension_numbers = #tpu.dot_dimension_numbers<[1], [0], [0], [1], [0, 0, 1, 1], [], []>} : vector<8x288xf32>, vector<288x64xf32>, vector<8x64xf32> -> vector<8x64xf32>
    %c0_255 = arith.constant 0 : index
    %c0_256 = arith.constant 0 : index
    %111 = vector.load %arg9[%c0_255, %c0_256] : memref<1x64xf32, #tpu.memory_space<vmem>>, vector<1x64xf32>
    %112 = vector.broadcast %111 : vector<1x64xf32> to vector<8x64xf32>
    %113 = arith.addf %110, %112 : vector<8x64xf32>
    %cst_257 = arith.constant 0.000000e+00 : f32
    %114 = vector.broadcast %cst_257 : f32 to vector<8x64xf32>
    %115 = arith.maximumf %113, %114 : vector<8x64xf32>
    %116 = vector.shape_cast %115 : vector<8x64xf32> to vector<2x2x2x64xf32>
    %cst_258 = arith.constant 0.000000e+00 : f32
    %117 = vector.broadcast %cst_258 : f32 to vector<2x1x4x64xf32>
    %cst_259 = arith.constant 0.000000e+00 : f32
    %118 = vector.broadcast %cst_259 : f32 to vector<2x4x1x64xf32>
    %c0_260 = arith.constant 0 : index
    %c0_261 = arith.constant 0 : index
    %c0_262 = arith.constant 0 : index
    %c0_263 = arith.constant 0 : index
    %119 = vector.load %arg17[%c0_260, %c0_261, %c0_262, %c0_263] : memref<2x4x4x64xf32, #tpu.memory_space<vmem>>, vector<2x1x4x64xf32>
    tpu.vector_store %arg17[%c0_260, %c0_261, %c0_262, %c0_263], %117 {strides = array<i32>} : memref<2x4x4x64xf32, #tpu.memory_space<vmem>>, vector<2x1x4x64xf32>,
    %c0_264 = arith.constant 0 : index
    %c3_265 = arith.constant 3 : index
    %c0_266 = arith.constant 0 : index
    %c0_267 = arith.constant 0 : index
    %120 = vector.load %arg17[%c0_264, %c3_265, %c0_266, %c0_267] : memref<2x4x4x64xf32, #tpu.memory_space<vmem>>, vector<2x1x4x64xf32>
    tpu.vector_store %arg17[%c0_264, %c3_265, %c0_266, %c0_267], %117 {strides = array<i32>} : memref<2x4x4x64xf32, #tpu.memory_space<vmem>>, vector<2x1x4x64xf32>,
    %c0_268 = arith.constant 0 : index
    %c0_269 = arith.constant 0 : index
    %c0_270 = arith.constant 0 : index
    %c0_271 = arith.constant 0 : index
    %121 = vector.load %arg17[%c0_268, %c0_269, %c0_270, %c0_271] : memref<2x4x4x64xf32, #tpu.memory_space<vmem>>, vector<2x4x1x64xf32>
    tpu.vector_store %arg17[%c0_268, %c0_269, %c0_270, %c0_271], %118 {strides = array<i32>} : memref<2x4x4x64xf32, #tpu.memory_space<vmem>>, vector<2x4x1x64xf32>,
    %c0_272 = arith.constant 0 : index
    %c0_273 = arith.constant 0 : index
    %c3_274 = arith.constant 3 : index
    %c0_275 = arith.constant 0 : index
    %122 = vector.load %arg17[%c0_272, %c0_273, %c3_274, %c0_275] : memref<2x4x4x64xf32, #tpu.memory_space<vmem>>, vector<2x4x1x64xf32>
    tpu.vector_store %arg17[%c0_272, %c0_273, %c3_274, %c0_275], %118 {strides = array<i32>} : memref<2x4x4x64xf32, #tpu.memory_space<vmem>>, vector<2x4x1x64xf32>,
    %c0_276 = arith.constant 0 : index
    %c1_277 = arith.constant 1 : index
    %c1_278 = arith.constant 1 : index
    %c0_279 = arith.constant 0 : index
    %123 = vector.load %arg17[%c0_276, %c1_277, %c1_278, %c0_279] : memref<2x4x4x64xf32, #tpu.memory_space<vmem>>, vector<2x2x2x64xf32>
    tpu.vector_store %arg17[%c0_276, %c1_277, %c1_278, %c0_279], %116 {strides = array<i32>} : memref<2x4x4x64xf32, #tpu.memory_space<vmem>>, vector<2x2x2x64xf32>,
    %c0_280 = arith.constant 0 : index
    %c0_281 = arith.constant 0 : index
    %c0_282 = arith.constant 0 : index
    %c0_283 = arith.constant 0 : index
    %124 = vector.load %arg17[%c0_280, %c0_281, %c0_282, %c0_283] : memref<2x4x4x64xf32, #tpu.memory_space<vmem>>, vector<2x2x2x64xf32>
    %c0_284 = arith.constant 0 : index
    %c0_285 = arith.constant 0 : index
    %c1_286 = arith.constant 1 : index
    %c0_287 = arith.constant 0 : index
    %125 = vector.load %arg17[%c0_284, %c0_285, %c1_286, %c0_287] : memref<2x4x4x64xf32, #tpu.memory_space<vmem>>, vector<2x2x2x64xf32>
    %c0_288 = arith.constant 0 : index
    %c0_289 = arith.constant 0 : index
    %c2_290 = arith.constant 2 : index
    %c0_291 = arith.constant 0 : index
    %126 = vector.load %arg17[%c0_288, %c0_289, %c2_290, %c0_291] : memref<2x4x4x64xf32, #tpu.memory_space<vmem>>, vector<2x2x2x64xf32>
    %c0_292 = arith.constant 0 : index
    %c1_293 = arith.constant 1 : index
    %c0_294 = arith.constant 0 : index
    %c0_295 = arith.constant 0 : index
    %127 = vector.load %arg17[%c0_292, %c1_293, %c0_294, %c0_295] : memref<2x4x4x64xf32, #tpu.memory_space<vmem>>, vector<2x2x2x64xf32>
    %c0_296 = arith.constant 0 : index
    %c1_297 = arith.constant 1 : index
    %c1_298 = arith.constant 1 : index
    %c0_299 = arith.constant 0 : index
    %128 = vector.load %arg17[%c0_296, %c1_297, %c1_298, %c0_299] : memref<2x4x4x64xf32, #tpu.memory_space<vmem>>, vector<2x2x2x64xf32>
    %c0_300 = arith.constant 0 : index
    %c1_301 = arith.constant 1 : index
    %c2_302 = arith.constant 2 : index
    %c0_303 = arith.constant 0 : index
    %129 = vector.load %arg17[%c0_300, %c1_301, %c2_302, %c0_303] : memref<2x4x4x64xf32, #tpu.memory_space<vmem>>, vector<2x2x2x64xf32>
    %c0_304 = arith.constant 0 : index
    %c2_305 = arith.constant 2 : index
    %c0_306 = arith.constant 0 : index
    %c0_307 = arith.constant 0 : index
    %130 = vector.load %arg17[%c0_304, %c2_305, %c0_306, %c0_307] : memref<2x4x4x64xf32, #tpu.memory_space<vmem>>, vector<2x2x2x64xf32>
    %c0_308 = arith.constant 0 : index
    %c2_309 = arith.constant 2 : index
    %c1_310 = arith.constant 1 : index
    %c0_311 = arith.constant 0 : index
    %131 = vector.load %arg17[%c0_308, %c2_309, %c1_310, %c0_311] : memref<2x4x4x64xf32, #tpu.memory_space<vmem>>, vector<2x2x2x64xf32>
    %c0_312 = arith.constant 0 : index
    %c2_313 = arith.constant 2 : index
    %c2_314 = arith.constant 2 : index
    %c0_315 = arith.constant 0 : index
    %132 = vector.load %arg17[%c0_312, %c2_313, %c2_314, %c0_315] : memref<2x4x4x64xf32, #tpu.memory_space<vmem>>, vector<2x2x2x64xf32>
    %133 = tpu.concatenate %124, %125, %126, %127, %128, %129, %130, %131, %132 in 3 : vector<2x2x2x64xf32>, vector<2x2x2x64xf32>, vector<2x2x2x64xf32>, vector<2x2x2x64xf32>, vector<2x2x2x64xf32>, vector<2x2x2x64xf32>, vector<2x2x2x64xf32>, vector<2x2x2x64xf32>, vector<2x2x2x64xf32> -> vector<2x2x2x576xf32>
    %134 = vector.shape_cast %133 : vector<2x2x2x576xf32> to vector<8x576xf32>
    %c0_316 = arith.constant 0 : index
    %c0_317 = arith.constant 0 : index
    %135 = vector.load %arg10[%c0_316, %c0_317] : memref<576x3xf32, #tpu.memory_space<vmem>>, vector<576x3xf32>
    %cst_318 = arith.constant dense<0.000000e+00> : vector<8x3xf32>
    %136 = tpu.matmul %134, %135, %cst_318 {dimension_numbers = #tpu.dot_dimension_numbers<[1], [0], [0], [1], [0, 0, 1, 1], [], []>} : vector<8x576xf32>, vector<576x3xf32>, vector<8x3xf32> -> vector<8x3xf32>
    %c0_319 = arith.constant 0 : index
    %c0_320 = arith.constant 0 : index
    %137 = vector.load %arg11[%c0_319, %c0_320] : memref<1x3xf32, #tpu.memory_space<vmem>>, vector<1x3xf32>
    %138 = vector.broadcast %137 : vector<1x3xf32> to vector<8x3xf32>
    %139 = arith.addf %136, %138 : vector<8x3xf32>
    %140 = vector.shape_cast %139 : vector<8x3xf32> to vector<2x2x2x3xf32>
    %c0_321 = arith.constant 0 : index
    %c0_322 = arith.constant 0 : index
    %c0_323 = arith.constant 0 : index
    %c0_324 = arith.constant 0 : index
    %141 = vector.load %arg12[%c0_321, %c0_322, %c0_323, %c0_324] : memref<2x2x2x3xf32, #tpu.memory_space<vmem>>, vector<2x2x2x3xf32>
    tpu.vector_store %arg12[%c0_321, %c0_322, %c0_323, %c0_324], %140 {strides = array<i32>} : memref<2x2x2x3xf32, #tpu.memory_space<vmem>>, vector<2x2x2x3xf32>,
    return
  }
  func.func @transform_0(%arg0: i32) -> (i32, i32, i32, i32) {
    %c0_i32 = arith.constant 0 : i32
    %c0_i32_0 = arith.constant 0 : i32
    %c0_i32_1 = arith.constant 0 : i32
    %c0_i32_2 = arith.constant 0 : i32
    return %arg0, %c0_i32, %c0_i32_0, %c0_i32_1 : i32, i32, i32, i32
  }
  func.func @transform_1(%arg0: i32) -> (i32, i32) {
    %c0_i32 = arith.constant 0 : i32
    %c0_i32_0 = arith.constant 0 : i32
    %c0_i32_1 = arith.constant 0 : i32
    return %c0_i32, %c0_i32_0 : i32, i32
  }
  func.func @transform_2(%arg0: i32) -> (i32, i32) {
    %c0_i32 = arith.constant 0 : i32
    %c0_i32_0 = arith.constant 0 : i32
    %c0_i32_1 = arith.constant 0 : i32
    return %c0_i32, %c0_i32_0 : i32, i32
  }
  func.func @transform_3(%arg0: i32) -> (i32, i32) {
    %c0_i32 = arith.constant 0 : i32
    %c0_i32_0 = arith.constant 0 : i32
    %c0_i32_1 = arith.constant 0 : i32
    return %c0_i32, %c0_i32_0 : i32, i32
  }
  func.func @transform_4(%arg0: i32) -> (i32, i32) {
    %c0_i32 = arith.constant 0 : i32
    %c0_i32_0 = arith.constant 0 : i32
    %c0_i32_1 = arith.constant 0 : i32
    return %c0_i32, %c0_i32_0 : i32, i32
  }
  func.func @transform_5(%arg0: i32) -> (i32, i32) {
    %c0_i32 = arith.constant 0 : i32
    %c0_i32_0 = arith.constant 0 : i32
    %c0_i32_1 = arith.constant 0 : i32
    return %c0_i32, %c0_i32_0 : i32, i32
  }
  func.func @transform_6(%arg0: i32) -> (i32, i32) {
    %c0_i32 = arith.constant 0 : i32
    %c0_i32_0 = arith.constant 0 : i32
    %c0_i32_1 = arith.constant 0 : i32
    return %c0_i32, %c0_i32_0 : i32, i32
  }
  func.func @transform_7(%arg0: i32) -> (i32, i32) {
    %c0_i32 = arith.constant 0 : i32
    %c0_i32_0 = arith.constant 0 : i32
    %c0_i32_1 = arith.constant 0 : i32
    return %c0_i32, %c0_i32_0 : i32, i32
  }
  func.func @transform_8(%arg0: i32) -> (i32, i32) {
    %c0_i32 = arith.constant 0 : i32
    %c0_i32_0 = arith.constant 0 : i32
    %c0_i32_1 = arith.constant 0 : i32
    return %c0_i32, %c0_i32_0 : i32, i32
  }
  func.func @transform_9(%arg0: i32) -> (i32, i32) {
    %c0_i32 = arith.constant 0 : i32
    %c0_i32_0 = arith.constant 0 : i32
    %c0_i32_1 = arith.constant 0 : i32
    return %c0_i32, %c0_i32_0 : i32, i32
  }
  func.func @transform_10(%arg0: i32) -> (i32, i32) {
    %c0_i32 = arith.constant 0 : i32
    %c0_i32_0 = arith.constant 0 : i32
    %c0_i32_1 = arith.constant 0 : i32
    return %c0_i32, %c0_i32_0 : i32, i32
  }
  func.func @transform_11(%arg0: i32) -> (i32, i32, i32, i32) {
    %c0_i32 = arith.constant 0 : i32
    %c0_i32_0 = arith.constant 0 : i32
    %c0_i32_1 = arith.constant 0 : i32
    %c0_i32_2 = arith.constant 0 : i32
    return %arg0, %c0_i32, %c0_i32_0, %c0_i32_1 : i32, i32, i32, i32
  }
}

</mosaic_0001>

<llo_original>
// kernel: attribute_net_forward.1
$region0: #{attribute_net_forward.1}
  #allocation0 [shape = 'u32[]', space=smem, size = 0x4, offset = 0x4, fixed_abs, tag = 'smem constant byte address 0x4 - core index']
  #allocation1 [shape = 'u32[144,128]{1,0:T(1,128)}', space=vmem, size = 0x12000, scoped, tag = 'internal scratch']
  #allocation2 [shape = 'f32[2,18,18,3]{3,2,1,0:T(8,128)}', space=vmem, size = 0x6c000, scoped, tag = 'scratch operand']
  #allocation3 [shape = 'f32[2,10,10,8]{3,2,1,0:T(8,128)}', space=vmem, size = 0x28000, scoped, tag = 'scratch operand']
  #allocation4 [shape = 'f32[2,6,6,16]{3,2,1,0:T(8,128)}', space=vmem, size = 0xc000, scoped, tag = 'scratch operand']
  #allocation5 [shape = 'f32[2,4,4,32]{3,2,1,0:T(4,128)}', space=vmem, size = 0x4000, scoped, tag = 'scratch operand']
  #allocation6 [shape = 'f32[2,4,4,64]{3,2,1,0:T(4,128)}', space=vmem, size = 0x4000, scoped, tag = 'scratch operand']
  %s0 = inlined_call_operand.vmem [shape: f32[4,16,16,3], index: 0, kind: input, shape index: {}]
  %s1 = inlined_call_operand.vmem [shape: f32[27,8], index: 1, kind: input, shape index: {}]
  %s2 = inlined_call_operand.vmem [shape: f32[1,8], index: 2, kind: input, shape index: {}]
  %s3 = inlined_call_operand.vmem [shape: f32[72,16], index: 3, kind: input, shape index: {}]
  %s4 = inlined_call_operand.vmem [shape: f32[1,16], index: 4, kind: input, shape index: {}]
  %s5 = inlined_call_operand.vmem [shape: f32[144,32], index: 5, kind: input, shape index: {}]
  %s6 = inlined_call_operand.vmem [shape: f32[1,32], index: 6, kind: input, shape index: {}]
  %s7 = inlined_call_operand.vmem [shape: f32[288,64], index: 7, kind: input, shape index: {}]
  %s8 = inlined_call_operand.vmem [shape: f32[1,64], index: 8, kind: input, shape index: {}]
  %s9 = inlined_call_operand.vmem [shape: f32[576,3], index: 9, kind: input, shape index: {}]
  %s10 = inlined_call_operand.vmem [shape: f32[1,3], index: 10, kind: input, shape index: {}]
  %s11 = inlined_call_operand.vmem [shape: f32[4,2,2,3], index: 11, kind: output, shape index: {}]
  %s12 = sld [smem:[#allocation0]]
  $region77: #{attribute_net_forward.1} parent=0
    _
  %s14 = ssub.s32 1, %s12
  %s15 = scalar_select 0, %s14, %s12
  loop: start=0, step=1, limit=4
  $region2: #{attribute_net_forward.1} parent=0 // loop_pre_header
    _
  $region3: #{attribute_net_forward.1} parent=0 // loop_header
    %s17 = sphi 0, %s21
    %p18 = scmp.ge.s32.totalorder %s17, 4
    %s27 = sphi 0, %s29
    %s30 = sphi 0, %s27
    %s31 = sphi 0, %s30
    %s47 = sphi 0, %s31
    %s51 = sphi 0, %s51
    %s53 = sphi 0, %s51
    %s54 = sphi 0, %s53
    %s68 = sphi 0, %s54
    %s72 = sphi 0, %s72
    %s74 = sphi 0, %s72
    %s75 = sphi 0, %s74
    %s89 = sphi 0, %s75
    %s93 = sphi 0, %s93
    %s95 = sphi 0, %s93
    %s96 = sphi 0, %s95
    %s110 = sphi 0, %s96
    %s114 = sphi 0, %s114
    %s116 = sphi 0, %s114
    %s117 = sphi 0, %s116
    %s131 = sphi 0, %s117
    %s135 = sphi 0, %s135
    %s137 = sphi 0, %s135
    %s138 = sphi 0, %s137
    %s152 = sphi 0, %s138
    %s156 = sphi 0, %s156
    %s158 = sphi 0, %s156
    %s159 = sphi 0, %s158
    %s173 = sphi 0, %s159
    %s177 = sphi 0, %s177
    %s179 = sphi 0, %s177
    %s180 = sphi 0, %s179
    %s194 = sphi 0, %s180
    %s198 = sphi 0, %s198
    %s200 = sphi 0, %s198
    %s201 = sphi 0, %s200
    %s215 = sphi 0, %s201
    %s219 = sphi 0, %s219
    %s221 = sphi 0, %s219
    %s222 = sphi 0, %s221
    %s236 = sphi 0, %s222
    %s240 = sphi 0, %s240
    %s242 = sphi 0, %s240
    %s243 = sphi 0, %s242
    %s257 = sphi 0, %s243
    %s263 = sphi 0, %s265
    %s266 = sphi 0, %s263
    %s267 = sphi 0, %s266
    %s283 = sphi 0, %s267
  $region4: #{attribute_net_forward.1} parent=0 // loop_header_branch
    %20 = sbr.rel (%p18) target = $region8
  $region5: #{attribute_net_forward.1} parent=0 // loop_body
    %s22 = ssub.s32 %s17, 1
    %s23 = ssub.s32 %s17, 2
    %s24 = sadd.s32 %s17, 1
    %s25 = ssub.s32 %s17, %s24
    %p26 = scmp.eq.s32.totalorder %s25, 0
    %s28 = sadd.s32 %s27, 1
    %s29 = scalar_select %p26, %s27, %s28
    %p32 = pneg %p26
    %p33 = scmp.eq.s32.totalorder %s17, 1
    %p34 = por %p32, %p33
    %p35 = scmp.ne.s32.totalorder %s27, %s30
    %p36 = scmp.eq.s32.totalorder %s17, 0
    %p37 = por %p35, %p36
    %p38 = scmp.ne.s32.totalorder %s27, %s30
    %p39 = scmp.eq.s32.totalorder %s22, 1
    %p40 = por %p38, %p39
    %p41 = scmp.ne.s32.totalorder %s30, %s31
    %p42 = scmp.eq.s32.totalorder %s22, 0
    %p43 = por %p41, %p42
    %p44 = scmp.ne.s32.totalorder %s30, %s31
    %p45 = scmp.eq.s32.totalorder %s23, 1
    %p46 = por %p44, %p45
    %p48 = scmp.ne.s32.totalorder %s31, %s47
    %p49 = scmp.eq.s32.totalorder %s23, 0
    %p50 = por %p48, %p49
    %s52 = sadd.s32 %s51, 1
    %p55 = scmp.eq.s32.totalorder %s17, 1
    %p56 = scmp.ne.s32.totalorder %s51, %s53
    %p57 = scmp.eq.s32.totalorder %s17, 0
    %p58 = por %p56, %p57
    %p59 = scmp.ne.s32.totalorder %s51, %s53
    %p60 = scmp.eq.s32.totalorder %s22, 1
    %p61 = por %p59, %p60
    %p62 = scmp.ne.s32.totalorder %s53, %s54
    %p63 = scmp.eq.s32.totalorder %s22, 0
    %p64 = por %p62, %p63
    %p65 = scmp.ne.s32.totalorder %s53, %s54
    %p66 = scmp.eq.s32.totalorder %s23, 1
    %p67 = por %p65, %p66
    %p69 = scmp.ne.s32.totalorder %s54, %s68
    %p70 = scmp.eq.s32.totalorder %s23, 0
    %p71 = por %p69, %p70
    %s73 = sadd.s32 %s72, 1
    %p76 = scmp.eq.s32.totalorder %s17, 1
    %p77 = scmp.ne.s32.totalorder %s72, %s74
    %p78 = scmp.eq.s32.totalorder %s17, 0
    %p79 = por %p77, %p78
    %p80 = scmp.ne.s32.totalorder %s72, %s74
    %p81 = scmp.eq.s32.totalorder %s22, 1
    %p82 = por %p80, %p81
    %p83 = scmp.ne.s32.totalorder %s74, %s75
    %p84 = scmp.eq.s32.totalorder %s22, 0
    %p85 = por %p83, %p84
    %p86 = scmp.ne.s32.totalorder %s74, %s75
    %p87 = scmp.eq.s32.totalorder %s23, 1
    %p88 = por %p86, %p87
    %p90 = scmp.ne.s32.totalorder %s75, %s89
    %p91 = scmp.eq.s32.totalorder %s23, 0
    %p92 = por %p90, %p91
    %s94 = sadd.s32 %s93, 1
    %p97 = scmp.eq.s32.totalorder %s17, 1
    %p98 = scmp.ne.s32.totalorder %s93, %s95
    %p99 = scmp.eq.s32.totalorder %s17, 0
    %p100 = por %p98, %p99
    %p101 = scmp.ne.s32.totalorder %s93, %s95
    %p102 = scmp.eq.s32.totalorder %s22, 1
    %p103 = por %p101, %p102
    %p104 = scmp.ne.s32.totalorder %s95, %s96
    %p105 = scmp.eq.s32.totalorder %s22, 0
    %p106 = por %p104, %p105
    %p107 = scmp.ne.s32.totalorder %s95, %s96
    %p108 = scmp.eq.s32.totalorder %s23, 1
    %p109 = por %p107, %p108
    %p111 = scmp.ne.s32.totalorder %s96, %s110
    %p112 = scmp.eq.s32.totalorder %s23, 0
    %p113 = por %p111, %p112
    %s115 = sadd.s32 %s114, 1
    %p118 = scmp.eq.s32.totalorder %s17, 1
    %p119 = scmp.ne.s32.totalorder %s114, %s116
    %p120 = scmp.eq.s32.totalorder %s17, 0
    %p121 = por %p119, %p120
    %p122 = scmp.ne.s32.totalorder %s114, %s116
    %p123 = scmp.eq.s32.totalorder %s22, 1
    %p124 = por %p122, %p123
    %p125 = scmp.ne.s32.totalorder %s116, %s117
    %p126 = scmp.eq.s32.totalorder %s22, 0
    %p127 = por %p125, %p126
    %p128 = scmp.ne.s32.totalorder %s116, %s117
    %p129 = scmp.eq.s32.totalorder %s23, 1
    %p130 = por %p128, %p129
    %p132 = scmp.ne.s32.totalorder %s117, %s131
    %p133 = scmp.eq.s32.totalorder %s23, 0
    %p134 = por %p132, %p133
    %s136 = sadd.s32 %s135, 1
    %p139 = scmp.eq.s32.totalorder %s17, 1
    %p140 = scmp.ne.s32.totalorder %s135, %s137
    %p141 = scmp.eq.s32.totalorder %s17, 0
    %p142 = por %p140, %p141
    %p143 = scmp.ne.s32.totalorder %s135, %s137
    %p144 = scmp.eq.s32.totalorder %s22, 1
    %p145 = por %p143, %p144
    %p146 = scmp.ne.s32.totalorder %s137, %s138
    %p147 = scmp.eq.s32.totalorder %s22, 0
    %p148 = por %p146, %p147
    %p149 = scmp.ne.s32.totalorder %s137, %s138
    %p150 = scmp.eq.s32.totalorder %s23, 1
    %p151 = por %p149, %p150
    %p153 = scmp.ne.s32.totalorder %s138, %s152
    %p154 = scmp.eq.s32.totalorder %s23, 0
    %p155 = por %p153, %p154
    %s157 = sadd.s32 %s156, 1
    %p160 = scmp.eq.s32.totalorder %s17, 1
    %p161 = scmp.ne.s32.totalorder %s156, %s158
    %p162 = scmp.eq.s32.totalorder %s17, 0
    %p163 = por %p161, %p162
    %p164 = scmp.ne.s32.totalorder %s156, %s158
    %p165 = scmp.eq.s32.totalorder %s22, 1
    %p166 = por %p164, %p165
    %p167 = scmp.ne.s32.totalorder %s158, %s159
    %p168 = scmp.eq.s32.totalorder %s22, 0
    %p169 = por %p167, %p168
    %p170 = scmp.ne.s32.totalorder %s158, %s159
    %p171 = scmp.eq.s32.totalorder %s23, 1
    %p172 = por %p170, %p171
    %p174 = scmp.ne.s32.totalorder %s159, %s173
    %p175 = scmp.eq.s32.totalorder %s23, 0
    %p176 = por %p174, %p175
    %s178 = sadd.s32 %s177, 1
    %p181 = scmp.eq.s32.totalorder %s17, 1
    %p182 = scmp.ne.s32.totalorder %s177, %s179
    %p183 = scmp.eq.s32.totalorder %s17, 0
    %p184 = por %p182, %p183
    %p185 = scmp.ne.s32.totalorder %s177, %s179
    %p186 = scmp.eq.s32.totalorder %s22, 1
    %p187 = por %p185, %p186
    %p188 = scmp.ne.s32.totalorder %s179, %s180
    %p189 = scmp.eq.s32.totalorder %s22, 0
    %p190 = por %p188, %p189
    %p191 = scmp.ne.s32.totalorder %s179, %s180
    %p192 = scmp.eq.s32.totalorder %s23, 1
    %p193 = por %p191, %p192
    %p195 = scmp.ne.s32.totalorder %s180, %s194
    %p196 = scmp.eq.s32.totalorder %s23, 0
    %p197 = por %p195, %p196
    %s199 = sadd.s32 %s198, 1
    %p202 = scmp.eq.s32.totalorder %s17, 1
    %p203 = scmp.ne.s32.totalorder %s198, %s200
    %p204 = scmp.eq.s32.totalorder %s17, 0
    %p205 = por %p203, %p204
    %p206 = scmp.ne.s32.totalorder %s198, %s200
    %p207 = scmp.eq.s32.totalorder %s22, 1
    %p208 = por %p206, %p207
    %p209 = scmp.ne.s32.totalorder %s200, %s201
    %p210 = scmp.eq.s32.totalorder %s22, 0
    %p211 = por %p209, %p210
    %p212 = scmp.ne.s32.totalorder %s200, %s201
    %p213 = scmp.eq.s32.totalorder %s23, 1
    %p214 = por %p212, %p213
    %p216 = scmp.ne.s32.totalorder %s201, %s215
    %p217 = scmp.eq.s32.totalorder %s23, 0
    %p218 = por %p216, %p217
    %s220 = sadd.s32 %s219, 1
    %p223 = scmp.eq.s32.totalorder %s17, 1
    %p224 = scmp.ne.s32.totalorder %s219, %s221
    %p225 = scmp.eq.s32.totalorder %s17, 0
    %p226 = por %p224, %p225
    %p227 = scmp.ne.s32.totalorder %s219, %s221
    %p228 = scmp.eq.s32.totalorder %s22, 1
    %p229 = por %p227, %p228
    %p230 = scmp.ne.s32.totalorder %s221, %s222
    %p231 = scmp.eq.s32.totalorder %s22, 0
    %p232 = por %p230, %p231
    %p233 = scmp.ne.s32.totalorder %s221, %s222
    %p234 = scmp.eq.s32.totalorder %s23, 1
    %p235 = por %p233, %p234
    %p237 = scmp.ne.s32.totalorder %s222, %s236
    %p238 = scmp.eq.s32.totalorder %s23, 0
    %p239 = por %p237, %p238
    %s241 = sadd.s32 %s240, 1
    %p244 = scmp.eq.s32.totalorder %s17, 1
    %p245 = scmp.ne.s32.totalorder %s240, %s242
    %p246 = scmp.eq.s32.totalorder %s17, 0
    %p247 = por %p245, %p246
    %p248 = scmp.ne.s32.totalorder %s240, %s242
    %p249 = scmp.eq.s32.totalorder %s22, 1
    %p250 = por %p248, %p249
    %p251 = scmp.ne.s32.totalorder %s242, %s243
    %p252 = scmp.eq.s32.totalorder %s22, 0
    %p253 = por %p251, %p252
    %p254 = scmp.ne.s32.totalorder %s242, %s243
    %p255 = scmp.eq.s32.totalorder %s23, 1
    %p256 = por %p254, %p255
    %p258 = scmp.ne.s32.totalorder %s243, %s257
    %p259 = scmp.eq.s32.totalorder %s23, 0
    %p260 = por %p258, %p259
    %s261 = ssub.s32 %s17, %s24
    %p262 = scmp.eq.s32.totalorder %s261, 0
    %s264 = sadd.s32 %s263, 1
    %s265 = scalar_select %p262, %s263, %s264
    %p268 = pneg %p262
    %p269 = scmp.eq.s32.totalorder %s17, 1
    %p270 = por %p268, %p269
    %p271 = scmp.ne.s32.totalorder %s263, %s266
    %p272 = scmp.eq.s32.totalorder %s17, 0
    %p273 = por %p271, %p272
    %p274 = scmp.ne.s32.totalorder %s263, %s266
    %p275 = scmp.eq.s32.totalorder %s22, 1
    %p276 = por %p274, %p275
    %p277 = scmp.ne.s32.totalorder %s266, %s267
    %p278 = scmp.eq.s32.totalorder %s22, 0
    %p279 = por %p277, %p278
    %p280 = scmp.ne.s32.totalorder %s266, %s267
    %p281 = scmp.eq.s32.totalorder %s23, 1
    %p282 = por %p280, %p281
    %p284 = scmp.ne.s32.totalorder %s267, %s283
    %p285 = scmp.eq.s32.totalorder %s23, 0
    %p286 = por %p284, %p285
    %p287 = scmp.le.s32.totalorder 1, %s17
    %p288 = scmp.lt.s32.totalorder %s17, 3
    %p289 = pnand %p287, %p288
    %p290 = pneg %p289
    // Predicated region
    $region9: #{attribute_net_forward.1} parent=5 // pred_check
      _
    $region10: #{attribute_net_forward.1} parent=5 // pred_check_branch
      %292 = sbr.rel (%p289) target = $region12
    $region11: #{attribute_net_forward.1} parent=5 // pred_region
      %s293 = ssub.s32 %s17, 1
      // Predicated region
      $region13: #{attribute_net_forward.1} parent=11 // pred_check
        %p294 = pneg %p64
      $region14: #{attribute_net_forward.1} parent=11 // pred_check_branch
        %296 = sbr.rel (%p294) target = $region16
      $region15: #{attribute_net_forward.1} parent=11 // pred_region
        _
      $region16: #{attribute_net_forward.1} parent=11 // pred_fallthru
        _
      // Predicated region
      $region17: #{attribute_net_forward.1} parent=11 // pred_check
        %p297 = pneg %p85
      $region18: #{attribute_net_forward.1} parent=11 // pred_check_branch
        %299 = sbr.rel (%p297) target = $region20
      $region19: #{attribute_net_forward.1} parent=11 // pred_region
        _
      $region20: #{attribute_net_forward.1} parent=11 // pred_fallthru
        _
      // Predicated region
      $region21: #{attribute_net_forward.1} parent=11 // pred_check
        %p300 = pneg %p106
      $region22: #{attribute_net_forward.1} parent=11 // pred_check_branch
        %302 = sbr.rel (%p300) target = $region24
      $region23: #{attribute_net_forward.1} parent=11 // pred_region
        _
      $region24: #{attribute_net_forward.1} parent=11 // pred_fallthru
        _
      // Predicated region
      $region25: #{attribute_net_forward.1} parent=11 // pred_check
        %p303 = pneg %p127
      $region26: #{attribute_net_forward.1} parent=11 // pred_check_branch
        %305 = sbr.rel (%p303) target = $region28
      $region27: #{attribute_net_forward.1} parent=11 // pred_region
        _
      $region28: #{attribute_net_forward.1} parent=11 // pred_fallthru
        _
      // Predicated region
      $region29: #{attribute_net_forward.1} parent=11 // pred_check
        %p306 = pneg %p148
      $region30: #{attribute_net_forward.1} parent=11 // pred_check_branch
        %308 = sbr.rel (%p306) target = $region32
      $region31: #{attribute_net_forward.1} parent=11 // pred_region
        _
      $region32: #{attribute_net_forward.1} parent=11 // pred_fallthru
        _
      // Predicated region
      $region33: #{attribute_net_forward.1} parent=11 // pred_check
        %p309 = pneg %p169
      $region34: #{attribute_net_forward.1} parent=11 // pred_check_branch
        %311 = sbr.rel (%p309) target = $region36
      $region35: #{attribute_net_forward.1} parent=11 // pred_region
        _
      $region36: #{attribute_net_forward.1} parent=11 // pred_fallthru
        _
      // Predicated region
      $region37: #{attribute_net_forward.1} parent=11 // pred_check
        %p312 = pneg %p190
      $region38: #{attribute_net_forward.1} parent=11 // pred_check_branch
        %314 = sbr.rel (%p312) target = $region40
      $region39: #{attribute_net_forward.1} parent=11 // pred_region
        _
      $region40: #{attribute_net_forward.1} parent=11 // pred_fallthru
        _
      // Predicated region
      $region41: #{attribute_net_forward.1} parent=11 // pred_check
        %p315 = pneg %p211
      $region42: #{attribute_net_forward.1} parent=11 // pred_check_branch
        %317 = sbr.rel (%p315) target = $region44
      $region43: #{attribute_net_forward.1} parent=11 // pred_region
        _
      $region44: #{attribute_net_forward.1} parent=11 // pred_fallthru
        _
      // Predicated region
      $region45: #{attribute_net_forward.1} parent=11 // pred_check
        %p318 = pneg %p232
      $region46: #{attribute_net_forward.1} parent=11 // pred_check_branch
        %320 = sbr.rel (%p318) target = $region48
      $region47: #{attribute_net_forward.1} parent=11 // pred_region
        _
      $region48: #{attribute_net_forward.1} parent=11 // pred_fallthru
        _
      // Predicated region
      $region49: #{attribute_net_forward.1} parent=11 // pred_check
        %p321 = pneg %p253
      $region50: #{attribute_net_forward.1} parent=11 // pred_check_branch
        %323 = sbr.rel (%p321) target = $region52
      $region51: #{attribute_net_forward.1} parent=11 // pred_region
        _
      $region52: #{attribute_net_forward.1} parent=11 // pred_fallthru
        _
    $region12: #{attribute_net_forward.1} parent=5 // pred_fallthru
      _
    %p324 = scmp.lt.s32.totalorder %s17, 2
    // Predicated region
    $region53: #{attribute_net_forward.1} parent=5 // pred_check
      %p325 = pneg %p324
    $region54: #{attribute_net_forward.1} parent=5 // pred_check_branch
      %327 = sbr.rel (%p325) target = $region56
    $region55: #{attribute_net_forward.1} parent=5 // pred_region
      // Predicated region
      $region57: #{attribute_net_forward.1} parent=55 // pred_check
        %p328 = pneg %p37
      $region58: #{attribute_net_forward.1} parent=55 // pred_check_branch
        %330 = sbr.rel (%p328) target = $region60
      $region59: #{attribute_net_forward.1} parent=55 // pred_region
        %s331 = smul.u32 2, %s17
        %p332 = scmp.lt.s32.totalorder %s331, 3
        %s333 = scalar_select %p332, %s331, 3
        %s334 = smul.addr %s333, 32
        %s335 = smul.addr %s334, 8
        %s336 = scalar_lea.vmem %s0, %s335
        %s337 = smul.u32 2, %s17
      $region60: #{attribute_net_forward.1} parent=55 // pred_fallthru
        _
    $region56: #{attribute_net_forward.1} parent=5 // pred_fallthru
      _
    %p338 = scmp.le.s32.totalorder 1, %s17
    %p339 = scmp.lt.s32.totalorder %s17, 3
    %p340 = pnand %p338, %p339
    %p341 = pneg %p340
    // Predicated region
    $region61: #{attribute_net_forward.1} parent=5 // pred_check
      _
    $region62: #{attribute_net_forward.1} parent=5 // pred_check_branch
      %343 = sbr.rel (%p340) target = $region64
    $region63: #{attribute_net_forward.1} parent=5 // pred_region
      %s344 = ssub.s32 %s17, 1
      %s345 = smul.u32 2, %s22
      %p346 = scmp.lt.s32.totalorder %s345, 3
      %s347 = scalar_select %p346, %s345, 3
      %s348 = smul.addr %s347, 32
      %s349 = smul.addr %s348, 8
      %s350 = scalar_lea.vmem %s0, %s349
      %p351 = pneg %p43
      %p352 = pneg %p40
      %p353 = pneg %p64
      %p354 = pneg %p61
      %p355 = pneg %p85
      %p356 = pneg %p82
      %p357 = pneg %p106
      %p358 = pneg %p103
      %p359 = pneg %p127
      %p360 = pneg %p124
      %p361 = pneg %p148
      %p362 = pneg %p145
      %p363 = pneg %p169
      %p364 = pneg %p166
      %p365 = pneg %p190
      %p366 = pneg %p187
      %p367 = pneg %p211
      %p368 = pneg %p208
      %p369 = pneg %p232
      %p370 = pneg %p229
      %p371 = pneg %p253
      %p372 = pneg %p250
      %p373 = pneg %p279
      %p374 = pneg %p276
      %s375 = smul.u32 2, %s22
      %p376 = scmp.lt.s32.totalorder %s375, 3
      %s377 = scalar_select %p376, %s375, 3
      %s378 = smul.addr %s377, 2
      %s379 = smul.addr %s378, 2
      %s380 = scalar_lea.vmem %s11, %s379
      %s381 = smul.u32 2, %s22
      %p382 = scmp.lt.s32.totalorder %s381, 3
      %s383 = scalar_select %p382, %s381, 3
      %s384 = smul.addr %s383, 32
      %s385 = smul.addr %s384, 8
      %s386 = scalar_lea.vmem %s0, %s385
      %s387 = smul.u32 2, %s22
      %s388 = smul.u32 2, %s22
      %p389 = scmp.lt.s32.totalorder %s388, 3
      %s390 = scalar_select %p389, %s388, 3
      %s391 = smul.addr %s390, 2
      %s392 = smul.addr %s391, 2
      %s393 = scalar_lea.vmem %s11, %s392
      %s394 = smul.u32 2, %s22
      %v395 = vld [vmem:[%s386] sm:$0xff]
      %v396 = vld [vmem:[%s386 + $0x8] sm:$0xff]
      %v397 = vld [vmem:[%s386 + $0x10] sm:$0xff]
      %v398 = vld [vmem:[%s386 + $0x18] sm:$0xff]
      %v399 = vld [vmem:[%s386 + $0x20] sm:$0xff]
      %v400 = vld [vmem:[%s386 + $0x28] sm:$0xff]
      %v401 = vld [vmem:[%s386 + $0x30] sm:$0xff]
      %v402 = vld [vmem:[%s386 + $0x38] sm:$0xff]
      %v403 = vld [vmem:[%s386 + $0x40] sm:$0xff]
      %v404 = vld [vmem:[%s386 + $0x48] sm:$0xff]
      %v405 = vld [vmem:[%s386 + $0x50] sm:$0xff]
      %v406 = vld [vmem:[%s386 + $0x58] sm:$0xff]
      %v407 = vld [vmem:[%s386 + $0x60] sm:$0xff]
      %v408 = vld [vmem:[%s386 + $0x68] sm:$0xff]
      %v409 = vld [vmem:[%s386 + $0x70] sm:$0xff]
      %v410 = vld [vmem:[%s386 + $0x78] sm:$0xff]
      %v411 = vld [vmem:[%s386 + $0x80] sm:$0xff]
      %v412 = vld [vmem:[%s386 + $0x88] sm:$0xff]
      %v413 = vld [vmem:[%s386 + $0x90] sm:$0xff]
      %v414 = vld [vmem:[%s386 + $0x98] sm:$0xff]
      %v415 = vld [vmem:[%s386 + $0xa0] sm:$0xff]
      %v416 = vld [vmem:[%s386 + $0xa8] sm:$0xff]
      %v417 = vld [vmem:[%s386 + $0xb0] sm:$0xff]
      %v418 = vld [vmem:[%s386 + $0xb8] sm:$0xff]
      %v419 = vld [vmem:[%s386 + $0xc0] sm:$0xff]
      %v420 = vld [vmem:[%s386 + $0xc8] sm:$0xff]
      %v421 = vld [vmem:[%s386 + $0xd0] sm:$0xff]
      %v422 = vld [vmem:[%s386 + $0xd8] sm:$0xff]
      %v423 = vld [vmem:[%s386 + $0xe0] sm:$0xff]
      %v424 = vld [vmem:[%s386 + $0xe8] sm:$0xff]
      %v425 = vld [vmem:[%s386 + $0xf0] sm:$0xff]
      %v426 = vld [vmem:[%s386 + $0xf8] sm:$0xff]
      %v427 = vld [vmem:[%s386 + $0x100] sm:$0xff]
      %v428 = vld [vmem:[%s386 + $0x108] sm:$0xff]
      %v429 = vld [vmem:[%s386 + $0x110] sm:$0xff]
      %v430 = vld [vmem:[%s386 + $0x118] sm:$0xff]
      %v431 = vld [vmem:[%s386 + $0x120] sm:$0xff]
      %v432 = vld [vmem:[%s386 + $0x128] sm:$0xff]
      %v433 = vld [vmem:[%s386 + $0x130] sm:$0xff]
      %v434 = vld [vmem:[%s386 + $0x138] sm:$0xff]
      %v435 = vld [vmem:[%s386 + $0x140] sm:$0xff]
      %v436 = vld [vmem:[%s386 + $0x148] sm:$0xff]
      %v437 = vld [vmem:[%s386 + $0x150] sm:$0xff]
      %v438 = vld [vmem:[%s386 + $0x158] sm:$0xff]
      %v439 = vld [vmem:[%s386 + $0x160] sm:$0xff]
      %v440 = vld [vmem:[%s386 + $0x168] sm:$0xff]
      %v441 = vld [vmem:[%s386 + $0x170] sm:$0xff]
      %v442 = vld [vmem:[%s386 + $0x178] sm:$0xff]
      %v443 = vld [vmem:[%s386 + $0x180] sm:$0xff]
      %v444 = vld [vmem:[%s386 + $0x188] sm:$0xff]
      %v445 = vld [vmem:[%s386 + $0x190] sm:$0xff]
      %v446 = vld [vmem:[%s386 + $0x198] sm:$0xff]
      %v447 = vld [vmem:[%s386 + $0x1a0] sm:$0xff]
      %v448 = vld [vmem:[%s386 + $0x1a8] sm:$0xff]
      %v449 = vld [vmem:[%s386 + $0x1b0] sm:$0xff]
      %v450 = vld [vmem:[%s386 + $0x1b8] sm:$0xff]
      %v451 = vld [vmem:[%s386 + $0x1c0] sm:$0xff]
      %v452 = vld [vmem:[%s386 + $0x1c8] sm:$0xff]
      %v453 = vld [vmem:[%s386 + $0x1d0] sm:$0xff]
      %v454 = vld [vmem:[%s386 + $0x1d8] sm:$0xff]
      %v455 = vld [vmem:[%s386 + $0x1e0] sm:$0xff]
      %v456 = vld [vmem:[%s386 + $0x1e8] sm:$0xff]
      %v457 = vld [vmem:[%s386 + $0x1f0] sm:$0xff]
      %v458 = vld [vmem:[%s386 + $0x1f8] sm:$0xff]
      %vm459 = vcmask 23552
      %460 = vst.msk [vmem:[#allocation2] sm:$0xff] %vm459, 0.0
      %461 = vst.msk [vmem:[#allocation2 + $0x8] sm:$0xff] %vm459, 0.0
      %vm462 = vcmask 17408
      %463 = vst.msk [vmem:[#allocation2 + $0x10] sm:$0x3] %vm462, 0.0
      %464 = vst.msk [vmem:[#allocation2 + $0x1b0] sm:$0xff] %vm459, 0.0
      %465 = vst.msk [vmem:[#allocation2 + $0x1b8] sm:$0xff] %vm459, 0.0
      %466 = vst.msk [vmem:[#allocation2 + $0x1c0] sm:$0x3] %vm462, 0.0
      %s467 = scalar_lea.vmem [#allocation2], 408
      %468 = vst.msk [vmem:[%s467] sm:$0xff] %vm459, 0.0
      %469 = vst.msk [vmem:[%s467 + $0x8] sm:$0xff] %vm459, 0.0
      %470 = vst.msk [vmem:[%s467 + $0x10] sm:$0x3] %vm462, 0.0
      %471 = vst.msk [vmem:[%s467 + $0x1b0] sm:$0xff] %vm459, 0.0
      %472 = vst.msk [vmem:[%s467 + $0x1b8] sm:$0xff] %vm459, 0.0
      %473 = vst.msk [vmem:[%s467 + $0x1c0] sm:$0x3] %vm462, 0.0
      %vm474 = vcmask 16384
      %475 = vst.msk [vmem:[#allocation2] sm:$0x1] %vm474, 0.0
      %476 = vst.msk [vmem:[#allocation2 + $0x18] sm:$0x1] %vm474, 0.0
      %477 = vst.msk [vmem:[#allocation2 + $0x30] sm:$0x1] %vm474, 0.0
      %478 = vst.msk [vmem:[#allocation2 + $0x48] sm:$0x1] %vm474, 0.0
      %479 = vst.msk [vmem:[#allocation2 + $0x60] sm:$0x1] %vm474, 0.0
      %480 = vst.msk [vmem:[#allocation2 + $0x78] sm:$0x1] %vm474, 0.0
      %481 = vst.msk [vmem:[#allocation2 + $0x90] sm:$0x1] %vm474, 0.0
      %482 = vst.msk [vmem:[#allocation2 + $0xa8] sm:$0x1] %vm474, 0.0
      %483 = vst.msk [vmem:[#allocation2 + $0xc0] sm:$0x1] %vm474, 0.0
      %484 = vst.msk [vmem:[#allocation2 + $0xd8] sm:$0x1] %vm474, 0.0
      %485 = vst.msk [vmem:[#allocation2 + $0xf0] sm:$0x1] %vm474, 0.0
      %486 = vst.msk [vmem:[#allocation2 + $0x108] sm:$0x1] %vm474, 0.0
      %487 = vst.msk [vmem:[#allocation2 + $0x120] sm:$0x1] %vm474, 0.0
      %488 = vst.msk [vmem:[#allocation2 + $0x138] sm:$0x1] %vm474, 0.0
      %489 = vst.msk [vmem:[#allocation2 + $0x150] sm:$0x1] %vm474, 0.0
      %490 = vst.msk [vmem:[#allocation2 + $0x168] sm:$0x1] %vm474, 0.0
      %491 = vst.msk [vmem:[#allocation2 + $0x180] sm:$0x1] %vm474, 0.0
      %492 = vst.msk [vmem:[#allocation2 + $0x198] sm:$0x1] %vm474, 0.0
      %493 = vst.msk [vmem:[#allocation2 + $0x1b0] sm:$0x1] %vm474, 0.0
      %494 = vst.msk [vmem:[#allocation2 + $0x1c8] sm:$0x1] %vm474, 0.0
      %495 = vst.msk [vmem:[#allocation2 + $0x1e0] sm:$0x1] %vm474, 0.0
      %496 = vst.msk [vmem:[#allocation2 + $0x1f8] sm:$0x1] %vm474, 0.0
      %497 = vst.msk [vmem:[#allocation2 + $0x210] sm:$0x1] %vm474, 0.0
      %498 = vst.msk [vmem:[#allocation2 + $0x228] sm:$0x1] %vm474, 0.0
      %499 = vst.msk [vmem:[#allocation2 + $0x240] sm:$0x1] %vm474, 0.0
      %500 = vst.msk [vmem:[#allocation2 + $0x258] sm:$0x1] %vm474, 0.0
      %501 = vst.msk [vmem:[#allocation2 + $0x270] sm:$0x1] %vm474, 0.0
      %502 = vst.msk [vmem:[#allocation2 + $0x288] sm:$0x1] %vm474, 0.0
      %503 = vst.msk [vmem:[#allocation2 + $0x2a0] sm:$0x1] %vm474, 0.0
      %504 = vst.msk [vmem:[#allocation2 + $0x2b8] sm:$0x1] %vm474, 0.0
      %505 = vst.msk [vmem:[#allocation2 + $0x2d0] sm:$0x1] %vm474, 0.0
      %506 = vst.msk [vmem:[#allocation2 + $0x2e8] sm:$0x1] %vm474, 0.0
      %507 = vst.msk [vmem:[#allocation2 + $0x300] sm:$0x1] %vm474, 0.0
      %508 = vst.msk [vmem:[#allocation2 + $0x318] sm:$0x1] %vm474, 0.0
      %509 = vst.msk [vmem:[#allocation2 + $0x330] sm:$0x1] %vm474, 0.0
      %510 = vst.msk [vmem:[#allocation2 + $0x348] sm:$0x1] %vm474, 0.0
      %511 = vst.msk [vmem:[#allocation2 + $0x11] sm:$0x1] %vm474, 0.0
      %512 = vst.msk [vmem:[#allocation2 + $0x29] sm:$0x1] %vm474, 0.0
      %513 = vst.msk [vmem:[#allocation2 + $0x41] sm:$0x1] %vm474, 0.0
      %514 = vst.msk [vmem:[#allocation2 + $0x59] sm:$0x1] %vm474, 0.0
      %515 = vst.msk [vmem:[#allocation2 + $0x71] sm:$0x1] %vm474, 0.0
      %516 = vst.msk [vmem:[#allocation2 + $0x89] sm:$0x1] %vm474, 0.0
      %517 = vst.msk [vmem:[#allocation2 + $0xa1] sm:$0x1] %vm474, 0.0
      %518 = vst.msk [vmem:[#allocation2 + $0xb9] sm:$0x1] %vm474, 0.0
      %519 = vst.msk [vmem:[#allocation2 + $0xd1] sm:$0x1] %vm474, 0.0
      %520 = vst.msk [vmem:[#allocation2 + $0xe9] sm:$0x1] %vm474, 0.0
      %521 = vst.msk [vmem:[#allocation2 + $0x101] sm:$0x1] %vm474, 0.0
      %522 = vst.msk [vmem:[#allocation2 + $0x119] sm:$0x1] %vm474, 0.0
      %523 = vst.msk [vmem:[#allocation2 + $0x131] sm:$0x1] %vm474, 0.0
      %524 = vst.msk [vmem:[#allocation2 + $0x149] sm:$0x1] %vm474, 0.0
      %525 = vst.msk [vmem:[#allocation2 + $0x161] sm:$0x1] %vm474, 0.0
      %526 = vst.msk [vmem:[#allocation2 + $0x179] sm:$0x1] %vm474, 0.0
      %527 = vst.msk [vmem:[#allocation2 + $0x191] sm:$0x1] %vm474, 0.0
      %528 = vst.msk [vmem:[#allocation2 + $0x1a9] sm:$0x1] %vm474, 0.0
      %529 = vst.msk [vmem:[#allocation2 + $0x1c1] sm:$0x1] %vm474, 0.0
      %530 = vst.msk [vmem:[#allocation2 + $0x1d9] sm:$0x1] %vm474, 0.0
      %531 = vst.msk [vmem:[#allocation2 + $0x1f1] sm:$0x1] %vm474, 0.0
      %532 = vst.msk [vmem:[#allocation2 + $0x209] sm:$0x1] %vm474, 0.0
      %533 = vst.msk [vmem:[#allocation2 + $0x221] sm:$0x1] %vm474, 0.0
      %534 = vst.msk [vmem:[#allocation2 + $0x239] sm:$0x1] %vm474, 0.0
      %535 = vst.msk [vmem:[#allocation2 + $0x251] sm:$0x1] %vm474, 0.0
      %536 = vst.msk [vmem:[#allocation2 + $0x269] sm:$0x1] %vm474, 0.0
      %537 = vst.msk [vmem:[#allocation2 + $0x281] sm:$0x1] %vm474, 0.0
      %538 = vst.msk [vmem:[#allocation2 + $0x299] sm:$0x1] %vm474, 0.0
      %539 = vst.msk [vmem:[#allocation2 + $0x2b1] sm:$0x1] %vm474, 0.0
      %540 = vst.msk [vmem:[#allocation2 + $0x2c9] sm:$0x1] %vm474, 0.0
      %541 = vst.msk [vmem:[#allocation2 + $0x2e1] sm:$0x1] %vm474, 0.0
      %542 = vst.msk [vmem:[#allocation2 + $0x2f9] sm:$0x1] %vm474, 0.0
      %543 = vst.msk [vmem:[#allocation2 + $0x311] sm:$0x1] %vm474, 0.0
      %544 = vst.msk [vmem:[#allocation2 + $0x329] sm:$0x1] %vm474, 0.0
      %545 = vst.msk [vmem:[#allocation2 + $0x341] sm:$0x1] %vm474, 0.0
      %546 = vst.msk [vmem:[#allocation2 + $0x359] sm:$0x1] %vm474, 0.0
      %s547 = scalar_lea.vmem [#allocation2], 24
      %548 = vst.msk [vmem:[%s547 + $0x1] sm:$0xff] %vm459, %v395
      %549 = vst.msk [vmem:[%s547 + $0x9] sm:$0xff] %vm459, %v396
      %550 = vst.msk [vmem:[%s547 + $0x19] sm:$0xff] %vm459, %v397
      %551 = vst.msk [vmem:[%s547 + $0x21] sm:$0xff] %vm459, %v398
      %552 = vst.msk [vmem:[%s547 + $0x31] sm:$0xff] %vm459, %v399
      %553 = vst.msk [vmem:[%s547 + $0x39] sm:$0xff] %vm459, %v400
      %554 = vst.msk [vmem:[%s547 + $0x49] sm:$0xff] %vm459, %v401
      %555 = vst.msk [vmem:[%s547 + $0x51] sm:$0xff] %vm459, %v402
      %556 = vst.msk [vmem:[%s547 + $0x61] sm:$0xff] %vm459, %v403
      %557 = vst.msk [vmem:[%s547 + $0x69] sm:$0xff] %vm459, %v404
      %558 = vst.msk [vmem:[%s547 + $0x79] sm:$0xff] %vm459, %v405
      %559 = vst.msk [vmem:[%s547 + $0x81] sm:$0xff] %vm459, %v406
      %560 = vst.msk [vmem:[%s547 + $0x91] sm:$0xff] %vm459, %v407
      %561 = vst.msk [vmem:[%s547 + $0x99] sm:$0xff] %vm459, %v408
      %562 = vst.msk [vmem:[%s547 + $0xa9] sm:$0xff] %vm459, %v409
      %563 = vst.msk [vmem:[%s547 + $0xb1] sm:$0xff] %vm459, %v410
      %564 = vst.msk [vmem:[%s547 + $0xc1] sm:$0xff] %vm459, %v411
      %565 = vst.msk [vmem:[%s547 + $0xc9] sm:$0xff] %vm459, %v412
      %566 = vst.msk [vmem:[%s547 + $0xd9] sm:$0xff] %vm459, %v413
      %567 = vst.msk [vmem:[%s547 + $0xe1] sm:$0xff] %vm459, %v414
      %568 = vst.msk [vmem:[%s547 + $0xf1] sm:$0xff] %vm459, %v415
      %569 = vst.msk [vmem:[%s547 + $0xf9] sm:$0xff] %vm459, %v416
      %570 = vst.msk [vmem:[%s547 + $0x109] sm:$0xff] %vm459, %v417
      %571 = vst.msk [vmem:[%s547 + $0x111] sm:$0xff] %vm459, %v418
      %572 = vst.msk [vmem:[%s547 + $0x121] sm:$0xff] %vm459, %v419
      %573 = vst.msk [vmem:[%s547 + $0x129] sm:$0xff] %vm459, %v420
      %574 = vst.msk [vmem:[%s547 + $0x139] sm:$0xff] %vm459, %v421
      %575 = vst.msk [vmem:[%s547 + $0x141] sm:$0xff] %vm459, %v422
      %576 = vst.msk [vmem:[%s547 + $0x151] sm:$0xff] %vm459, %v423
      %577 = vst.msk [vmem:[%s547 + $0x159] sm:$0xff] %vm459, %v424
      %578 = vst.msk [vmem:[%s547 + $0x169] sm:$0xff] %vm459, %v425
      %579 = vst.msk [vmem:[%s547 + $0x171] sm:$0xff] %vm459, %v426
      %580 = vst.msk [vmem:[%s547 + $0x1b1] sm:$0xff] %vm459, %v427
      %581 = vst.msk [vmem:[%s547 + $0x1b9] sm:$0xff] %vm459, %v428
      %582 = vst.msk [vmem:[%s547 + $0x1c9] sm:$0xff] %vm459, %v429
      %583 = vst.msk [vmem:[%s547 + $0x1d1] sm:$0xff] %vm459, %v430
      %584 = vst.msk [vmem:[%s547 + $0x1e1] sm:$0xff] %vm459, %v431
      %585 = vst.msk [vmem:[%s547 + $0x1e9] sm:$0xff] %vm459, %v432
      %586 = vst.msk [vmem:[%s547 + $0x1f9] sm:$0xff] %vm459, %v433
      %587 = vst.msk [vmem:[%s547 + $0x201] sm:$0xff] %vm459, %v434
      %588 = vst.msk [vmem:[%s547 + $0x211] sm:$0xff] %vm459, %v435
      %589 = vst.msk [vmem:[%s547 + $0x219] sm:$0xff] %vm459, %v436
      %590 = vst.msk [vmem:[%s547 + $0x229] sm:$0xff] %vm459, %v437
      %591 = vst.msk [vmem:[%s547 + $0x231] sm:$0xff] %vm459, %v438
      %592 = vst.msk [vmem:[%s547 + $0x241] sm:$0xff] %vm459, %v439
      %593 = vst.msk [vmem:[%s547 + $0x249] sm:$0xff] %vm459, %v440
      %594 = vst.msk [vmem:[%s547 + $0x259] sm:$0xff] %vm459, %v441
      %595 = vst.msk [vmem:[%s547 + $0x261] sm:$0xff] %vm459, %v442
      %596 = vst.msk [vmem:[%s547 + $0x271] sm:$0xff] %vm459, %v443
      %597 = vst.msk [vmem:[%s547 + $0x279] sm:$0xff] %vm459, %v444
      %598 = vst.msk [vmem:[%s547 + $0x289] sm:$0xff] %vm459, %v445
      %599 = vst.msk [vmem:[%s547 + $0x291] sm:$0xff] %vm459, %v446
      %600 = vst.msk [vmem:[%s547 + $0x2a1] sm:$0xff] %vm459, %v447
      %601 = vst.msk [vmem:[%s547 + $0x2a9] sm:$0xff] %vm459, %v448
      %602 = vst.msk [vmem:[%s547 + $0x2b9] sm:$0xff] %vm459, %v449
      %603 = vst.msk [vmem:[%s547 + $0x2c1] sm:$0xff] %vm459, %v450
      %604 = vst.msk [vmem:[%s547 + $0x2d1] sm:$0xff] %vm459, %v451
      %605 = vst.msk [vmem:[%s547 + $0x2d9] sm:$0xff] %vm459, %v452
      %606 = vst.msk [vmem:[%s547 + $0x2e9] sm:$0xff] %vm459, %v453
      %607 = vst.msk [vmem:[%s547 + $0x2f1] sm:$0xff] %vm459, %v454
      %608 = vst.msk [vmem:[%s547 + $0x301] sm:$0xff] %vm459, %v455
      %609 = vst.msk [vmem:[%s547 + $0x309] sm:$0xff] %vm459, %v456
      %610 = vst.msk [vmem:[%s547 + $0x319] sm:$0xff] %vm459, %v457
      %611 = vst.msk [vmem:[%s547 + $0x321] sm:$0xff] %vm459, %v458
      %v612 = vld [vmem:[#allocation2] sm:$0xff]
      %v613 = vld [vmem:[#allocation2 + $0x8] sm:$0xff]
      %v614 = vld [vmem:[#allocation2 + $0x18] sm:$0xff]
      %v615 = vld [vmem:[#allocation2 + $0x20] sm:$0xff]
      %v616 = vld [vmem:[#allocation2 + $0x30] sm:$0xff]
      %v617 = vld [vmem:[#allocation2 + $0x38] sm:$0xff]
      %v618 = vld [vmem:[#allocation2 + $0x48] sm:$0xff]
      %v619 = vld [vmem:[#allocation2 + $0x50] sm:$0xff]
      %v620 = vld [vmem:[#allocation2 + $0x60] sm:$0xff]
      %v621 = vld [vmem:[#allocation2 + $0x68] sm:$0xff]
      %v622 = vld [vmem:[#allocation2 + $0x78] sm:$0xff]
      %v623 = vld [vmem:[#allocation2 + $0x80] sm:$0xff]
      %v624 = vld [vmem:[#allocation2 + $0x90] sm:$0xff]
      %v625 = vld [vmem:[#allocation2 + $0x98] sm:$0xff]
      %v626 = vld [vmem:[#allocation2 + $0xa8] sm:$0xff]
      %v627 = vld [vmem:[#allocation2 + $0xb0] sm:$0xff]
      %v628 = vld [vmem:[#allocation2 + $0xc0] sm:$0xff]
      %v629 = vld [vmem:[#allocation2 + $0xc8] sm:$0xff]
      %v630 = vld [vmem:[#allocation2 + $0xd8] sm:$0xff]
      %v631 = vld [vmem:[#allocation2 + $0xe0] sm:$0xff]
      %v632 = vld [vmem:[#allocation2 + $0xf0] sm:$0xff]
      %v633 = vld [vmem:[#allocation2 + $0xf8] sm:$0xff]
      %v634 = vld [vmem:[#allocation2 + $0x108] sm:$0xff]
      %v635 = vld [vmem:[#allocation2 + $0x110] sm:$0xff]
      %v636 = vld [vmem:[#allocation2 + $0x120] sm:$0xff]
      %v637 = vld [vmem:[#allocation2 + $0x128] sm:$0xff]
      %v638 = vld [vmem:[#allocation2 + $0x138] sm:$0xff]
      %v639 = vld [vmem:[#allocation2 + $0x140] sm:$0xff]
      %v640 = vld [vmem:[#allocation2 + $0x150] sm:$0xff]
      %v641 = vld [vmem:[#allocation2 + $0x158] sm:$0xff]
      %v642 = vld [vmem:[#allocation2 + $0x168] sm:$0xff]
      %v643 = vld [vmem:[#allocation2 + $0x170] sm:$0xff]
      %v644 = vld [vmem:[#allocation2 + $0x1b0] sm:$0xff]
      %v645 = vld [vmem:[#allocation2 + $0x1b8] sm:$0xff]
      %v646 = vld [vmem:[#allocation2 + $0x1c8] sm:$0xff]
      %v647 = vld [vmem:[#allocation2 + $0x1d0] sm:$0xff]
      %v648 = vld [vmem:[#allocation2 + $0x1e0] sm:$0xff]
      %v649 = vld [vmem:[#allocation2 + $0x1e8] sm:$0xff]
      %v650 = vld [vmem:[#allocation2 + $0x1f8] sm:$0xff]
      %v651 = vld [vmem:[#allocation2 + $0x200] sm:$0xff]
      %v652 = vld [vmem:[#allocation2 + $0x210] sm:$0xff]
      %v653 = vld [vmem:[#allocation2 + $0x218] sm:$0xff]
      %v654 = vld [vmem:[#allocation2 + $0x228] sm:$0xff]
      %v655 = vld [vmem:[#allocation2 + $0x230] sm:$0xff]
      %v656 = vld [vmem:[#allocation2 + $0x240] sm:$0xff]
      %v657 = vld [vmem:[#allocation2 + $0x248] sm:$0xff]
      %v658 = vld [vmem:[#allocation2 + $0x258] sm:$0xff]
      %v659 = vld [vmem:[#allocation2 + $0x260] sm:$0xff]
      %v660 = vld [vmem:[#allocation2 + $0x270] sm:$0xff]
      %v661 = vld [vmem:[#allocation2 + $0x278] sm:$0xff]
      %v662 = vld [vmem:[#allocation2 + $0x288] sm:$0xff]
      %v663 = vld [vmem:[#allocation2 + $0x290] sm:$0xff]
      %v664 = vld [vmem:[#allocation2 + $0x2a0] sm:$0xff]
      %v665 = vld [vmem:[#allocation2 + $0x2a8] sm:$0xff]
      %v666 = vld [vmem:[#allocation2 + $0x2b8] sm:$0xff]
      %v667 = vld [vmem:[#allocation2 + $0x2c0] sm:$0xff]
      %v668 = vld [vmem:[#allocation2 + $0x2d0] sm:$0xff]
      %v669 = vld [vmem:[#allocation2 + $0x2d8] sm:$0xff]
      %v670 = vld [vmem:[#allocation2 + $0x2e8] sm:$0xff]
      %v671 = vld [vmem:[#allocation2 + $0x2f0] sm:$0xff]
      %v672 = vld [vmem:[#allocation2 + $0x300] sm:$0xff]
      %v673 = vld [vmem:[#allocation2 + $0x308] sm:$0xff]
      %v674 = vld [vmem:[#allocation2 + $0x318] sm:$0xff]
      %v675 = vld [vmem:[#allocation2 + $0x320] sm:$0xff]
      %v676 = vld [vmem:[#allocation2 + $0x1] sm:$0xff]
      %v677 = vld [vmem:[#allocation2 + $0x9] sm:$0xff]
      %v678 = vld [vmem:[#allocation2 + $0x19] sm:$0xff]
      %v679 = vld [vmem:[#allocation2 + $0x21] sm:$0xff]
      %v680 = vld [vmem:[#allocation2 + $0x31] sm:$0xff]
      %v681 = vld [vmem:[#allocation2 + $0x39] sm:$0xff]
      %v682 = vld [vmem:[#allocation2 + $0x49] sm:$0xff]
      %v683 = vld [vmem:[#allocation2 + $0x51] sm:$0xff]
      %v684 = vld [vmem:[#allocation2 + $0x61] sm:$0xff]
      %v685 = vld [vmem:[#allocation2 + $0x69] sm:$0xff]
      %v686 = vld [vmem:[#allocation2 + $0x79] sm:$0xff]
      %v687 = vld [vmem:[#allocation2 + $0x81] sm:$0xff]
      %v688 = vld [vmem:[#allocation2 + $0x91] sm:$0xff]
      %v689 = vld [vmem:[#allocation2 + $0x99] sm:$0xff]
      %v690 = vld [vmem:[#allocation2 + $0xa9] sm:$0xff]
      %v691 = vld [vmem:[#allocation2 + $0xb1] sm:$0xff]
      %v692 = vld [vmem:[#allocation2 + $0xc1] sm:$0xff]
      %v693 = vld [vmem:[#allocation2 + $0xc9] sm:$0xff]
      %v694 = vld [vmem:[#allocation2 + $0xd9] sm:$0xff]
      %v695 = vld [vmem:[#allocation2 + $0xe1] sm:$0xff]
      %v696 = vld [vmem:[#allocation2 + $0xf1] sm:$0xff]
      %v697 = vld [vmem:[#allocation2 + $0xf9] sm:$0xff]
      %v698 = vld [vmem:[#allocation2 + $0x109] sm:$0xff]
      %v699 = vld [vmem:[#allocation2 + $0x111] sm:$0xff]
      %v700 = vld [vmem:[#allocation2 + $0x121] sm:$0xff]
      %v701 = vld [vmem:[#allocation2 + $0x129] sm:$0xff]
      %v702 = vld [vmem:[#allocation2 + $0x139] sm:$0xff]
      %v703 = vld [vmem:[#allocation2 + $0x141] sm:$0xff]
      %v704 = vld [vmem:[#allocation2 + $0x151] sm:$0xff]
      %v705 = vld [vmem:[#allocation2 + $0x159] sm:$0xff]
      %v706 = vld [vmem:[#allocation2 + $0x169] sm:$0xff]
      %v707 = vld [vmem:[#allocation2 + $0x171] sm:$0xff]
      %v708 = vld [vmem:[#allocation2 + $0x1b1] sm:$0xff]
      %v709 = vld [vmem:[#allocation2 + $0x1b9] sm:$0xff]
      %v710 = vld [vmem:[#allocation2 + $0x1c9] sm:$0xff]
      %v711 = vld [vmem:[#allocation2 + $0x1d1] sm:$0xff]
      %v712 = vld [vmem:[#allocation2 + $0x1e1] sm:$0xff]
      %v713 = vld [vmem:[#allocation2 + $0x1e9] sm:$0xff]
      %v714 = vld [vmem:[#allocation2 + $0x1f9] sm:$0xff]
      %v715 = vld [vmem:[#allocation2 + $0x201] sm:$0xff]
      %v716 = vld [vmem:[#allocation2 + $0x211] sm:$0xff]
      %v717 = vld [vmem:[#allocation2 + $0x219] sm:$0xff]
      %v718 = vld [vmem:[#allocation2 + $0x229] sm:$0xff]
      %v719 = vld [vmem:[#allocation2 + $0x231] sm:$0xff]
      %v720 = vld [vmem:[#allocation2 + $0x241] sm:$0xff]
      %v721 = vld [vmem:[#allocation2 + $0x249] sm:$0xff]
      %v722 = vld [vmem:[#allocation2 + $0x259] sm:$0xff]
      %v723 = vld [vmem:[#allocation2 + $0x261] sm:$0xff]
      %v724 = vld [vmem:[#allocation2 + $0x271] sm:$0xff]
      %v725 = vld [vmem:[#allocation2 + $0x279] sm:$0xff]
      %v726 = vld [vmem:[#allocation2 + $0x289] sm:$0xff]
      %v727 = vld [vmem:[#allocation2 + $0x291] sm:$0xff]
      %v728 = vld [vmem:[#allocation2 + $0x2a1] sm:$0xff]
      %v729 = vld [vmem:[#allocation2 + $0x2a9] sm:$0xff]
      %v730 = vld [vmem:[#allocation2 + $0x2b9] sm:$0xff]
      %v731 = vld [vmem:[#allocation2 + $0x2c1] sm:$0xff]
      %v732 = vld [vmem:[#allocation2 + $0x2d1] sm:$0xff]
      %v733 = vld [vmem:[#allocation2 + $0x2d9] sm:$0xff]
      %v734 = vld [vmem:[#allocation2 + $0x2e9] sm:$0xff]
      %v735 = vld [vmem:[#allocation2 + $0x2f1] sm:$0xff]
      %v736 = vld [vmem:[#allocation2 + $0x301] sm:$0xff]
      %v737 = vld [vmem:[#allocation2 + $0x309] sm:$0xff]
      %v738 = vld [vmem:[#allocation2 + $0x319] sm:$0xff]
      %v739 = vld [vmem:[#allocation2 + $0x321] sm:$0xff]
      %v740 = vld [vmem:[#allocation2 + $0x2] sm:$0xff]
      %v741 = vld [vmem:[#allocation2 + $0xa] sm:$0xff]
      %v742 = vld [vmem:[#allocation2 + $0x1a] sm:$0xff]
      %v743 = vld [vmem:[#allocation2 + $0x22] sm:$0xff]
      %v744 = vld [vmem:[#allocation2 + $0x32] sm:$0xff]
      %v745 = vld [vmem:[#allocation2 + $0x3a] sm:$0xff]
      %v746 = vld [vmem:[#allocation2 + $0x4a] sm:$0xff]
      %v747 = vld [vmem:[#allocation2 + $0x52] sm:$0xff]
      %v748 = vld [vmem:[#allocation2 + $0x62] sm:$0xff]
      %v749 = vld [vmem:[#allocation2 + $0x6a] sm:$0xff]
      %v750 = vld [vmem:[#allocation2 + $0x7a] sm:$0xff]
      %v751 = vld [vmem:[#allocation2 + $0x82] sm:$0xff]
      %v752 = vld [vmem:[#allocation2 + $0x92] sm:$0xff]
      %v753 = vld [vmem:[#allocation2 + $0x9a] sm:$0xff]
      %v754 = vld [vmem:[#allocation2 + $0xaa] sm:$0xff]
      %v755 = vld [vmem:[#allocation2 + $0xb2] sm:$0xff]
      %v756 = vld [vmem:[#allocation2 + $0xc2] sm:$0xff]
      %v757 = vld [vmem:[#allocation2 + $0xca] sm:$0xff]
      %v758 = vld [vmem:[#allocation2 + $0xda] sm:$0xff]
      %v759 = vld [vmem:[#allocation2 + $0xe2] sm:$0xff]
      %v760 = vld [vmem:[#allocation2 + $0xf2] sm:$0xff]
      %v761 = vld [vmem:[#allocation2 + $0xfa] sm:$0xff]
      %v762 = vld [vmem:[#allocation2 + $0x10a] sm:$0xff]
      %v763 = vld [vmem:[#allocation2 + $0x112] sm:$0xff]
      %v764 = vld [vmem:[#allocation2 + $0x122] sm:$0xff]
      %v765 = vld [vmem:[#allocation2 + $0x12a] sm:$0xff]
      %v766 = vld [vmem:[#allocation2 + $0x13a] sm:$0xff]
      %v767 = vld [vmem:[#allocation2 + $0x142] sm:$0xff]
      %v768 = vld [vmem:[#allocation2 + $0x152] sm:$0xff]
      %v769 = vld [vmem:[#allocation2 + $0x15a] sm:$0xff]
      %v770 = vld [vmem:[#allocation2 + $0x16a] sm:$0xff]
      %v771 = vld [vmem:[#allocation2 + $0x172] sm:$0xff]
      %v772 = vld [vmem:[#allocation2 + $0x1b2] sm:$0xff]
      %v773 = vld [vmem:[#allocation2 + $0x1ba] sm:$0xff]
      %v774 = vld [vmem:[#allocation2 + $0x1ca] sm:$0xff]
      %v775 = vld [vmem:[#allocation2 + $0x1d2] sm:$0xff]
      %v776 = vld [vmem:[#allocation2 + $0x1e2] sm:$0xff]
      %v777 = vld [vmem:[#allocation2 + $0x1ea] sm:$0xff]
      %v778 = vld [vmem:[#allocation2 + $0x1fa] sm:$0xff]
      %v779 = vld [vmem:[#allocation2 + $0x202] sm:$0xff]
      %v780 = vld [vmem:[#allocation2 + $0x212] sm:$0xff]
      %v781 = vld [vmem:[#allocation2 + $0x21a] sm:$0xff]
      %v782 = vld [vmem:[#allocation2 + $0x22a] sm:$0xff]
      %v783 = vld [vmem:[#allocation2 + $0x232] sm:$0xff]
      %v784 = vld [vmem:[#allocation2 + $0x242] sm:$0xff]
      %v785 = vld [vmem:[#allocation2 + $0x24a] sm:$0xff]
      %v786 = vld [vmem:[#allocation2 + $0x25a] sm:$0xff]
      %v787 = vld [vmem:[#allocation2 + $0x262] sm:$0xff]
      %v788 = vld [vmem:[#allocation2 + $0x272] sm:$0xff]
      %v789 = vld [vmem:[#allocation2 + $0x27a] sm:$0xff]
      %v790 = vld [vmem:[#allocation2 + $0x28a] sm:$0xff]
      %v791 = vld [vmem:[#allocation2 + $0x292] sm:$0xff]
      %v792 = vld [vmem:[#allocation2 + $0x2a2] sm:$0xff]
      %v793 = vld [vmem:[#allocation2 + $0x2aa] sm:$0xff]
      %v794 = vld [vmem:[#allocation2 + $0x2ba] sm:$0xff]
      %v795 = vld [vmem:[#allocation2 + $0x2c2] sm:$0xff]
      %v796 = vld [vmem:[#allocation2 + $0x2d2] sm:$0xff]
      %v797 = vld [vmem:[#allocation2 + $0x2da] sm:$0xff]
      %v798 = vld [vmem:[#allocation2 + $0x2ea] sm:$0xff]
      %v799 = vld [vmem:[#allocation2 + $0x2f2] sm:$0xff]
      %v800 = vld [vmem:[#allocation2 + $0x302] sm:$0xff]
      %v801 = vld [vmem:[#allocation2 + $0x30a] sm:$0xff]
      %v802 = vld [vmem:[#allocation2 + $0x31a] sm:$0xff]
      %v803 = vld [vmem:[#allocation2 + $0x322] sm:$0xff]
      %v804 = vld [vmem:[%s547] sm:$0xff]
      %v805 = vld [vmem:[%s547 + $0x8] sm:$0xff]
      %v806 = vld [vmem:[%s547 + $0x18] sm:$0xff]
      %v807 = vld [vmem:[%s547 + $0x20] sm:$0xff]
      %v808 = vld [vmem:[%s547 + $0x30] sm:$0xff]
      %v809 = vld [vmem:[%s547 + $0x38] sm:$0xff]
      %v810 = vld [vmem:[%s547 + $0x48] sm:$0xff]
      %v811 = vld [vmem:[%s547 + $0x50] sm:$0xff]
      %v812 = vld [vmem:[%s547 + $0x60] sm:$0xff]
      %v813 = vld [vmem:[%s547 + $0x68] sm:$0xff]
      %v814 = vld [vmem:[%s547 + $0x78] sm:$0xff]
      %v815 = vld [vmem:[%s547 + $0x80] sm:$0xff]
      %v816 = vld [vmem:[%s547 + $0x90] sm:$0xff]
      %v817 = vld [vmem:[%s547 + $0x98] sm:$0xff]
      %v818 = vld [vmem:[%s547 + $0xa8] sm:$0xff]
      %v819 = vld [vmem:[%s547 + $0xb0] sm:$0xff]
      %v820 = vld [vmem:[%s547 + $0xc0] sm:$0xff]
      %v821 = vld [vmem:[%s547 + $0xc8] sm:$0xff]
      %v822 = vld [vmem:[%s547 + $0xd8] sm:$0xff]
      %v823 = vld [vmem:[%s547 + $0xe0] sm:$0xff]
      %v824 = vld [vmem:[%s547 + $0xf0] sm:$0xff]
      %v825 = vld [vmem:[%s547 + $0xf8] sm:$0xff]
      %v826 = vld [vmem:[%s547 + $0x108] sm:$0xff]
      %v827 = vld [vmem:[%s547 + $0x110] sm:$0xff]
      %v828 = vld [vmem:[%s547 + $0x120] sm:$0xff]
      %v829 = vld [vmem:[%s547 + $0x128] sm:$0xff]
      %v830 = vld [vmem:[%s547 + $0x138] sm:$0xff]
      %v831 = vld [vmem:[%s547 + $0x140] sm:$0xff]
      %v832 = vld [vmem:[%s547 + $0x150] sm:$0xff]
      %v833 = vld [vmem:[%s547 + $0x158] sm:$0xff]
      %v834 = vld [vmem:[%s547 + $0x168] sm:$0xff]
      %v835 = vld [vmem:[%s547 + $0x170] sm:$0xff]
      %v836 = vld [vmem:[%s547 + $0x1b0] sm:$0xff]
      %v837 = vld [vmem:[%s547 + $0x1b8] sm:$0xff]
      %v838 = vld [vmem:[%s547 + $0x1c8] sm:$0xff]
      %v839 = vld [vmem:[%s547 + $0x1d0] sm:$0xff]
      %v840 = vld [vmem:[%s547 + $0x1e0] sm:$0xff]
      %v841 = vld [vmem:[%s547 + $0x1e8] sm:$0xff]
      %v842 = vld [vmem:[%s547 + $0x1f8] sm:$0xff]
      %v843 = vld [vmem:[%s547 + $0x200] sm:$0xff]
      %v844 = vld [vmem:[%s547 + $0x210] sm:$0xff]
      %v845 = vld [vmem:[%s547 + $0x218] sm:$0xff]
      %v846 = vld [vmem:[%s547 + $0x228] sm:$0xff]
      %v847 = vld [vmem:[%s547 + $0x230] sm:$0xff]
      %v848 = vld [vmem:[%s547 + $0x240] sm:$0xff]
      %v849 = vld [vmem:[%s547 + $0x248] sm:$0xff]
      %v850 = vld [vmem:[%s547 + $0x258] sm:$0xff]
      %v851 = vld [vmem:[%s547 + $0x260] sm:$0xff]
      %v852 = vld [vmem:[%s547 + $0x270] sm:$0xff]
      %v853 = vld [vmem:[%s547 + $0x278] sm:$0xff]
      %v854 = vld [vmem:[%s547 + $0x288] sm:$0xff]
      %v855 = vld [vmem:[%s547 + $0x290] sm:$0xff]
      %v856 = vld [vmem:[%s547 + $0x2a0] sm:$0xff]
      %v857 = vld [vmem:[%s547 + $0x2a8] sm:$0xff]
      %v858 = vld [vmem:[%s547 + $0x2b8] sm:$0xff]
      %v859 = vld [vmem:[%s547 + $0x2c0] sm:$0xff]
      %v860 = vld [vmem:[%s547 + $0x2d0] sm:$0xff]
      %v861 = vld [vmem:[%s547 + $0x2d8] sm:$0xff]
      %v862 = vld [vmem:[%s547 + $0x2e8] sm:$0xff]
      %v863 = vld [vmem:[%s547 + $0x2f0] sm:$0xff]
      %v864 = vld [vmem:[%s547 + $0x300] sm:$0xff]
      %v865 = vld [vmem:[%s547 + $0x308] sm:$0xff]
      %v866 = vld [vmem:[%s547 + $0x318] sm:$0xff]
      %v867 = vld [vmem:[%s547 + $0x320] sm:$0xff]
      %v868 = vld [vmem:[%s547 + $0x1] sm:$0xff]
      %v869 = vld [vmem:[%s547 + $0x9] sm:$0xff]
      %v870 = vld [vmem:[%s547 + $0x19] sm:$0xff]
      %v871 = vld [vmem:[%s547 + $0x21] sm:$0xff]
      %v872 = vld [vmem:[%s547 + $0x31] sm:$0xff]
      %v873 = vld [vmem:[%s547 + $0x39] sm:$0xff]
      %v874 = vld [vmem:[%s547 + $0x49] sm:$0xff]
      %v875 = vld [vmem:[%s547 + $0x51] sm:$0xff]
      %v876 = vld [vmem:[%s547 + $0x61] sm:$0xff]
      %v877 = vld [vmem:[%s547 + $0x69] sm:$0xff]
      %v878 = vld [vmem:[%s547 + $0x79] sm:$0xff]
      %v879 = vld [vmem:[%s547 + $0x81] sm:$0xff]
      %v880 = vld [vmem:[%s547 + $0x91] sm:$0xff]
      %v881 = vld [vmem:[%s547 + $0x99] sm:$0xff]
      %v882 = vld [vmem:[%s547 + $0xa9] sm:$0xff]
      %v883 = vld [vmem:[%s547 + $0xb1] sm:$0xff]
      %v884 = vld [vmem:[%s547 + $0xc1] sm:$0xff]
      %v885 = vld [vmem:[%s547 + $0xc9] sm:$0xff]
      %v886 = vld [vmem:[%s547 + $0xd9] sm:$0xff]
      %v887 = vld [vmem:[%s547 + $0xe1] sm:$0xff]
      %v888 = vld [vmem:[%s547 + $0xf1] sm:$0xff]
      %v889 = vld [vmem:[%s547 + $0xf9] sm:$0xff]
      %v890 = vld [vmem:[%s547 + $0x109] sm:$0xff]
      %v891 = vld [vmem:[%s547 + $0x111] sm:$0xff]
      %v892 = vld [vmem:[%s547 + $0x121] sm:$0xff]
      %v893 = vld [vmem:[%s547 + $0x129] sm:$0xff]
      %v894 = vld [vmem:[%s547 + $0x139] sm:$0xff]
      %v895 = vld [vmem:[%s547 + $0x141] sm:$0xff]
      %v896 = vld [vmem:[%s547 + $0x151] sm:$0xff]
      %v897 = vld [vmem:[%s547 + $0x159] sm:$0xff]
      %v898 = vld [vmem:[%s547 + $0x169] sm:$0xff]
      %v899 = vld [vmem:[%s547 + $0x171] sm:$0xff]
      %v900 = vld [vmem:[%s547 + $0x1b1] sm:$0xff]
      %v901 = vld [vmem:[%s547 + $0x1b9] sm:$0xff]
      %v902 = vld [vmem:[%s547 + $0x1c9] sm:$0xff]
      %v903 = vld [vmem:[%s547 + $0x1d1] sm:$0xff]
      %v904 = vld [vmem:[%s547 + $0x1e1] sm:$0xff]
      %v905 = vld [vmem:[%s547 + $0x1e9] sm:$0xff]
      %v906 = vld [vmem:[%s547 + $0x1f9] sm:$0xff]
      %v907 = vld [vmem:[%s547 + $0x201] sm:$0xff]
      %v908 = vld [vmem:[%s547 + $0x211] sm:$0xff]
      %v909 = vld [vmem:[%s547 + $0x219] sm:$0xff]
      %v910 = vld [vmem:[%s547 + $0x229] sm:$0xff]
      %v911 = vld [vmem:[%s547 + $0x231] sm:$0xff]
      %v912 = vld [vmem:[%s547 + $0x241] sm:$0xff]
      %v913 = vld [vmem:[%s547 + $0x249] sm:$0xff]
      %v914 = vld [vmem:[%s547 + $0x259] sm:$0xff]
      %v915 = vld [vmem:[%s547 + $0x261] sm:$0xff]
      %v916 = vld [vmem:[%s547 + $0x271] sm:$0xff]
      %v917 = vld [vmem:[%s547 + $0x279] sm:$0xff]
      %v918 = vld [vmem:[%s547 + $0x289] sm:$0xff]
      %v919 = vld [vmem:[%s547 + $0x291] sm:$0xff]
      %v920 = vld [vmem:[%s547 + $0x2a1] sm:$0xff]
      %v921 = vld [vmem:[%s547 + $0x2a9] sm:$0xff]
      %v922 = vld [vmem:[%s547 + $0x2b9] sm:$0xff]
      %v923 = vld [vmem:[%s547 + $0x2c1] sm:$0xff]
      %v924 = vld [vmem:[%s547 + $0x2d1] sm:$0xff]
      %v925 = vld [vmem:[%s547 + $0x2d9] sm:$0xff]
      %v926 = vld [vmem:[%s547 + $0x2e9] sm:$0xff]
      %v927 = vld [vmem:[%s547 + $0x2f1] sm:$0xff]
      %v928 = vld [vmem:[%s547 + $0x301] sm:$0xff]
      %v929 = vld [vmem:[%s547 + $0x309] sm:$0xff]
      %v930 = vld [vmem:[%s547 + $0x319] sm:$0xff]
      %v931 = vld [vmem:[%s547 + $0x321] sm:$0xff]
      %v932 = vld [vmem:[%s547 + $0x2] sm:$0xff]
      %v933 = vld [vmem:[%s547 + $0xa] sm:$0xff]
      %v934 = vld [vmem:[%s547 + $0x1a] sm:$0xff]
      %v935 = vld [vmem:[%s547 + $0x22] sm:$0xff]
      %v936 = vld [vmem:[%s547 + $0x32] sm:$0xff]
      %v937 = vld [vmem:[%s547 + $0x3a] sm:$0xff]
      %v938 = vld [vmem:[%s547 + $0x4a] sm:$0xff]
      %v939 = vld [vmem:[%s547 + $0x52] sm:$0xff]
      %v940 = vld [vmem:[%s547 + $0x62] sm:$0xff]
      %v941 = vld [vmem:[%s547 + $0x6a] sm:$0xff]
      %v942 = vld [vmem:[%s547 + $0x7a] sm:$0xff]
      %v943 = vld [vmem:[%s547 + $0x82] sm:$0xff]
      %v944 = vld [vmem:[%s547 + $0x92] sm:$0xff]
      %v945 = vld [vmem:[%s547 + $0x9a] sm:$0xff]
      %v946 = vld [vmem:[%s547 + $0xaa] sm:$0xff]
      %v947 = vld [vmem:[%s547 + $0xb2] sm:$0xff]
      %v948 = vld [vmem:[%s547 + $0xc2] sm:$0xff]
      %v949 = vld [vmem:[%s547 + $0xca] sm:$0xff]
      %v950 = vld [vmem:[%s547 + $0xda] sm:$0xff]
      %v951 = vld [vmem:[%s547 + $0xe2] sm:$0xff]
      %v952 = vld [vmem:[%s547 + $0xf2] sm:$0xff]
      %v953 = vld [vmem:[%s547 + $0xfa] sm:$0xff]
      %v954 = vld [vmem:[%s547 + $0x10a] sm:$0xff]
      %v955 = vld [vmem:[%s547 + $0x112] sm:$0xff]
      %v956 = vld [vmem:[%s547 + $0x122] sm:$0xff]
      %v957 = vld [vmem:[%s547 + $0x12a] sm:$0xff]
      %v958 = vld [vmem:[%s547 + $0x13a] sm:$0xff]
      %v959 = vld [vmem:[%s547 + $0x142] sm:$0xff]
      %v960 = vld [vmem:[%s547 + $0x152] sm:$0xff]
      %v961 = vld [vmem:[%s547 + $0x15a] sm:$0xff]
      %v962 = vld [vmem:[%s547 + $0x16a] sm:$0xff]
      %v963 = vld [vmem:[%s547 + $0x172] sm:$0xff]
      %v964 = vld [vmem:[%s547 + $0x1b2] sm:$0xff]
      %v965 = vld [vmem:[%s547 + $0x1ba] sm:$0xff]
      %v966 = vld [vmem:[%s547 + $0x1ca] sm:$0xff]
      %v967 = vld [vmem:[%s547 + $0x1d2] sm:$0xff]
      %v968 = vld [vmem:[%s547 + $0x1e2] sm:$0xff]
      %v969 = vld [vmem:[%s547 + $0x1ea] sm:$0xff]
      %v970 = vld [vmem:[%s547 + $0x1fa] sm:$0xff]
      %v971 = vld [vmem:[%s547 + $0x202] sm:$0xff]
      %v972 = vld [vmem:[%s547 + $0x212] sm:$0xff]
      %v973 = vld [vmem:[%s547 + $0x21a] sm:$0xff]
      %v974 = vld [vmem:[%s547 + $0x22a] sm:$0xff]
      %v975 = vld [vmem:[%s547 + $0x232] sm:$0xff]
      %v976 = vld [vmem:[%s547 + $0x242] sm:$0xff]
      %v977 = vld [vmem:[%s547 + $0x24a] sm:$0xff]
      %v978 = vld [vmem:[%s547 + $0x25a] sm:$0xff]
      %v979 = vld [vmem:[%s547 + $0x262] sm:$0xff]
      %v980 = vld [vmem:[%s547 + $0x272] sm:$0xff]
      %v981 = vld [vmem:[%s547 + $0x27a] sm:$0xff]
      %v982 = vld [vmem:[%s547 + $0x28a] sm:$0xff]
      %v983 = vld [vmem:[%s547 + $0x292] sm:$0xff]
      %v984 = vld [vmem:[%s547 + $0x2a2] sm:$0xff]
      %v985 = vld [vmem:[%s547 + $0x2aa] sm:$0xff]
      %v986 = vld [vmem:[%s547 + $0x2ba] sm:$0xff]
      %v987 = vld [vmem:[%s547 + $0x2c2] sm:$0xff]
      %v988 = vld [vmem:[%s547 + $0x2d2] sm:$0xff]
      %v989 = vld [vmem:[%s547 + $0x2da] sm:$0xff]
      %v990 = vld [vmem:[%s547 + $0x2ea] sm:$0xff]
      %v991 = vld [vmem:[%s547 + $0x2f2] sm:$0xff]
      %v992 = vld [vmem:[%s547 + $0x302] sm:$0xff]
      %v993 = vld [vmem:[%s547 + $0x30a] sm:$0xff]
      %v994 = vld [vmem:[%s547 + $0x31a] sm:$0xff]
      %v995 = vld [vmem:[%s547 + $0x322] sm:$0xff]
      %s996 = scalar_lea.vmem [#allocation2], 48
      %v997 = vld [vmem:[%s996] sm:$0xff]
      %v998 = vld [vmem:[%s996 + $0x8] sm:$0xff]
      %v999 = vld [vmem:[%s996 + $0x18] sm:$0xff]
      %v1000 = vld [vmem:[%s996 + $0x20] sm:$0xff]
      %v1001 = vld [vmem:[%s996 + $0x30] sm:$0xff]
      %v1002 = vld [vmem:[%s996 + $0x38] sm:$0xff]
      %v1003 = vld [vmem:[%s996 + $0x48] sm:$0xff]
      %v1004 = vld [vmem:[%s996 + $0x50] sm:$0xff]
      %v1005 = vld [vmem:[%s996 + $0x60] sm:$0xff]
      %v1006 = vld [vmem:[%s996 + $0x68] sm:$0xff]
      %v1007 = vld [vmem:[%s996 + $0x78] sm:$0xff]
      %v1008 = vld [vmem:[%s996 + $0x80] sm:$0xff]
      %v1009 = vld [vmem:[%s996 + $0x90] sm:$0xff]
      %v1010 = vld [vmem:[%s996 + $0x98] sm:$0xff]
      %v1011 = vld [vmem:[%s996 + $0xa8] sm:$0xff]
      %v1012 = vld [vmem:[%s996 + $0xb0] sm:$0xff]
      %v1013 = vld [vmem:[%s996 + $0xc0] sm:$0xff]
      %v1014 = vld [vmem:[%s996 + $0xc8] sm:$0xff]
      %v1015 = vld [vmem:[%s996 + $0xd8] sm:$0xff]
      %v1016 = vld [vmem:[%s996 + $0xe0] sm:$0xff]
      %v1017 = vld [vmem:[%s996 + $0xf0] sm:$0xff]
      %v1018 = vld [vmem:[%s996 + $0xf8] sm:$0xff]
      %v1019 = vld [vmem:[%s996 + $0x108] sm:$0xff]
      %v1020 = vld [vmem:[%s996 + $0x110] sm:$0xff]
      %v1021 = vld [vmem:[%s996 + $0x120] sm:$0xff]
      %v1022 = vld [vmem:[%s996 + $0x128] sm:$0xff]
      %v1023 = vld [vmem:[%s996 + $0x138] sm:$0xff]
      %v1024 = vld [vmem:[%s996 + $0x140] sm:$0xff]
      %v1025 = vld [vmem:[%s996 + $0x150] sm:$0xff]
      %v1026 = vld [vmem:[%s996 + $0x158] sm:$0xff]
      %v1027 = vld [vmem:[%s996 + $0x168] sm:$0xff]
      %v1028 = vld [vmem:[%s996 + $0x170] sm:$0xff]
      %v1029 = vld [vmem:[%s996 + $0x1b0] sm:$0xff]
      %v1030 = vld [vmem:[%s996 + $0x1b8] sm:$0xff]
      %v1031 = vld [vmem:[%s996 + $0x1c8] sm:$0xff]
      %v1032 = vld [vmem:[%s996 + $0x1d0] sm:$0xff]
      %v1033 = vld [vmem:[%s996 + $0x1e0] sm:$0xff]
      %v1034 = vld [vmem:[%s996 + $0x1e8] sm:$0xff]
      %v1035 = vld [vmem:[%s996 + $0x1f8] sm:$0xff]
      %v1036 = vld [vmem:[%s996 + $0x200] sm:$0xff]
      %v1037 = vld [vmem:[%s996 + $0x210] sm:$0xff]
      %v1038 = vld [vmem:[%s996 + $0x218] sm:$0xff]
      %v1039 = vld [vmem:[%s996 + $0x228] sm:$0xff]
      %v1040 = vld [vmem:[%s996 + $0x230] sm:$0xff]
      %v1041 = vld [vmem:[%s996 + $0x240] sm:$0xff]
      %v1042 = vld [vmem:[%s996 + $0x248] sm:$0xff]
      %v1043 = vld [vmem:[%s996 + $0x258] sm:$0xff]
      %v1044 = vld [vmem:[%s996 + $0x260] sm:$0xff]
      %v1045 = vld [vmem:[%s996 + $0x270] sm:$0xff]
      %v1046 = vld [vmem:[%s996 + $0x278] sm:$0xff]
      %v1047 = vld [vmem:[%s996 + $0x288] sm:$0xff]
      %v1048 = vld [vmem:[%s996 + $0x290] sm:$0xff]
      %v1049 = vld [vmem:[%s996 + $0x2a0] sm:$0xff]
      %v1050 = vld [vmem:[%s996 + $0x2a8] sm:$0xff]
      %v1051 = vld [vmem:[%s996 + $0x2b8] sm:$0xff]
      %v1052 = vld [vmem:[%s996 + $0x2c0] sm:$0xff]
      %v1053 = vld [vmem:[%s996 + $0x2d0] sm:$0xff]
      %v1054 = vld [vmem:[%s996 + $0x2d8] sm:$0xff]
      %v1055 = vld [vmem:[%s996 + $0x2e8] sm:$0xff]
      %v1056 = vld [vmem:[%s996 + $0x2f0] sm:$0xff]
      %v1057 = vld [vmem:[%s996 + $0x300] sm:$0xff]
      %v1058 = vld [vmem:[%s996 + $0x308] sm:$0xff]
      %v1059 = vld [vmem:[%s996 + $0x318] sm:$0xff]
      %v1060 = vld [vmem:[%s996 + $0x320] sm:$0xff]
      %v1061 = vld [vmem:[%s996 + $0x1] sm:$0xff]
      %v1062 = vld [vmem:[%s996 + $0x9] sm:$0xff]
      %v1063 = vld [vmem:[%s996 + $0x19] sm:$0xff]
      %v1064 = vld [vmem:[%s996 + $0x21] sm:$0xff]
      %v1065 = vld [vmem:[%s996 + $0x31] sm:$0xff]
      %v1066 = vld [vmem:[%s996 + $0x39] sm:$0xff]
      %v1067 = vld [vmem:[%s996 + $0x49] sm:$0xff]
      %v1068 = vld [vmem:[%s996 + $0x51] sm:$0xff]
      %v1069 = vld [vmem:[%s996 + $0x61] sm:$0xff]
      %v1070 = vld [vmem:[%s996 + $0x69] sm:$0xff]
      %v1071 = vld [vmem:[%s996 + $0x79] sm:$0xff]
      %v1072 = vld [vmem:[%s996 + $0x81] sm:$0xff]
      %v1073 = vld [vmem:[%s996 + $0x91] sm:$0xff]
      %v1074 = vld [vmem:[%s996 + $0x99] sm:$0xff]
      %v1075 = vld [vmem:[%s996 + $0xa9] sm:$0xff]
      %v1076 = vld [vmem:[%s996 + $0xb1] sm:$0xff]
      %v1077 = vld [vmem:[%s996 + $0xc1] sm:$0xff]
      %v1078 = vld [vmem:[%s996 + $0xc9] sm:$0xff]
      %v1079 = vld [vmem:[%s996 + $0xd9] sm:$0xff]
      %v1080 = vld [vmem:[%s996 + $0xe1] sm:$0xff]
      %v1081 = vld [vmem:[%s996 + $0xf1] sm:$0xff]
      %v1082 = vld [vmem:[%s996 + $0xf9] sm:$0xff]
      %v1083 = vld [vmem:[%s996 + $0x109] sm:$0xff]
      %v1084 = vld [vmem:[%s996 + $0x111] sm:$0xff]
      %v1085 = vld [vmem:[%s996 + $0x121] sm:$0xff]
      %v1086 = vld [vmem:[%s996 + $0x129] sm:$0xff]
      %v1087 = vld [vmem:[%s996 + $0x139] sm:$0xff]
      %v1088 = vld [vmem:[%s996 + $0x141] sm:$0xff]
      %v1089 = vld [vmem:[%s996 + $0x151] sm:$0xff]
      %v1090 = vld [vmem:[%s996 + $0x159] sm:$0xff]
      %v1091 = vld [vmem:[%s996 + $0x169] sm:$0xff]
      %v1092 = vld [vmem:[%s996 + $0x171] sm:$0xff]
      %v1093 = vld [vmem:[%s996 + $0x1b1] sm:$0xff]
      %v1094 = vld [vmem:[%s996 + $0x1b9] sm:$0xff]
      %v1095 = vld [vmem:[%s996 + $0x1c9] sm:$0xff]
      %v1096 = vld [vmem:[%s996 + $0x1d1] sm:$0xff]
      %v1097 = vld [vmem:[%s996 + $0x1e1] sm:$0xff]
      %v1098 = vld [vmem:[%s996 + $0x1e9] sm:$0xff]
      %v1099 = vld [vmem:[%s996 + $0x1f9] sm:$0xff]
      %v1100 = vld [vmem:[%s996 + $0x201] sm:$0xff]
      %v1101 = vld [vmem:[%s996 + $0x211] sm:$0xff]
      %v1102 = vld [vmem:[%s996 + $0x219] sm:$0xff]
      %v1103 = vld [vmem:[%s996 + $0x229] sm:$0xff]
      %v1104 = vld [vmem:[%s996 + $0x231] sm:$0xff]
      %v1105 = vld [vmem:[%s996 + $0x241] sm:$0xff]
      %v1106 = vld [vmem:[%s996 + $0x249] sm:$0xff]
      %v1107 = vld [vmem:[%s996 + $0x259] sm:$0xff]
      %v1108 = vld [vmem:[%s996 + $0x261] sm:$0xff]
      %v1109 = vld [vmem:[%s996 + $0x271] sm:$0xff]
      %v1110 = vld [vmem:[%s996 + $0x279] sm:$0xff]
      %v1111 = vld [vmem:[%s996 + $0x289] sm:$0xff]
      %v1112 = vld [vmem:[%s996 + $0x291] sm:$0xff]
      %v1113 = vld [vmem:[%s996 + $0x2a1] sm:$0xff]
      %v1114 = vld [vmem:[%s996 + $0x2a9] sm:$0xff]
      %v1115 = vld [vmem:[%s996 + $0x2b9] sm:$0xff]
      %v1116 = vld [vmem:[%s996 + $0x2c1] sm:$0xff]
      %v1117 = vld [vmem:[%s996 + $0x2d1] sm:$0xff]
      %v1118 = vld [vmem:[%s996 + $0x2d9] sm:$0xff]
      %v1119 = vld [vmem:[%s996 + $0x2e9] sm:$0xff]
      %v1120 = vld [vmem:[%s996 + $0x2f1] sm:$0xff]
      %v1121 = vld [vmem:[%s996 + $0x301] sm:$0xff]
      %v1122 = vld [vmem:[%s996 + $0x309] sm:$0xff]
      %v1123 = vld [vmem:[%s996 + $0x319] sm:$0xff]
      %v1124 = vld [vmem:[%s996 + $0x321] sm:$0xff]
      %v1125 = vld [vmem:[%s996 + $0x2] sm:$0xff]
      %v1126 = vld [vmem:[%s996 + $0xa] sm:$0xff]
      %v1127 = vld [vmem:[%s996 + $0x1a] sm:$0xff]
      %v1128 = vld [vmem:[%s996 + $0x22] sm:$0xff]
      %v1129 = vld [vmem:[%s996 + $0x32] sm:$0xff]
      %v1130 = vld [vmem:[%s996 + $0x3a] sm:$0xff]
      %v1131 = vld [vmem:[%s996 + $0x4a] sm:$0xff]
      %v1132 = vld [vmem:[%s996 + $0x52] sm:$0xff]
      %v1133 = vld [vmem:[%s996 + $0x62] sm:$0xff]
      %v1134 = vld [vmem:[%s996 + $0x6a] sm:$0xff]
      %v1135 = vld [vmem:[%s996 + $0x7a] sm:$0xff]
      %v1136 = vld [vmem:[%s996 + $0x82] sm:$0xff]
      %v1137 = vld [vmem:[%s996 + $0x92] sm:$0xff]
      %v1138 = vld [vmem:[%s996 + $0x9a] sm:$0xff]
      %v1139 = vld [vmem:[%s996 + $0xaa] sm:$0xff]
      %v1140 = vld [vmem:[%s996 + $0xb2] sm:$0xff]
      %v1141 = vld [vmem:[%s996 + $0xc2] sm:$0xff]
      %v1142 = vld [vmem:[%s996 + $0xca] sm:$0xff]
      %v1143 = vld [vmem:[%s996 + $0xda] sm:$0xff]
      %v1144 = vld [vmem:[%s996 + $0xe2] sm:$0xff]
      %v1145 = vld [vmem:[%s996 + $0xf2] sm:$0xff]
      %v1146 = vld [vmem:[%s996 + $0xfa] sm:$0xff]
      %v1147 = vld [vmem:[%s996 + $0x10a] sm:$0xff]
      %v1148 = vld [vmem:[%s996 + $0x112] sm:$0xff]
      %v1149 = vld [vmem:[%s996 + $0x122] sm:$0xff]
      %v1150 = vld [vmem:[%s996 + $0x12a] sm:$0xff]
      %v1151 = vld [vmem:[%s996 + $0x13a] sm:$0xff]
      %v1152 = vld [vmem:[%s996 + $0x142] sm:$0xff]
      %v1153 = vld [vmem:[%s996 + $0x152] sm:$0xff]
      %v1154 = vld [vmem:[%s996 + $0x15a] sm:$0xff]
      %v1155 = vld [vmem:[%s996 + $0x16a] sm:$0xff]
      %v1156 = vld [vmem:[%s996 + $0x172] sm:$0xff]
      %v1157 = vld [vmem:[%s996 + $0x1b2] sm:$0xff]
      %v1158 = vld [vmem:[%s996 + $0x1ba] sm:$0xff]
      %v1159 = vld [vmem:[%s996 + $0x1ca] sm:$0xff]
      %v1160 = vld [vmem:[%s996 + $0x1d2] sm:$0xff]
      %v1161 = vld [vmem:[%s996 + $0x1e2] sm:$0xff]
      %v1162 = vld [vmem:[%s996 + $0x1ea] sm:$0xff]
      %v1163 = vld [vmem:[%s996 + $0x1fa] sm:$0xff]
      %v1164 = vld [vmem:[%s996 + $0x202] sm:$0xff]
      %v1165 = vld [vmem:[%s996 + $0x212] sm:$0xff]
      %v1166 = vld [vmem:[%s996 + $0x21a] sm:$0xff]
      %v1167 = vld [vmem:[%s996 + $0x22a] sm:$0xff]
      %v1168 = vld [vmem:[%s996 + $0x232] sm:$0xff]
      %v1169 = vld [vmem:[%s996 + $0x242] sm:$0xff]
      %v1170 = vld [vmem:[%s996 + $0x24a] sm:$0xff]
      %v1171 = vld [vmem:[%s996 + $0x25a] sm:$0xff]
      %v1172 = vld [vmem:[%s996 + $0x262] sm:$0xff]
      %v1173 = vld [vmem:[%s996 + $0x272] sm:$0xff]
      %v1174 = vld [vmem:[%s996 + $0x27a] sm:$0xff]
      %v1175 = vld [vmem:[%s996 + $0x28a] sm:$0xff]
      %v1176 = vld [vmem:[%s996 + $0x292] sm:$0xff]
      %v1177 = vld [vmem:[%s996 + $0x2a2] sm:$0xff]
      %v1178 = vld [vmem:[%s996 + $0x2aa] sm:$0xff]
      %v1179 = vld [vmem:[%s996 + $0x2ba] sm:$0xff]
      %v1180 = vld [vmem:[%s996 + $0x2c2] sm:$0xff]
      %v1181 = vld [vmem:[%s996 + $0x2d2] sm:$0xff]
      %v1182 = vld [vmem:[%s996 + $0x2da] sm:$0xff]
      %v1183 = vld [vmem:[%s996 + $0x2ea] sm:$0xff]
      %v1184 = vld [vmem:[%s996 + $0x2f2] sm:$0xff]
      %v1185 = vld [vmem:[%s996 + $0x302] sm:$0xff]
      %v1186 = vld [vmem:[%s996 + $0x30a] sm:$0xff]
      %v1187 = vld [vmem:[%s996 + $0x31a] sm:$0xff]
      %v1188 = vld [vmem:[%s996 + $0x322] sm:$0xff]
      %1253 = vrot.lane.b32.xlu0 %v676, 3
      %v1254 = vpop.permute.xlu0 %1253
      %1255 = vrot.lane.b32.xlu0 %v677, 3
      %v1256 = vpop.permute.xlu0 %1255
      %1257 = vrot.lane.b32.xlu0 %v678, 3
      %v1258 = vpop.permute.xlu0 %1257
      %1259 = vrot.lane.b32.xlu0 %v679, 3
      %v1260 = vpop.permute.xlu0 %1259
      %1261 = vrot.lane.b32.xlu0 %v680, 3
      %v1262 = vpop.permute.xlu0 %1261
      %1263 = vrot.lane.b32.xlu0 %v681, 3
      %v1264 = vpop.permute.xlu0 %1263
      %1265 = vrot.lane.b32.xlu0 %v682, 3
      %v1266 = vpop.permute.xlu0 %1265
      %1267 = vrot.lane.b32.xlu0 %v683, 3
      %v1268 = vpop.permute.xlu0 %1267
      %1269 = vrot.lane.b32.xlu0 %v684, 3
      %v1270 = vpop.permute.xlu0 %1269
      %1271 = vrot.lane.b32.xlu0 %v685, 3
      %v1272 = vpop.permute.xlu0 %1271
      %1273 = vrot.lane.b32.xlu0 %v686, 3
      %v1274 = vpop.permute.xlu0 %1273
      %1275 = vrot.lane.b32.xlu0 %v687, 3
      %v1276 = vpop.permute.xlu0 %1275
      %1277 = vrot.lane.b32.xlu0 %v688, 3
      %v1278 = vpop.permute.xlu0 %1277
      %1279 = vrot.lane.b32.xlu0 %v689, 3
      %v1280 = vpop.permute.xlu0 %1279
      %1281 = vrot.lane.b32.xlu0 %v690, 3
      %v1282 = vpop.permute.xlu0 %1281
      %1283 = vrot.lane.b32.xlu0 %v691, 3
      %v1284 = vpop.permute.xlu0 %1283
      %1285 = vrot.lane.b32.xlu0 %v692, 3
      %v1286 = vpop.permute.xlu0 %1285
      %1287 = vrot.lane.b32.xlu0 %v693, 3
      %v1288 = vpop.permute.xlu0 %1287
      %1289 = vrot.lane.b32.xlu0 %v694, 3
      %v1290 = vpop.permute.xlu0 %1289
      %1291 = vrot.lane.b32.xlu0 %v695, 3
      %v1292 = vpop.permute.xlu0 %1291
      %1293 = vrot.lane.b32.xlu0 %v696, 3
      %v1294 = vpop.permute.xlu0 %1293
      %1295 = vrot.lane.b32.xlu0 %v697, 3
      %v1296 = vpop.permute.xlu0 %1295
      %1297 = vrot.lane.b32.xlu0 %v698, 3
      %v1298 = vpop.permute.xlu0 %1297
      %1299 = vrot.lane.b32.xlu0 %v699, 3
      %v1300 = vpop.permute.xlu0 %1299
      %1301 = vrot.lane.b32.xlu0 %v700, 3
      %v1302 = vpop.permute.xlu0 %1301
      %1303 = vrot.lane.b32.xlu0 %v701, 3
      %v1304 = vpop.permute.xlu0 %1303
      %1305 = vrot.lane.b32.xlu0 %v702, 3
      %v1306 = vpop.permute.xlu0 %1305
      %1307 = vrot.lane.b32.xlu0 %v703, 3
      %v1308 = vpop.permute.xlu0 %1307
      %1309 = vrot.lane.b32.xlu0 %v704, 3
      %v1310 = vpop.permute.xlu0 %1309
      %1311 = vrot.lane.b32.xlu0 %v705, 3
      %v1312 = vpop.permute.xlu0 %1311
      %1313 = vrot.lane.b32.xlu0 %v706, 3
      %v1314 = vpop.permute.xlu0 %1313
      %1315 = vrot.lane.b32.xlu0 %v707, 3
      %v1316 = vpop.permute.xlu0 %1315
      %1317 = vrot.lane.b32.xlu0 %v708, 3
      %v1318 = vpop.permute.xlu0 %1317
      %1319 = vrot.lane.b32.xlu0 %v709, 3
      %v1320 = vpop.permute.xlu0 %1319
      %1321 = vrot.lane.b32.xlu0 %v710, 3
      %v1322 = vpop.permute.xlu0 %1321
      %1323 = vrot.lane.b32.xlu0 %v711, 3
      %v1324 = vpop.permute.xlu0 %1323
      %1325 = vrot.lane.b32.xlu0 %v712, 3
      %v1326 = vpop.permute.xlu0 %1325
      %1327 = vrot.lane.b32.xlu0 %v713, 3
      %v1328 = vpop.permute.xlu0 %1327
      %1329 = vrot.lane.b32.xlu0 %v714, 3
      %v1330 = vpop.permute.xlu0 %1329
      %1331 = vrot.lane.b32.xlu0 %v715, 3
      %v1332 = vpop.permute.xlu0 %1331
      %1333 = vrot.lane.b32.xlu0 %v716, 3
      %v1334 = vpop.permute.xlu0 %1333
      %1335 = vrot.lane.b32.xlu0 %v717, 3
      %v1336 = vpop.permute.xlu0 %1335
      %1337 = vrot.lane.b32.xlu0 %v718, 3
      %v1338 = vpop.permute.xlu0 %1337
      %1339 = vrot.lane.b32.xlu0 %v719, 3
      %v1340 = vpop.permute.xlu0 %1339
      %1341 = vrot.lane.b32.xlu0 %v720, 3
      %v1342 = vpop.permute.xlu0 %1341
      %1343 = vrot.lane.b32.xlu0 %v721, 3
      %v1344 = vpop.permute.xlu0 %1343
      %1345 = vrot.lane.b32.xlu0 %v722, 3
      %v1346 = vpop.permute.xlu0 %1345
      %1347 = vrot.lane.b32.xlu0 %v723, 3
      %v1348 = vpop.permute.xlu0 %1347
      %1349 = vrot.lane.b32.xlu0 %v724, 3
      %v1350 = vpop.permute.xlu0 %1349
      %1351 = vrot.lane.b32.xlu0 %v725, 3
      %v1352 = vpop.permute.xlu0 %1351
      %1353 = vrot.lane.b32.xlu0 %v726, 3
      %v1354 = vpop.permute.xlu0 %1353
      %1355 = vrot.lane.b32.xlu0 %v727, 3
      %v1356 = vpop.permute.xlu0 %1355
      %1357 = vrot.lane.b32.xlu0 %v728, 3
      %v1358 = vpop.permute.xlu0 %1357
      %1359 = vrot.lane.b32.xlu0 %v729, 3
      %v1360 = vpop.permute.xlu0 %1359
      %1361 = vrot.lane.b32.xlu0 %v730, 3
      %v1362 = vpop.permute.xlu0 %1361
      %1363 = vrot.lane.b32.xlu0 %v731, 3
      %v1364 = vpop.permute.xlu0 %1363
      %1365 = vrot.lane.b32.xlu0 %v732, 3
      %v1366 = vpop.permute.xlu0 %1365
      %1367 = vrot.lane.b32.xlu0 %v733, 3
      %v1368 = vpop.permute.xlu0 %1367
      %1369 = vrot.lane.b32.xlu0 %v734, 3
      %v1370 = vpop.permute.xlu0 %1369
      %1371 = vrot.lane.b32.xlu0 %v735, 3
      %v1372 = vpop.permute.xlu0 %1371
      %1373 = vrot.lane.b32.xlu0 %v736, 3
      %v1374 = vpop.permute.xlu0 %1373
      %1375 = vrot.lane.b32.xlu0 %v737, 3
      %v1376 = vpop.permute.xlu0 %1375
      %1377 = vrot.lane.b32.xlu0 %v738, 3
      %v1378 = vpop.permute.xlu0 %1377
      %1379 = vrot.lane.b32.xlu0 %v739, 3
      %v1380 = vpop.permute.xlu0 %1379
      %1509 = vrot.lane.b32.xlu0 %v740, 6
      %v1510 = vpop.permute.xlu0 %1509
      %1511 = vrot.lane.b32.xlu0 %v741, 6
      %v1512 = vpop.permute.xlu0 %1511
      %1513 = vrot.lane.b32.xlu0 %v742, 6
      %v1514 = vpop.permute.xlu0 %1513
      %1515 = vrot.lane.b32.xlu0 %v743, 6
      %v1516 = vpop.permute.xlu0 %1515
      %1517 = vrot.lane.b32.xlu0 %v744, 6
      %v1518 = vpop.permute.xlu0 %1517
      %1519 = vrot.lane.b32.xlu0 %v745, 6
      %v1520 = vpop.permute.xlu0 %1519
      %1521 = vrot.lane.b32.xlu0 %v746, 6
      %v1522 = vpop.permute.xlu0 %1521
      %1523 = vrot.lane.b32.xlu0 %v747, 6
      %v1524 = vpop.permute.xlu0 %1523
      %1525 = vrot.lane.b32.xlu0 %v748, 6
      %v1526 = vpop.permute.xlu0 %1525
      %1527 = vrot.lane.b32.xlu0 %v749, 6
      %v1528 = vpop.permute.xlu0 %1527
      %1529 = vrot.lane.b32.xlu0 %v750, 6
      %v1530 = vpop.permute.xlu0 %1529
      %1531 = vrot.lane.b32.xlu0 %v751, 6
      %v1532 = vpop.permute.xlu0 %1531
      %1533 = vrot.lane.b32.xlu0 %v752, 6
      %v1534 = vpop.permute.xlu0 %1533
      %1535 = vrot.lane.b32.xlu0 %v753, 6
      %v1536 = vpop.permute.xlu0 %1535
      %1537 = vrot.lane.b32.xlu0 %v754, 6
      %v1538 = vpop.permute.xlu0 %1537
      %1539 = vrot.lane.b32.xlu0 %v755, 6
      %v1540 = vpop.permute.xlu0 %1539
      %1541 = vrot.lane.b32.xlu0 %v756, 6
      %v1542 = vpop.permute.xlu0 %1541
      %1543 = vrot.lane.b32.xlu0 %v757, 6
      %v1544 = vpop.permute.xlu0 %1543
      %1545 = vrot.lane.b32.xlu0 %v758, 6
      %v1546 = vpop.permute.xlu0 %1545
      %1547 = vrot.lane.b32.xlu0 %v759, 6
      %v1548 = vpop.permute.xlu0 %1547
      %1549 = vrot.lane.b32.xlu0 %v760, 6
      %v1550 = vpop.permute.xlu0 %1549
      %1551 = vrot.lane.b32.xlu0 %v761, 6
      %v1552 = vpop.permute.xlu0 %1551
      %1553 = vrot.lane.b32.xlu0 %v762, 6
      %v1554 = vpop.permute.xlu0 %1553
      %1555 = vrot.lane.b32.xlu0 %v763, 6
      %v1556 = vpop.permute.xlu0 %1555
      %1557 = vrot.lane.b32.xlu0 %v764, 6
      %v1558 = vpop.permute.xlu0 %1557
      %1559 = vrot.lane.b32.xlu0 %v765, 6
      %v1560 = vpop.permute.xlu0 %1559
      %1561 = vrot.lane.b32.xlu0 %v766, 6
      %v1562 = vpop.permute.xlu0 %1561
      %1563 = vrot.lane.b32.xlu0 %v767, 6
      %v1564 = vpop.permute.xlu0 %1563
      %1565 = vrot.lane.b32.xlu0 %v768, 6
      %v1566 = vpop.permute.xlu0 %1565
      %1567 = vrot.lane.b32.xlu0 %v769, 6
      %v1568 = vpop.permute.xlu0 %1567
      %1569 = vrot.lane.b32.xlu0 %v770, 6
      %v1570 = vpop.permute.xlu0 %1569
      %1571 = vrot.lane.b32.xlu0 %v771, 6
      %v1572 = vpop.permute.xlu0 %1571
      %1573 = vrot.lane.b32.xlu0 %v772, 6
      %v1574 = vpop.permute.xlu0 %1573
      %1575 = vrot.lane.b32.xlu0 %v773, 6
      %v1576 = vpop.permute.xlu0 %1575
      %1577 = vrot.lane.b32.xlu0 %v774, 6
      %v1578 = vpop.permute.xlu0 %1577
      %1579 = vrot.lane.b32.xlu0 %v775, 6
      %v1580 = vpop.permute.xlu0 %1579
      %1581 = vrot.lane.b32.xlu0 %v776, 6
      %v1582 = vpop.permute.xlu0 %1581
      %1583 = vrot.lane.b32.xlu0 %v777, 6
      %v1584 = vpop.permute.xlu0 %1583
      %1585 = vrot.lane.b32.xlu0 %v778, 6
      %v1586 = vpop.permute.xlu0 %1585
      %1587 = vrot.lane.b32.xlu0 %v779, 6
      %v1588 = vpop.permute.xlu0 %1587
      %1589 = vrot.lane.b32.xlu0 %v780, 6
      %v1590 = vpop.permute.xlu0 %1589
      %1591 = vrot.lane.b32.xlu0 %v781, 6
      %v1592 = vpop.permute.xlu0 %1591
      %1593 = vrot.lane.b32.xlu0 %v782, 6
      %v1594 = vpop.permute.xlu0 %1593
      %1595 = vrot.lane.b32.xlu0 %v783, 6
      %v1596 = vpop.permute.xlu0 %1595
      %1597 = vrot.lane.b32.xlu0 %v784, 6
      %v1598 = vpop.permute.xlu0 %1597
      %1599 = vrot.lane.b32.xlu0 %v785, 6
      %v1600 = vpop.permute.xlu0 %1599
      %1601 = vrot.lane.b32.xlu0 %v786, 6
      %v1602 = vpop.permute.xlu0 %1601
      %1603 = vrot.lane.b32.xlu0 %v787, 6
      %v1604 = vpop.permute.xlu0 %1603
      %1605 = vrot.lane.b32.xlu0 %v788, 6
      %v1606 = vpop.permute.xlu0 %1605
      %1607 = vrot.lane.b32.xlu0 %v789, 6
      %v1608 = vpop.permute.xlu0 %1607
      %1609 = vrot.lane.b32.xlu0 %v790, 6
      %v1610 = vpop.permute.xlu0 %1609
      %1611 = vrot.lane.b32.xlu0 %v791, 6
      %v1612 = vpop.permute.xlu0 %1611
      %1613 = vrot.lane.b32.xlu0 %v792, 6
      %v1614 = vpop.permute.xlu0 %1613
      %1615 = vrot.lane.b32.xlu0 %v793, 6
      %v1616 = vpop.permute.xlu0 %1615
      %1617 = vrot.lane.b32.xlu0 %v794, 6
      %v1618 = vpop.permute.xlu0 %1617
      %1619 = vrot.lane.b32.xlu0 %v795, 6
      %v1620 = vpop.permute.xlu0 %1619
      %1621 = vrot.lane.b32.xlu0 %v796, 6
      %v1622 = vpop.permute.xlu0 %1621
      %1623 = vrot.lane.b32.xlu0 %v797, 6
      %v1624 = vpop.permute.xlu0 %1623
      %1625 = vrot.lane.b32.xlu0 %v798, 6
      %v1626 = vpop.permute.xlu0 %1625
      %1627 = vrot.lane.b32.xlu0 %v799, 6
      %v1628 = vpop.permute.xlu0 %1627
      %1629 = vrot.lane.b32.xlu0 %v800, 6
      %v1630 = vpop.permute.xlu0 %1629
      %1631 = vrot.lane.b32.xlu0 %v801, 6
      %v1632 = vpop.permute.xlu0 %1631
      %1633 = vrot.lane.b32.xlu0 %v802, 6
      %v1634 = vpop.permute.xlu0 %1633
      %1635 = vrot.lane.b32.xlu0 %v803, 6
      %v1636 = vpop.permute.xlu0 %1635
      %1765 = vrot.lane.b32.xlu0 %v804, 9
      %v1766 = vpop.permute.xlu0 %1765
      %1767 = vrot.lane.b32.xlu0 %v805, 9
      %v1768 = vpop.permute.xlu0 %1767
      %1769 = vrot.lane.b32.xlu0 %v806, 9
      %v1770 = vpop.permute.xlu0 %1769
      %1771 = vrot.lane.b32.xlu0 %v807, 9
      %v1772 = vpop.permute.xlu0 %1771
      %1773 = vrot.lane.b32.xlu0 %v808, 9
      %v1774 = vpop.permute.xlu0 %1773
      %1775 = vrot.lane.b32.xlu0 %v809, 9
      %v1776 = vpop.permute.xlu0 %1775
      %1777 = vrot.lane.b32.xlu0 %v810, 9
      %v1778 = vpop.permute.xlu0 %1777
      %1779 = vrot.lane.b32.xlu0 %v811, 9
      %v1780 = vpop.permute.xlu0 %1779
      %1781 = vrot.lane.b32.xlu0 %v812, 9
      %v1782 = vpop.permute.xlu0 %1781
      %1783 = vrot.lane.b32.xlu0 %v813, 9
      %v1784 = vpop.permute.xlu0 %1783
      %1785 = vrot.lane.b32.xlu0 %v814, 9
      %v1786 = vpop.permute.xlu0 %1785
      %1787 = vrot.lane.b32.xlu0 %v815, 9
      %v1788 = vpop.permute.xlu0 %1787
      %1789 = vrot.lane.b32.xlu0 %v816, 9
      %v1790 = vpop.permute.xlu0 %1789
      %1791 = vrot.lane.b32.xlu0 %v817, 9
      %v1792 = vpop.permute.xlu0 %1791
      %1793 = vrot.lane.b32.xlu0 %v818, 9
      %v1794 = vpop.permute.xlu0 %1793
      %1795 = vrot.lane.b32.xlu0 %v819, 9
      %v1796 = vpop.permute.xlu0 %1795
      %1797 = vrot.lane.b32.xlu0 %v820, 9
      %v1798 = vpop.permute.xlu0 %1797
      %1799 = vrot.lane.b32.xlu0 %v821, 9
      %v1800 = vpop.permute.xlu0 %1799
      %1801 = vrot.lane.b32.xlu0 %v822, 9
      %v1802 = vpop.permute.xlu0 %1801
      %1803 = vrot.lane.b32.xlu0 %v823, 9
      %v1804 = vpop.permute.xlu0 %1803
      %1805 = vrot.lane.b32.xlu0 %v824, 9
      %v1806 = vpop.permute.xlu0 %1805
      %1807 = vrot.lane.b32.xlu0 %v825, 9
      %v1808 = vpop.permute.xlu0 %1807
      %1809 = vrot.lane.b32.xlu0 %v826, 9
      %v1810 = vpop.permute.xlu0 %1809
      %1811 = vrot.lane.b32.xlu0 %v827, 9
      %v1812 = vpop.permute.xlu0 %1811
      %1813 = vrot.lane.b32.xlu0 %v828, 9
      %v1814 = vpop.permute.xlu0 %1813
      %1815 = vrot.lane.b32.xlu0 %v829, 9
      %v1816 = vpop.permute.xlu0 %1815
      %1817 = vrot.lane.b32.xlu0 %v830, 9
      %v1818 = vpop.permute.xlu0 %1817
      %1819 = vrot.lane.b32.xlu0 %v831, 9
      %v1820 = vpop.permute.xlu0 %1819
      %1821 = vrot.lane.b32.xlu0 %v832, 9
      %v1822 = vpop.permute.xlu0 %1821
      %1823 = vrot.lane.b32.xlu0 %v833, 9
      %v1824 = vpop.permute.xlu0 %1823
      %1825 = vrot.lane.b32.xlu0 %v834, 9
      %v1826 = vpop.permute.xlu0 %1825
      %1827 = vrot.lane.b32.xlu0 %v835, 9
      %v1828 = vpop.permute.xlu0 %1827
      %1829 = vrot.lane.b32.xlu0 %v836, 9
      %v1830 = vpop.permute.xlu0 %1829
      %1831 = vrot.lane.b32.xlu0 %v837, 9
      %v1832 = vpop.permute.xlu0 %1831
      %1833 = vrot.lane.b32.xlu0 %v838, 9
      %v1834 = vpop.permute.xlu0 %1833
      %1835 = vrot.lane.b32.xlu0 %v839, 9
      %v1836 = vpop.permute.xlu0 %1835
      %1837 = vrot.lane.b32.xlu0 %v840, 9
      %v1838 = vpop.permute.xlu0 %1837
      %1839 = vrot.lane.b32.xlu0 %v841, 9
      %v1840 = vpop.permute.xlu0 %1839
      %1841 = vrot.lane.b32.xlu0 %v842, 9
      %v1842 = vpop.permute.xlu0 %1841
      %1843 = vrot.lane.b32.xlu0 %v843, 9
      %v1844 = vpop.permute.xlu0 %1843
      %1845 = vrot.lane.b32.xlu0 %v844, 9
      %v1846 = vpop.permute.xlu0 %1845
      %1847 = vrot.lane.b32.xlu0 %v845, 9
      %v1848 = vpop.permute.xlu0 %1847
      %1849 = vrot.lane.b32.xlu0 %v846, 9
      %v1850 = vpop.permute.xlu0 %1849
      %1851 = vrot.lane.b32.xlu0 %v847, 9
      %v1852 = vpop.permute.xlu0 %1851
      %1853 = vrot.lane.b32.xlu0 %v848, 9
      %v1854 = vpop.permute.xlu0 %1853
      %1855 = vrot.lane.b32.xlu0 %v849, 9
      %v1856 = vpop.permute.xlu0 %1855
      %1857 = vrot.lane.b32.xlu0 %v850, 9
      %v1858 = vpop.permute.xlu0 %1857
      %1859 = vrot.lane.b32.xlu0 %v851, 9
      %v1860 = vpop.permute.xlu0 %1859
      %1861 = vrot.lane.b32.xlu0 %v852, 9
      %v1862 = vpop.permute.xlu0 %1861
      %1863 = vrot.lane.b32.xlu0 %v853, 9
      %v1864 = vpop.permute.xlu0 %1863
      %1865 = vrot.lane.b32.xlu0 %v854, 9
      %v1866 = vpop.permute.xlu0 %1865
      %1867 = vrot.lane.b32.xlu0 %v855, 9
      %v1868 = vpop.permute.xlu0 %1867
      %1869 = vrot.lane.b32.xlu0 %v856, 9
      %v1870 = vpop.permute.xlu0 %1869
      %1871 = vrot.lane.b32.xlu0 %v857, 9
      %v1872 = vpop.permute.xlu0 %1871
      %1873 = vrot.lane.b32.xlu0 %v858, 9
      %v1874 = vpop.permute.xlu0 %1873
      %1875 = vrot.lane.b32.xlu0 %v859, 9
      %v1876 = vpop.permute.xlu0 %1875
      %1877 = vrot.lane.b32.xlu0 %v860, 9
      %v1878 = vpop.permute.xlu0 %1877
      %1879 = vrot.lane.b32.xlu0 %v861, 9
      %v1880 = vpop.permute.xlu0 %1879
      %1881 = vrot.lane.b32.xlu0 %v862, 9
      %v1882 = vpop.permute.xlu0 %1881
      %1883 = vrot.lane.b32.xlu0 %v863, 9
      %v1884 = vpop.permute.xlu0 %1883
      %1885 = vrot.lane.b32.xlu0 %v864, 9
      %v1886 = vpop.permute.xlu0 %1885
      %1887 = vrot.lane.b32.xlu0 %v865, 9
      %v1888 = vpop.permute.xlu0 %1887
      %1889 = vrot.lane.b32.xlu0 %v866, 9
      %v1890 = vpop.permute.xlu0 %1889
      %1891 = vrot.lane.b32.xlu0 %v867, 9
      %v1892 = vpop.permute.xlu0 %1891
      %2021 = vrot.lane.b32.xlu0 %v868, 12
      %v2022 = vpop.permute.xlu0 %2021
      %2023 = vrot.lane.b32.xlu0 %v869, 12
      %v2024 = vpop.permute.xlu0 %2023
      %2025 = vrot.lane.b32.xlu0 %v870, 12
      %v2026 = vpop.permute.xlu0 %2025
      %2027 = vrot.lane.b32.xlu0 %v871, 12
      %v2028 = vpop.permute.xlu0 %2027
      %2029 = vrot.lane.b32.xlu0 %v872, 12
      %v2030 = vpop.permute.xlu0 %2029
      %2031 = vrot.lane.b32.xlu0 %v873, 12
      %v2032 = vpop.permute.xlu0 %2031
      %2033 = vrot.lane.b32.xlu0 %v874, 12
      %v2034 = vpop.permute.xlu0 %2033
      %2035 = vrot.lane.b32.xlu0 %v875, 12
      %v2036 = vpop.permute.xlu0 %2035
      %2037 = vrot.lane.b32.xlu0 %v876, 12
      %v2038 = vpop.permute.xlu0 %2037
      %2039 = vrot.lane.b32.xlu0 %v877, 12
      %v2040 = vpop.permute.xlu0 %2039
      %2041 = vrot.lane.b32.xlu0 %v878, 12
      %v2042 = vpop.permute.xlu0 %2041
      %2043 = vrot.lane.b32.xlu0 %v879, 12
      %v2044 = vpop.permute.xlu0 %2043
      %2045 = vrot.lane.b32.xlu0 %v880, 12
      %v2046 = vpop.permute.xlu0 %2045
      %2047 = vrot.lane.b32.xlu0 %v881, 12
      %v2048 = vpop.permute.xlu0 %2047
      %2049 = vrot.lane.b32.xlu0 %v882, 12
      %v2050 = vpop.permute.xlu0 %2049
      %2051 = vrot.lane.b32.xlu0 %v883, 12
      %v2052 = vpop.permute.xlu0 %2051
      %2053 = vrot.lane.b32.xlu0 %v884, 12
      %v2054 = vpop.permute.xlu0 %2053
      %2055 = vrot.lane.b32.xlu0 %v885, 12
      %v2056 = vpop.permute.xlu0 %2055
      %2057 = vrot.lane.b32.xlu0 %v886, 12
      %v2058 = vpop.permute.xlu0 %2057
      %2059 = vrot.lane.b32.xlu0 %v887, 12
      %v2060 = vpop.permute.xlu0 %2059
      %2061 = vrot.lane.b32.xlu0 %v888, 12
      %v2062 = vpop.permute.xlu0 %2061
      %2063 = vrot.lane.b32.xlu0 %v889, 12
      %v2064 = vpop.permute.xlu0 %2063
      %2065 = vrot.lane.b32.xlu0 %v890, 12
      %v2066 = vpop.permute.xlu0 %2065
      %2067 = vrot.lane.b32.xlu0 %v891, 12
      %v2068 = vpop.permute.xlu0 %2067
      %2069 = vrot.lane.b32.xlu0 %v892, 12
      %v2070 = vpop.permute.xlu0 %2069
      %2071 = vrot.lane.b32.xlu0 %v893, 12
      %v2072 = vpop.permute.xlu0 %2071
      %2073 = vrot.lane.b32.xlu0 %v894, 12
      %v2074 = vpop.permute.xlu0 %2073
      %2075 = vrot.lane.b32.xlu0 %v895, 12
      %v2076 = vpop.permute.xlu0 %2075
      %2077 = vrot.lane.b32.xlu0 %v896, 12
      %v2078 = vpop.permute.xlu0 %2077
      %2079 = vrot.lane.b32.xlu0 %v897, 12
      %v2080 = vpop.permute.xlu0 %2079
      %2081 = vrot.lane.b32.xlu0 %v898, 12
      %v2082 = vpop.permute.xlu0 %2081
      %2083 = vrot.lane.b32.xlu0 %v899, 12
      %v2084 = vpop.permute.xlu0 %2083
      %2085 = vrot.lane.b32.xlu0 %v900, 12
      %v2086 = vpop.permute.xlu0 %2085
      %2087 = vrot.lane.b32.xlu0 %v901, 12
      %v2088 = vpop.permute.xlu0 %2087
      %2089 = vrot.lane.b32.xlu0 %v902, 12
      %v2090 = vpop.permute.xlu0 %2089
      %2091 = vrot.lane.b32.xlu0 %v903, 12
      %v2092 = vpop.permute.xlu0 %2091
      %2093 = vrot.lane.b32.xlu0 %v904, 12
      %v2094 = vpop.permute.xlu0 %2093
      %2095 = vrot.lane.b32.xlu0 %v905, 12
      %v2096 = vpop.permute.xlu0 %2095
      %2097 = vrot.lane.b32.xlu0 %v906, 12
      %v2098 = vpop.permute.xlu0 %2097
      %2099 = vrot.lane.b32.xlu0 %v907, 12
      %v2100 = vpop.permute.xlu0 %2099
      %2101 = vrot.lane.b32.xlu0 %v908, 12
      %v2102 = vpop.permute.xlu0 %2101
      %2103 = vrot.lane.b32.xlu0 %v909, 12
      %v2104 = vpop.permute.xlu0 %2103
      %2105 = vrot.lane.b32.xlu0 %v910, 12
      %v2106 = vpop.permute.xlu0 %2105
      %2107 = vrot.lane.b32.xlu0 %v911, 12
      %v2108 = vpop.permute.xlu0 %2107
      %2109 = vrot.lane.b32.xlu0 %v912, 12
      %v2110 = vpop.permute.xlu0 %2109
      %2111 = vrot.lane.b32.xlu0 %v913, 12
      %v2112 = vpop.permute.xlu0 %2111
      %2113 = vrot.lane.b32.xlu0 %v914, 12
      %v2114 = vpop.permute.xlu0 %2113
      %2115 = vrot.lane.b32.xlu0 %v915, 12
      %v2116 = vpop.permute.xlu0 %2115
      %2117 = vrot.lane.b32.xlu0 %v916, 12
      %v2118 = vpop.permute.xlu0 %2117
      %2119 = vrot.lane.b32.xlu0 %v917, 12
      %v2120 = vpop.permute.xlu0 %2119
      %2121 = vrot.lane.b32.xlu0 %v918, 12
      %v2122 = vpop.permute.xlu0 %2121
      %2123 = vrot.lane.b32.xlu0 %v919, 12
      %v2124 = vpop.permute.xlu0 %2123
      %2125 = vrot.lane.b32.xlu0 %v920, 12
      %v2126 = vpop.permute.xlu0 %2125
      %2127 = vrot.lane.b32.xlu0 %v921, 12
      %v2128 = vpop.permute.xlu0 %2127
      %2129 = vrot.lane.b32.xlu0 %v922, 12
      %v2130 = vpop.permute.xlu0 %2129
      %2131 = vrot.lane.b32.xlu0 %v923, 12
      %v2132 = vpop.permute.xlu0 %2131
      %2133 = vrot.lane.b32.xlu0 %v924, 12
      %v2134 = vpop.permute.xlu0 %2133
      %2135 = vrot.lane.b32.xlu0 %v925, 12
      %v2136 = vpop.permute.xlu0 %2135
      %2137 = vrot.lane.b32.xlu0 %v926, 12
      %v2138 = vpop.permute.xlu0 %2137
      %2139 = vrot.lane.b32.xlu0 %v927, 12
      %v2140 = vpop.permute.xlu0 %2139
      %2141 = vrot.lane.b32.xlu0 %v928, 12
      %v2142 = vpop.permute.xlu0 %2141
      %2143 = vrot.lane.b32.xlu0 %v929, 12
      %v2144 = vpop.permute.xlu0 %2143
      %2145 = vrot.lane.b32.xlu0 %v930, 12
      %v2146 = vpop.permute.xlu0 %2145
      %2147 = vrot.lane.b32.xlu0 %v931, 12
      %v2148 = vpop.permute.xlu0 %2147
      %2277 = vrot.lane.b32.xlu0 %v932, 15
      %v2278 = vpop.permute.xlu0 %2277
      %2279 = vrot.lane.b32.xlu0 %v933, 15
      %v2280 = vpop.permute.xlu0 %2279
      %2281 = vrot.lane.b32.xlu0 %v934, 15
      %v2282 = vpop.permute.xlu0 %2281
      %2283 = vrot.lane.b32.xlu0 %v935, 15
      %v2284 = vpop.permute.xlu0 %2283
      %2285 = vrot.lane.b32.xlu0 %v936, 15
      %v2286 = vpop.permute.xlu0 %2285
      %2287 = vrot.lane.b32.xlu0 %v937, 15
      %v2288 = vpop.permute.xlu0 %2287
      %2289 = vrot.lane.b32.xlu0 %v938, 15
      %v2290 = vpop.permute.xlu0 %2289
      %2291 = vrot.lane.b32.xlu0 %v939, 15
      %v2292 = vpop.permute.xlu0 %2291
      %2293 = vrot.lane.b32.xlu0 %v940, 15
      %v2294 = vpop.permute.xlu0 %2293
      %2295 = vrot.lane.b32.xlu0 %v941, 15
      %v2296 = vpop.permute.xlu0 %2295
      %2297 = vrot.lane.b32.xlu0 %v942, 15
      %v2298 = vpop.permute.xlu0 %2297
      %2299 = vrot.lane.b32.xlu0 %v943, 15
      %v2300 = vpop.permute.xlu0 %2299
      %2301 = vrot.lane.b32.xlu0 %v944, 15
      %v2302 = vpop.permute.xlu0 %2301
      %2303 = vrot.lane.b32.xlu0 %v945, 15
      %v2304 = vpop.permute.xlu0 %2303
      %2305 = vrot.lane.b32.xlu0 %v946, 15
      %v2306 = vpop.permute.xlu0 %2305
      %2307 = vrot.lane.b32.xlu0 %v947, 15
      %v2308 = vpop.permute.xlu0 %2307
      %2309 = vrot.lane.b32.xlu0 %v948, 15
      %v2310 = vpop.permute.xlu0 %2309
      %2311 = vrot.lane.b32.xlu0 %v949, 15
      %v2312 = vpop.permute.xlu0 %2311
      %2313 = vrot.lane.b32.xlu0 %v950, 15
      %v2314 = vpop.permute.xlu0 %2313
      %2315 = vrot.lane.b32.xlu0 %v951, 15
      %v2316 = vpop.permute.xlu0 %2315
      %2317 = vrot.lane.b32.xlu0 %v952, 15
      %v2318 = vpop.permute.xlu0 %2317
      %2319 = vrot.lane.b32.xlu0 %v953, 15
      %v2320 = vpop.permute.xlu0 %2319
      %2321 = vrot.lane.b32.xlu0 %v954, 15
      %v2322 = vpop.permute.xlu0 %2321
      %2323 = vrot.lane.b32.xlu0 %v955, 15
      %v2324 = vpop.permute.xlu0 %2323
      %2325 = vrot.lane.b32.xlu0 %v956, 15
      %v2326 = vpop.permute.xlu0 %2325
      %2327 = vrot.lane.b32.xlu0 %v957, 15
      %v2328 = vpop.permute.xlu0 %2327
      %2329 = vrot.lane.b32.xlu0 %v958, 15
      %v2330 = vpop.permute.xlu0 %2329
      %2331 = vrot.lane.b32.xlu0 %v959, 15
      %v2332 = vpop.permute.xlu0 %2331
      %2333 = vrot.lane.b32.xlu0 %v960, 15
      %v2334 = vpop.permute.xlu0 %2333
      %2335 = vrot.lane.b32.xlu0 %v961, 15
      %v2336 = vpop.permute.xlu0 %2335
      %2337 = vrot.lane.b32.xlu0 %v962, 15
      %v2338 = vpop.permute.xlu0 %2337
      %2339 = vrot.lane.b32.xlu0 %v963, 15
      %v2340 = vpop.permute.xlu0 %2339
      %2341 = vrot.lane.b32.xlu0 %v964, 15
      %v2342 = vpop.permute.xlu0 %2341
      %2343 = vrot.lane.b32.xlu0 %v965, 15
      %v2344 = vpop.permute.xlu0 %2343
      %2345 = vrot.lane.b32.xlu0 %v966, 15
      %v2346 = vpop.permute.xlu0 %2345
      %2347 = vrot.lane.b32.xlu0 %v967, 15
      %v2348 = vpop.permute.xlu0 %2347
      %2349 = vrot.lane.b32.xlu0 %v968, 15
      %v2350 = vpop.permute.xlu0 %2349
      %2351 = vrot.lane.b32.xlu0 %v969, 15
      %v2352 = vpop.permute.xlu0 %2351
      %2353 = vrot.lane.b32.xlu0 %v970, 15
      %v2354 = vpop.permute.xlu0 %2353
      %2355 = vrot.lane.b32.xlu0 %v971, 15
      %v2356 = vpop.permute.xlu0 %2355
      %2357 = vrot.lane.b32.xlu0 %v972, 15
      %v2358 = vpop.permute.xlu0 %2357
      %2359 = vrot.lane.b32.xlu0 %v973, 15
      %v2360 = vpop.permute.xlu0 %2359
      %2361 = vrot.lane.b32.xlu0 %v974, 15
      %v2362 = vpop.permute.xlu0 %2361
      %2363 = vrot.lane.b32.xlu0 %v975, 15
      %v2364 = vpop.permute.xlu0 %2363
      %2365 = vrot.lane.b32.xlu0 %v976, 15
      %v2366 = vpop.permute.xlu0 %2365
      %2367 = vrot.lane.b32.xlu0 %v977, 15
      %v2368 = vpop.permute.xlu0 %2367
      %2369 = vrot.lane.b32.xlu0 %v978, 15
      %v2370 = vpop.permute.xlu0 %2369
      %2371 = vrot.lane.b32.xlu0 %v979, 15
      %v2372 = vpop.permute.xlu0 %2371
      %2373 = vrot.lane.b32.xlu0 %v980, 15
      %v2374 = vpop.permute.xlu0 %2373
      %2375 = vrot.lane.b32.xlu0 %v981, 15
      %v2376 = vpop.permute.xlu0 %2375
      %2377 = vrot.lane.b32.xlu0 %v982, 15
      %v2378 = vpop.permute.xlu0 %2377
      %2379 = vrot.lane.b32.xlu0 %v983, 15
      %v2380 = vpop.permute.xlu0 %2379
      %2381 = vrot.lane.b32.xlu0 %v984, 15
      %v2382 = vpop.permute.xlu0 %2381
      %2383 = vrot.lane.b32.xlu0 %v985, 15
      %v2384 = vpop.permute.xlu0 %2383
      %2385 = vrot.lane.b32.xlu0 %v986, 15
      %v2386 = vpop.permute.xlu0 %2385
      %2387 = vrot.lane.b32.xlu0 %v987, 15
      %v2388 = vpop.permute.xlu0 %2387
      %2389 = vrot.lane.b32.xlu0 %v988, 15
      %v2390 = vpop.permute.xlu0 %2389
      %2391 = vrot.lane.b32.xlu0 %v989, 15
      %v2392 = vpop.permute.xlu0 %2391
      %2393 = vrot.lane.b32.xlu0 %v990, 15
      %v2394 = vpop.permute.xlu0 %2393
      %2395 = vrot.lane.b32.xlu0 %v991, 15
      %v2396 = vpop.permute.xlu0 %2395
      %2397 = vrot.lane.b32.xlu0 %v992, 15
      %v2398 = vpop.permute.xlu0 %2397
      %2399 = vrot.lane.b32.xlu0 %v993, 15
      %v2400 = vpop.permute.xlu0 %2399
      %2401 = vrot.lane.b32.xlu0 %v994, 15
      %v2402 = vpop.permute.xlu0 %2401
      %2403 = vrot.lane.b32.xlu0 %v995, 15
      %v2404 = vpop.permute.xlu0 %2403
      %2533 = vrot.lane.b32.xlu0 %v997, 18
      %v2534 = vpop.permute.xlu0 %2533
      %2535 = vrot.lane.b32.xlu0 %v998, 18
      %v2536 = vpop.permute.xlu0 %2535
      %2537 = vrot.lane.b32.xlu0 %v999, 18
      %v2538 = vpop.permute.xlu0 %2537
      %2539 = vrot.lane.b32.xlu0 %v1000, 18
      %v2540 = vpop.permute.xlu0 %2539
      %2541 = vrot.lane.b32.xlu0 %v1001, 18
      %v2542 = vpop.permute.xlu0 %2541
      %2543 = vrot.lane.b32.xlu0 %v1002, 18
      %v2544 = vpop.permute.xlu0 %2543
      %2545 = vrot.lane.b32.xlu0 %v1003, 18
      %v2546 = vpop.permute.xlu0 %2545
      %2547 = vrot.lane.b32.xlu0 %v1004, 18
      %v2548 = vpop.permute.xlu0 %2547
      %2549 = vrot.lane.b32.xlu0 %v1005, 18
      %v2550 = vpop.permute.xlu0 %2549
      %2551 = vrot.lane.b32.xlu0 %v1006, 18
      %v2552 = vpop.permute.xlu0 %2551
      %2553 = vrot.lane.b32.xlu0 %v1007, 18
      %v2554 = vpop.permute.xlu0 %2553
      %2555 = vrot.lane.b32.xlu0 %v1008, 18
      %v2556 = vpop.permute.xlu0 %2555
      %2557 = vrot.lane.b32.xlu0 %v1009, 18
      %v2558 = vpop.permute.xlu0 %2557
      %2559 = vrot.lane.b32.xlu0 %v1010, 18
      %v2560 = vpop.permute.xlu0 %2559
      %2561 = vrot.lane.b32.xlu0 %v1011, 18
      %v2562 = vpop.permute.xlu0 %2561
      %2563 = vrot.lane.b32.xlu0 %v1012, 18
      %v2564 = vpop.permute.xlu0 %2563
      %2565 = vrot.lane.b32.xlu0 %v1013, 18
      %v2566 = vpop.permute.xlu0 %2565
      %2567 = vrot.lane.b32.xlu0 %v1014, 18
      %v2568 = vpop.permute.xlu0 %2567
      %2569 = vrot.lane.b32.xlu0 %v1015, 18
      %v2570 = vpop.permute.xlu0 %2569
      %2571 = vrot.lane.b32.xlu0 %v1016, 18
      %v2572 = vpop.permute.xlu0 %2571
      %2573 = vrot.lane.b32.xlu0 %v1017, 18
      %v2574 = vpop.permute.xlu0 %2573
      %2575 = vrot.lane.b32.xlu0 %v1018, 18
      %v2576 = vpop.permute.xlu0 %2575
      %2577 = vrot.lane.b32.xlu0 %v1019, 18
      %v2578 = vpop.permute.xlu0 %2577
      %2579 = vrot.lane.b32.xlu0 %v1020, 18
      %v2580 = vpop.permute.xlu0 %2579
      %2581 = vrot.lane.b32.xlu0 %v1021, 18
      %v2582 = vpop.permute.xlu0 %2581
      %2583 = vrot.lane.b32.xlu0 %v1022, 18
      %v2584 = vpop.permute.xlu0 %2583
      %2585 = vrot.lane.b32.xlu0 %v1023, 18
      %v2586 = vpop.permute.xlu0 %2585
      %2587 = vrot.lane.b32.xlu0 %v1024, 18
      %v2588 = vpop.permute.xlu0 %2587
      %2589 = vrot.lane.b32.xlu0 %v1025, 18
      %v2590 = vpop.permute.xlu0 %2589
      %2591 = vrot.lane.b32.xlu0 %v1026, 18
      %v2592 = vpop.permute.xlu0 %2591
      %2593 = vrot.lane.b32.xlu0 %v1027, 18
      %v2594 = vpop.permute.xlu0 %2593
      %2595 = vrot.lane.b32.xlu0 %v1028, 18
      %v2596 = vpop.permute.xlu0 %2595
      %2597 = vrot.lane.b32.xlu0 %v1029, 18
      %v2598 = vpop.permute.xlu0 %2597
      %2599 = vrot.lane.b32.xlu0 %v1030, 18
      %v2600 = vpop.permute.xlu0 %2599
      %2601 = vrot.lane.b32.xlu0 %v1031, 18
      %v2602 = vpop.permute.xlu0 %2601
      %2603 = vrot.lane.b32.xlu0 %v1032, 18
      %v2604 = vpop.permute.xlu0 %2603
      %2605 = vrot.lane.b32.xlu0 %v1033, 18
      %v2606 = vpop.permute.xlu0 %2605
      %2607 = vrot.lane.b32.xlu0 %v1034, 18
      %v2608 = vpop.permute.xlu0 %2607
      %2609 = vrot.lane.b32.xlu0 %v1035, 18
      %v2610 = vpop.permute.xlu0 %2609
      %2611 = vrot.lane.b32.xlu0 %v1036, 18
      %v2612 = vpop.permute.xlu0 %2611
      %2613 = vrot.lane.b32.xlu0 %v1037, 18
      %v2614 = vpop.permute.xlu0 %2613
      %2615 = vrot.lane.b32.xlu0 %v1038, 18
      %v2616 = vpop.permute.xlu0 %2615
      %2617 = vrot.lane.b32.xlu0 %v1039, 18
      %v2618 = vpop.permute.xlu0 %2617
      %2619 = vrot.lane.b32.xlu0 %v1040, 18
      %v2620 = vpop.permute.xlu0 %2619
      %2621 = vrot.lane.b32.xlu0 %v1041, 18
      %v2622 = vpop.permute.xlu0 %2621
      %2623 = vrot.lane.b32.xlu0 %v1042, 18
      %v2624 = vpop.permute.xlu0 %2623
      %2625 = vrot.lane.b32.xlu0 %v1043, 18
      %v2626 = vpop.permute.xlu0 %2625
      %2627 = vrot.lane.b32.xlu0 %v1044, 18
      %v2628 = vpop.permute.xlu0 %2627
      %2629 = vrot.lane.b32.xlu0 %v1045, 18
      %v2630 = vpop.permute.xlu0 %2629
      %2631 = vrot.lane.b32.xlu0 %v1046, 18
      %v2632 = vpop.permute.xlu0 %2631
      %2633 = vrot.lane.b32.xlu0 %v1047, 18
      %v2634 = vpop.permute.xlu0 %2633
      %2635 = vrot.lane.b32.xlu0 %v1048, 18
      %v2636 = vpop.permute.xlu0 %2635
      %2637 = vrot.lane.b32.xlu0 %v1049, 18
      %v2638 = vpop.permute.xlu0 %2637
      %2639 = vrot.lane.b32.xlu0 %v1050, 18
      %v2640 = vpop.permute.xlu0 %2639
      %2641 = vrot.lane.b32.xlu0 %v1051, 18
      %v2642 = vpop.permute.xlu0 %2641
      %2643 = vrot.lane.b32.xlu0 %v1052, 18
      %v2644 = vpop.permute.xlu0 %2643
      %2645 = vrot.lane.b32.xlu0 %v1053, 18
      %v2646 = vpop.permute.xlu0 %2645
      %2647 = vrot.lane.b32.xlu0 %v1054, 18
      %v2648 = vpop.permute.xlu0 %2647
      %2649 = vrot.lane.b32.xlu0 %v1055, 18
      %v2650 = vpop.permute.xlu0 %2649
      %2651 = vrot.lane.b32.xlu0 %v1056, 18
      %v2652 = vpop.permute.xlu0 %2651
      %2653 = vrot.lane.b32.xlu0 %v1057, 18
      %v2654 = vpop.permute.xlu0 %2653
      %2655 = vrot.lane.b32.xlu0 %v1058, 18
      %v2656 = vpop.permute.xlu0 %2655
      %2657 = vrot.lane.b32.xlu0 %v1059, 18
      %v2658 = vpop.permute.xlu0 %2657
      %2659 = vrot.lane.b32.xlu0 %v1060, 18
      %v2660 = vpop.permute.xlu0 %2659
      %2789 = vrot.lane.b32.xlu0 %v1061, 21
      %v2790 = vpop.permute.xlu0 %2789
      %2791 = vrot.lane.b32.xlu0 %v1062, 21
      %v2792 = vpop.permute.xlu0 %2791
      %2793 = vrot.lane.b32.xlu0 %v1063, 21
      %v2794 = vpop.permute.xlu0 %2793
      %2795 = vrot.lane.b32.xlu0 %v1064, 21
      %v2796 = vpop.permute.xlu0 %2795
      %2797 = vrot.lane.b32.xlu0 %v1065, 21
      %v2798 = vpop.permute.xlu0 %2797
      %2799 = vrot.lane.b32.xlu0 %v1066, 21
      %v2800 = vpop.permute.xlu0 %2799
      %2801 = vrot.lane.b32.xlu0 %v1067, 21
      %v2802 = vpop.permute.xlu0 %2801
      %2803 = vrot.lane.b32.xlu0 %v1068, 21
      %v2804 = vpop.permute.xlu0 %2803
      %2805 = vrot.lane.b32.xlu0 %v1069, 21
      %v2806 = vpop.permute.xlu0 %2805
      %2807 = vrot.lane.b32.xlu0 %v1070, 21
      %v2808 = vpop.permute.xlu0 %2807
      %2809 = vrot.lane.b32.xlu0 %v1071, 21
      %v2810 = vpop.permute.xlu0 %2809
      %2811 = vrot.lane.b32.xlu0 %v1072, 21
      %v2812 = vpop.permute.xlu0 %2811
      %2813 = vrot.lane.b32.xlu0 %v1073, 21
      %v2814 = vpop.permute.xlu0 %2813
      %2815 = vrot.lane.b32.xlu0 %v1074, 21
      %v2816 = vpop.permute.xlu0 %2815
      %2817 = vrot.lane.b32.xlu0 %v1075, 21
      %v2818 = vpop.permute.xlu0 %2817
      %2819 = vrot.lane.b32.xlu0 %v1076, 21
      %v2820 = vpop.permute.xlu0 %2819
      %2821 = vrot.lane.b32.xlu0 %v1077, 21
      %v2822 = vpop.permute.xlu0 %2821
      %2823 = vrot.lane.b32.xlu0 %v1078, 21
      %v2824 = vpop.permute.xlu0 %2823
      %2825 = vrot.lane.b32.xlu0 %v1079, 21
      %v2826 = vpop.permute.xlu0 %2825
      %2827 = vrot.lane.b32.xlu0 %v1080, 21
      %v2828 = vpop.permute.xlu0 %2827
      %2829 = vrot.lane.b32.xlu0 %v1081, 21
      %v2830 = vpop.permute.xlu0 %2829
      %2831 = vrot.lane.b32.xlu0 %v1082, 21
      %v2832 = vpop.permute.xlu0 %2831
      %2833 = vrot.lane.b32.xlu0 %v1083, 21
      %v2834 = vpop.permute.xlu0 %2833
      %2835 = vrot.lane.b32.xlu0 %v1084, 21
      %v2836 = vpop.permute.xlu0 %2835
      %2837 = vrot.lane.b32.xlu0 %v1085, 21
      %v2838 = vpop.permute.xlu0 %2837
      %2839 = vrot.lane.b32.xlu0 %v1086, 21
      %v2840 = vpop.permute.xlu0 %2839
      %2841 = vrot.lane.b32.xlu0 %v1087, 21
      %v2842 = vpop.permute.xlu0 %2841
      %2843 = vrot.lane.b32.xlu0 %v1088, 21
      %v2844 = vpop.permute.xlu0 %2843
      %2845 = vrot.lane.b32.xlu0 %v1089, 21
      %v2846 = vpop.permute.xlu0 %2845
      %2847 = vrot.lane.b32.xlu0 %v1090, 21
      %v2848 = vpop.permute.xlu0 %2847
      %2849 = vrot.lane.b32.xlu0 %v1091, 21
      %v2850 = vpop.permute.xlu0 %2849
      %2851 = vrot.lane.b32.xlu0 %v1092, 21
      %v2852 = vpop.permute.xlu0 %2851
      %2853 = vrot.lane.b32.xlu0 %v1093, 21
      %v2854 = vpop.permute.xlu0 %2853
      %2855 = vrot.lane.b32.xlu0 %v1094, 21
      %v2856 = vpop.permute.xlu0 %2855
      %2857 = vrot.lane.b32.xlu0 %v1095, 21
      %v2858 = vpop.permute.xlu0 %2857
      %2859 = vrot.lane.b32.xlu0 %v1096, 21
      %v2860 = vpop.permute.xlu0 %2859
      %2861 = vrot.lane.b32.xlu0 %v1097, 21
      %v2862 = vpop.permute.xlu0 %2861
      %2863 = vrot.lane.b32.xlu0 %v1098, 21
      %v2864 = vpop.permute.xlu0 %2863
      %2865 = vrot.lane.b32.xlu0 %v1099, 21
      %v2866 = vpop.permute.xlu0 %2865
      %2867 = vrot.lane.b32.xlu0 %v1100, 21
      %v2868 = vpop.permute.xlu0 %2867
      %2869 = vrot.lane.b32.xlu0 %v1101, 21
      %v2870 = vpop.permute.xlu0 %2869
      %2871 = vrot.lane.b32.xlu0 %v1102, 21
      %v2872 = vpop.permute.xlu0 %2871
      %2873 = vrot.lane.b32.xlu0 %v1103, 21
      %v2874 = vpop.permute.xlu0 %2873
      %2875 = vrot.lane.b32.xlu0 %v1104, 21
      %v2876 = vpop.permute.xlu0 %2875
      %2877 = vrot.lane.b32.xlu0 %v1105, 21
      %v2878 = vpop.permute.xlu0 %2877
      %2879 = vrot.lane.b32.xlu0 %v1106, 21
      %v2880 = vpop.permute.xlu0 %2879
      %2881 = vrot.lane.b32.xlu0 %v1107, 21
      %v2882 = vpop.permute.xlu0 %2881
      %2883 = vrot.lane.b32.xlu0 %v1108, 21
      %v2884 = vpop.permute.xlu0 %2883
      %2885 = vrot.lane.b32.xlu0 %v1109, 21
      %v2886 = vpop.permute.xlu0 %2885
      %2887 = vrot.lane.b32.xlu0 %v1110, 21
      %v2888 = vpop.permute.xlu0 %2887
      %2889 = vrot.lane.b32.xlu0 %v1111, 21
      %v2890 = vpop.permute.xlu0 %2889
      %2891 = vrot.lane.b32.xlu0 %v1112, 21
      %v2892 = vpop.permute.xlu0 %2891
      %2893 = vrot.lane.b32.xlu0 %v1113, 21
      %v2894 = vpop.permute.xlu0 %2893
      %2895 = vrot.lane.b32.xlu0 %v1114, 21
      %v2896 = vpop.permute.xlu0 %2895
      %2897 = vrot.lane.b32.xlu0 %v1115, 21
      %v2898 = vpop.permute.xlu0 %2897
      %2899 = vrot.lane.b32.xlu0 %v1116, 21
      %v2900 = vpop.permute.xlu0 %2899
      %2901 = vrot.lane.b32.xlu0 %v1117, 21
      %v2902 = vpop.permute.xlu0 %2901
      %2903 = vrot.lane.b32.xlu0 %v1118, 21
      %v2904 = vpop.permute.xlu0 %2903
      %2905 = vrot.lane.b32.xlu0 %v1119, 21
      %v2906 = vpop.permute.xlu0 %2905
      %2907 = vrot.lane.b32.xlu0 %v1120, 21
      %v2908 = vpop.permute.xlu0 %2907
      %2909 = vrot.lane.b32.xlu0 %v1121, 21
      %v2910 = vpop.permute.xlu0 %2909
      %2911 = vrot.lane.b32.xlu0 %v1122, 21
      %v2912 = vpop.permute.xlu0 %2911
      %2913 = vrot.lane.b32.xlu0 %v1123, 21
      %v2914 = vpop.permute.xlu0 %2913
      %2915 = vrot.lane.b32.xlu0 %v1124, 21
      %v2916 = vpop.permute.xlu0 %2915
      %3045 = vrot.lane.b32.xlu0 %v1125, 24
      %v3046 = vpop.permute.xlu0 %3045
      %3047 = vrot.lane.b32.xlu0 %v1126, 24
      %v3048 = vpop.permute.xlu0 %3047
      %3049 = vrot.lane.b32.xlu0 %v1127, 24
      %v3050 = vpop.permute.xlu0 %3049
      %3051 = vrot.lane.b32.xlu0 %v1128, 24
      %v3052 = vpop.permute.xlu0 %3051
      %3053 = vrot.lane.b32.xlu0 %v1129, 24
      %v3054 = vpop.permute.xlu0 %3053
      %3055 = vrot.lane.b32.xlu0 %v1130, 24
      %v3056 = vpop.permute.xlu0 %3055
      %3057 = vrot.lane.b32.xlu0 %v1131, 24
      %v3058 = vpop.permute.xlu0 %3057
      %3059 = vrot.lane.b32.xlu0 %v1132, 24
      %v3060 = vpop.permute.xlu0 %3059
      %3061 = vrot.lane.b32.xlu0 %v1133, 24
      %v3062 = vpop.permute.xlu0 %3061
      %3063 = vrot.lane.b32.xlu0 %v1134, 24
      %v3064 = vpop.permute.xlu0 %3063
      %3065 = vrot.lane.b32.xlu0 %v1135, 24
      %v3066 = vpop.permute.xlu0 %3065
      %3067 = vrot.lane.b32.xlu0 %v1136, 24
      %v3068 = vpop.permute.xlu0 %3067
      %3069 = vrot.lane.b32.xlu0 %v1137, 24
      %v3070 = vpop.permute.xlu0 %3069
      %3071 = vrot.lane.b32.xlu0 %v1138, 24
      %v3072 = vpop.permute.xlu0 %3071
      %3073 = vrot.lane.b32.xlu0 %v1139, 24
      %v3074 = vpop.permute.xlu0 %3073
      %3075 = vrot.lane.b32.xlu0 %v1140, 24
      %v3076 = vpop.permute.xlu0 %3075
      %3077 = vrot.lane.b32.xlu0 %v1141, 24
      %v3078 = vpop.permute.xlu0 %3077
      %3079 = vrot.lane.b32.xlu0 %v1142, 24
      %v3080 = vpop.permute.xlu0 %3079
      %3081 = vrot.lane.b32.xlu0 %v1143, 24
      %v3082 = vpop.permute.xlu0 %3081
      %3083 = vrot.lane.b32.xlu0 %v1144, 24
      %v3084 = vpop.permute.xlu0 %3083
      %3085 = vrot.lane.b32.xlu0 %v1145, 24
      %v3086 = vpop.permute.xlu0 %3085
      %3087 = vrot.lane.b32.xlu0 %v1146, 24
      %v3088 = vpop.permute.xlu0 %3087
      %3089 = vrot.lane.b32.xlu0 %v1147, 24
      %v3090 = vpop.permute.xlu0 %3089
      %3091 = vrot.lane.b32.xlu0 %v1148, 24
      %v3092 = vpop.permute.xlu0 %3091
      %3093 = vrot.lane.b32.xlu0 %v1149, 24
      %v3094 = vpop.permute.xlu0 %3093
      %3095 = vrot.lane.b32.xlu0 %v1150, 24
      %v3096 = vpop.permute.xlu0 %3095
      %3097 = vrot.lane.b32.xlu0 %v1151, 24
      %v3098 = vpop.permute.xlu0 %3097
      %3099 = vrot.lane.b32.xlu0 %v1152, 24
      %v3100 = vpop.permute.xlu0 %3099
      %3101 = vrot.lane.b32.xlu0 %v1153, 24
      %v3102 = vpop.permute.xlu0 %3101
      %3103 = vrot.lane.b32.xlu0 %v1154, 24
      %v3104 = vpop.permute.xlu0 %3103
      %3105 = vrot.lane.b32.xlu0 %v1155, 24
      %v3106 = vpop.permute.xlu0 %3105
      %3107 = vrot.lane.b32.xlu0 %v1156, 24
      %v3108 = vpop.permute.xlu0 %3107
      %3109 = vrot.lane.b32.xlu0 %v1157, 24
      %v3110 = vpop.permute.xlu0 %3109
      %3111 = vrot.lane.b32.xlu0 %v1158, 24
      %v3112 = vpop.permute.xlu0 %3111
      %3113 = vrot.lane.b32.xlu0 %v1159, 24
      %v3114 = vpop.permute.xlu0 %3113
      %3115 = vrot.lane.b32.xlu0 %v1160, 24
      %v3116 = vpop.permute.xlu0 %3115
      %3117 = vrot.lane.b32.xlu0 %v1161, 24
      %v3118 = vpop.permute.xlu0 %3117
      %3119 = vrot.lane.b32.xlu0 %v1162, 24
      %v3120 = vpop.permute.xlu0 %3119
      %3121 = vrot.lane.b32.xlu0 %v1163, 24
      %v3122 = vpop.permute.xlu0 %3121
      %3123 = vrot.lane.b32.xlu0 %v1164, 24
      %v3124 = vpop.permute.xlu0 %3123
      %3125 = vrot.lane.b32.xlu0 %v1165, 24
      %v3126 = vpop.permute.xlu0 %3125
      %3127 = vrot.lane.b32.xlu0 %v1166, 24
      %v3128 = vpop.permute.xlu0 %3127
      %3129 = vrot.lane.b32.xlu0 %v1167, 24
      %v3130 = vpop.permute.xlu0 %3129
      %3131 = vrot.lane.b32.xlu0 %v1168, 24
      %v3132 = vpop.permute.xlu0 %3131
      %3133 = vrot.lane.b32.xlu0 %v1169, 24
      %v3134 = vpop.permute.xlu0 %3133
      %3135 = vrot.lane.b32.xlu0 %v1170, 24
      %v3136 = vpop.permute.xlu0 %3135
      %3137 = vrot.lane.b32.xlu0 %v1171, 24
      %v3138 = vpop.permute.xlu0 %3137
      %3139 = vrot.lane.b32.xlu0 %v1172, 24
      %v3140 = vpop.permute.xlu0 %3139
      %3141 = vrot.lane.b32.xlu0 %v1173, 24
      %v3142 = vpop.permute.xlu0 %3141
      %3143 = vrot.lane.b32.xlu0 %v1174, 24
      %v3144 = vpop.permute.xlu0 %3143
      %3145 = vrot.lane.b32.xlu0 %v1175, 24
      %v3146 = vpop.permute.xlu0 %3145
      %3147 = vrot.lane.b32.xlu0 %v1176, 24
      %v3148 = vpop.permute.xlu0 %3147
      %3149 = vrot.lane.b32.xlu0 %v1177, 24
      %v3150 = vpop.permute.xlu0 %3149
      %3151 = vrot.lane.b32.xlu0 %v1178, 24
      %v3152 = vpop.permute.xlu0 %3151
      %3153 = vrot.lane.b32.xlu0 %v1179, 24
      %v3154 = vpop.permute.xlu0 %3153
      %3155 = vrot.lane.b32.xlu0 %v1180, 24
      %v3156 = vpop.permute.xlu0 %3155
      %3157 = vrot.lane.b32.xlu0 %v1181, 24
      %v3158 = vpop.permute.xlu0 %3157
      %3159 = vrot.lane.b32.xlu0 %v1182, 24
      %v3160 = vpop.permute.xlu0 %3159
      %3161 = vrot.lane.b32.xlu0 %v1183, 24
      %v3162 = vpop.permute.xlu0 %3161
      %3163 = vrot.lane.b32.xlu0 %v1184, 24
      %v3164 = vpop.permute.xlu0 %3163
      %3165 = vrot.lane.b32.xlu0 %v1185, 24
      %v3166 = vpop.permute.xlu0 %3165
      %3167 = vrot.lane.b32.xlu0 %v1186, 24
      %v3168 = vpop.permute.xlu0 %3167
      %3169 = vrot.lane.b32.xlu0 %v1187, 24
      %v3170 = vpop.permute.xlu0 %3169
      %3171 = vrot.lane.b32.xlu0 %v1188, 24
      %v3172 = vpop.permute.xlu0 %3171
      %v3237 = vsel %vm459, %v612, %v1254
      %v3238 = vsel %vm459, %v613, %v1256
      %v3239 = vsel %vm459, %v614, %v1258
      %v3240 = vsel %vm459, %v615, %v1260
      %v3241 = vsel %vm459, %v616, %v1262
      %v3242 = vsel %vm459, %v617, %v1264
      %v3243 = vsel %vm459, %v618, %v1266
      %v3244 = vsel %vm459, %v619, %v1268
      %v3245 = vsel %vm459, %v620, %v1270
      %v3246 = vsel %vm459, %v621, %v1272
      %v3247 = vsel %vm459, %v622, %v1274
      %v3248 = vsel %vm459, %v623, %v1276
      %v3249 = vsel %vm459, %v624, %v1278
      %v3250 = vsel %vm459, %v625, %v1280
      %v3251 = vsel %vm459, %v626, %v1282
      %v3252 = vsel %vm459, %v627, %v1284
      %v3253 = vsel %vm459, %v628, %v1286
      %v3254 = vsel %vm459, %v629, %v1288
      %v3255 = vsel %vm459, %v630, %v1290
      %v3256 = vsel %vm459, %v631, %v1292
      %v3257 = vsel %vm459, %v632, %v1294
      %v3258 = vsel %vm459, %v633, %v1296
      %v3259 = vsel %vm459, %v634, %v1298
      %v3260 = vsel %vm459, %v635, %v1300
      %v3261 = vsel %vm459, %v636, %v1302
      %v3262 = vsel %vm459, %v637, %v1304
      %v3263 = vsel %vm459, %v638, %v1306
      %v3264 = vsel %vm459, %v639, %v1308
      %v3265 = vsel %vm459, %v640, %v1310
      %v3266 = vsel %vm459, %v641, %v1312
      %v3267 = vsel %vm459, %v642, %v1314
      %v3268 = vsel %vm459, %v643, %v1316
      %v3269 = vsel %vm459, %v644, %v1318
      %v3270 = vsel %vm459, %v645, %v1320
      %v3271 = vsel %vm459, %v646, %v1322
      %v3272 = vsel %vm459, %v647, %v1324
      %v3273 = vsel %vm459, %v648, %v1326
      %v3274 = vsel %vm459, %v649, %v1328
      %v3275 = vsel %vm459, %v650, %v1330
      %v3276 = vsel %vm459, %v651, %v1332
      %v3277 = vsel %vm459, %v652, %v1334
      %v3278 = vsel %vm459, %v653, %v1336
      %v3279 = vsel %vm459, %v654, %v1338
      %v3280 = vsel %vm459, %v655, %v1340
      %v3281 = vsel %vm459, %v656, %v1342
      %v3282 = vsel %vm459, %v657, %v1344
      %v3283 = vsel %vm459, %v658, %v1346
      %v3284 = vsel %vm459, %v659, %v1348
      %v3285 = vsel %vm459, %v660, %v1350
      %v3286 = vsel %vm459, %v661, %v1352
      %v3287 = vsel %vm459, %v662, %v1354
      %v3288 = vsel %vm459, %v663, %v1356
      %v3289 = vsel %vm459, %v664, %v1358
      %v3290 = vsel %vm459, %v665, %v1360
      %v3291 = vsel %vm459, %v666, %v1362
      %v3292 = vsel %vm459, %v667, %v1364
      %v3293 = vsel %vm459, %v668, %v1366
      %v3294 = vsel %vm459, %v669, %v1368
      %v3295 = vsel %vm459, %v670, %v1370
      %v3296 = vsel %vm459, %v671, %v1372
      %v3297 = vsel %vm459, %v672, %v1374
      %v3298 = vsel %vm459, %v673, %v1376
      %v3299 = vsel %vm459, %v674, %v1378
      %v3300 = vsel %vm459, %v675, %v1380
      %vm3301 = vcmask 48128
      %v3302 = vsel %vm3301, %v3237, %v1510
      %v3303 = vsel %vm3301, %v3238, %v1512
      %v3304 = vsel %vm3301, %v3239, %v1514
      %v3305 = vsel %vm3301, %v3240, %v1516
      %v3306 = vsel %vm3301, %v3241, %v1518
      %v3307 = vsel %vm3301, %v3242, %v1520
      %v3308 = vsel %vm3301, %v3243, %v1522
      %v3309 = vsel %vm3301, %v3244, %v1524
      %v3310 = vsel %vm3301, %v3245, %v1526
      %v3311 = vsel %vm3301, %v3246, %v1528
      %v3312 = vsel %vm3301, %v3247, %v1530
      %v3313 = vsel %vm3301, %v3248, %v1532
      %v3314 = vsel %vm3301, %v3249, %v1534
      %v3315 = vsel %vm3301, %v3250, %v1536
      %v3316 = vsel %vm3301, %v3251, %v1538
      %v3317 = vsel %vm3301, %v3252, %v1540
      %v3318 = vsel %vm3301, %v3253, %v1542
      %v3319 = vsel %vm3301, %v3254, %v1544
      %v3320 = vsel %vm3301, %v3255, %v1546
      %v3321 = vsel %vm3301, %v3256, %v1548
      %v3322 = vsel %vm3301, %v3257, %v1550
      %v3323 = vsel %vm3301, %v3258, %v1552
      %v3324 = vsel %vm3301, %v3259, %v1554
      %v3325 = vsel %vm3301, %v3260, %v1556
      %v3326 = vsel %vm3301, %v3261, %v1558
      %v3327 = vsel %vm3301, %v3262, %v1560
      %v3328 = vsel %vm3301, %v3263, %v1562
      %v3329 = vsel %vm3301, %v3264, %v1564
      %v3330 = vsel %vm3301, %v3265, %v1566
      %v3331 = vsel %vm3301, %v3266, %v1568
      %v3332 = vsel %vm3301, %v3267, %v1570
      %v3333 = vsel %vm3301, %v3268, %v1572
      %v3334 = vsel %vm3301, %v3269, %v1574
      %v3335 = vsel %vm3301, %v3270, %v1576
      %v3336 = vsel %vm3301, %v3271, %v1578
      %v3337 = vsel %vm3301, %v3272, %v1580
      %v3338 = vsel %vm3301, %v3273, %v1582
      %v3339 = vsel %vm3301, %v3274, %v1584
      %v3340 = vsel %vm3301, %v3275, %v1586
      %v3341 = vsel %vm3301, %v3276, %v1588
      %v3342 = vsel %vm3301, %v3277, %v1590
      %v3343 = vsel %vm3301, %v3278, %v1592
      %v3344 = vsel %vm3301, %v3279, %v1594
      %v3345 = vsel %vm3301, %v3280, %v1596
      %v3346 = vsel %vm3301, %v3281, %v1598
      %v3347 = vsel %vm3301, %v3282, %v1600
      %v3348 = vsel %vm3301, %v3283, %v1602
      %v3349 = vsel %vm3301, %v3284, %v1604
      %v3350 = vsel %vm3301, %v3285, %v1606
      %v3351 = vsel %vm3301, %v3286, %v1608
      %v3352 = vsel %vm3301, %v3287, %v1610
      %v3353 = vsel %vm3301, %v3288, %v1612
      %v3354 = vsel %vm3301, %v3289, %v1614
      %v3355 = vsel %vm3301, %v3290, %v1616
      %v3356 = vsel %vm3301, %v3291, %v1618
      %v3357 = vsel %vm3301, %v3292, %v1620
      %v3358 = vsel %vm3301, %v3293, %v1622
      %v3359 = vsel %vm3301, %v3294, %v1624
      %v3360 = vsel %vm3301, %v3295, %v1626
      %v3361 = vsel %vm3301, %v3296, %v1628
      %v3362 = vsel %vm3301, %v3297, %v1630
      %v3363 = vsel %vm3301, %v3298, %v1632
      %v3364 = vsel %vm3301, %v3299, %v1634
      %v3365 = vsel %vm3301, %v3300, %v1636
      %vm3366 = vcmask 72704
      %v3367 = vsel %vm3366, %v3302, %v1766
      %v3368 = vsel %vm3366, %v3303, %v1768
      %v3369 = vsel %vm3366, %v3304, %v1770
      %v3370 = vsel %vm3366, %v3305, %v1772
      %v3371 = vsel %vm3366, %v3306, %v1774
      %v3372 = vsel %vm3366, %v3307, %v1776
      %v3373 = vsel %vm3366, %v3308, %v1778
      %v3374 = vsel %vm3366, %v3309, %v1780
      %v3375 = vsel %vm3366, %v3310, %v1782
      %v3376 = vsel %vm3366, %v3311, %v1784
      %v3377 = vsel %vm3366, %v3312, %v1786
      %v3378 = vsel %vm3366, %v3313, %v1788
      %v3379 = vsel %vm3366, %v3314, %v1790
      %v3380 = vsel %vm3366, %v3315, %v1792
      %v3381 = vsel %vm3366, %v3316, %v1794
      %v3382 = vsel %vm3366, %v3317, %v1796
      %v3383 = vsel %vm3366, %v3318, %v1798
      %v3384 = vsel %vm3366, %v3319, %v1800
      %v3385 = vsel %vm3366, %v3320, %v1802
      %v3386 = vsel %vm3366, %v3321, %v1804
      %v3387 = vsel %vm3366, %v3322, %v1806
      %v3388 = vsel %vm3366, %v3323, %v1808
      %v3389 = vsel %vm3366, %v3324, %v1810
      %v3390 = vsel %vm3366, %v3325, %v1812
      %v3391 = vsel %vm3366, %v3326, %v1814
      %v3392 = vsel %vm3366, %v3327, %v1816
      %v3393 = vsel %vm3366, %v3328, %v1818
      %v3394 = vsel %vm3366, %v3329, %v1820
      %v3395 = vsel %vm3366, %v3330, %v1822
      %v3396 = vsel %vm3366, %v3331, %v1824
      %v3397 = vsel %vm3366, %v3332, %v1826
      %v3398 = vsel %vm3366, %v3333, %v1828
      %v3399 = vsel %vm3366, %v3334, %v1830
      %v3400 = vsel %vm3366, %v3335, %v1832
      %v3401 = vsel %vm3366, %v3336, %v1834
      %v3402 = vsel %vm3366, %v3337, %v1836
      %v3403 = vsel %vm3366, %v3338, %v1838
      %v3404 = vsel %vm3366, %v3339, %v1840
      %v3405 = vsel %vm3366, %v3340, %v1842
      %v3406 = vsel %vm3366, %v3341, %v1844
      %v3407 = vsel %vm3366, %v3342, %v1846
      %v3408 = vsel %vm3366, %v3343, %v1848
      %v3409 = vsel %vm3366, %v3344, %v1850
      %v3410 = vsel %vm3366, %v3345, %v1852
      %v3411 = vsel %vm3366, %v3346, %v1854
      %v3412 = vsel %vm3366, %v3347, %v1856
      %v3413 = vsel %vm3366, %v3348, %v1858
      %v3414 = vsel %vm3366, %v3349, %v1860
      %v3415 = vsel %vm3366, %v3350, %v1862
      %v3416 = vsel %vm3366, %v3351, %v1864
      %v3417 = vsel %vm3366, %v3352, %v1866
      %v3418 = vsel %vm3366, %v3353, %v1868
      %v3419 = vsel %vm3366, %v3354, %v1870
      %v3420 = vsel %vm3366, %v3355, %v1872
      %v3421 = vsel %vm3366, %v3356, %v1874
      %v3422 = vsel %vm3366, %v3357, %v1876
      %v3423 = vsel %vm3366, %v3358, %v1878
      %v3424 = vsel %vm3366, %v3359, %v1880
      %v3425 = vsel %vm3366, %v3360, %v1882
      %v3426 = vsel %vm3366, %v3361, %v1884
      %v3427 = vsel %vm3366, %v3362, %v1886
      %v3428 = vsel %vm3366, %v3363, %v1888
      %v3429 = vsel %vm3366, %v3364, %v1890
      %v3430 = vsel %vm3366, %v3365, %v1892
      %vm3431 = vcmask 97280
      %v3432 = vsel %vm3431, %v3367, %v2022
      %v3433 = vsel %vm3431, %v3368, %v2024
      %v3434 = vsel %vm3431, %v3369, %v2026
      %v3435 = vsel %vm3431, %v3370, %v2028
      %v3436 = vsel %vm3431, %v3371, %v2030
      %v3437 = vsel %vm3431, %v3372, %v2032
      %v3438 = vsel %vm3431, %v3373, %v2034
      %v3439 = vsel %vm3431, %v3374, %v2036
      %v3440 = vsel %vm3431, %v3375, %v2038
      %v3441 = vsel %vm3431, %v3376, %v2040
      %v3442 = vsel %vm3431, %v3377, %v2042
      %v3443 = vsel %vm3431, %v3378, %v2044
      %v3444 = vsel %vm3431, %v3379, %v2046
      %v3445 = vsel %vm3431, %v3380, %v2048
      %v3446 = vsel %vm3431, %v3381, %v2050
      %v3447 = vsel %vm3431, %v3382, %v2052
      %v3448 = vsel %vm3431, %v3383, %v2054
      %v3449 = vsel %vm3431, %v3384, %v2056
      %v3450 = vsel %vm3431, %v3385, %v2058
      %v3451 = vsel %vm3431, %v3386, %v2060
      %v3452 = vsel %vm3431, %v3387, %v2062
      %v3453 = vsel %vm3431, %v3388, %v2064
      %v3454 = vsel %vm3431, %v3389, %v2066
      %v3455 = vsel %vm3431, %v3390, %v2068
      %v3456 = vsel %vm3431, %v3391, %v2070
      %v3457 = vsel %vm3431, %v3392, %v2072
      %v3458 = vsel %vm3431, %v3393, %v2074
      %v3459 = vsel %vm3431, %v3394, %v2076
      %v3460 = vsel %vm3431, %v3395, %v2078
      %v3461 = vsel %vm3431, %v3396, %v2080
      %v3462 = vsel %vm3431, %v3397, %v2082
      %v3463 = vsel %vm3431, %v3398, %v2084
      %v3464 = vsel %vm3431, %v3399, %v2086
      %v3465 = vsel %vm3431, %v3400, %v2088
      %v3466 = vsel %vm3431, %v3401, %v2090
      %v3467 = vsel %vm3431, %v3402, %v2092
      %v3468 = vsel %vm3431, %v3403, %v2094
      %v3469 = vsel %vm3431, %v3404, %v2096
      %v3470 = vsel %vm3431, %v3405, %v2098
      %v3471 = vsel %vm3431, %v3406, %v2100
      %v3472 = vsel %vm3431, %v3407, %v2102
      %v3473 = vsel %vm3431, %v3408, %v2104
      %v3474 = vsel %vm3431, %v3409, %v2106
      %v3475 = vsel %vm3431, %v3410, %v2108
      %v3476 = vsel %vm3431, %v3411, %v2110
      %v3477 = vsel %vm3431, %v3412, %v2112
      %v3478 = vsel %vm3431, %v3413, %v2114
      %v3479 = vsel %vm3431, %v3414, %v2116
      %v3480 = vsel %vm3431, %v3415, %v2118
      %v3481 = vsel %vm3431, %v3416, %v2120
      %v3482 = vsel %vm3431, %v3417, %v2122
      %v3483 = vsel %vm3431, %v3418, %v2124
      %v3484 = vsel %vm3431, %v3419, %v2126
      %v3485 = vsel %vm3431, %v3420, %v2128
      %v3486 = vsel %vm3431, %v3421, %v2130
      %v3487 = vsel %vm3431, %v3422, %v2132
      %v3488 = vsel %vm3431, %v3423, %v2134
      %v3489 = vsel %vm3431, %v3424, %v2136
      %v3490 = vsel %vm3431, %v3425, %v2138
      %v3491 = vsel %vm3431, %v3426, %v2140
      %v3492 = vsel %vm3431, %v3427, %v2142
      %v3493 = vsel %vm3431, %v3428, %v2144
      %v3494 = vsel %vm3431, %v3429, %v2146
      %v3495 = vsel %vm3431, %v3430, %v2148
      %vm3496 = vcmask 121856
      %v3497 = vsel %vm3496, %v3432, %v2278
      %v3498 = vsel %vm3496, %v3433, %v2280
      %v3499 = vsel %vm3496, %v3434, %v2282
      %v3500 = vsel %vm3496, %v3435, %v2284
      %v3501 = vsel %vm3496, %v3436, %v2286
      %v3502 = vsel %vm3496, %v3437, %v2288
      %v3503 = vsel %vm3496, %v3438, %v2290
      %v3504 = vsel %vm3496, %v3439, %v2292
      %v3505 = vsel %vm3496, %v3440, %v2294
      %v3506 = vsel %vm3496, %v3441, %v2296
      %v3507 = vsel %vm3496, %v3442, %v2298
      %v3508 = vsel %vm3496, %v3443, %v2300
      %v3509 = vsel %vm3496, %v3444, %v2302
      %v3510 = vsel %vm3496, %v3445, %v2304
      %v3511 = vsel %vm3496, %v3446, %v2306
      %v3512 = vsel %vm3496, %v3447, %v2308
      %v3513 = vsel %vm3496, %v3448, %v2310
      %v3514 = vsel %vm3496, %v3449, %v2312
      %v3515 = vsel %vm3496, %v3450, %v2314
      %v3516 = vsel %vm3496, %v3451, %v2316
      %v3517 = vsel %vm3496, %v3452, %v2318
      %v3518 = vsel %vm3496, %v3453, %v2320
      %v3519 = vsel %vm3496, %v3454, %v2322
      %v3520 = vsel %vm3496, %v3455, %v2324
      %v3521 = vsel %vm3496, %v3456, %v2326
      %v3522 = vsel %vm3496, %v3457, %v2328
      %v3523 = vsel %vm3496, %v3458, %v2330
      %v3524 = vsel %vm3496, %v3459, %v2332
      %v3525 = vsel %vm3496, %v3460, %v2334
      %v3526 = vsel %vm3496, %v3461, %v2336
      %v3527 = vsel %vm3496, %v3462, %v2338
      %v3528 = vsel %vm3496, %v3463, %v2340
      %v3529 = vsel %vm3496, %v3464, %v2342
      %v3530 = vsel %vm3496, %v3465, %v2344
      %v3531 = vsel %vm3496, %v3466, %v2346
      %v3532 = vsel %vm3496, %v3467, %v2348
      %v3533 = vsel %vm3496, %v3468, %v2350
      %v3534 = vsel %vm3496, %v3469, %v2352
      %v3535 = vsel %vm3496, %v3470, %v2354
      %v3536 = vsel %vm3496, %v3471, %v2356
      %v3537 = vsel %vm3496, %v3472, %v2358
      %v3538 = vsel %vm3496, %v3473, %v2360
      %v3539 = vsel %vm3496, %v3474, %v2362
      %v3540 = vsel %vm3496, %v3475, %v2364
      %v3541 = vsel %vm3496, %v3476, %v2366
      %v3542 = vsel %vm3496, %v3477, %v2368
      %v3543 = vsel %vm3496, %v3478, %v2370
      %v3544 = vsel %vm3496, %v3479, %v2372
      %v3545 = vsel %vm3496, %v3480, %v2374
      %v3546 = vsel %vm3496, %v3481, %v2376
      %v3547 = vsel %vm3496, %v3482, %v2378
      %v3548 = vsel %vm3496, %v3483, %v2380
      %v3549 = vsel %vm3496, %v3484, %v2382
      %v3550 = vsel %vm3496, %v3485, %v2384
      %v3551 = vsel %vm3496, %v3486, %v2386
      %v3552 = vsel %vm3496, %v3487, %v2388
      %v3553 = vsel %vm3496, %v3488, %v2390
      %v3554 = vsel %vm3496, %v3489, %v2392
      %v3555 = vsel %vm3496, %v3490, %v2394
      %v3556 = vsel %vm3496, %v3491, %v2396
      %v3557 = vsel %vm3496, %v3492, %v2398
      %v3558 = vsel %vm3496, %v3493, %v2400
      %v3559 = vsel %vm3496, %v3494, %v2402
      %v3560 = vsel %vm3496, %v3495, %v2404
      %vm3561 = vcmask 146432
      %v3562 = vsel %vm3561, %v3497, %v2534
      %v3563 = vsel %vm3561, %v3498, %v2536
      %v3564 = vsel %vm3561, %v3499, %v2538
      %v3565 = vsel %vm3561, %v3500, %v2540
      %v3566 = vsel %vm3561, %v3501, %v2542
      %v3567 = vsel %vm3561, %v3502, %v2544
      %v3568 = vsel %vm3561, %v3503, %v2546
      %v3569 = vsel %vm3561, %v3504, %v2548
      %v3570 = vsel %vm3561, %v3505, %v2550
      %v3571 = vsel %vm3561, %v3506, %v2552
      %v3572 = vsel %vm3561, %v3507, %v2554
      %v3573 = vsel %vm3561, %v3508, %v2556
      %v3574 = vsel %vm3561, %v3509, %v2558
      %v3575 = vsel %vm3561, %v3510, %v2560
      %v3576 = vsel %vm3561, %v3511, %v2562
      %v3577 = vsel %vm3561, %v3512, %v2564
      %v3578 = vsel %vm3561, %v3513, %v2566
      %v3579 = vsel %vm3561, %v3514, %v2568
      %v3580 = vsel %vm3561, %v3515, %v2570
      %v3581 = vsel %vm3561, %v3516, %v2572
      %v3582 = vsel %vm3561, %v3517, %v2574
      %v3583 = vsel %vm3561, %v3518, %v2576
      %v3584 = vsel %vm3561, %v3519, %v2578
      %v3585 = vsel %vm3561, %v3520, %v2580
      %v3586 = vsel %vm3561, %v3521, %v2582
      %v3587 = vsel %vm3561, %v3522, %v2584
      %v3588 = vsel %vm3561, %v3523, %v2586
      %v3589 = vsel %vm3561, %v3524, %v2588
      %v3590 = vsel %vm3561, %v3525, %v2590
      %v3591 = vsel %vm3561, %v3526, %v2592
      %v3592 = vsel %vm3561, %v3527, %v2594
      %v3593 = vsel %vm3561, %v3528, %v2596
      %v3594 = vsel %vm3561, %v3529, %v2598
      %v3595 = vsel %vm3561, %v3530, %v2600
      %v3596 = vsel %vm3561, %v3531, %v2602
      %v3597 = vsel %vm3561, %v3532, %v2604
      %v3598 = vsel %vm3561, %v3533, %v2606
      %v3599 = vsel %vm3561, %v3534, %v2608
      %v3600 = vsel %vm3561, %v3535, %v2610
      %v3601 = vsel %vm3561, %v3536, %v2612
      %v3602 = vsel %vm3561, %v3537, %v2614
      %v3603 = vsel %vm3561, %v3538, %v2616
      %v3604 = vsel %vm3561, %v3539, %v2618
      %v3605 = vsel %vm3561, %v3540, %v2620
      %v3606 = vsel %vm3561, %v3541, %v2622
      %v3607 = vsel %vm3561, %v3542, %v2624
      %v3608 = vsel %vm3561, %v3543, %v2626
      %v3609 = vsel %vm3561, %v3544, %v2628
      %v3610 = vsel %vm3561, %v3545, %v2630
      %v3611 = vsel %vm3561, %v3546, %v2632
      %v3612 = vsel %vm3561, %v3547, %v2634
      %v3613 = vsel %vm3561, %v3548, %v2636
      %v3614 = vsel %vm3561, %v3549, %v2638
      %v3615 = vsel %vm3561, %v3550, %v2640
      %v3616 = vsel %vm3561, %v3551, %v2642
      %v3617 = vsel %vm3561, %v3552, %v2644
      %v3618 = vsel %vm3561, %v3553, %v2646
      %v3619 = vsel %vm3561, %v3554, %v2648
      %v3620 = vsel %vm3561, %v3555, %v2650
      %v3621 = vsel %vm3561, %v3556, %v2652
      %v3622 = vsel %vm3561, %v3557, %v2654
      %v3623 = vsel %vm3561, %v3558, %v2656
      %v3624 = vsel %vm3561, %v3559, %v2658
      %v3625 = vsel %vm3561, %v3560, %v2660
      %vm3626 = vcmask 171008
      %v3627 = vsel %vm3626, %v3562, %v2790
      %v3628 = vsel %vm3626, %v3563, %v2792
      %v3629 = vsel %vm3626, %v3564, %v2794
      %v3630 = vsel %vm3626, %v3565, %v2796
      %v3631 = vsel %vm3626, %v3566, %v2798
      %v3632 = vsel %vm3626, %v3567, %v2800
      %v3633 = vsel %vm3626, %v3568, %v2802
      %v3634 = vsel %vm3626, %v3569, %v2804
      %v3635 = vsel %vm3626, %v3570, %v2806
      %v3636 = vsel %vm3626, %v3571, %v2808
      %v3637 = vsel %vm3626, %v3572, %v2810
      %v3638 = vsel %vm3626, %v3573, %v2812
      %v3639 = vsel %vm3626, %v3574, %v2814
      %v3640 = vsel %vm3626, %v3575, %v2816
      %v3641 = vsel %vm3626, %v3576, %v2818
      %v3642 = vsel %vm3626, %v3577, %v2820
      %v3643 = vsel %vm3626, %v3578, %v2822
      %v3644 = vsel %vm3626, %v3579, %v2824
      %v3645 = vsel %vm3626, %v3580, %v2826
      %v3646 = vsel %vm3626, %v3581, %v2828
      %v3647 = vsel %vm3626, %v3582, %v2830
      %v3648 = vsel %vm3626, %v3583, %v2832
      %v3649 = vsel %vm3626, %v3584, %v2834
      %v3650 = vsel %vm3626, %v3585, %v2836
      %v3651 = vsel %vm3626, %v3586, %v2838
      %v3652 = vsel %vm3626, %v3587, %v2840
      %v3653 = vsel %vm3626, %v3588, %v2842
      %v3654 = vsel %vm3626, %v3589, %v2844
      %v3655 = vsel %vm3626, %v3590, %v2846
      %v3656 = vsel %vm3626, %v3591, %v2848
      %v3657 = vsel %vm3626, %v3592, %v2850
      %v3658 = vsel %vm3626, %v3593, %v2852
      %v3659 = vsel %vm3626, %v3594, %v2854
      %v3660 = vsel %vm3626, %v3595, %v2856
      %v3661 = vsel %vm3626, %v3596, %v2858
      %v3662 = vsel %vm3626, %v3597, %v2860
      %v3663 = vsel %vm3626, %v3598, %v2862
      %v3664 = vsel %vm3626, %v3599, %v2864
      %v3665 = vsel %vm3626, %v3600, %v2866
      %v3666 = vsel %vm3626, %v3601, %v2868
      %v3667 = vsel %vm3626, %v3602, %v2870
      %v3668 = vsel %vm3626, %v3603, %v2872
      %v3669 = vsel %vm3626, %v3604, %v2874
      %v3670 = vsel %vm3626, %v3605, %v2876
      %v3671 = vsel %vm3626, %v3606, %v2878
      %v3672 = vsel %vm3626, %v3607, %v2880
      %v3673 = vsel %vm3626, %v3608, %v2882
      %v3674 = vsel %vm3626, %v3609, %v2884
      %v3675 = vsel %vm3626, %v3610, %v2886
      %v3676 = vsel %vm3626, %v3611, %v2888
      %v3677 = vsel %vm3626, %v3612, %v2890
      %v3678 = vsel %vm3626, %v3613, %v2892
      %v3679 = vsel %vm3626, %v3614, %v2894
      %v3680 = vsel %vm3626, %v3615, %v2896
      %v3681 = vsel %vm3626, %v3616, %v2898
      %v3682 = vsel %vm3626, %v3617, %v2900
      %v3683 = vsel %vm3626, %v3618, %v2902
      %v3684 = vsel %vm3626, %v3619, %v2904
      %v3685 = vsel %vm3626, %v3620, %v2906
      %v3686 = vsel %vm3626, %v3621, %v2908
      %v3687 = vsel %vm3626, %v3622, %v2910
      %v3688 = vsel %vm3626, %v3623, %v2912
      %v3689 = vsel %vm3626, %v3624, %v2914
      %v3690 = vsel %vm3626, %v3625, %v2916
      %vm3691 = vcmask 195584
      %v3692 = vsel %vm3691, %v3627, %v3046
      %v3693 = vsel %vm3691, %v3628, %v3048
      %v3694 = vsel %vm3691, %v3629, %v3050
      %v3695 = vsel %vm3691, %v3630, %v3052
      %v3696 = vsel %vm3691, %v3631, %v3054
      %v3697 = vsel %vm3691, %v3632, %v3056
      %v3698 = vsel %vm3691, %v3633, %v3058
      %v3699 = vsel %vm3691, %v3634, %v3060
      %v3700 = vsel %vm3691, %v3635, %v3062
      %v3701 = vsel %vm3691, %v3636, %v3064
      %v3702 = vsel %vm3691, %v3637, %v3066
      %v3703 = vsel %vm3691, %v3638, %v3068
      %v3704 = vsel %vm3691, %v3639, %v3070
      %v3705 = vsel %vm3691, %v3640, %v3072
      %v3706 = vsel %vm3691, %v3641, %v3074
      %v3707 = vsel %vm3691, %v3642, %v3076
      %v3708 = vsel %vm3691, %v3643, %v3078
      %v3709 = vsel %vm3691, %v3644, %v3080
      %v3710 = vsel %vm3691, %v3645, %v3082
      %v3711 = vsel %vm3691, %v3646, %v3084
      %v3712 = vsel %vm3691, %v3647, %v3086
      %v3713 = vsel %vm3691, %v3648, %v3088
      %v3714 = vsel %vm3691, %v3649, %v3090
      %v3715 = vsel %vm3691, %v3650, %v3092
      %v3716 = vsel %vm3691, %v3651, %v3094
      %v3717 = vsel %vm3691, %v3652, %v3096
      %v3718 = vsel %vm3691, %v3653, %v3098
      %v3719 = vsel %vm3691, %v3654, %v3100
      %v3720 = vsel %vm3691, %v3655, %v3102
      %v3721 = vsel %vm3691, %v3656, %v3104
      %v3722 = vsel %vm3691, %v3657, %v3106
      %v3723 = vsel %vm3691, %v3658, %v3108
      %v3724 = vsel %vm3691, %v3659, %v3110
      %v3725 = vsel %vm3691, %v3660, %v3112
      %v3726 = vsel %vm3691, %v3661, %v3114
      %v3727 = vsel %vm3691, %v3662, %v3116
      %v3728 = vsel %vm3691, %v3663, %v3118
      %v3729 = vsel %vm3691, %v3664, %v3120
      %v3730 = vsel %vm3691, %v3665, %v3122
      %v3731 = vsel %vm3691, %v3666, %v3124
      %v3732 = vsel %vm3691, %v3667, %v3126
      %v3733 = vsel %vm3691, %v3668, %v3128
      %v3734 = vsel %vm3691, %v3669, %v3130
      %v3735 = vsel %vm3691, %v3670, %v3132
      %v3736 = vsel %vm3691, %v3671, %v3134
      %v3737 = vsel %vm3691, %v3672, %v3136
      %v3738 = vsel %vm3691, %v3673, %v3138
      %v3739 = vsel %vm3691, %v3674, %v3140
      %v3740 = vsel %vm3691, %v3675, %v3142
      %v3741 = vsel %vm3691, %v3676, %v3144
      %v3742 = vsel %vm3691, %v3677, %v3146
      %v3743 = vsel %vm3691, %v3678, %v3148
      %v3744 = vsel %vm3691, %v3679, %v3150
      %v3745 = vsel %vm3691, %v3680, %v3152
      %v3746 = vsel %vm3691, %v3681, %v3154
      %v3747 = vsel %vm3691, %v3682, %v3156
      %v3748 = vsel %vm3691, %v3683, %v3158
      %v3749 = vsel %vm3691, %v3684, %v3160
      %v3750 = vsel %vm3691, %v3685, %v3162
      %v3751 = vsel %vm3691, %v3686, %v3164
      %v3752 = vsel %vm3691, %v3687, %v3166
      %v3753 = vsel %vm3691, %v3688, %v3168
      %v3754 = vsel %vm3691, %v3689, %v3170
      %v3755 = vsel %vm3691, %v3690, %v3172
      %v3756 = vld [vmem:[%s1] sm:$0xff]
      %v3757 = vld [vmem:[%s1 + $0x8] sm:$0xff]
      %v3758 = vld [vmem:[%s1 + $0x10] sm:$0xff]
      %v3759 = vld [vmem:[%s1 + $0x18] sm:$0x7]
      %v3760 = vld [vmem:[%s2] sm:$0x1]
      %v3762 = vlaneseq
      %v3763 = vshrl.u32 %v3762, 7
      %v3764 = vsub.s32 0, %v3763
      %v3765 = vrot.slane %v3760, %v3764
      %vm3767 = vcmask 220160
      %v3769 = vsel %vm3767, %v3692, 0
      %v3772 = vsel %vm3767, %v3693, 0
      %v3775 = vsel %vm3767, %v3694, 0
      %v3778 = vsel %vm3767, %v3695, 0
      %v3781 = vsel %vm3767, %v3696, 0
      %v3784 = vsel %vm3767, %v3697, 0
      %v3787 = vsel %vm3767, %v3698, 0
      %v3790 = vsel %vm3767, %v3699, 0
      %v3793 = vsel %vm3767, %v3700, 0
      %v3796 = vsel %vm3767, %v3701, 0
      %v3799 = vsel %vm3767, %v3702, 0
      %v3802 = vsel %vm3767, %v3703, 0
      %v3805 = vsel %vm3767, %v3704, 0
      %v3808 = vsel %vm3767, %v3705, 0
      %v3811 = vsel %vm3767, %v3706, 0
      %v3814 = vsel %vm3767, %v3707, 0
      %v3817 = vsel %vm3767, %v3708, 0
      %v3820 = vsel %vm3767, %v3709, 0
      %v3823 = vsel %vm3767, %v3710, 0
      %v3826 = vsel %vm3767, %v3711, 0
      %v3829 = vsel %vm3767, %v3712, 0
      %v3832 = vsel %vm3767, %v3713, 0
      %v3835 = vsel %vm3767, %v3714, 0
      %v3838 = vsel %vm3767, %v3715, 0
      %v3841 = vsel %vm3767, %v3716, 0
      %v3844 = vsel %vm3767, %v3717, 0
      %v3847 = vsel %vm3767, %v3718, 0
      %v3850 = vsel %vm3767, %v3719, 0
      %v3853 = vsel %vm3767, %v3720, 0
      %v3856 = vsel %vm3767, %v3721, 0
      %v3859 = vsel %vm3767, %v3722, 0
      %v3862 = vsel %vm3767, %v3723, 0
      %v3865 = vsel %vm3767, %v3724, 0
      %v3868 = vsel %vm3767, %v3725, 0
      %v3871 = vsel %vm3767, %v3726, 0
      %v3874 = vsel %vm3767, %v3727, 0
      %v3877 = vsel %vm3767, %v3728, 0
      %v3880 = vsel %vm3767, %v3729, 0
      %v3883 = vsel %vm3767, %v3730, 0
      %v3886 = vsel %vm3767, %v3731, 0
      %v3889 = vsel %vm3767, %v3732, 0
      %v3892 = vsel %vm3767, %v3733, 0
      %v3895 = vsel %vm3767, %v3734, 0
      %v3898 = vsel %vm3767, %v3735, 0
      %v3901 = vsel %vm3767, %v3736, 0
      %v3904 = vsel %vm3767, %v3737, 0
      %v3907 = vsel %vm3767, %v3738, 0
      %v3910 = vsel %vm3767, %v3739, 0
      %v3913 = vsel %vm3767, %v3740, 0
      %v3916 = vsel %vm3767, %v3741, 0
      %v3919 = vsel %vm3767, %v3742, 0
      %v3922 = vsel %vm3767, %v3743, 0
      %v3925 = vsel %vm3767, %v3744, 0
      %v3928 = vsel %vm3767, %v3745, 0
      %v3931 = vsel %vm3767, %v3746, 0
      %v3934 = vsel %vm3767, %v3747, 0
      %v3937 = vsel %vm3767, %v3748, 0
      %v3940 = vsel %vm3767, %v3749, 0
      %v3943 = vsel %vm3767, %v3750, 0
      %v3946 = vsel %vm3767, %v3751, 0
      %v3949 = vsel %vm3767, %v3752, 0
      %v3952 = vsel %vm3767, %v3753, 0
      %v3955 = vsel %vm3767, %v3754, 0
      %v3958 = vsel %vm3767, %v3755, 0
      %vm3960 = vcmask 1042432
      %v3962 = vsel %vm3960, %v3759, 0
      %3964 = vmatprep.subr.mxu0 0.0
      %3965 = vmatpush1.msra.mxu0 %v3756
      %3966 = vmatprep.subr.mxu0 0.0
      %3967 = vmatpush1.msra.mxu0 %v3757
      %3968 = vmatprep.subr.mxu0 0.0
      %3969 = vmatpush1.msra.mxu0 %v3758
      %3970 = vmatprep.subr.mxu0 0.0
      %3971 = vmatpush1.msra.mxu0 %v3962
      %3972 = vmatprep.subr.mxu0 0.0
      %3973 = vmatpush1.msra.mxu0 0.0
      %3974 = vmatprep.subr.mxu0 0.0
      %3975 = vmatpush1.msra.mxu0 0.0
      %3976 = vmatprep.subr.mxu0 0.0
      %3977 = vmatpush1.msra.mxu0 0.0
      %3978 = vmatprep.subr.mxu0 0.0
      %3979 = vmatpush1.msra.mxu0 0.0
      %3980 = vmatprep.subr.mxu0 0.0
      %3981 = vmatpush1.msra.mxu0 0.0
      %3982 = vmatprep.subr.mxu0 0.0
      %3983 = vmatpush1.msra.mxu0 0.0
      %3984 = vmatprep.subr.mxu0 0.0
      %3985 = vmatpush1.msra.mxu0 0.0
      %3986 = vmatprep.subr.mxu0 0.0
      %3987 = vmatpush1.msra.mxu0 0.0
      %3988 = vmatprep.subr.mxu0 0.0
      %3989 = vmatpush1.msra.mxu0 0.0
      %3990 = vmatprep.subr.mxu0 0.0
      %3991 = vmatpush1.msra.mxu0 0.0
      %3992 = vmatprep.subr.mxu0 0.0
      %3993 = vmatpush1.msra.mxu0 0.0
      %3994 = vmatprep.subr.mxu0 0.0
      %3995 = vmatpush1.msra.mxu0 0.0
      %3996 = vmatprep.subr.mxu0 0.0
      %3997 = vmatpush1.msra.mxu0 0.0
      %3998 = vmatprep.subr.mxu0 0.0
      %3999 = vmatpush1.msra.mxu0 0.0
      %4000 = vmatprep.subr.mxu0 0.0
      %4001 = vmatpush1.msra.mxu0 0.0
      %4002 = vmatprep.subr.mxu0 0.0
      %4003 = vmatpush1.msra.mxu0 0.0
      %4004 = vmatprep.subr.mxu0 0.0
      %4005 = vmatpush1.msra.mxu0 0.0
      %4006 = vmatprep.subr.mxu0 0.0
      %4007 = vmatpush1.msra.mxu0 0.0
      %4008 = vmatprep.subr.mxu0 0.0
      %4009 = vmatpush1.msra.mxu0 0.0
      %4010 = vmatprep.subr.mxu0 0.0
      %4011 = vmatpush1.msra.mxu0 0.0
      %4012 = vmatprep.subr.mxu0 0.0
      %4013 = vmatpush1.msra.mxu0 0.0
      %4014 = vmatprep.subr.mxu0 0.0
      %4015 = vmatpush1.msra.mxu0 0.0
      %4016 = vmatprep.subr.mxu0 0.0
      %4017 = vmatpush1.msra.mxu0 0.0
      %4018 = vmatprep.subr.mxu0 0.0
      %4019 = vmatpush1.msra.mxu0 0.0
      %4020 = vmatprep.subr.mxu0 0.0
      %4021 = vmatpush1.msra.mxu0 0.0
      %4022 = vmatprep.subr.mxu0 0.0
      %4023 = vmatpush1.msra.mxu0 0.0
      %4024 = vmatprep.subr.mxu0 0.0
      %4025 = vmatpush1.msra.mxu0 0.0
      %4026 = vmatprep.subr.mxu0 0.0
      %4027 = vmatpush1.msra.mxu0 0.0
      %4028 = vmatprep.mubr.f32.mxu0 0.0
      %4029 = vmatmul.mubr.f32.gmra.mrb[0].mxu0 %v3769
      %v4030 = vpop.f32.mrb[0].mxu0
      %v4031 = vadd.f32 %v3765, %v4030
      %v4032 = vpop.f32.mrb[0].mxu0
      %4033 = vmatprep.mubr.f32.mxu0 0.0
      %4034 = vmatmul.mubr.f32.gmra.mrb[0].mxu0 %v3772
      %v4035 = vpop.f32.mrb[0].mxu0
      %v4036 = vadd.f32 %v3765, %v4035
      %v4037 = vpop.f32.mrb[0].mxu0
      %4038 = vmatprep.mubr.f32.mxu0 0.0
      %4039 = vmatmul.mubr.f32.gmra.mrb[0].mxu0 %v3775
      %v4040 = vpop.f32.mrb[0].mxu0
      %v4041 = vadd.f32 %v3765, %v4040
      %v4042 = vpop.f32.mrb[0].mxu0
      %4043 = vmatprep.mubr.f32.mxu0 0.0
      %4044 = vmatmul.mubr.f32.gmra.mrb[0].mxu0 %v3778
      %v4045 = vpop.f32.mrb[0].mxu0
      %v4046 = vadd.f32 %v3765, %v4045
      %v4047 = vpop.f32.mrb[0].mxu0
      %4048 = vmatprep.mubr.f32.mxu0 0.0
      %4049 = vmatmul.mubr.f32.gmra.mrb[0].mxu0 %v3781
      %v4050 = vpop.f32.mrb[0].mxu0
      %v4051 = vadd.f32 %v3765, %v4050
      %v4052 = vpop.f32.mrb[0].mxu0
      %4053 = vmatprep.mubr.f32.mxu0 0.0
      %4054 = vmatmul.mubr.f32.gmra.mrb[0].mxu0 %v3784
      %v4055 = vpop.f32.mrb[0].mxu0
      %v4056 = vadd.f32 %v3765, %v4055
      %v4057 = vpop.f32.mrb[0].mxu0
      %4058 = vmatprep.mubr.f32.mxu0 0.0
      %4059 = vmatmul.mubr.f32.gmra.mrb[0].mxu0 %v3787
      %v4060 = vpop.f32.mrb[0].mxu0
      %v4061 = vadd.f32 %v3765, %v4060
      %v4062 = vpop.f32.mrb[0].mxu0
      %4063 = vmatprep.mubr.f32.mxu0 0.0
      %4064 = vmatmul.mubr.f32.gmra.mrb[0].mxu0 %v3790
      %v4065 = vpop.f32.mrb[0].mxu0
      %v4066 = vadd.f32 %v3765, %v4065
      %v4067 = vpop.f32.mrb[0].mxu0
      %4068 = vmatprep.mubr.f32.mxu0 0.0
      %4069 = vmatmul.mubr.f32.gmra.mrb[0].mxu0 %v3793
      %v4070 = vpop.f32.mrb[0].mxu0
      %v4071 = vadd.f32 %v3765, %v4070
      %v4072 = vpop.f32.mrb[0].mxu0
      %4073 = vmatprep.mubr.f32.mxu0 0.0
      %4074 = vmatmul.mubr.f32.gmra.mrb[0].mxu0 %v3796
      %v4075 = vpop.f32.mrb[0].mxu0
      %v4076 = vadd.f32 %v3765, %v4075
      %v4077 = vpop.f32.mrb[0].mxu0
      %4078 = vmatprep.mubr.f32.mxu0 0.0
      %4079 = vmatmul.mubr.f32.gmra.mrb[0].mxu0 %v3799
      %v4080 = vpop.f32.mrb[0].mxu0
      %v4081 = vadd.f32 %v3765, %v4080
      %v4082 = vpop.f32.mrb[0].mxu0
      %4083 = vmatprep.mubr.f32.mxu0 0.0
      %4084 = vmatmul.mubr.f32.gmra.mrb[0].mxu0 %v3802
      %v4085 = vpop.f32.mrb[0].mxu0
      %v4086 = vadd.f32 %v3765, %v4085
      %v4087 = vpop.f32.mrb[0].mxu0
      %4088 = vmatprep.mubr.f32.mxu0 0.0
      %4089 = vmatmul.mubr.f32.gmra.mrb[0].mxu0 %v3805
      %v4090 = vpop.f32.mrb[0].mxu0
      %v4091 = vadd.f32 %v3765, %v4090
      %v4092 = vpop.f32.mrb[0].mxu0
      %4093 = vmatprep.mubr.f32.mxu0 0.0
      %4094 = vmatmul.mubr.f32.gmra.mrb[0].mxu0 %v3808
      %v4095 = vpop.f32.mrb[0].mxu0
      %v4096 = vadd.f32 %v3765, %v4095
      %v4097 = vpop.f32.mrb[0].mxu0
      %4098 = vmatprep.mubr.f32.mxu0 0.0
      %4099 = vmatmul.mubr.f32.gmra.mrb[0].mxu0 %v3811
      %v4100 = vpop.f32.mrb[0].mxu0
      %v4101 = vadd.f32 %v3765, %v4100
      %v4102 = vpop.f32.mrb[0].mxu0
      %4103 = vmatprep.mubr.f32.mxu0 0.0
      %4104 = vmatmul.mubr.f32.gmra.mrb[0].mxu0 %v3814
      %v4105 = vpop.f32.mrb[0].mxu0
      %v4106 = vadd.f32 %v3765, %v4105
      %v4107 = vpop.f32.mrb[0].mxu0
      %4108 = vmatprep.mubr.f32.mxu0 0.0
      %4109 = vmatmul.mubr.f32.gmra.mrb[0].mxu0 %v3817
      %v4110 = vpop.f32.mrb[0].mxu0
      %v4111 = vadd.f32 %v3765, %v4110
      %v4112 = vpop.f32.mrb[0].mxu0
      %4113 = vmatprep.mubr.f32.mxu0 0.0
      %4114 = vmatmul.mubr.f32.gmra.mrb[0].mxu0 %v3820
      %v4115 = vpop.f32.mrb[0].mxu0
      %v4116 = vadd.f32 %v3765, %v4115
      %v4117 = vpop.f32.mrb[0].mxu0
      %4118 = vmatprep.mubr.f32.mxu0 0.0
      %4119 = vmatmul.mubr.f32.gmra.mrb[0].mxu0 %v3823
      %v4120 = vpop.f32.mrb[0].mxu0
      %v4121 = vadd.f32 %v3765, %v4120
      %v4122 = vpop.f32.mrb[0].mxu0
      %4123 = vmatprep.mubr.f32.mxu0 0.0
      %4124 = vmatmul.mubr.f32.gmra.mrb[0].mxu0 %v3826
      %v4125 = vpop.f32.mrb[0].mxu0
      %v4126 = vadd.f32 %v3765, %v4125
      %v4127 = vpop.f32.mrb[0].mxu0
      %4128 = vmatprep.mubr.f32.mxu0 0.0
      %4129 = vmatmul.mubr.f32.gmra.mrb[0].mxu0 %v3829
      %v4130 = vpop.f32.mrb[0].mxu0
      %v4131 = vadd.f32 %v3765, %v4130
      %v4132 = vpop.f32.mrb[0].mxu0
      %4133 = vmatprep.mubr.f32.mxu0 0.0
      %4134 = vmatmul.mubr.f32.gmra.mrb[0].mxu0 %v3832
      %v4135 = vpop.f32.mrb[0].mxu0
      %v4136 = vadd.f32 %v3765, %v4135
      %v4137 = vpop.f32.mrb[0].mxu0
      %4138 = vmatprep.mubr.f32.mxu0 0.0
      %4139 = vmatmul.mubr.f32.gmra.mrb[0].mxu0 %v3835
      %v4140 = vpop.f32.mrb[0].mxu0
      %v4141 = vadd.f32 %v3765, %v4140
      %v4142 = vpop.f32.mrb[0].mxu0
      %4143 = vmatprep.mubr.f32.mxu0 0.0
      %4144 = vmatmul.mubr.f32.gmra.mrb[0].mxu0 %v3838
      %v4145 = vpop.f32.mrb[0].mxu0
      %v4146 = vadd.f32 %v3765, %v4145
      %v4147 = vpop.f32.mrb[0].mxu0
      %4148 = vmatprep.mubr.f32.mxu0 0.0
      %4149 = vmatmul.mubr.f32.gmra.mrb[0].mxu0 %v3841
      %v4150 = vpop.f32.mrb[0].mxu0
      %v4151 = vadd.f32 %v3765, %v4150
      %v4152 = vpop.f32.mrb[0].mxu0
      %4153 = vmatprep.mubr.f32.mxu0 0.0
      %4154 = vmatmul.mubr.f32.gmra.mrb[0].mxu0 %v3844
      %v4155 = vpop.f32.mrb[0].mxu0
      %v4156 = vadd.f32 %v3765, %v4155
      %v4157 = vpop.f32.mrb[0].mxu0
      %4158 = vmatprep.mubr.f32.mxu0 0.0
      %4159 = vmatmul.mubr.f32.gmra.mrb[0].mxu0 %v3847
      %v4160 = vpop.f32.mrb[0].mxu0
      %v4161 = vadd.f32 %v3765, %v4160
      %v4162 = vpop.f32.mrb[0].mxu0
      %4163 = vmatprep.mubr.f32.mxu0 0.0
      %4164 = vmatmul.mubr.f32.gmra.mrb[0].mxu0 %v3850
      %v4165 = vpop.f32.mrb[0].mxu0
      %v4166 = vadd.f32 %v3765, %v4165
      %v4167 = vpop.f32.mrb[0].mxu0
      %4168 = vmatprep.mubr.f32.mxu0 0.0
      %4169 = vmatmul.mubr.f32.gmra.mrb[0].mxu0 %v3853
      %v4170 = vpop.f32.mrb[0].mxu0
      %v4171 = vadd.f32 %v3765, %v4170
      %v4172 = vpop.f32.mrb[0].mxu0
      %4173 = vmatprep.mubr.f32.mxu0 0.0
      %4174 = vmatmul.mubr.f32.gmra.mrb[0].mxu0 %v3856
      %v4175 = vpop.f32.mrb[0].mxu0
      %v4176 = vadd.f32 %v3765, %v4175
      %v4177 = vpop.f32.mrb[0].mxu0
      %4178 = vmatprep.mubr.f32.mxu0 0.0
      %4179 = vmatmul.mubr.f32.gmra.mrb[0].mxu0 %v3859
      %v4180 = vpop.f32.mrb[0].mxu0
      %v4181 = vadd.f32 %v3765, %v4180
      %v4182 = vpop.f32.mrb[0].mxu0
      %4183 = vmatprep.mubr.f32.mxu0 0.0
      %4184 = vmatmul.mubr.f32.gmra.mrb[0].mxu0 %v3862
      %v4185 = vpop.f32.mrb[0].mxu0
      %v4186 = vadd.f32 %v3765, %v4185
      %v4187 = vpop.f32.mrb[0].mxu0
      %4188 = vmatprep.mubr.f32.mxu0 0.0
      %4189 = vmatmul.mubr.f32.gmra.mrb[0].mxu0 %v3865
      %v4190 = vpop.f32.mrb[0].mxu0
      %v4191 = vadd.f32 %v3765, %v4190
      %v4192 = vpop.f32.mrb[0].mxu0
      %4193 = vmatprep.mubr.f32.mxu0 0.0
      %4194 = vmatmul.mubr.f32.gmra.mrb[0].mxu0 %v3868
      %v4195 = vpop.f32.mrb[0].mxu0
      %v4196 = vadd.f32 %v3765, %v4195
      %v4197 = vpop.f32.mrb[0].mxu0
      %4198 = vmatprep.mubr.f32.mxu0 0.0
      %4199 = vmatmul.mubr.f32.gmra.mrb[0].mxu0 %v3871
      %v4200 = vpop.f32.mrb[0].mxu0
      %v4201 = vadd.f32 %v3765, %v4200
      %v4202 = vpop.f32.mrb[0].mxu0
      %4203 = vmatprep.mubr.f32.mxu0 0.0
      %4204 = vmatmul.mubr.f32.gmra.mrb[0].mxu0 %v3874
      %v4205 = vpop.f32.mrb[0].mxu0
      %v4206 = vadd.f32 %v3765, %v4205
      %v4207 = vpop.f32.mrb[0].mxu0
      %4208 = vmatprep.mubr.f32.mxu0 0.0
      %4209 = vmatmul.mubr.f32.gmra.mrb[0].mxu0 %v3877
      %v4210 = vpop.f32.mrb[0].mxu0
      %v4211 = vadd.f32 %v3765, %v4210
      %v4212 = vpop.f32.mrb[0].mxu0
      %4213 = vmatprep.mubr.f32.mxu0 0.0
      %4214 = vmatmul.mubr.f32.gmra.mrb[0].mxu0 %v3880
      %v4215 = vpop.f32.mrb[0].mxu0
      %v4216 = vadd.f32 %v3765, %v4215
      %v4217 = vpop.f32.mrb[0].mxu0
      %4218 = vmatprep.mubr.f32.mxu0 0.0
      %4219 = vmatmul.mubr.f32.gmra.mrb[0].mxu0 %v3883
      %v4220 = vpop.f32.mrb[0].mxu0
      %v4221 = vadd.f32 %v3765, %v4220
      %v4222 = vpop.f32.mrb[0].mxu0
      %4223 = vmatprep.mubr.f32.mxu0 0.0
      %4224 = vmatmul.mubr.f32.gmra.mrb[0].mxu0 %v3886
      %v4225 = vpop.f32.mrb[0].mxu0
      %v4226 = vadd.f32 %v3765, %v4225
      %v4227 = vpop.f32.mrb[0].mxu0
      %4228 = vmatprep.mubr.f32.mxu0 0.0
      %4229 = vmatmul.mubr.f32.gmra.mrb[0].mxu0 %v3889
      %v4230 = vpop.f32.mrb[0].mxu0
      %v4231 = vadd.f32 %v3765, %v4230
      %v4232 = vpop.f32.mrb[0].mxu0
      %4233 = vmatprep.mubr.f32.mxu0 0.0
      %4234 = vmatmul.mubr.f32.gmra.mrb[0].mxu0 %v3892
      %v4235 = vpop.f32.mrb[0].mxu0
      %v4236 = vadd.f32 %v3765, %v4235
      %v4237 = vpop.f32.mrb[0].mxu0
      %4238 = vmatprep.mubr.f32.mxu0 0.0
      %4239 = vmatmul.mubr.f32.gmra.mrb[0].mxu0 %v3895
      %v4240 = vpop.f32.mrb[0].mxu0
      %v4241 = vadd.f32 %v3765, %v4240
      %v4242 = vpop.f32.mrb[0].mxu0
      %4243 = vmatprep.mubr.f32.mxu0 0.0
      %4244 = vmatmul.mubr.f32.gmra.mrb[0].mxu0 %v3898
      %v4245 = vpop.f32.mrb[0].mxu0
      %v4246 = vadd.f32 %v3765, %v4245
      %v4247 = vpop.f32.mrb[0].mxu0
      %4248 = vmatprep.mubr.f32.mxu0 0.0
      %4249 = vmatmul.mubr.f32.gmra.mrb[0].mxu0 %v3901
      %v4250 = vpop.f32.mrb[0].mxu0
      %v4251 = vadd.f32 %v3765, %v4250
      %v4252 = vpop.f32.mrb[0].mxu0
      %4253 = vmatprep.mubr.f32.mxu0 0.0
      %4254 = vmatmul.mubr.f32.gmra.mrb[0].mxu0 %v3904
      %v4255 = vpop.f32.mrb[0].mxu0
      %v4256 = vadd.f32 %v3765, %v4255
      %v4257 = vpop.f32.mrb[0].mxu0
      %4258 = vmatprep.mubr.f32.mxu0 0.0
      %4259 = vmatmul.mubr.f32.gmra.mrb[0].mxu0 %v3907
      %v4260 = vpop.f32.mrb[0].mxu0
      %v4261 = vadd.f32 %v3765, %v4260
      %v4262 = vpop.f32.mrb[0].mxu0
      %4263 = vmatprep.mubr.f32.mxu0 0.0
      %4264 = vmatmul.mubr.f32.gmra.mrb[0].mxu0 %v3910
      %v4265 = vpop.f32.mrb[0].mxu0
      %v4266 = vadd.f32 %v3765, %v4265
      %v4267 = vpop.f32.mrb[0].mxu0
      %4268 = vmatprep.mubr.f32.mxu0 0.0
      %4269 = vmatmul.mubr.f32.gmra.mrb[0].mxu0 %v3913
      %v4270 = vpop.f32.mrb[0].mxu0
      %v4271 = vadd.f32 %v3765, %v4270
      %v4272 = vpop.f32.mrb[0].mxu0
      %4273 = vmatprep.mubr.f32.mxu0 0.0
      %4274 = vmatmul.mubr.f32.gmra.mrb[0].mxu0 %v3916
      %v4275 = vpop.f32.mrb[0].mxu0
      %v4276 = vadd.f32 %v3765, %v4275
      %v4277 = vpop.f32.mrb[0].mxu0
      %4278 = vmatprep.mubr.f32.mxu0 0.0
      %4279 = vmatmul.mubr.f32.gmra.mrb[0].mxu0 %v3919
      %v4280 = vpop.f32.mrb[0].mxu0
      %v4281 = vadd.f32 %v3765, %v4280
      %v4282 = vpop.f32.mrb[0].mxu0
      %4283 = vmatprep.mubr.f32.mxu0 0.0
      %4284 = vmatmul.mubr.f32.gmra.mrb[0].mxu0 %v3922
      %v4285 = vpop.f32.mrb[0].mxu0
      %v4286 = vadd.f32 %v3765, %v4285
      %v4287 = vpop.f32.mrb[0].mxu0
      %4288 = vmatprep.mubr.f32.mxu0 0.0
      %4289 = vmatmul.mubr.f32.gmra.mrb[0].mxu0 %v3925
      %v4290 = vpop.f32.mrb[0].mxu0
      %v4291 = vadd.f32 %v3765, %v4290
      %v4292 = vpop.f32.mrb[0].mxu0
      %4293 = vmatprep.mubr.f32.mxu0 0.0
      %4294 = vmatmul.mubr.f32.gmra.mrb[0].mxu0 %v3928
      %v4295 = vpop.f32.mrb[0].mxu0
      %v4296 = vadd.f32 %v3765, %v4295
      %v4297 = vpop.f32.mrb[0].mxu0
      %4298 = vmatprep.mubr.f32.mxu0 0.0
      %4299 = vmatmul.mubr.f32.gmra.mrb[0].mxu0 %v3931
      %v4300 = vpop.f32.mrb[0].mxu0
      %v4301 = vadd.f32 %v3765, %v4300
      %v4302 = vpop.f32.mrb[0].mxu0
      %4303 = vmatprep.mubr.f32.mxu0 0.0
      %4304 = vmatmul.mubr.f32.gmra.mrb[0].mxu0 %v3934
      %v4305 = vpop.f32.mrb[0].mxu0
      %v4306 = vadd.f32 %v3765, %v4305
      %v4307 = vpop.f32.mrb[0].mxu0
      %4308 = vmatprep.mubr.f32.mxu0 0.0
      %4309 = vmatmul.mubr.f32.gmra.mrb[0].mxu0 %v3937
      %v4310 = vpop.f32.mrb[0].mxu0
      %v4311 = vadd.f32 %v3765, %v4310
      %v4312 = vpop.f32.mrb[0].mxu0
      %4313 = vmatprep.mubr.f32.mxu0 0.0
      %4314 = vmatmul.mubr.f32.gmra.mrb[0].mxu0 %v3940
      %v4315 = vpop.f32.mrb[0].mxu0
      %v4316 = vadd.f32 %v3765, %v4315
      %v4317 = vpop.f32.mrb[0].mxu0
      %4318 = vmatprep.mubr.f32.mxu0 0.0
      %4319 = vmatmul.mubr.f32.gmra.mrb[0].mxu0 %v3943
      %v4320 = vpop.f32.mrb[0].mxu0
      %v4321 = vadd.f32 %v3765, %v4320
      %v4322 = vpop.f32.mrb[0].mxu0
      %4323 = vmatprep.mubr.f32.mxu0 0.0
      %4324 = vmatmul.mubr.f32.gmra.mrb[0].mxu0 %v3946
      %v4325 = vpop.f32.mrb[0].mxu0
      %v4326 = vadd.f32 %v3765, %v4325
      %v4327 = vpop.f32.mrb[0].mxu0
      %4328 = vmatprep.mubr.f32.mxu0 0.0
      %4329 = vmatmul.mubr.f32.gmra.mrb[0].mxu0 %v3949
      %v4330 = vpop.f32.mrb[0].mxu0
      %v4331 = vadd.f32 %v3765, %v4330
      %v4332 = vpop.f32.mrb[0].mxu0
      %4333 = vmatprep.mubr.f32.mxu0 0.0
      %4334 = vmatmul.mubr.f32.gmra.mrb[0].mxu0 %v3952
      %v4335 = vpop.f32.mrb[0].mxu0
      %v4336 = vadd.f32 %v3765, %v4335
      %v4337 = vpop.f32.mrb[0].mxu0
      %4338 = vmatprep.mubr.f32.mxu0 0.0
      %4339 = vmatmul.mubr.f32.gmra.mrb[0].mxu0 %v3955
      %v4340 = vpop.f32.mrb[0].mxu0
      %v4341 = vadd.f32 %v3765, %v4340
      %v4342 = vpop.f32.mrb[0].mxu0
      %4343 = vmatprep.mubr.f32.mxu0 0.0
      %4344 = vmatmul.mubr.f32.gmra.mrb[0].mxu0 %v3958
      %v4345 = vpop.f32.mrb[0].mxu0
      %v4346 = vadd.f32 %v3765, %v4345
      %v4347 = vpop.f32.mrb[0].mxu0
      %4348 = vdwg.mxu0
      %v4349 = vmax.f32 %v4031, 0.0
      %v4350 = vmax.f32 %v4036, 0.0
      %v4351 = vmax.f32 %v4041, 0.0
      %v4352 = vmax.f32 %v4046, 0.0
      %v4353 = vmax.f32 %v4051, 0.0
      %v4354 = vmax.f32 %v4056, 0.0
      %v4355 = vmax.f32 %v4061, 0.0
      %v4356 = vmax.f32 %v4066, 0.0
      %v4357 = vmax.f32 %v4071, 0.0
      %v4358 = vmax.f32 %v4076, 0.0
      %v4359 = vmax.f32 %v4081, 0.0
      %v4360 = vmax.f32 %v4086, 0.0
      %v4361 = vmax.f32 %v4091, 0.0
      %v4362 = vmax.f32 %v4096, 0.0
      %v4363 = vmax.f32 %v4101, 0.0
      %v4364 = vmax.f32 %v4106, 0.0
      %v4365 = vmax.f32 %v4111, 0.0
      %v4366 = vmax.f32 %v4116, 0.0
      %v4367 = vmax.f32 %v4121, 0.0
      %v4368 = vmax.f32 %v4126, 0.0
      %v4369 = vmax.f32 %v4131, 0.0
      %v4370 = vmax.f32 %v4136, 0.0
      %v4371 = vmax.f32 %v4141, 0.0
      %v4372 = vmax.f32 %v4146, 0.0
      %v4373 = vmax.f32 %v4151, 0.0
      %v4374 = vmax.f32 %v4156, 0.0
      %v4375 = vmax.f32 %v4161, 0.0
      %v4376 = vmax.f32 %v4166, 0.0
      %v4377 = vmax.f32 %v4171, 0.0
      %v4378 = vmax.f32 %v4176, 0.0
      %v4379 = vmax.f32 %v4181, 0.0
      %v4380 = vmax.f32 %v4186, 0.0
      %v4381 = vmax.f32 %v4191, 0.0
      %v4382 = vmax.f32 %v4196, 0.0
      %v4383 = vmax.f32 %v4201, 0.0
      %v4384 = vmax.f32 %v4206, 0.0
      %v4385 = vmax.f32 %v4211, 0.0
      %v4386 = vmax.f32 %v4216, 0.0
      %v4387 = vmax.f32 %v4221, 0.0
      %v4388 = vmax.f32 %v4226, 0.0
      %v4389 = vmax.f32 %v4231, 0.0
      %v4390 = vmax.f32 %v4236, 0.0
      %v4391 = vmax.f32 %v4241, 0.0
      %v4392 = vmax.f32 %v4246, 0.0
      %v4393 = vmax.f32 %v4251, 0.0
      %v4394 = vmax.f32 %v4256, 0.0
      %v4395 = vmax.f32 %v4261, 0.0
      %v4396 = vmax.f32 %v4266, 0.0
      %v4397 = vmax.f32 %v4271, 0.0
      %v4398 = vmax.f32 %v4276, 0.0
      %v4399 = vmax.f32 %v4281, 0.0
      %v4400 = vmax.f32 %v4286, 0.0
      %v4401 = vmax.f32 %v4291, 0.0
      %v4402 = vmax.f32 %v4296, 0.0
      %v4403 = vmax.f32 %v4301, 0.0
      %v4404 = vmax.f32 %v4306, 0.0
      %v4405 = vmax.f32 %v4311, 0.0
      %v4406 = vmax.f32 %v4316, 0.0
      %v4407 = vmax.f32 %v4321, 0.0
      %v4408 = vmax.f32 %v4326, 0.0
      %v4409 = vmax.f32 %v4331, 0.0
      %v4410 = vmax.f32 %v4336, 0.0
      %v4411 = vmax.f32 %v4341, 0.0
      %v4412 = vmax.f32 %v4346, 0.0
      %v4477 = vcombine.high %v4349, %v4349
      %v4479 = vunpack.c.l.s4 1983009808
      %v4480 = vunpack.c.0.s8 %v4479
      %v4481 = vlaneseq
      %v4482 = vshrl.u32 %v4481, 7
      %v4483 = vsub.s32 %v4480, %v4482
      %v4484 = vrot.slane %v4349, %v4483
      %v4486 = vunpack.c.l.s4 1983009808
      %v4487 = vunpack.c.0.s8 %v4486
      %v4488 = vlaneseq
      %v4489 = vshrl.u32 %v4488, 7
      %v4490 = vsub.s32 %v4487, %v4489
      %v4491 = vrot.slane %v4477, %v4490
      %v4492 = vcombine.high %v4484, %v4484
      %v4493 = vcombine.high %v4491, %v4491
      %v4494 = vcombine.high %v4350, %v4350
      %v4496 = vunpack.c.l.s4 1983009808
      %v4497 = vunpack.c.0.s8 %v4496
      %v4498 = vlaneseq
      %v4499 = vshrl.u32 %v4498, 7
      %v4500 = vsub.s32 %v4497, %v4499
      %v4501 = vrot.slane %v4350, %v4500
      %v4503 = vunpack.c.l.s4 1983009808
      %v4504 = vunpack.c.0.s8 %v4503
      %v4505 = vlaneseq
      %v4506 = vshrl.u32 %v4505, 7
      %v4507 = vsub.s32 %v4504, %v4506
      %v4508 = vrot.slane %v4494, %v4507
      %v4509 = vcombine.high %v4501, %v4501
      %v4510 = vcombine.high %v4508, %v4508
      %v4511 = vcombine.high %v4351, %v4351
      %v4513 = vunpack.c.l.s4 1983009808
      %v4514 = vunpack.c.0.s8 %v4513
      %v4515 = vlaneseq
      %v4516 = vshrl.u32 %v4515, 7
      %v4517 = vsub.s32 %v4514, %v4516
      %v4518 = vrot.slane %v4351, %v4517
      %v4520 = vunpack.c.l.s4 1983009808
      %v4521 = vunpack.c.0.s8 %v4520
      %v4522 = vlaneseq
      %v4523 = vshrl.u32 %v4522, 7
      %v4524 = vsub.s32 %v4521, %v4523
      %v4525 = vrot.slane %v4511, %v4524
      %v4526 = vcombine.high %v4518, %v4518
      %v4527 = vcombine.high %v4525, %v4525
      %v4528 = vcombine.high %v4352, %v4352
      %v4530 = vunpack.c.l.s4 1983009808
      %v4531 = vunpack.c.0.s8 %v4530
      %v4532 = vlaneseq
      %v4533 = vshrl.u32 %v4532, 7
      %v4534 = vsub.s32 %v4531, %v4533
      %v4535 = vrot.slane %v4352, %v4534
      %v4537 = vunpack.c.l.s4 1983009808
      %v4538 = vunpack.c.0.s8 %v4537
      %v4539 = vlaneseq
      %v4540 = vshrl.u32 %v4539, 7
      %v4541 = vsub.s32 %v4538, %v4540
      %v4542 = vrot.slane %v4528, %v4541
      %v4543 = vcombine.high %v4535, %v4535
      %v4544 = vcombine.high %v4542, %v4542
      %v4545 = vcombine.high %v4353, %v4353
      %v4547 = vunpack.c.l.s4 1983009808
      %v4548 = vunpack.c.0.s8 %v4547
      %v4549 = vlaneseq
      %v4550 = vshrl.u32 %v4549, 7
      %v4551 = vsub.s32 %v4548, %v4550
      %v4552 = vrot.slane %v4353, %v4551
      %v4554 = vunpack.c.l.s4 1983009808
      %v4555 = vunpack.c.0.s8 %v4554
      %v4556 = vlaneseq
      %v4557 = vshrl.u32 %v4556, 7
      %v4558 = vsub.s32 %v4555, %v4557
      %v4559 = vrot.slane %v4545, %v4558
      %v4560 = vcombine.high %v4552, %v4552
      %v4561 = vcombine.high %v4559, %v4559
      %v4562 = vcombine.high %v4354, %v4354
      %v4564 = vunpack.c.l.s4 1983009808
      %v4565 = vunpack.c.0.s8 %v4564
      %v4566 = vlaneseq
      %v4567 = vshrl.u32 %v4566, 7
      %v4568 = vsub.s32 %v4565, %v4567
      %v4569 = vrot.slane %v4354, %v4568
      %v4571 = vunpack.c.l.s4 1983009808
      %v4572 = vunpack.c.0.s8 %v4571
      %v4573 = vlaneseq
      %v4574 = vshrl.u32 %v4573, 7
      %v4575 = vsub.s32 %v4572, %v4574
      %v4576 = vrot.slane %v4562, %v4575
      %v4577 = vcombine.high %v4569, %v4569
      %v4578 = vcombine.high %v4576, %v4576
      %v4579 = vcombine.high %v4355, %v4355
      %v4581 = vunpack.c.l.s4 1983009808
      %v4582 = vunpack.c.0.s8 %v4581
      %v4583 = vlaneseq
      %v4584 = vshrl.u32 %v4583, 7
      %v4585 = vsub.s32 %v4582, %v4584
      %v4586 = vrot.slane %v4355, %v4585
      %v4588 = vunpack.c.l.s4 1983009808
      %v4589 = vunpack.c.0.s8 %v4588
      %v4590 = vlaneseq
      %v4591 = vshrl.u32 %v4590, 7
      %v4592 = vsub.s32 %v4589, %v4591
      %v4593 = vrot.slane %v4579, %v4592
      %v4594 = vcombine.high %v4586, %v4586
      %v4595 = vcombine.high %v4593, %v4593
      %v4596 = vcombine.high %v4356, %v4356
      %v4598 = vunpack.c.l.s4 1983009808
      %v4599 = vunpack.c.0.s8 %v4598
      %v4600 = vlaneseq
      %v4601 = vshrl.u32 %v4600, 7
      %v4602 = vsub.s32 %v4599, %v4601
      %v4603 = vrot.slane %v4356, %v4602
      %v4605 = vunpack.c.l.s4 1983009808
      %v4606 = vunpack.c.0.s8 %v4605
      %v4607 = vlaneseq
      %v4608 = vshrl.u32 %v4607, 7
      %v4609 = vsub.s32 %v4606, %v4608
      %v4610 = vrot.slane %v4596, %v4609
      %v4611 = vcombine.high %v4603, %v4603
      %v4612 = vcombine.high %v4610, %v4610
      %v4613 = vcombine.high %v4357, %v4357
      %v4615 = vunpack.c.l.s4 1983009808
      %v4616 = vunpack.c.0.s8 %v4615
      %v4617 = vlaneseq
      %v4618 = vshrl.u32 %v4617, 7
      %v4619 = vsub.s32 %v4616, %v4618
      %v4620 = vrot.slane %v4357, %v4619
      %v4622 = vunpack.c.l.s4 1983009808
      %v4623 = vunpack.c.0.s8 %v4622
      %v4624 = vlaneseq
      %v4625 = vshrl.u32 %v4624, 7
      %v4626 = vsub.s32 %v4623, %v4625
      %v4627 = vrot.slane %v4613, %v4626
      %v4628 = vcombine.high %v4620, %v4620
      %v4629 = vcombine.high %v4627, %v4627
      %v4630 = vcombine.high %v4358, %v4358
      %v4632 = vunpack.c.l.s4 1983009808
      %v4633 = vunpack.c.0.s8 %v4632
      %v4634 = vlaneseq
      %v4635 = vshrl.u32 %v4634, 7
      %v4636 = vsub.s32 %v4633, %v4635
      %v4637 = vrot.slane %v4358, %v4636
      %v4639 = vunpack.c.l.s4 1983009808
      %v4640 = vunpack.c.0.s8 %v4639
      %v4641 = vlaneseq
      %v4642 = vshrl.u32 %v4641, 7
      %v4643 = vsub.s32 %v4640, %v4642
      %v4644 = vrot.slane %v4630, %v4643
      %v4645 = vcombine.high %v4637, %v4637
      %v4646 = vcombine.high %v4644, %v4644
      %v4647 = vcombine.high %v4359, %v4359
      %v4649 = vunpack.c.l.s4 1983009808
      %v4650 = vunpack.c.0.s8 %v4649
      %v4651 = vlaneseq
      %v4652 = vshrl.u32 %v4651, 7
      %v4653 = vsub.s32 %v4650, %v4652
      %v4654 = vrot.slane %v4359, %v4653
      %v4656 = vunpack.c.l.s4 1983009808
      %v4657 = vunpack.c.0.s8 %v4656
      %v4658 = vlaneseq
      %v4659 = vshrl.u32 %v4658, 7
      %v4660 = vsub.s32 %v4657, %v4659
      %v4661 = vrot.slane %v4647, %v4660
      %v4662 = vcombine.high %v4654, %v4654
      %v4663 = vcombine.high %v4661, %v4661
      %v4664 = vcombine.high %v4360, %v4360
      %v4666 = vunpack.c.l.s4 1983009808
      %v4667 = vunpack.c.0.s8 %v4666
      %v4668 = vlaneseq
      %v4669 = vshrl.u32 %v4668, 7
      %v4670 = vsub.s32 %v4667, %v4669
      %v4671 = vrot.slane %v4360, %v4670
      %v4673 = vunpack.c.l.s4 1983009808
      %v4674 = vunpack.c.0.s8 %v4673
      %v4675 = vlaneseq
      %v4676 = vshrl.u32 %v4675, 7
      %v4677 = vsub.s32 %v4674, %v4676
      %v4678 = vrot.slane %v4664, %v4677
      %v4679 = vcombine.high %v4671, %v4671
      %v4680 = vcombine.high %v4678, %v4678
      %v4681 = vcombine.high %v4361, %v4361
      %v4683 = vunpack.c.l.s4 1983009808
      %v4684 = vunpack.c.0.s8 %v4683
      %v4685 = vlaneseq
      %v4686 = vshrl.u32 %v4685, 7
      %v4687 = vsub.s32 %v4684, %v4686
      %v4688 = vrot.slane %v4361, %v4687
      %v4690 = vunpack.c.l.s4 1983009808
      %v4691 = vunpack.c.0.s8 %v4690
      %v4692 = vlaneseq
      %v4693 = vshrl.u32 %v4692, 7
      %v4694 = vsub.s32 %v4691, %v4693
      %v4695 = vrot.slane %v4681, %v4694
      %v4696 = vcombine.high %v4688, %v4688
      %v4697 = vcombine.high %v4695, %v4695
      %v4698 = vcombine.high %v4362, %v4362
      %v4700 = vunpack.c.l.s4 1983009808
      %v4701 = vunpack.c.0.s8 %v4700
      %v4702 = vlaneseq
      %v4703 = vshrl.u32 %v4702, 7
      %v4704 = vsub.s32 %v4701, %v4703
      %v4705 = vrot.slane %v4362, %v4704
      %v4707 = vunpack.c.l.s4 1983009808
      %v4708 = vunpack.c.0.s8 %v4707
      %v4709 = vlaneseq
      %v4710 = vshrl.u32 %v4709, 7
      %v4711 = vsub.s32 %v4708, %v4710
      %v4712 = vrot.slane %v4698, %v4711
      %v4713 = vcombine.high %v4705, %v4705
      %v4714 = vcombine.high %v4712, %v4712
      %v4715 = vcombine.high %v4363, %v4363
      %v4717 = vunpack.c.l.s4 1983009808
      %v4718 = vunpack.c.0.s8 %v4717
      %v4719 = vlaneseq
      %v4720 = vshrl.u32 %v4719, 7
      %v4721 = vsub.s32 %v4718, %v4720
      %v4722 = vrot.slane %v4363, %v4721
      %v4724 = vunpack.c.l.s4 1983009808
      %v4725 = vunpack.c.0.s8 %v4724
      %v4726 = vlaneseq
      %v4727 = vshrl.u32 %v4726, 7
      %v4728 = vsub.s32 %v4725, %v4727
      %v4729 = vrot.slane %v4715, %v4728
      %v4730 = vcombine.high %v4722, %v4722
      %v4731 = vcombine.high %v4729, %v4729
      %v4732 = vcombine.high %v4364, %v4364
      %v4734 = vunpack.c.l.s4 1983009808
      %v4735 = vunpack.c.0.s8 %v4734
      %v4736 = vlaneseq
      %v4737 = vshrl.u32 %v4736, 7
      %v4738 = vsub.s32 %v4735, %v4737
      %v4739 = vrot.slane %v4364, %v4738
      %v4741 = vunpack.c.l.s4 1983009808
      %v4742 = vunpack.c.0.s8 %v4741
      %v4743 = vlaneseq
      %v4744 = vshrl.u32 %v4743, 7
      %v4745 = vsub.s32 %v4742, %v4744
      %v4746 = vrot.slane %v4732, %v4745
      %v4747 = vcombine.high %v4739, %v4739
      %v4748 = vcombine.high %v4746, %v4746
      %v4749 = vcombine.high %v4365, %v4365
      %v4751 = vunpack.c.l.s4 1983009808
      %v4752 = vunpack.c.0.s8 %v4751
      %v4753 = vlaneseq
      %v4754 = vshrl.u32 %v4753, 7
      %v4755 = vsub.s32 %v4752, %v4754
      %v4756 = vrot.slane %v4365, %v4755
      %v4758 = vunpack.c.l.s4 1983009808
      %v4759 = vunpack.c.0.s8 %v4758
      %v4760 = vlaneseq
      %v4761 = vshrl.u32 %v4760, 7
      %v4762 = vsub.s32 %v4759, %v4761
      %v4763 = vrot.slane %v4749, %v4762
      %v4764 = vcombine.high %v4756, %v4756
      %v4765 = vcombine.high %v4763, %v4763
      %v4766 = vcombine.high %v4366, %v4366
      %v4768 = vunpack.c.l.s4 1983009808
      %v4769 = vunpack.c.0.s8 %v4768
      %v4770 = vlaneseq
      %v4771 = vshrl.u32 %v4770, 7
      %v4772 = vsub.s32 %v4769, %v4771
      %v4773 = vrot.slane %v4366, %v4772
      %v4775 = vunpack.c.l.s4 1983009808
      %v4776 = vunpack.c.0.s8 %v4775
      %v4777 = vlaneseq
      %v4778 = vshrl.u32 %v4777, 7
      %v4779 = vsub.s32 %v4776, %v4778
      %v4780 = vrot.slane %v4766, %v4779
      %v4781 = vcombine.high %v4773, %v4773
      %v4782 = vcombine.high %v4780, %v4780
      %v4783 = vcombine.high %v4367, %v4367
      %v4785 = vunpack.c.l.s4 1983009808
      %v4786 = vunpack.c.0.s8 %v4785
      %v4787 = vlaneseq
      %v4788 = vshrl.u32 %v4787, 7
      %v4789 = vsub.s32 %v4786, %v4788
      %v4790 = vrot.slane %v4367, %v4789
      %v4792 = vunpack.c.l.s4 1983009808
      %v4793 = vunpack.c.0.s8 %v4792
      %v4794 = vlaneseq
      %v4795 = vshrl.u32 %v4794, 7
      %v4796 = vsub.s32 %v4793, %v4795
      %v4797 = vrot.slane %v4783, %v4796
      %v4798 = vcombine.high %v4790, %v4790
      %v4799 = vcombine.high %v4797, %v4797
      %v4800 = vcombine.high %v4368, %v4368
      %v4802 = vunpack.c.l.s4 1983009808
      %v4803 = vunpack.c.0.s8 %v4802
      %v4804 = vlaneseq
      %v4805 = vshrl.u32 %v4804, 7
      %v4806 = vsub.s32 %v4803, %v4805
      %v4807 = vrot.slane %v4368, %v4806
      %v4809 = vunpack.c.l.s4 1983009808
      %v4810 = vunpack.c.0.s8 %v4809
      %v4811 = vlaneseq
      %v4812 = vshrl.u32 %v4811, 7
      %v4813 = vsub.s32 %v4810, %v4812
      %v4814 = vrot.slane %v4800, %v4813
      %v4815 = vcombine.high %v4807, %v4807
      %v4816 = vcombine.high %v4814, %v4814
      %v4817 = vcombine.high %v4369, %v4369
      %v4819 = vunpack.c.l.s4 1983009808
      %v4820 = vunpack.c.0.s8 %v4819
      %v4821 = vlaneseq
      %v4822 = vshrl.u32 %v4821, 7
      %v4823 = vsub.s32 %v4820, %v4822
      %v4824 = vrot.slane %v4369, %v4823
      %v4826 = vunpack.c.l.s4 1983009808
      %v4827 = vunpack.c.0.s8 %v4826
      %v4828 = vlaneseq
      %v4829 = vshrl.u32 %v4828, 7
      %v4830 = vsub.s32 %v4827, %v4829
      %v4831 = vrot.slane %v4817, %v4830
      %v4832 = vcombine.high %v4824, %v4824
      %v4833 = vcombine.high %v4831, %v4831
      %v4834 = vcombine.high %v4370, %v4370
      %v4836 = vunpack.c.l.s4 1983009808
      %v4837 = vunpack.c.0.s8 %v4836
      %v4838 = vlaneseq
      %v4839 = vshrl.u32 %v4838, 7
      %v4840 = vsub.s32 %v4837, %v4839
      %v4841 = vrot.slane %v4370, %v4840
      %v4843 = vunpack.c.l.s4 1983009808
      %v4844 = vunpack.c.0.s8 %v4843
      %v4845 = vlaneseq
      %v4846 = vshrl.u32 %v4845, 7
      %v4847 = vsub.s32 %v4844, %v4846
      %v4848 = vrot.slane %v4834, %v4847
      %v4849 = vcombine.high %v4841, %v4841
      %v4850 = vcombine.high %v4848, %v4848
      %v4851 = vcombine.high %v4371, %v4371
      %v4853 = vunpack.c.l.s4 1983009808
      %v4854 = vunpack.c.0.s8 %v4853
      %v4855 = vlaneseq
      %v4856 = vshrl.u32 %v4855, 7
      %v4857 = vsub.s32 %v4854, %v4856
      %v4858 = vrot.slane %v4371, %v4857
      %v4860 = vunpack.c.l.s4 1983009808
      %v4861 = vunpack.c.0.s8 %v4860
      %v4862 = vlaneseq
      %v4863 = vshrl.u32 %v4862, 7
      %v4864 = vsub.s32 %v4861, %v4863
      %v4865 = vrot.slane %v4851, %v4864
      %v4866 = vcombine.high %v4858, %v4858
      %v4867 = vcombine.high %v4865, %v4865
      %v4868 = vcombine.high %v4372, %v4372
      %v4870 = vunpack.c.l.s4 1983009808
      %v4871 = vunpack.c.0.s8 %v4870
      %v4872 = vlaneseq
      %v4873 = vshrl.u32 %v4872, 7
      %v4874 = vsub.s32 %v4871, %v4873
      %v4875 = vrot.slane %v4372, %v4874
      %v4877 = vunpack.c.l.s4 1983009808
      %v4878 = vunpack.c.0.s8 %v4877
      %v4879 = vlaneseq
      %v4880 = vshrl.u32 %v4879, 7
      %v4881 = vsub.s32 %v4878, %v4880
      %v4882 = vrot.slane %v4868, %v4881
      %v4883 = vcombine.high %v4875, %v4875
      %v4884 = vcombine.high %v4882, %v4882
      %v4885 = vcombine.high %v4373, %v4373
      %v4887 = vunpack.c.l.s4 1983009808
      %v4888 = vunpack.c.0.s8 %v4887
      %v4889 = vlaneseq
      %v4890 = vshrl.u32 %v4889, 7
      %v4891 = vsub.s32 %v4888, %v4890
      %v4892 = vrot.slane %v4373, %v4891
      %v4894 = vunpack.c.l.s4 1983009808
      %v4895 = vunpack.c.0.s8 %v4894
      %v4896 = vlaneseq
      %v4897 = vshrl.u32 %v4896, 7
      %v4898 = vsub.s32 %v4895, %v4897
      %v4899 = vrot.slane %v4885, %v4898
      %v4900 = vcombine.high %v4892, %v4892
      %v4901 = vcombine.high %v4899, %v4899
      %v4902 = vcombine.high %v4374, %v4374
      %v4904 = vunpack.c.l.s4 1983009808
      %v4905 = vunpack.c.0.s8 %v4904
      %v4906 = vlaneseq
      %v4907 = vshrl.u32 %v4906, 7
      %v4908 = vsub.s32 %v4905, %v4907
      %v4909 = vrot.slane %v4374, %v4908
      %v4911 = vunpack.c.l.s4 1983009808
      %v4912 = vunpack.c.0.s8 %v4911
      %v4913 = vlaneseq
      %v4914 = vshrl.u32 %v4913, 7
      %v4915 = vsub.s32 %v4912, %v4914
      %v4916 = vrot.slane %v4902, %v4915
      %v4917 = vcombine.high %v4909, %v4909
      %v4918 = vcombine.high %v4916, %v4916
      %v4919 = vcombine.high %v4375, %v4375
      %v4921 = vunpack.c.l.s4 1983009808
      %v4922 = vunpack.c.0.s8 %v4921
      %v4923 = vlaneseq
      %v4924 = vshrl.u32 %v4923, 7
      %v4925 = vsub.s32 %v4922, %v4924
      %v4926 = vrot.slane %v4375, %v4925
      %v4928 = vunpack.c.l.s4 1983009808
      %v4929 = vunpack.c.0.s8 %v4928
      %v4930 = vlaneseq
      %v4931 = vshrl.u32 %v4930, 7
      %v4932 = vsub.s32 %v4929, %v4931
      %v4933 = vrot.slane %v4919, %v4932
      %v4934 = vcombine.high %v4926, %v4926
      %v4935 = vcombine.high %v4933, %v4933
      %v4936 = vcombine.high %v4376, %v4376
      %v4938 = vunpack.c.l.s4 1983009808
      %v4939 = vunpack.c.0.s8 %v4938
      %v4940 = vlaneseq
      %v4941 = vshrl.u32 %v4940, 7
      %v4942 = vsub.s32 %v4939, %v4941
      %v4943 = vrot.slane %v4376, %v4942
      %v4945 = vunpack.c.l.s4 1983009808
      %v4946 = vunpack.c.0.s8 %v4945
      %v4947 = vlaneseq
      %v4948 = vshrl.u32 %v4947, 7
      %v4949 = vsub.s32 %v4946, %v4948
      %v4950 = vrot.slane %v4936, %v4949
      %v4951 = vcombine.high %v4943, %v4943
      %v4952 = vcombine.high %v4950, %v4950
      %v4953 = vcombine.high %v4377, %v4377
      %v4955 = vunpack.c.l.s4 1983009808
      %v4956 = vunpack.c.0.s8 %v4955
      %v4957 = vlaneseq
      %v4958 = vshrl.u32 %v4957, 7
      %v4959 = vsub.s32 %v4956, %v4958
      %v4960 = vrot.slane %v4377, %v4959
      %v4962 = vunpack.c.l.s4 1983009808
      %v4963 = vunpack.c.0.s8 %v4962
      %v4964 = vlaneseq
      %v4965 = vshrl.u32 %v4964, 7
      %v4966 = vsub.s32 %v4963, %v4965
      %v4967 = vrot.slane %v4953, %v4966
      %v4968 = vcombine.high %v4960, %v4960
      %v4969 = vcombine.high %v4967, %v4967
      %v4970 = vcombine.high %v4378, %v4378
      %v4972 = vunpack.c.l.s4 1983009808
      %v4973 = vunpack.c.0.s8 %v4972
      %v4974 = vlaneseq
      %v4975 = vshrl.u32 %v4974, 7
      %v4976 = vsub.s32 %v4973, %v4975
      %v4977 = vrot.slane %v4378, %v4976
      %v4979 = vunpack.c.l.s4 1983009808
      %v4980 = vunpack.c.0.s8 %v4979
      %v4981 = vlaneseq
      %v4982 = vshrl.u32 %v4981, 7
      %v4983 = vsub.s32 %v4980, %v4982
      %v4984 = vrot.slane %v4970, %v4983
      %v4985 = vcombine.high %v4977, %v4977
      %v4986 = vcombine.high %v4984, %v4984
      %v4987 = vcombine.high %v4379, %v4379
      %v4989 = vunpack.c.l.s4 1983009808
      %v4990 = vunpack.c.0.s8 %v4989
      %v4991 = vlaneseq
      %v4992 = vshrl.u32 %v4991, 7
      %v4993 = vsub.s32 %v4990, %v4992
      %v4994 = vrot.slane %v4379, %v4993
      %v4996 = vunpack.c.l.s4 1983009808
      %v4997 = vunpack.c.0.s8 %v4996
      %v4998 = vlaneseq
      %v4999 = vshrl.u32 %v4998, 7
      %v5000 = vsub.s32 %v4997, %v4999
      %v5001 = vrot.slane %v4987, %v5000
      %v5002 = vcombine.high %v4994, %v4994
      %v5003 = vcombine.high %v5001, %v5001
      %v5004 = vcombine.high %v4380, %v4380
      %v5006 = vunpack.c.l.s4 1983009808
      %v5007 = vunpack.c.0.s8 %v5006
      %v5008 = vlaneseq
      %v5009 = vshrl.u32 %v5008, 7
      %v5010 = vsub.s32 %v5007, %v5009
      %v5011 = vrot.slane %v4380, %v5010
      %v5013 = vunpack.c.l.s4 1983009808
      %v5014 = vunpack.c.0.s8 %v5013
      %v5015 = vlaneseq
      %v5016 = vshrl.u32 %v5015, 7
      %v5017 = vsub.s32 %v5014, %v5016
      %v5018 = vrot.slane %v5004, %v5017
      %v5019 = vcombine.high %v5011, %v5011
      %v5020 = vcombine.high %v5018, %v5018
      %v5021 = vcombine.high %v4381, %v4381
      %v5023 = vunpack.c.l.s4 1983009808
      %v5024 = vunpack.c.0.s8 %v5023
      %v5025 = vlaneseq
      %v5026 = vshrl.u32 %v5025, 7
      %v5027 = vsub.s32 %v5024, %v5026
      %v5028 = vrot.slane %v4381, %v5027
      %v5030 = vunpack.c.l.s4 1983009808
      %v5031 = vunpack.c.0.s8 %v5030
      %v5032 = vlaneseq
      %v5033 = vshrl.u32 %v5032, 7
      %v5034 = vsub.s32 %v5031, %v5033
      %v5035 = vrot.slane %v5021, %v5034
      %v5036 = vcombine.high %v5028, %v5028
      %v5037 = vcombine.high %v5035, %v5035
      %v5038 = vcombine.high %v4382, %v4382
      %v5040 = vunpack.c.l.s4 1983009808
      %v5041 = vunpack.c.0.s8 %v5040
      %v5042 = vlaneseq
      %v5043 = vshrl.u32 %v5042, 7
      %v5044 = vsub.s32 %v5041, %v5043
      %v5045 = vrot.slane %v4382, %v5044
      %v5047 = vunpack.c.l.s4 1983009808
      %v5048 = vunpack.c.0.s8 %v5047
      %v5049 = vlaneseq
      %v5050 = vshrl.u32 %v5049, 7
      %v5051 = vsub.s32 %v5048, %v5050
      %v5052 = vrot.slane %v5038, %v5051
      %v5053 = vcombine.high %v5045, %v5045
      %v5054 = vcombine.high %v5052, %v5052
      %v5055 = vcombine.high %v4383, %v4383
      %v5057 = vunpack.c.l.s4 1983009808
      %v5058 = vunpack.c.0.s8 %v5057
      %v5059 = vlaneseq
      %v5060 = vshrl.u32 %v5059, 7
      %v5061 = vsub.s32 %v5058, %v5060
      %v5062 = vrot.slane %v4383, %v5061
      %v5064 = vunpack.c.l.s4 1983009808
      %v5065 = vunpack.c.0.s8 %v5064
      %v5066 = vlaneseq
      %v5067 = vshrl.u32 %v5066, 7
      %v5068 = vsub.s32 %v5065, %v5067
      %v5069 = vrot.slane %v5055, %v5068
      %v5070 = vcombine.high %v5062, %v5062
      %v5071 = vcombine.high %v5069, %v5069
      %v5072 = vcombine.high %v4384, %v4384
      %v5074 = vunpack.c.l.s4 1983009808
      %v5075 = vunpack.c.0.s8 %v5074
      %v5076 = vlaneseq
      %v5077 = vshrl.u32 %v5076, 7
      %v5078 = vsub.s32 %v5075, %v5077
      %v5079 = vrot.slane %v4384, %v5078
      %v5081 = vunpack.c.l.s4 1983009808
      %v5082 = vunpack.c.0.s8 %v5081
      %v5083 = vlaneseq
      %v5084 = vshrl.u32 %v5083, 7
      %v5085 = vsub.s32 %v5082, %v5084
      %v5086 = vrot.slane %v5072, %v5085
      %v5087 = vcombine.high %v5079, %v5079
      %v5088 = vcombine.high %v5086, %v5086
      %v5089 = vcombine.high %v4385, %v4385
      %v5091 = vunpack.c.l.s4 1983009808
      %v5092 = vunpack.c.0.s8 %v5091
      %v5093 = vlaneseq
      %v5094 = vshrl.u32 %v5093, 7
      %v5095 = vsub.s32 %v5092, %v5094
      %v5096 = vrot.slane %v4385, %v5095
      %v5098 = vunpack.c.l.s4 1983009808
      %v5099 = vunpack.c.0.s8 %v5098
      %v5100 = vlaneseq
      %v5101 = vshrl.u32 %v5100, 7
      %v5102 = vsub.s32 %v5099, %v5101
      %v5103 = vrot.slane %v5089, %v5102
      %v5104 = vcombine.high %v5096, %v5096
      %v5105 = vcombine.high %v5103, %v5103
      %v5106 = vcombine.high %v4386, %v4386
      %v5108 = vunpack.c.l.s4 1983009808
      %v5109 = vunpack.c.0.s8 %v5108
      %v5110 = vlaneseq
      %v5111 = vshrl.u32 %v5110, 7
      %v5112 = vsub.s32 %v5109, %v5111
      %v5113 = vrot.slane %v4386, %v5112
      %v5115 = vunpack.c.l.s4 1983009808
      %v5116 = vunpack.c.0.s8 %v5115
      %v5117 = vlaneseq
      %v5118 = vshrl.u32 %v5117, 7
      %v5119 = vsub.s32 %v5116, %v5118
      %v5120 = vrot.slane %v5106, %v5119
      %v5121 = vcombine.high %v5113, %v5113
      %v5122 = vcombine.high %v5120, %v5120
      %v5123 = vcombine.high %v4387, %v4387
      %v5125 = vunpack.c.l.s4 1983009808
      %v5126 = vunpack.c.0.s8 %v5125
      %v5127 = vlaneseq
      %v5128 = vshrl.u32 %v5127, 7
      %v5129 = vsub.s32 %v5126, %v5128
      %v5130 = vrot.slane %v4387, %v5129
      %v5132 = vunpack.c.l.s4 1983009808
      %v5133 = vunpack.c.0.s8 %v5132
      %v5134 = vlaneseq
      %v5135 = vshrl.u32 %v5134, 7
      %v5136 = vsub.s32 %v5133, %v5135
      %v5137 = vrot.slane %v5123, %v5136
      %v5138 = vcombine.high %v5130, %v5130
      %v5139 = vcombine.high %v5137, %v5137
      %v5140 = vcombine.high %v4388, %v4388
      %v5142 = vunpack.c.l.s4 1983009808
      %v5143 = vunpack.c.0.s8 %v5142
      %v5144 = vlaneseq
      %v5145 = vshrl.u32 %v5144, 7
      %v5146 = vsub.s32 %v5143, %v5145
      %v5147 = vrot.slane %v4388, %v5146
      %v5149 = vunpack.c.l.s4 1983009808
      %v5150 = vunpack.c.0.s8 %v5149
      %v5151 = vlaneseq
      %v5152 = vshrl.u32 %v5151, 7
      %v5153 = vsub.s32 %v5150, %v5152
      %v5154 = vrot.slane %v5140, %v5153
      %v5155 = vcombine.high %v5147, %v5147
      %v5156 = vcombine.high %v5154, %v5154
      %v5157 = vcombine.high %v4389, %v4389
      %v5159 = vunpack.c.l.s4 1983009808
      %v5160 = vunpack.c.0.s8 %v5159
      %v5161 = vlaneseq
      %v5162 = vshrl.u32 %v5161, 7
      %v5163 = vsub.s32 %v5160, %v5162
      %v5164 = vrot.slane %v4389, %v5163
      %v5166 = vunpack.c.l.s4 1983009808
      %v5167 = vunpack.c.0.s8 %v5166
      %v5168 = vlaneseq
      %v5169 = vshrl.u32 %v5168, 7
      %v5170 = vsub.s32 %v5167, %v5169
      %v5171 = vrot.slane %v5157, %v5170
      %v5172 = vcombine.high %v5164, %v5164
      %v5173 = vcombine.high %v5171, %v5171
      %v5174 = vcombine.high %v4390, %v4390
      %v5176 = vunpack.c.l.s4 1983009808
      %v5177 = vunpack.c.0.s8 %v5176
      %v5178 = vlaneseq
      %v5179 = vshrl.u32 %v5178, 7
      %v5180 = vsub.s32 %v5177, %v5179
      %v5181 = vrot.slane %v4390, %v5180
      %v5183 = vunpack.c.l.s4 1983009808
      %v5184 = vunpack.c.0.s8 %v5183
      %v5185 = vlaneseq
      %v5186 = vshrl.u32 %v5185, 7
      %v5187 = vsub.s32 %v5184, %v5186
      %v5188 = vrot.slane %v5174, %v5187
      %v5189 = vcombine.high %v5181, %v5181
      %v5190 = vcombine.high %v5188, %v5188
      %v5191 = vcombine.high %v4391, %v4391
      %v5193 = vunpack.c.l.s4 1983009808
      %v5194 = vunpack.c.0.s8 %v5193
      %v5195 = vlaneseq
      %v5196 = vshrl.u32 %v5195, 7
      %v5197 = vsub.s32 %v5194, %v5196
      %v5198 = vrot.slane %v4391, %v5197
      %v5200 = vunpack.c.l.s4 1983009808
      %v5201 = vunpack.c.0.s8 %v5200
      %v5202 = vlaneseq
      %v5203 = vshrl.u32 %v5202, 7
      %v5204 = vsub.s32 %v5201, %v5203
      %v5205 = vrot.slane %v5191, %v5204
      %v5206 = vcombine.high %v5198, %v5198
      %v5207 = vcombine.high %v5205, %v5205
      %v5208 = vcombine.high %v4392, %v4392
      %v5210 = vunpack.c.l.s4 1983009808
      %v5211 = vunpack.c.0.s8 %v5210
      %v5212 = vlaneseq
      %v5213 = vshrl.u32 %v5212, 7
      %v5214 = vsub.s32 %v5211, %v5213
      %v5215 = vrot.slane %v4392, %v5214
      %v5217 = vunpack.c.l.s4 1983009808
      %v5218 = vunpack.c.0.s8 %v5217
      %v5219 = vlaneseq
      %v5220 = vshrl.u32 %v5219, 7
      %v5221 = vsub.s32 %v5218, %v5220
      %v5222 = vrot.slane %v5208, %v5221
      %v5223 = vcombine.high %v5215, %v5215
      %v5224 = vcombine.high %v5222, %v5222
      %v5225 = vcombine.high %v4393, %v4393
      %v5227 = vunpack.c.l.s4 1983009808
      %v5228 = vunpack.c.0.s8 %v5227
      %v5229 = vlaneseq
      %v5230 = vshrl.u32 %v5229, 7
      %v5231 = vsub.s32 %v5228, %v5230
      %v5232 = vrot.slane %v4393, %v5231
      %v5234 = vunpack.c.l.s4 1983009808
      %v5235 = vunpack.c.0.s8 %v5234
      %v5236 = vlaneseq
      %v5237 = vshrl.u32 %v5236, 7
      %v5238 = vsub.s32 %v5235, %v5237
      %v5239 = vrot.slane %v5225, %v5238
      %v5240 = vcombine.high %v5232, %v5232
      %v5241 = vcombine.high %v5239, %v5239
      %v5242 = vcombine.high %v4394, %v4394
      %v5244 = vunpack.c.l.s4 1983009808
      %v5245 = vunpack.c.0.s8 %v5244
      %v5246 = vlaneseq
      %v5247 = vshrl.u32 %v5246, 7
      %v5248 = vsub.s32 %v5245, %v5247
      %v5249 = vrot.slane %v4394, %v5248
      %v5251 = vunpack.c.l.s4 1983009808
      %v5252 = vunpack.c.0.s8 %v5251
      %v5253 = vlaneseq
      %v5254 = vshrl.u32 %v5253, 7
      %v5255 = vsub.s32 %v5252, %v5254
      %v5256 = vrot.slane %v5242, %v5255
      %v5257 = vcombine.high %v5249, %v5249
      %v5258 = vcombine.high %v5256, %v5256
      %v5259 = vcombine.high %v4395, %v4395
      %v5261 = vunpack.c.l.s4 1983009808
      %v5262 = vunpack.c.0.s8 %v5261
      %v5263 = vlaneseq
      %v5264 = vshrl.u32 %v5263, 7
      %v5265 = vsub.s32 %v5262, %v5264
      %v5266 = vrot.slane %v4395, %v5265
      %v5268 = vunpack.c.l.s4 1983009808
      %v5269 = vunpack.c.0.s8 %v5268
      %v5270 = vlaneseq
      %v5271 = vshrl.u32 %v5270, 7
      %v5272 = vsub.s32 %v5269, %v5271
      %v5273 = vrot.slane %v5259, %v5272
      %v5274 = vcombine.high %v5266, %v5266
      %v5275 = vcombine.high %v5273, %v5273
      %v5276 = vcombine.high %v4396, %v4396
      %v5278 = vunpack.c.l.s4 1983009808
      %v5279 = vunpack.c.0.s8 %v5278
      %v5280 = vlaneseq
      %v5281 = vshrl.u32 %v5280, 7
      %v5282 = vsub.s32 %v5279, %v5281
      %v5283 = vrot.slane %v4396, %v5282
      %v5285 = vunpack.c.l.s4 1983009808
      %v5286 = vunpack.c.0.s8 %v5285
      %v5287 = vlaneseq
      %v5288 = vshrl.u32 %v5287, 7
      %v5289 = vsub.s32 %v5286, %v5288
      %v5290 = vrot.slane %v5276, %v5289
      %v5291 = vcombine.high %v5283, %v5283
      %v5292 = vcombine.high %v5290, %v5290
      %v5293 = vcombine.high %v4397, %v4397
      %v5295 = vunpack.c.l.s4 1983009808
      %v5296 = vunpack.c.0.s8 %v5295
      %v5297 = vlaneseq
      %v5298 = vshrl.u32 %v5297, 7
      %v5299 = vsub.s32 %v5296, %v5298
      %v5300 = vrot.slane %v4397, %v5299
      %v5302 = vunpack.c.l.s4 1983009808
      %v5303 = vunpack.c.0.s8 %v5302
      %v5304 = vlaneseq
      %v5305 = vshrl.u32 %v5304, 7
      %v5306 = vsub.s32 %v5303, %v5305
      %v5307 = vrot.slane %v5293, %v5306
      %v5308 = vcombine.high %v5300, %v5300
      %v5309 = vcombine.high %v5307, %v5307
      %v5310 = vcombine.high %v4398, %v4398
      %v5312 = vunpack.c.l.s4 1983009808
      %v5313 = vunpack.c.0.s8 %v5312
      %v5314 = vlaneseq
      %v5315 = vshrl.u32 %v5314, 7
      %v5316 = vsub.s32 %v5313, %v5315
      %v5317 = vrot.slane %v4398, %v5316
      %v5319 = vunpack.c.l.s4 1983009808
      %v5320 = vunpack.c.0.s8 %v5319
      %v5321 = vlaneseq
      %v5322 = vshrl.u32 %v5321, 7
      %v5323 = vsub.s32 %v5320, %v5322
      %v5324 = vrot.slane %v5310, %v5323
      %v5325 = vcombine.high %v5317, %v5317
      %v5326 = vcombine.high %v5324, %v5324
      %v5327 = vcombine.high %v4399, %v4399
      %v5329 = vunpack.c.l.s4 1983009808
      %v5330 = vunpack.c.0.s8 %v5329
      %v5331 = vlaneseq
      %v5332 = vshrl.u32 %v5331, 7
      %v5333 = vsub.s32 %v5330, %v5332
      %v5334 = vrot.slane %v4399, %v5333
      %v5336 = vunpack.c.l.s4 1983009808
      %v5337 = vunpack.c.0.s8 %v5336
      %v5338 = vlaneseq
      %v5339 = vshrl.u32 %v5338, 7
      %v5340 = vsub.s32 %v5337, %v5339
      %v5341 = vrot.slane %v5327, %v5340
      %v5342 = vcombine.high %v5334, %v5334
      %v5343 = vcombine.high %v5341, %v5341
      %v5344 = vcombine.high %v4400, %v4400
      %v5346 = vunpack.c.l.s4 1983009808
      %v5347 = vunpack.c.0.s8 %v5346
      %v5348 = vlaneseq
      %v5349 = vshrl.u32 %v5348, 7
      %v5350 = vsub.s32 %v5347, %v5349
      %v5351 = vrot.slane %v4400, %v5350
      %v5353 = vunpack.c.l.s4 1983009808
      %v5354 = vunpack.c.0.s8 %v5353
      %v5355 = vlaneseq
      %v5356 = vshrl.u32 %v5355, 7
      %v5357 = vsub.s32 %v5354, %v5356
      %v5358 = vrot.slane %v5344, %v5357
      %v5359 = vcombine.high %v5351, %v5351
      %v5360 = vcombine.high %v5358, %v5358
      %v5361 = vcombine.high %v4401, %v4401
      %v5363 = vunpack.c.l.s4 1983009808
      %v5364 = vunpack.c.0.s8 %v5363
      %v5365 = vlaneseq
      %v5366 = vshrl.u32 %v5365, 7
      %v5367 = vsub.s32 %v5364, %v5366
      %v5368 = vrot.slane %v4401, %v5367
      %v5370 = vunpack.c.l.s4 1983009808
      %v5371 = vunpack.c.0.s8 %v5370
      %v5372 = vlaneseq
      %v5373 = vshrl.u32 %v5372, 7
      %v5374 = vsub.s32 %v5371, %v5373
      %v5375 = vrot.slane %v5361, %v5374
      %v5376 = vcombine.high %v5368, %v5368
      %v5377 = vcombine.high %v5375, %v5375
      %v5378 = vcombine.high %v4402, %v4402
      %v5380 = vunpack.c.l.s4 1983009808
      %v5381 = vunpack.c.0.s8 %v5380
      %v5382 = vlaneseq
      %v5383 = vshrl.u32 %v5382, 7
      %v5384 = vsub.s32 %v5381, %v5383
      %v5385 = vrot.slane %v4402, %v5384
      %v5387 = vunpack.c.l.s4 1983009808
      %v5388 = vunpack.c.0.s8 %v5387
      %v5389 = vlaneseq
      %v5390 = vshrl.u32 %v5389, 7
      %v5391 = vsub.s32 %v5388, %v5390
      %v5392 = vrot.slane %v5378, %v5391
      %v5393 = vcombine.high %v5385, %v5385
      %v5394 = vcombine.high %v5392, %v5392
      %v5395 = vcombine.high %v4403, %v4403
      %v5397 = vunpack.c.l.s4 1983009808
      %v5398 = vunpack.c.0.s8 %v5397
      %v5399 = vlaneseq
      %v5400 = vshrl.u32 %v5399, 7
      %v5401 = vsub.s32 %v5398, %v5400
      %v5402 = vrot.slane %v4403, %v5401
      %v5404 = vunpack.c.l.s4 1983009808
      %v5405 = vunpack.c.0.s8 %v5404
      %v5406 = vlaneseq
      %v5407 = vshrl.u32 %v5406, 7
      %v5408 = vsub.s32 %v5405, %v5407
      %v5409 = vrot.slane %v5395, %v5408
      %v5410 = vcombine.high %v5402, %v5402
      %v5411 = vcombine.high %v5409, %v5409
      %v5412 = vcombine.high %v4404, %v4404
      %v5414 = vunpack.c.l.s4 1983009808
      %v5415 = vunpack.c.0.s8 %v5414
      %v5416 = vlaneseq
      %v5417 = vshrl.u32 %v5416, 7
      %v5418 = vsub.s32 %v5415, %v5417
      %v5419 = vrot.slane %v4404, %v5418
      %v5421 = vunpack.c.l.s4 1983009808
      %v5422 = vunpack.c.0.s8 %v5421
      %v5423 = vlaneseq
      %v5424 = vshrl.u32 %v5423, 7
      %v5425 = vsub.s32 %v5422, %v5424
      %v5426 = vrot.slane %v5412, %v5425
      %v5427 = vcombine.high %v5419, %v5419
      %v5428 = vcombine.high %v5426, %v5426
      %v5429 = vcombine.high %v4405, %v4405
      %v5431 = vunpack.c.l.s4 1983009808
      %v5432 = vunpack.c.0.s8 %v5431
      %v5433 = vlaneseq
      %v5434 = vshrl.u32 %v5433, 7
      %v5435 = vsub.s32 %v5432, %v5434
      %v5436 = vrot.slane %v4405, %v5435
      %v5438 = vunpack.c.l.s4 1983009808
      %v5439 = vunpack.c.0.s8 %v5438
      %v5440 = vlaneseq
      %v5441 = vshrl.u32 %v5440, 7
      %v5442 = vsub.s32 %v5439, %v5441
      %v5443 = vrot.slane %v5429, %v5442
      %v5444 = vcombine.high %v5436, %v5436
      %v5445 = vcombine.high %v5443, %v5443
      %v5446 = vcombine.high %v4406, %v4406
      %v5448 = vunpack.c.l.s4 1983009808
      %v5449 = vunpack.c.0.s8 %v5448
      %v5450 = vlaneseq
      %v5451 = vshrl.u32 %v5450, 7
      %v5452 = vsub.s32 %v5449, %v5451
      %v5453 = vrot.slane %v4406, %v5452
      %v5455 = vunpack.c.l.s4 1983009808
      %v5456 = vunpack.c.0.s8 %v5455
      %v5457 = vlaneseq
      %v5458 = vshrl.u32 %v5457, 7
      %v5459 = vsub.s32 %v5456, %v5458
      %v5460 = vrot.slane %v5446, %v5459
      %v5461 = vcombine.high %v5453, %v5453
      %v5462 = vcombine.high %v5460, %v5460
      %v5463 = vcombine.high %v4407, %v4407
      %v5465 = vunpack.c.l.s4 1983009808
      %v5466 = vunpack.c.0.s8 %v5465
      %v5467 = vlaneseq
      %v5468 = vshrl.u32 %v5467, 7
      %v5469 = vsub.s32 %v5466, %v5468
      %v5470 = vrot.slane %v4407, %v5469
      %v5472 = vunpack.c.l.s4 1983009808
      %v5473 = vunpack.c.0.s8 %v5472
      %v5474 = vlaneseq
      %v5475 = vshrl.u32 %v5474, 7
      %v5476 = vsub.s32 %v5473, %v5475
      %v5477 = vrot.slane %v5463, %v5476
      %v5478 = vcombine.high %v5470, %v5470
      %v5479 = vcombine.high %v5477, %v5477
      %v5480 = vcombine.high %v4408, %v4408
      %v5482 = vunpack.c.l.s4 1983009808
      %v5483 = vunpack.c.0.s8 %v5482
      %v5484 = vlaneseq
      %v5485 = vshrl.u32 %v5484, 7
      %v5486 = vsub.s32 %v5483, %v5485
      %v5487 = vrot.slane %v4408, %v5486
      %v5489 = vunpack.c.l.s4 1983009808
      %v5490 = vunpack.c.0.s8 %v5489
      %v5491 = vlaneseq
      %v5492 = vshrl.u32 %v5491, 7
      %v5493 = vsub.s32 %v5490, %v5492
      %v5494 = vrot.slane %v5480, %v5493
      %v5495 = vcombine.high %v5487, %v5487
      %v5496 = vcombine.high %v5494, %v5494
      %v5497 = vcombine.high %v4409, %v4409
      %v5499 = vunpack.c.l.s4 1983009808
      %v5500 = vunpack.c.0.s8 %v5499
      %v5501 = vlaneseq
      %v5502 = vshrl.u32 %v5501, 7
      %v5503 = vsub.s32 %v5500, %v5502
      %v5504 = vrot.slane %v4409, %v5503
      %v5506 = vunpack.c.l.s4 1983009808
      %v5507 = vunpack.c.0.s8 %v5506
      %v5508 = vlaneseq
      %v5509 = vshrl.u32 %v5508, 7
      %v5510 = vsub.s32 %v5507, %v5509
      %v5511 = vrot.slane %v5497, %v5510
      %v5512 = vcombine.high %v5504, %v5504
      %v5513 = vcombine.high %v5511, %v5511
      %v5514 = vcombine.high %v4410, %v4410
      %v5516 = vunpack.c.l.s4 1983009808
      %v5517 = vunpack.c.0.s8 %v5516
      %v5518 = vlaneseq
      %v5519 = vshrl.u32 %v5518, 7
      %v5520 = vsub.s32 %v5517, %v5519
      %v5521 = vrot.slane %v4410, %v5520
      %v5523 = vunpack.c.l.s4 1983009808
      %v5524 = vunpack.c.0.s8 %v5523
      %v5525 = vlaneseq
      %v5526 = vshrl.u32 %v5525, 7
      %v5527 = vsub.s32 %v5524, %v5526
      %v5528 = vrot.slane %v5514, %v5527
      %v5529 = vcombine.high %v5521, %v5521
      %v5530 = vcombine.high %v5528, %v5528
      %v5531 = vcombine.high %v4411, %v4411
      %v5533 = vunpack.c.l.s4 1983009808
      %v5534 = vunpack.c.0.s8 %v5533
      %v5535 = vlaneseq
      %v5536 = vshrl.u32 %v5535, 7
      %v5537 = vsub.s32 %v5534, %v5536
      %v5538 = vrot.slane %v4411, %v5537
      %v5540 = vunpack.c.l.s4 1983009808
      %v5541 = vunpack.c.0.s8 %v5540
      %v5542 = vlaneseq
      %v5543 = vshrl.u32 %v5542, 7
      %v5544 = vsub.s32 %v5541, %v5543
      %v5545 = vrot.slane %v5531, %v5544
      %v5546 = vcombine.high %v5538, %v5538
      %v5547 = vcombine.high %v5545, %v5545
      %v5548 = vcombine.high %v4412, %v4412
      %v5550 = vunpack.c.l.s4 1983009808
      %v5551 = vunpack.c.0.s8 %v5550
      %v5552 = vlaneseq
      %v5553 = vshrl.u32 %v5552, 7
      %v5554 = vsub.s32 %v5551, %v5553
      %v5555 = vrot.slane %v4412, %v5554
      %v5557 = vunpack.c.l.s4 1983009808
      %v5558 = vunpack.c.0.s8 %v5557
      %v5559 = vlaneseq
      %v5560 = vshrl.u32 %v5559, 7
      %v5561 = vsub.s32 %v5558, %v5560
      %v5562 = vrot.slane %v5548, %v5561
      %v5563 = vcombine.high %v5555, %v5555
      %v5564 = vcombine.high %v5562, %v5562
      %vm5821 = vcmask 58368
      %v5822 = vsel %vm5821, %v4484, -inf
      %v5823 = vrot.slane %v5822, 4
      %v5824 = vmax.f32 %v5822, %v5823
      %v5825 = vrot.slane %v5824, 2
      %v5826 = vmax.f32 %v5824, %v5825
      %v5827 = vrot.slane %v5826, 1
      %v5828 = vmax.f32 %v5826, %v5827
      %v5829 = vsel %vm5821, %v4492, -inf
      %v5830 = vrot.slane %v5829, 4
      %v5831 = vmax.f32 %v5829, %v5830
      %v5832 = vrot.slane %v5831, 2
      %v5833 = vmax.f32 %v5831, %v5832
      %v5834 = vrot.slane %v5833, 1
      %v5835 = vmax.f32 %v5833, %v5834
      %v5836 = vsel %vm5821, %v4491, -inf
      %v5837 = vrot.slane %v5836, 4
      %v5838 = vmax.f32 %v5836, %v5837
      %v5839 = vrot.slane %v5838, 2
      %v5840 = vmax.f32 %v5838, %v5839
      %v5841 = vrot.slane %v5840, 1
      %v5842 = vmax.f32 %v5840, %v5841
      %v5843 = vsel %vm5821, %v4493, -inf
      %v5844 = vrot.slane %v5843, 4
      %v5845 = vmax.f32 %v5843, %v5844
      %v5846 = vrot.slane %v5845, 2
      %v5847 = vmax.f32 %v5845, %v5846
      %v5848 = vrot.slane %v5847, 1
      %v5849 = vmax.f32 %v5847, %v5848
      %v5850 = vsel %vm5821, %v4501, -inf
      %v5851 = vrot.slane %v5850, 4
      %v5852 = vmax.f32 %v5850, %v5851
      %v5853 = vrot.slane %v5852, 2
      %v5854 = vmax.f32 %v5852, %v5853
      %v5855 = vrot.slane %v5854, 1
      %v5856 = vmax.f32 %v5854, %v5855
      %v5857 = vsel %vm5821, %v4509, -inf
      %v5858 = vrot.slane %v5857, 4
      %v5859 = vmax.f32 %v5857, %v5858
      %v5860 = vrot.slane %v5859, 2
      %v5861 = vmax.f32 %v5859, %v5860
      %v5862 = vrot.slane %v5861, 1
      %v5863 = vmax.f32 %v5861, %v5862
      %v5864 = vsel %vm5821, %v4508, -inf
      %v5865 = vrot.slane %v5864, 4
      %v5866 = vmax.f32 %v5864, %v5865
      %v5867 = vrot.slane %v5866, 2
      %v5868 = vmax.f32 %v5866, %v5867
      %v5869 = vrot.slane %v5868, 1
      %v5870 = vmax.f32 %v5868, %v5869
      %v5871 = vsel %vm5821, %v4510, -inf
      %v5872 = vrot.slane %v5871, 4
      %v5873 = vmax.f32 %v5871, %v5872
      %v5874 = vrot.slane %v5873, 2
      %v5875 = vmax.f32 %v5873, %v5874
      %v5876 = vrot.slane %v5875, 1
      %v5877 = vmax.f32 %v5875, %v5876
      %v5878 = vsel %vm5821, %v4518, -inf
      %v5879 = vrot.slane %v5878, 4
      %v5880 = vmax.f32 %v5878, %v5879
      %v5881 = vrot.slane %v5880, 2
      %v5882 = vmax.f32 %v5880, %v5881
      %v5883 = vrot.slane %v5882, 1
      %v5884 = vmax.f32 %v5882, %v5883
      %v5885 = vsel %vm5821, %v4526, -inf
      %v5886 = vrot.slane %v5885, 4
      %v5887 = vmax.f32 %v5885, %v5886
      %v5888 = vrot.slane %v5887, 2
      %v5889 = vmax.f32 %v5887, %v5888
      %v5890 = vrot.slane %v5889, 1
      %v5891 = vmax.f32 %v5889, %v5890
      %v5892 = vsel %vm5821, %v4525, -inf
      %v5893 = vrot.slane %v5892, 4
      %v5894 = vmax.f32 %v5892, %v5893
      %v5895 = vrot.slane %v5894, 2
      %v5896 = vmax.f32 %v5894, %v5895
      %v5897 = vrot.slane %v5896, 1
      %v5898 = vmax.f32 %v5896, %v5897
      %v5899 = vsel %vm5821, %v4527, -inf
      %v5900 = vrot.slane %v5899, 4
      %v5901 = vmax.f32 %v5899, %v5900
      %v5902 = vrot.slane %v5901, 2
      %v5903 = vmax.f32 %v5901, %v5902
      %v5904 = vrot.slane %v5903, 1
      %v5905 = vmax.f32 %v5903, %v5904
      %v5906 = vsel %vm5821, %v4535, -inf
      %v5907 = vrot.slane %v5906, 4
      %v5908 = vmax.f32 %v5906, %v5907
      %v5909 = vrot.slane %v5908, 2
      %v5910 = vmax.f32 %v5908, %v5909
      %v5911 = vrot.slane %v5910, 1
      %v5912 = vmax.f32 %v5910, %v5911
      %v5913 = vsel %vm5821, %v4543, -inf
      %v5914 = vrot.slane %v5913, 4
      %v5915 = vmax.f32 %v5913, %v5914
      %v5916 = vrot.slane %v5915, 2
      %v5917 = vmax.f32 %v5915, %v5916
      %v5918 = vrot.slane %v5917, 1
      %v5919 = vmax.f32 %v5917, %v5918
      %v5920 = vsel %vm5821, %v4542, -inf
      %v5921 = vrot.slane %v5920, 4
      %v5922 = vmax.f32 %v5920, %v5921
      %v5923 = vrot.slane %v5922, 2
      %v5924 = vmax.f32 %v5922, %v5923
      %v5925 = vrot.slane %v5924, 1
      %v5926 = vmax.f32 %v5924, %v5925
      %v5927 = vsel %vm5821, %v4544, -inf
      %v5928 = vrot.slane %v5927, 4
      %v5929 = vmax.f32 %v5927, %v5928
      %v5930 = vrot.slane %v5929, 2
      %v5931 = vmax.f32 %v5929, %v5930
      %v5932 = vrot.slane %v5931, 1
      %v5933 = vmax.f32 %v5931, %v5932
      %v5934 = vsel %vm5821, %v4552, -inf
      %v5935 = vrot.slane %v5934, 4
      %v5936 = vmax.f32 %v5934, %v5935
      %v5937 = vrot.slane %v5936, 2
      %v5938 = vmax.f32 %v5936, %v5937
      %v5939 = vrot.slane %v5938, 1
      %v5940 = vmax.f32 %v5938, %v5939
      %v5941 = vsel %vm5821, %v4560, -inf
      %v5942 = vrot.slane %v5941, 4
      %v5943 = vmax.f32 %v5941, %v5942
      %v5944 = vrot.slane %v5943, 2
      %v5945 = vmax.f32 %v5943, %v5944
      %v5946 = vrot.slane %v5945, 1
      %v5947 = vmax.f32 %v5945, %v5946
      %v5948 = vsel %vm5821, %v4559, -inf
      %v5949 = vrot.slane %v5948, 4
      %v5950 = vmax.f32 %v5948, %v5949
      %v5951 = vrot.slane %v5950, 2
      %v5952 = vmax.f32 %v5950, %v5951
      %v5953 = vrot.slane %v5952, 1
      %v5954 = vmax.f32 %v5952, %v5953
      %v5955 = vsel %vm5821, %v4561, -inf
      %v5956 = vrot.slane %v5955, 4
      %v5957 = vmax.f32 %v5955, %v5956
      %v5958 = vrot.slane %v5957, 2
      %v5959 = vmax.f32 %v5957, %v5958
      %v5960 = vrot.slane %v5959, 1
      %v5961 = vmax.f32 %v5959, %v5960
      %v5962 = vsel %vm5821, %v4569, -inf
      %v5963 = vrot.slane %v5962, 4
      %v5964 = vmax.f32 %v5962, %v5963
      %v5965 = vrot.slane %v5964, 2
      %v5966 = vmax.f32 %v5964, %v5965
      %v5967 = vrot.slane %v5966, 1
      %v5968 = vmax.f32 %v5966, %v5967
      %v5969 = vsel %vm5821, %v4577, -inf
      %v5970 = vrot.slane %v5969, 4
      %v5971 = vmax.f32 %v5969, %v5970
      %v5972 = vrot.slane %v5971, 2
      %v5973 = vmax.f32 %v5971, %v5972
      %v5974 = vrot.slane %v5973, 1
      %v5975 = vmax.f32 %v5973, %v5974
      %v5976 = vsel %vm5821, %v4576, -inf
      %v5977 = vrot.slane %v5976, 4
      %v5978 = vmax.f32 %v5976, %v5977
      %v5979 = vrot.slane %v5978, 2
      %v5980 = vmax.f32 %v5978, %v5979
      %v5981 = vrot.slane %v5980, 1
      %v5982 = vmax.f32 %v5980, %v5981
      %v5983 = vsel %vm5821, %v4578, -inf
      %v5984 = vrot.slane %v5983, 4
      %v5985 = vmax.f32 %v5983, %v5984
      %v5986 = vrot.slane %v5985, 2
      %v5987 = vmax.f32 %v5985, %v5986
      %v5988 = vrot.slane %v5987, 1
      %v5989 = vmax.f32 %v5987, %v5988
      %v5990 = vsel %vm5821, %v4586, -inf
      %v5991 = vrot.slane %v5990, 4
      %v5992 = vmax.f32 %v5990, %v5991
      %v5993 = vrot.slane %v5992, 2
      %v5994 = vmax.f32 %v5992, %v5993
      %v5995 = vrot.slane %v5994, 1
      %v5996 = vmax.f32 %v5994, %v5995
      %v5997 = vsel %vm5821, %v4594, -inf
      %v5998 = vrot.slane %v5997, 4
      %v5999 = vmax.f32 %v5997, %v5998
      %v6000 = vrot.slane %v5999, 2
      %v6001 = vmax.f32 %v5999, %v6000
      %v6002 = vrot.slane %v6001, 1
      %v6003 = vmax.f32 %v6001, %v6002
      %v6004 = vsel %vm5821, %v4593, -inf
      %v6005 = vrot.slane %v6004, 4
      %v6006 = vmax.f32 %v6004, %v6005
      %v6007 = vrot.slane %v6006, 2
      %v6008 = vmax.f32 %v6006, %v6007
      %v6009 = vrot.slane %v6008, 1
      %v6010 = vmax.f32 %v6008, %v6009
      %v6011 = vsel %vm5821, %v4595, -inf
      %v6012 = vrot.slane %v6011, 4
      %v6013 = vmax.f32 %v6011, %v6012
      %v6014 = vrot.slane %v6013, 2
      %v6015 = vmax.f32 %v6013, %v6014
      %v6016 = vrot.slane %v6015, 1
      %v6017 = vmax.f32 %v6015, %v6016
      %v6018 = vsel %vm5821, %v4603, -inf
      %v6019 = vrot.slane %v6018, 4
      %v6020 = vmax.f32 %v6018, %v6019
      %v6021 = vrot.slane %v6020, 2
      %v6022 = vmax.f32 %v6020, %v6021
      %v6023 = vrot.slane %v6022, 1
      %v6024 = vmax.f32 %v6022, %v6023
      %v6025 = vsel %vm5821, %v4611, -inf
      %v6026 = vrot.slane %v6025, 4
      %v6027 = vmax.f32 %v6025, %v6026
      %v6028 = vrot.slane %v6027, 2
      %v6029 = vmax.f32 %v6027, %v6028
      %v6030 = vrot.slane %v6029, 1
      %v6031 = vmax.f32 %v6029, %v6030
      %v6032 = vsel %vm5821, %v4610, -inf
      %v6033 = vrot.slane %v6032, 4
      %v6034 = vmax.f32 %v6032, %v6033
      %v6035 = vrot.slane %v6034, 2
      %v6036 = vmax.f32 %v6034, %v6035
      %v6037 = vrot.slane %v6036, 1
      %v6038 = vmax.f32 %v6036, %v6037
      %v6039 = vsel %vm5821, %v4612, -inf
      %v6040 = vrot.slane %v6039, 4
      %v6041 = vmax.f32 %v6039, %v6040
      %v6042 = vrot.slane %v6041, 2
      %v6043 = vmax.f32 %v6041, %v6042
      %v6044 = vrot.slane %v6043, 1
      %v6045 = vmax.f32 %v6043, %v6044
      %v6046 = vsel %vm5821, %v4620, -inf
      %v6047 = vrot.slane %v6046, 4
      %v6048 = vmax.f32 %v6046, %v6047
      %v6049 = vrot.slane %v6048, 2
      %v6050 = vmax.f32 %v6048, %v6049
      %v6051 = vrot.slane %v6050, 1
      %v6052 = vmax.f32 %v6050, %v6051
      %v6053 = vsel %vm5821, %v4628, -inf
      %v6054 = vrot.slane %v6053, 4
      %v6055 = vmax.f32 %v6053, %v6054
      %v6056 = vrot.slane %v6055, 2
      %v6057 = vmax.f32 %v6055, %v6056
      %v6058 = vrot.slane %v6057, 1
      %v6059 = vmax.f32 %v6057, %v6058
      %v6060 = vsel %vm5821, %v4627, -inf
      %v6061 = vrot.slane %v6060, 4
      %v6062 = vmax.f32 %v6060, %v6061
      %v6063 = vrot.slane %v6062, 2
      %v6064 = vmax.f32 %v6062, %v6063
      %v6065 = vrot.slane %v6064, 1
      %v6066 = vmax.f32 %v6064, %v6065
      %v6067 = vsel %vm5821, %v4629, -inf
      %v6068 = vrot.slane %v6067, 4
      %v6069 = vmax.f32 %v6067, %v6068
      %v6070 = vrot.slane %v6069, 2
      %v6071 = vmax.f32 %v6069, %v6070
      %v6072 = vrot.slane %v6071, 1
      %v6073 = vmax.f32 %v6071, %v6072
      %v6074 = vsel %vm5821, %v4637, -inf
      %v6075 = vrot.slane %v6074, 4
      %v6076 = vmax.f32 %v6074, %v6075
      %v6077 = vrot.slane %v6076, 2
      %v6078 = vmax.f32 %v6076, %v6077
      %v6079 = vrot.slane %v6078, 1
      %v6080 = vmax.f32 %v6078, %v6079
      %v6081 = vsel %vm5821, %v4645, -inf
      %v6082 = vrot.slane %v6081, 4
      %v6083 = vmax.f32 %v6081, %v6082
      %v6084 = vrot.slane %v6083, 2
      %v6085 = vmax.f32 %v6083, %v6084
      %v6086 = vrot.slane %v6085, 1
      %v6087 = vmax.f32 %v6085, %v6086
      %v6088 = vsel %vm5821, %v4644, -inf
      %v6089 = vrot.slane %v6088, 4
      %v6090 = vmax.f32 %v6088, %v6089
      %v6091 = vrot.slane %v6090, 2
      %v6092 = vmax.f32 %v6090, %v6091
      %v6093 = vrot.slane %v6092, 1
      %v6094 = vmax.f32 %v6092, %v6093
      %v6095 = vsel %vm5821, %v4646, -inf
      %v6096 = vrot.slane %v6095, 4
      %v6097 = vmax.f32 %v6095, %v6096
      %v6098 = vrot.slane %v6097, 2
      %v6099 = vmax.f32 %v6097, %v6098
      %v6100 = vrot.slane %v6099, 1
      %v6101 = vmax.f32 %v6099, %v6100
      %v6102 = vsel %vm5821, %v4654, -inf
      %v6103 = vrot.slane %v6102, 4
      %v6104 = vmax.f32 %v6102, %v6103
      %v6105 = vrot.slane %v6104, 2
      %v6106 = vmax.f32 %v6104, %v6105
      %v6107 = vrot.slane %v6106, 1
      %v6108 = vmax.f32 %v6106, %v6107
      %v6109 = vsel %vm5821, %v4662, -inf
      %v6110 = vrot.slane %v6109, 4
      %v6111 = vmax.f32 %v6109, %v6110
      %v6112 = vrot.slane %v6111, 2
      %v6113 = vmax.f32 %v6111, %v6112
      %v6114 = vrot.slane %v6113, 1
      %v6115 = vmax.f32 %v6113, %v6114
      %v6116 = vsel %vm5821, %v4661, -inf
      %v6117 = vrot.slane %v6116, 4
      %v6118 = vmax.f32 %v6116, %v6117
      %v6119 = vrot.slane %v6118, 2
      %v6120 = vmax.f32 %v6118, %v6119
      %v6121 = vrot.slane %v6120, 1
      %v6122 = vmax.f32 %v6120, %v6121
      %v6123 = vsel %vm5821, %v4663, -inf
      %v6124 = vrot.slane %v6123, 4
      %v6125 = vmax.f32 %v6123, %v6124
      %v6126 = vrot.slane %v6125, 2
      %v6127 = vmax.f32 %v6125, %v6126
      %v6128 = vrot.slane %v6127, 1
      %v6129 = vmax.f32 %v6127, %v6128
      %v6130 = vsel %vm5821, %v4671, -inf
      %v6131 = vrot.slane %v6130, 4
      %v6132 = vmax.f32 %v6130, %v6131
      %v6133 = vrot.slane %v6132, 2
      %v6134 = vmax.f32 %v6132, %v6133
      %v6135 = vrot.slane %v6134, 1
      %v6136 = vmax.f32 %v6134, %v6135
      %v6137 = vsel %vm5821, %v4679, -inf
      %v6138 = vrot.slane %v6137, 4
      %v6139 = vmax.f32 %v6137, %v6138
      %v6140 = vrot.slane %v6139, 2
      %v6141 = vmax.f32 %v6139, %v6140
      %v6142 = vrot.slane %v6141, 1
      %v6143 = vmax.f32 %v6141, %v6142
      %v6144 = vsel %vm5821, %v4678, -inf
      %v6145 = vrot.slane %v6144, 4
      %v6146 = vmax.f32 %v6144, %v6145
      %v6147 = vrot.slane %v6146, 2
      %v6148 = vmax.f32 %v6146, %v6147
      %v6149 = vrot.slane %v6148, 1
      %v6150 = vmax.f32 %v6148, %v6149
      %v6151 = vsel %vm5821, %v4680, -inf
      %v6152 = vrot.slane %v6151, 4
      %v6153 = vmax.f32 %v6151, %v6152
      %v6154 = vrot.slane %v6153, 2
      %v6155 = vmax.f32 %v6153, %v6154
      %v6156 = vrot.slane %v6155, 1
      %v6157 = vmax.f32 %v6155, %v6156
      %v6158 = vsel %vm5821, %v4688, -inf
      %v6159 = vrot.slane %v6158, 4
      %v6160 = vmax.f32 %v6158, %v6159
      %v6161 = vrot.slane %v6160, 2
      %v6162 = vmax.f32 %v6160, %v6161
      %v6163 = vrot.slane %v6162, 1
      %v6164 = vmax.f32 %v6162, %v6163
      %v6165 = vsel %vm5821, %v4696, -inf
      %v6166 = vrot.slane %v6165, 4
      %v6167 = vmax.f32 %v6165, %v6166
      %v6168 = vrot.slane %v6167, 2
      %v6169 = vmax.f32 %v6167, %v6168
      %v6170 = vrot.slane %v6169, 1
      %v6171 = vmax.f32 %v6169, %v6170
      %v6172 = vsel %vm5821, %v4695, -inf
      %v6173 = vrot.slane %v6172, 4
      %v6174 = vmax.f32 %v6172, %v6173
      %v6175 = vrot.slane %v6174, 2
      %v6176 = vmax.f32 %v6174, %v6175
      %v6177 = vrot.slane %v6176, 1
      %v6178 = vmax.f32 %v6176, %v6177
      %v6179 = vsel %vm5821, %v4697, -inf
      %v6180 = vrot.slane %v6179, 4
      %v6181 = vmax.f32 %v6179, %v6180
      %v6182 = vrot.slane %v6181, 2
      %v6183 = vmax.f32 %v6181, %v6182
      %v6184 = vrot.slane %v6183, 1
      %v6185 = vmax.f32 %v6183, %v6184
      %v6186 = vsel %vm5821, %v4705, -inf
      %v6187 = vrot.slane %v6186, 4
      %v6188 = vmax.f32 %v6186, %v6187
      %v6189 = vrot.slane %v6188, 2
      %v6190 = vmax.f32 %v6188, %v6189
      %v6191 = vrot.slane %v6190, 1
      %v6192 = vmax.f32 %v6190, %v6191
      %v6193 = vsel %vm5821, %v4713, -inf
      %v6194 = vrot.slane %v6193, 4
      %v6195 = vmax.f32 %v6193, %v6194
      %v6196 = vrot.slane %v6195, 2
      %v6197 = vmax.f32 %v6195, %v6196
      %v6198 = vrot.slane %v6197, 1
      %v6199 = vmax.f32 %v6197, %v6198
      %v6200 = vsel %vm5821, %v4712, -inf
      %v6201 = vrot.slane %v6200, 4
      %v6202 = vmax.f32 %v6200, %v6201
      %v6203 = vrot.slane %v6202, 2
      %v6204 = vmax.f32 %v6202, %v6203
      %v6205 = vrot.slane %v6204, 1
      %v6206 = vmax.f32 %v6204, %v6205
      %v6207 = vsel %vm5821, %v4714, -inf
      %v6208 = vrot.slane %v6207, 4
      %v6209 = vmax.f32 %v6207, %v6208
      %v6210 = vrot.slane %v6209, 2
      %v6211 = vmax.f32 %v6209, %v6210
      %v6212 = vrot.slane %v6211, 1
      %v6213 = vmax.f32 %v6211, %v6212
      %v6214 = vsel %vm5821, %v4722, -inf
      %v6215 = vrot.slane %v6214, 4
      %v6216 = vmax.f32 %v6214, %v6215
      %v6217 = vrot.slane %v6216, 2
      %v6218 = vmax.f32 %v6216, %v6217
      %v6219 = vrot.slane %v6218, 1
      %v6220 = vmax.f32 %v6218, %v6219
      %v6221 = vsel %vm5821, %v4730, -inf
      %v6222 = vrot.slane %v6221, 4
      %v6223 = vmax.f32 %v6221, %v6222
      %v6224 = vrot.slane %v6223, 2
      %v6225 = vmax.f32 %v6223, %v6224
      %v6226 = vrot.slane %v6225, 1
      %v6227 = vmax.f32 %v6225, %v6226
      %v6228 = vsel %vm5821, %v4729, -inf
      %v6229 = vrot.slane %v6228, 4
      %v6230 = vmax.f32 %v6228, %v6229
      %v6231 = vrot.slane %v6230, 2
      %v6232 = vmax.f32 %v6230, %v6231
      %v6233 = vrot.slane %v6232, 1
      %v6234 = vmax.f32 %v6232, %v6233
      %v6235 = vsel %vm5821, %v4731, -inf
      %v6236 = vrot.slane %v6235, 4
      %v6237 = vmax.f32 %v6235, %v6236
      %v6238 = vrot.slane %v6237, 2
      %v6239 = vmax.f32 %v6237, %v6238
      %v6240 = vrot.slane %v6239, 1
      %v6241 = vmax.f32 %v6239, %v6240
      %v6242 = vsel %vm5821, %v4739, -inf
      %v6243 = vrot.slane %v6242, 4
      %v6244 = vmax.f32 %v6242, %v6243
      %v6245 = vrot.slane %v6244, 2
      %v6246 = vmax.f32 %v6244, %v6245
      %v6247 = vrot.slane %v6246, 1
      %v6248 = vmax.f32 %v6246, %v6247
      %v6249 = vsel %vm5821, %v4747, -inf
      %v6250 = vrot.slane %v6249, 4
      %v6251 = vmax.f32 %v6249, %v6250
      %v6252 = vrot.slane %v6251, 2
      %v6253 = vmax.f32 %v6251, %v6252
      %v6254 = vrot.slane %v6253, 1
      %v6255 = vmax.f32 %v6253, %v6254
      %v6256 = vsel %vm5821, %v4746, -inf
      %v6257 = vrot.slane %v6256, 4
      %v6258 = vmax.f32 %v6256, %v6257
      %v6259 = vrot.slane %v6258, 2
      %v6260 = vmax.f32 %v6258, %v6259
      %v6261 = vrot.slane %v6260, 1
      %v6262 = vmax.f32 %v6260, %v6261
      %v6263 = vsel %vm5821, %v4748, -inf
      %v6264 = vrot.slane %v6263, 4
      %v6265 = vmax.f32 %v6263, %v6264
      %v6266 = vrot.slane %v6265, 2
      %v6267 = vmax.f32 %v6265, %v6266
      %v6268 = vrot.slane %v6267, 1
      %v6269 = vmax.f32 %v6267, %v6268
      %v6270 = vsel %vm5821, %v4756, -inf
      %v6271 = vrot.slane %v6270, 4
      %v6272 = vmax.f32 %v6270, %v6271
      %v6273 = vrot.slane %v6272, 2
      %v6274 = vmax.f32 %v6272, %v6273
      %v6275 = vrot.slane %v6274, 1
      %v6276 = vmax.f32 %v6274, %v6275
      %v6277 = vsel %vm5821, %v4764, -inf
      %v6278 = vrot.slane %v6277, 4
      %v6279 = vmax.f32 %v6277, %v6278
      %v6280 = vrot.slane %v6279, 2
      %v6281 = vmax.f32 %v6279, %v6280
      %v6282 = vrot.slane %v6281, 1
      %v6283 = vmax.f32 %v6281, %v6282
      %v6284 = vsel %vm5821, %v4763, -inf
      %v6285 = vrot.slane %v6284, 4
      %v6286 = vmax.f32 %v6284, %v6285
      %v6287 = vrot.slane %v6286, 2
      %v6288 = vmax.f32 %v6286, %v6287
      %v6289 = vrot.slane %v6288, 1
      %v6290 = vmax.f32 %v6288, %v6289
      %v6291 = vsel %vm5821, %v4765, -inf
      %v6292 = vrot.slane %v6291, 4
      %v6293 = vmax.f32 %v6291, %v6292
      %v6294 = vrot.slane %v6293, 2
      %v6295 = vmax.f32 %v6293, %v6294
      %v6296 = vrot.slane %v6295, 1
      %v6297 = vmax.f32 %v6295, %v6296
      %v6298 = vsel %vm5821, %v4773, -inf
      %v6299 = vrot.slane %v6298, 4
      %v6300 = vmax.f32 %v6298, %v6299
      %v6301 = vrot.slane %v6300, 2
      %v6302 = vmax.f32 %v6300, %v6301
      %v6303 = vrot.slane %v6302, 1
      %v6304 = vmax.f32 %v6302, %v6303
      %v6305 = vsel %vm5821, %v4781, -inf
      %v6306 = vrot.slane %v6305, 4
      %v6307 = vmax.f32 %v6305, %v6306
      %v6308 = vrot.slane %v6307, 2
      %v6309 = vmax.f32 %v6307, %v6308
      %v6310 = vrot.slane %v6309, 1
      %v6311 = vmax.f32 %v6309, %v6310
      %v6312 = vsel %vm5821, %v4780, -inf
      %v6313 = vrot.slane %v6312, 4
      %v6314 = vmax.f32 %v6312, %v6313
      %v6315 = vrot.slane %v6314, 2
      %v6316 = vmax.f32 %v6314, %v6315
      %v6317 = vrot.slane %v6316, 1
      %v6318 = vmax.f32 %v6316, %v6317
      %v6319 = vsel %vm5821, %v4782, -inf
      %v6320 = vrot.slane %v6319, 4
      %v6321 = vmax.f32 %v6319, %v6320
      %v6322 = vrot.slane %v6321, 2
      %v6323 = vmax.f32 %v6321, %v6322
      %v6324 = vrot.slane %v6323, 1
      %v6325 = vmax.f32 %v6323, %v6324
      %v6326 = vsel %vm5821, %v4790, -inf
      %v6327 = vrot.slane %v6326, 4
      %v6328 = vmax.f32 %v6326, %v6327
      %v6329 = vrot.slane %v6328, 2
      %v6330 = vmax.f32 %v6328, %v6329
      %v6331 = vrot.slane %v6330, 1
      %v6332 = vmax.f32 %v6330, %v6331
      %v6333 = vsel %vm5821, %v4798, -inf
      %v6334 = vrot.slane %v6333, 4
      %v6335 = vmax.f32 %v6333, %v6334
      %v6336 = vrot.slane %v6335, 2
      %v6337 = vmax.f32 %v6335, %v6336
      %v6338 = vrot.slane %v6337, 1
      %v6339 = vmax.f32 %v6337, %v6338
      %v6340 = vsel %vm5821, %v4797, -inf
      %v6341 = vrot.slane %v6340, 4
      %v6342 = vmax.f32 %v6340, %v6341
      %v6343 = vrot.slane %v6342, 2
      %v6344 = vmax.f32 %v6342, %v6343
      %v6345 = vrot.slane %v6344, 1
      %v6346 = vmax.f32 %v6344, %v6345
      %v6347 = vsel %vm5821, %v4799, -inf
      %v6348 = vrot.slane %v6347, 4
      %v6349 = vmax.f32 %v6347, %v6348
      %v6350 = vrot.slane %v6349, 2
      %v6351 = vmax.f32 %v6349, %v6350
      %v6352 = vrot.slane %v6351, 1
      %v6353 = vmax.f32 %v6351, %v6352
      %v6354 = vsel %vm5821, %v4807, -inf
      %v6355 = vrot.slane %v6354, 4
      %v6356 = vmax.f32 %v6354, %v6355
      %v6357 = vrot.slane %v6356, 2
      %v6358 = vmax.f32 %v6356, %v6357
      %v6359 = vrot.slane %v6358, 1
      %v6360 = vmax.f32 %v6358, %v6359
      %v6361 = vsel %vm5821, %v4815, -inf
      %v6362 = vrot.slane %v6361, 4
      %v6363 = vmax.f32 %v6361, %v6362
      %v6364 = vrot.slane %v6363, 2
      %v6365 = vmax.f32 %v6363, %v6364
      %v6366 = vrot.slane %v6365, 1
      %v6367 = vmax.f32 %v6365, %v6366
      %v6368 = vsel %vm5821, %v4814, -inf
      %v6369 = vrot.slane %v6368, 4
      %v6370 = vmax.f32 %v6368, %v6369
      %v6371 = vrot.slane %v6370, 2
      %v6372 = vmax.f32 %v6370, %v6371
      %v6373 = vrot.slane %v6372, 1
      %v6374 = vmax.f32 %v6372, %v6373
      %v6375 = vsel %vm5821, %v4816, -inf
      %v6376 = vrot.slane %v6375, 4
      %v6377 = vmax.f32 %v6375, %v6376
      %v6378 = vrot.slane %v6377, 2
      %v6379 = vmax.f32 %v6377, %v6378
      %v6380 = vrot.slane %v6379, 1
      %v6381 = vmax.f32 %v6379, %v6380
      %v6382 = vsel %vm5821, %v4824, -inf
      %v6383 = vrot.slane %v6382, 4
      %v6384 = vmax.f32 %v6382, %v6383
      %v6385 = vrot.slane %v6384, 2
      %v6386 = vmax.f32 %v6384, %v6385
      %v6387 = vrot.slane %v6386, 1
      %v6388 = vmax.f32 %v6386, %v6387
      %v6389 = vsel %vm5821, %v4832, -inf
      %v6390 = vrot.slane %v6389, 4
      %v6391 = vmax.f32 %v6389, %v6390
      %v6392 = vrot.slane %v6391, 2
      %v6393 = vmax.f32 %v6391, %v6392
      %v6394 = vrot.slane %v6393, 1
      %v6395 = vmax.f32 %v6393, %v6394
      %v6396 = vsel %vm5821, %v4831, -inf
      %v6397 = vrot.slane %v6396, 4
      %v6398 = vmax.f32 %v6396, %v6397
      %v6399 = vrot.slane %v6398, 2
      %v6400 = vmax.f32 %v6398, %v6399
      %v6401 = vrot.slane %v6400, 1
      %v6402 = vmax.f32 %v6400, %v6401
      %v6403 = vsel %vm5821, %v4833, -inf
      %v6404 = vrot.slane %v6403, 4
      %v6405 = vmax.f32 %v6403, %v6404
      %v6406 = vrot.slane %v6405, 2
      %v6407 = vmax.f32 %v6405, %v6406
      %v6408 = vrot.slane %v6407, 1
      %v6409 = vmax.f32 %v6407, %v6408
      %v6410 = vsel %vm5821, %v4841, -inf
      %v6411 = vrot.slane %v6410, 4
      %v6412 = vmax.f32 %v6410, %v6411
      %v6413 = vrot.slane %v6412, 2
      %v6414 = vmax.f32 %v6412, %v6413
      %v6415 = vrot.slane %v6414, 1
      %v6416 = vmax.f32 %v6414, %v6415
      %v6417 = vsel %vm5821, %v4849, -inf
      %v6418 = vrot.slane %v6417, 4
      %v6419 = vmax.f32 %v6417, %v6418
      %v6420 = vrot.slane %v6419, 2
      %v6421 = vmax.f32 %v6419, %v6420
      %v6422 = vrot.slane %v6421, 1
      %v6423 = vmax.f32 %v6421, %v6422
      %v6424 = vsel %vm5821, %v4848, -inf
      %v6425 = vrot.slane %v6424, 4
      %v6426 = vmax.f32 %v6424, %v6425
      %v6427 = vrot.slane %v6426, 2
      %v6428 = vmax.f32 %v6426, %v6427
      %v6429 = vrot.slane %v6428, 1
      %v6430 = vmax.f32 %v6428, %v6429
      %v6431 = vsel %vm5821, %v4850, -inf
      %v6432 = vrot.slane %v6431, 4
      %v6433 = vmax.f32 %v6431, %v6432
      %v6434 = vrot.slane %v6433, 2
      %v6435 = vmax.f32 %v6433, %v6434
      %v6436 = vrot.slane %v6435, 1
      %v6437 = vmax.f32 %v6435, %v6436
      %v6438 = vsel %vm5821, %v4858, -inf
      %v6439 = vrot.slane %v6438, 4
      %v6440 = vmax.f32 %v6438, %v6439
      %v6441 = vrot.slane %v6440, 2
      %v6442 = vmax.f32 %v6440, %v6441
      %v6443 = vrot.slane %v6442, 1
      %v6444 = vmax.f32 %v6442, %v6443
      %v6445 = vsel %vm5821, %v4866, -inf
      %v6446 = vrot.slane %v6445, 4
      %v6447 = vmax.f32 %v6445, %v6446
      %v6448 = vrot.slane %v6447, 2
      %v6449 = vmax.f32 %v6447, %v6448
      %v6450 = vrot.slane %v6449, 1
      %v6451 = vmax.f32 %v6449, %v6450
      %v6452 = vsel %vm5821, %v4865, -inf
      %v6453 = vrot.slane %v6452, 4
      %v6454 = vmax.f32 %v6452, %v6453
      %v6455 = vrot.slane %v6454, 2
      %v6456 = vmax.f32 %v6454, %v6455
      %v6457 = vrot.slane %v6456, 1
      %v6458 = vmax.f32 %v6456, %v6457
      %v6459 = vsel %vm5821, %v4867, -inf
      %v6460 = vrot.slane %v6459, 4
      %v6461 = vmax.f32 %v6459, %v6460
      %v6462 = vrot.slane %v6461, 2
      %v6463 = vmax.f32 %v6461, %v6462
      %v6464 = vrot.slane %v6463, 1
      %v6465 = vmax.f32 %v6463, %v6464
      %v6466 = vsel %vm5821, %v4875, -inf
      %v6467 = vrot.slane %v6466, 4
      %v6468 = vmax.f32 %v6466, %v6467
      %v6469 = vrot.slane %v6468, 2
      %v6470 = vmax.f32 %v6468, %v6469
      %v6471 = vrot.slane %v6470, 1
      %v6472 = vmax.f32 %v6470, %v6471
      %v6473 = vsel %vm5821, %v4883, -inf
      %v6474 = vrot.slane %v6473, 4
      %v6475 = vmax.f32 %v6473, %v6474
      %v6476 = vrot.slane %v6475, 2
      %v6477 = vmax.f32 %v6475, %v6476
      %v6478 = vrot.slane %v6477, 1
      %v6479 = vmax.f32 %v6477, %v6478
      %v6480 = vsel %vm5821, %v4882, -inf
      %v6481 = vrot.slane %v6480, 4
      %v6482 = vmax.f32 %v6480, %v6481
      %v6483 = vrot.slane %v6482, 2
      %v6484 = vmax.f32 %v6482, %v6483
      %v6485 = vrot.slane %v6484, 1
      %v6486 = vmax.f32 %v6484, %v6485
      %v6487 = vsel %vm5821, %v4884, -inf
      %v6488 = vrot.slane %v6487, 4
      %v6489 = vmax.f32 %v6487, %v6488
      %v6490 = vrot.slane %v6489, 2
      %v6491 = vmax.f32 %v6489, %v6490
      %v6492 = vrot.slane %v6491, 1
      %v6493 = vmax.f32 %v6491, %v6492
      %v6494 = vsel %vm5821, %v4892, -inf
      %v6495 = vrot.slane %v6494, 4
      %v6496 = vmax.f32 %v6494, %v6495
      %v6497 = vrot.slane %v6496, 2
      %v6498 = vmax.f32 %v6496, %v6497
      %v6499 = vrot.slane %v6498, 1
      %v6500 = vmax.f32 %v6498, %v6499
      %v6501 = vsel %vm5821, %v4900, -inf
      %v6502 = vrot.slane %v6501, 4
      %v6503 = vmax.f32 %v6501, %v6502
      %v6504 = vrot.slane %v6503, 2
      %v6505 = vmax.f32 %v6503, %v6504
      %v6506 = vrot.slane %v6505, 1
      %v6507 = vmax.f32 %v6505, %v6506
      %v6508 = vsel %vm5821, %v4899, -inf
      %v6509 = vrot.slane %v6508, 4
      %v6510 = vmax.f32 %v6508, %v6509
      %v6511 = vrot.slane %v6510, 2
      %v6512 = vmax.f32 %v6510, %v6511
      %v6513 = vrot.slane %v6512, 1
      %v6514 = vmax.f32 %v6512, %v6513
      %v6515 = vsel %vm5821, %v4901, -inf
      %v6516 = vrot.slane %v6515, 4
      %v6517 = vmax.f32 %v6515, %v6516
      %v6518 = vrot.slane %v6517, 2
      %v6519 = vmax.f32 %v6517, %v6518
      %v6520 = vrot.slane %v6519, 1
      %v6521 = vmax.f32 %v6519, %v6520
      %v6522 = vsel %vm5821, %v4909, -inf
      %v6523 = vrot.slane %v6522, 4
      %v6524 = vmax.f32 %v6522, %v6523
      %v6525 = vrot.slane %v6524, 2
      %v6526 = vmax.f32 %v6524, %v6525
      %v6527 = vrot.slane %v6526, 1
      %v6528 = vmax.f32 %v6526, %v6527
      %v6529 = vsel %vm5821, %v4917, -inf
      %v6530 = vrot.slane %v6529, 4
      %v6531 = vmax.f32 %v6529, %v6530
      %v6532 = vrot.slane %v6531, 2
      %v6533 = vmax.f32 %v6531, %v6532
      %v6534 = vrot.slane %v6533, 1
      %v6535 = vmax.f32 %v6533, %v6534
      %v6536 = vsel %vm5821, %v4916, -inf
      %v6537 = vrot.slane %v6536, 4
      %v6538 = vmax.f32 %v6536, %v6537
      %v6539 = vrot.slane %v6538, 2
      %v6540 = vmax.f32 %v6538, %v6539
      %v6541 = vrot.slane %v6540, 1
      %v6542 = vmax.f32 %v6540, %v6541
      %v6543 = vsel %vm5821, %v4918, -inf
      %v6544 = vrot.slane %v6543, 4
      %v6545 = vmax.f32 %v6543, %v6544
      %v6546 = vrot.slane %v6545, 2
      %v6547 = vmax.f32 %v6545, %v6546
      %v6548 = vrot.slane %v6547, 1
      %v6549 = vmax.f32 %v6547, %v6548
      %v6550 = vsel %vm5821, %v4926, -inf
      %v6551 = vrot.slane %v6550, 4
      %v6552 = vmax.f32 %v6550, %v6551
      %v6553 = vrot.slane %v6552, 2
      %v6554 = vmax.f32 %v6552, %v6553
      %v6555 = vrot.slane %v6554, 1
      %v6556 = vmax.f32 %v6554, %v6555
      %v6557 = vsel %vm5821, %v4934, -inf
      %v6558 = vrot.slane %v6557, 4
      %v6559 = vmax.f32 %v6557, %v6558
      %v6560 = vrot.slane %v6559, 2
      %v6561 = vmax.f32 %v6559, %v6560
      %v6562 = vrot.slane %v6561, 1
      %v6563 = vmax.f32 %v6561, %v6562
      %v6564 = vsel %vm5821, %v4933, -inf
      %v6565 = vrot.slane %v6564, 4
      %v6566 = vmax.f32 %v6564, %v6565
      %v6567 = vrot.slane %v6566, 2
      %v6568 = vmax.f32 %v6566, %v6567
      %v6569 = vrot.slane %v6568, 1
      %v6570 = vmax.f32 %v6568, %v6569
      %v6571 = vsel %vm5821, %v4935, -inf
      %v6572 = vrot.slane %v6571, 4
      %v6573 = vmax.f32 %v6571, %v6572
      %v6574 = vrot.slane %v6573, 2
      %v6575 = vmax.f32 %v6573, %v6574
      %v6576 = vrot.slane %v6575, 1
      %v6577 = vmax.f32 %v6575, %v6576
      %v6578 = vsel %vm5821, %v4943, -inf
      %v6579 = vrot.slane %v6578, 4
      %v6580 = vmax.f32 %v6578, %v6579
      %v6581 = vrot.slane %v6580, 2
      %v6582 = vmax.f32 %v6580, %v6581
      %v6583 = vrot.slane %v6582, 1
      %v6584 = vmax.f32 %v6582, %v6583
      %v6585 = vsel %vm5821, %v4951, -inf
      %v6586 = vrot.slane %v6585, 4
      %v6587 = vmax.f32 %v6585, %v6586
      %v6588 = vrot.slane %v6587, 2
      %v6589 = vmax.f32 %v6587, %v6588
      %v6590 = vrot.slane %v6589, 1
      %v6591 = vmax.f32 %v6589, %v6590
      %v6592 = vsel %vm5821, %v4950, -inf
      %v6593 = vrot.slane %v6592, 4
      %v6594 = vmax.f32 %v6592, %v6593
      %v6595 = vrot.slane %v6594, 2
      %v6596 = vmax.f32 %v6594, %v6595
      %v6597 = vrot.slane %v6596, 1
      %v6598 = vmax.f32 %v6596, %v6597
      %v6599 = vsel %vm5821, %v4952, -inf
      %v6600 = vrot.slane %v6599, 4
      %v6601 = vmax.f32 %v6599, %v6600
      %v6602 = vrot.slane %v6601, 2
      %v6603 = vmax.f32 %v6601, %v6602
      %v6604 = vrot.slane %v6603, 1
      %v6605 = vmax.f32 %v6603, %v6604
      %v6606 = vsel %vm5821, %v4960, -inf
      %v6607 = vrot.slane %v6606, 4
      %v6608 = vmax.f32 %v6606, %v6607
      %v6609 = vrot.slane %v6608, 2
      %v6610 = vmax.f32 %v6608, %v6609
      %v6611 = vrot.slane %v6610, 1
      %v6612 = vmax.f32 %v6610, %v6611
      %v6613 = vsel %vm5821, %v4968, -inf
      %v6614 = vrot.slane %v6613, 4
      %v6615 = vmax.f32 %v6613, %v6614
      %v6616 = vrot.slane %v6615, 2
      %v6617 = vmax.f32 %v6615, %v6616
      %v6618 = vrot.slane %v6617, 1
      %v6619 = vmax.f32 %v6617, %v6618
      %v6620 = vsel %vm5821, %v4967, -inf
      %v6621 = vrot.slane %v6620, 4
      %v6622 = vmax.f32 %v6620, %v6621
      %v6623 = vrot.slane %v6622, 2
      %v6624 = vmax.f32 %v6622, %v6623
      %v6625 = vrot.slane %v6624, 1
      %v6626 = vmax.f32 %v6624, %v6625
      %v6627 = vsel %vm5821, %v4969, -inf
      %v6628 = vrot.slane %v6627, 4
      %v6629 = vmax.f32 %v6627, %v6628
      %v6630 = vrot.slane %v6629, 2
      %v6631 = vmax.f32 %v6629, %v6630
      %v6632 = vrot.slane %v6631, 1
      %v6633 = vmax.f32 %v6631, %v6632
      %v6634 = vsel %vm5821, %v4977, -inf
      %v6635 = vrot.slane %v6634, 4
      %v6636 = vmax.f32 %v6634, %v6635
      %v6637 = vrot.slane %v6636, 2
      %v6638 = vmax.f32 %v6636, %v6637
      %v6639 = vrot.slane %v6638, 1
      %v6640 = vmax.f32 %v6638, %v6639
      %v6641 = vsel %vm5821, %v4985, -inf
      %v6642 = vrot.slane %v6641, 4
      %v6643 = vmax.f32 %v6641, %v6642
      %v6644 = vrot.slane %v6643, 2
      %v6645 = vmax.f32 %v6643, %v6644
      %v6646 = vrot.slane %v6645, 1
      %v6647 = vmax.f32 %v6645, %v6646
      %v6648 = vsel %vm5821, %v4984, -inf
      %v6649 = vrot.slane %v6648, 4
      %v6650 = vmax.f32 %v6648, %v6649
      %v6651 = vrot.slane %v6650, 2
      %v6652 = vmax.f32 %v6650, %v6651
      %v6653 = vrot.slane %v6652, 1
      %v6654 = vmax.f32 %v6652, %v6653
      %v6655 = vsel %vm5821, %v4986, -inf
      %v6656 = vrot.slane %v6655, 4
      %v6657 = vmax.f32 %v6655, %v6656
      %v6658 = vrot.slane %v6657, 2
      %v6659 = vmax.f32 %v6657, %v6658
      %v6660 = vrot.slane %v6659, 1
      %v6661 = vmax.f32 %v6659, %v6660
      %v6662 = vsel %vm5821, %v4994, -inf
      %v6663 = vrot.slane %v6662, 4
      %v6664 = vmax.f32 %v6662, %v6663
      %v6665 = vrot.slane %v6664, 2
      %v6666 = vmax.f32 %v6664, %v6665
      %v6667 = vrot.slane %v6666, 1
      %v6668 = vmax.f32 %v6666, %v6667
      %v6669 = vsel %vm5821, %v5002, -inf
      %v6670 = vrot.slane %v6669, 4
      %v6671 = vmax.f32 %v6669, %v6670
      %v6672 = vrot.slane %v6671, 2
      %v6673 = vmax.f32 %v6671, %v6672
      %v6674 = vrot.slane %v6673, 1
      %v6675 = vmax.f32 %v6673, %v6674
      %v6676 = vsel %vm5821, %v5001, -inf
      %v6677 = vrot.slane %v6676, 4
      %v6678 = vmax.f32 %v6676, %v6677
      %v6679 = vrot.slane %v6678, 2
      %v6680 = vmax.f32 %v6678, %v6679
      %v6681 = vrot.slane %v6680, 1
      %v6682 = vmax.f32 %v6680, %v6681
      %v6683 = vsel %vm5821, %v5003, -inf
      %v6684 = vrot.slane %v6683, 4
      %v6685 = vmax.f32 %v6683, %v6684
      %v6686 = vrot.slane %v6685, 2
      %v6687 = vmax.f32 %v6685, %v6686
      %v6688 = vrot.slane %v6687, 1
      %v6689 = vmax.f32 %v6687, %v6688
      %v6690 = vsel %vm5821, %v5011, -inf
      %v6691 = vrot.slane %v6690, 4
      %v6692 = vmax.f32 %v6690, %v6691
      %v6693 = vrot.slane %v6692, 2
      %v6694 = vmax.f32 %v6692, %v6693
      %v6695 = vrot.slane %v6694, 1
      %v6696 = vmax.f32 %v6694, %v6695
      %v6697 = vsel %vm5821, %v5019, -inf
      %v6698 = vrot.slane %v6697, 4
      %v6699 = vmax.f32 %v6697, %v6698
      %v6700 = vrot.slane %v6699, 2
      %v6701 = vmax.f32 %v6699, %v6700
      %v6702 = vrot.slane %v6701, 1
      %v6703 = vmax.f32 %v6701, %v6702
      %v6704 = vsel %vm5821, %v5018, -inf
      %v6705 = vrot.slane %v6704, 4
      %v6706 = vmax.f32 %v6704, %v6705
      %v6707 = vrot.slane %v6706, 2
      %v6708 = vmax.f32 %v6706, %v6707
      %v6709 = vrot.slane %v6708, 1
      %v6710 = vmax.f32 %v6708, %v6709
      %v6711 = vsel %vm5821, %v5020, -inf
      %v6712 = vrot.slane %v6711, 4
      %v6713 = vmax.f32 %v6711, %v6712
      %v6714 = vrot.slane %v6713, 2
      %v6715 = vmax.f32 %v6713, %v6714
      %v6716 = vrot.slane %v6715, 1
      %v6717 = vmax.f32 %v6715, %v6716
      %v6718 = vsel %vm5821, %v5028, -inf
      %v6719 = vrot.slane %v6718, 4
      %v6720 = vmax.f32 %v6718, %v6719
      %v6721 = vrot.slane %v6720, 2
      %v6722 = vmax.f32 %v6720, %v6721
      %v6723 = vrot.slane %v6722, 1
      %v6724 = vmax.f32 %v6722, %v6723
      %v6725 = vsel %vm5821, %v5036, -inf
      %v6726 = vrot.slane %v6725, 4
      %v6727 = vmax.f32 %v6725, %v6726
      %v6728 = vrot.slane %v6727, 2
      %v6729 = vmax.f32 %v6727, %v6728
      %v6730 = vrot.slane %v6729, 1
      %v6731 = vmax.f32 %v6729, %v6730
      %v6732 = vsel %vm5821, %v5035, -inf
      %v6733 = vrot.slane %v6732, 4
      %v6734 = vmax.f32 %v6732, %v6733
      %v6735 = vrot.slane %v6734, 2
      %v6736 = vmax.f32 %v6734, %v6735
      %v6737 = vrot.slane %v6736, 1
      %v6738 = vmax.f32 %v6736, %v6737
      %v6739 = vsel %vm5821, %v5037, -inf
      %v6740 = vrot.slane %v6739, 4
      %v6741 = vmax.f32 %v6739, %v6740
      %v6742 = vrot.slane %v6741, 2
      %v6743 = vmax.f32 %v6741, %v6742
      %v6744 = vrot.slane %v6743, 1
      %v6745 = vmax.f32 %v6743, %v6744
      %v6746 = vsel %vm5821, %v5045, -inf
      %v6747 = vrot.slane %v6746, 4
      %v6748 = vmax.f32 %v6746, %v6747
      %v6749 = vrot.slane %v6748, 2
      %v6750 = vmax.f32 %v6748, %v6749
      %v6751 = vrot.slane %v6750, 1
      %v6752 = vmax.f32 %v6750, %v6751
      %v6753 = vsel %vm5821, %v5053, -inf
      %v6754 = vrot.slane %v6753, 4
      %v6755 = vmax.f32 %v6753, %v6754
      %v6756 = vrot.slane %v6755, 2
      %v6757 = vmax.f32 %v6755, %v6756
      %v6758 = vrot.slane %v6757, 1
      %v6759 = vmax.f32 %v6757, %v6758
      %v6760 = vsel %vm5821, %v5052, -inf
      %v6761 = vrot.slane %v6760, 4
      %v6762 = vmax.f32 %v6760, %v6761
      %v6763 = vrot.slane %v6762, 2
      %v6764 = vmax.f32 %v6762, %v6763
      %v6765 = vrot.slane %v6764, 1
      %v6766 = vmax.f32 %v6764, %v6765
      %v6767 = vsel %vm5821, %v5054, -inf
      %v6768 = vrot.slane %v6767, 4
      %v6769 = vmax.f32 %v6767, %v6768
      %v6770 = vrot.slane %v6769, 2
      %v6771 = vmax.f32 %v6769, %v6770
      %v6772 = vrot.slane %v6771, 1
      %v6773 = vmax.f32 %v6771, %v6772
      %v6774 = vsel %vm5821, %v5062, -inf
      %v6775 = vrot.slane %v6774, 4
      %v6776 = vmax.f32 %v6774, %v6775
      %v6777 = vrot.slane %v6776, 2
      %v6778 = vmax.f32 %v6776, %v6777
      %v6779 = vrot.slane %v6778, 1
      %v6780 = vmax.f32 %v6778, %v6779
      %v6781 = vsel %vm5821, %v5070, -inf
      %v6782 = vrot.slane %v6781, 4
      %v6783 = vmax.f32 %v6781, %v6782
      %v6784 = vrot.slane %v6783, 2
      %v6785 = vmax.f32 %v6783, %v6784
      %v6786 = vrot.slane %v6785, 1
      %v6787 = vmax.f32 %v6785, %v6786
      %v6788 = vsel %vm5821, %v5069, -inf
      %v6789 = vrot.slane %v6788, 4
      %v6790 = vmax.f32 %v6788, %v6789
      %v6791 = vrot.slane %v6790, 2
      %v6792 = vmax.f32 %v6790, %v6791
      %v6793 = vrot.slane %v6792, 1
      %v6794 = vmax.f32 %v6792, %v6793
      %v6795 = vsel %vm5821, %v5071, -inf
      %v6796 = vrot.slane %v6795, 4
      %v6797 = vmax.f32 %v6795, %v6796
      %v6798 = vrot.slane %v6797, 2
      %v6799 = vmax.f32 %v6797, %v6798
      %v6800 = vrot.slane %v6799, 1
      %v6801 = vmax.f32 %v6799, %v6800
      %v6802 = vsel %vm5821, %v5079, -inf
      %v6803 = vrot.slane %v6802, 4
      %v6804 = vmax.f32 %v6802, %v6803
      %v6805 = vrot.slane %v6804, 2
      %v6806 = vmax.f32 %v6804, %v6805
      %v6807 = vrot.slane %v6806, 1
      %v6808 = vmax.f32 %v6806, %v6807
      %v6809 = vsel %vm5821, %v5087, -inf
      %v6810 = vrot.slane %v6809, 4
      %v6811 = vmax.f32 %v6809, %v6810
      %v6812 = vrot.slane %v6811, 2
      %v6813 = vmax.f32 %v6811, %v6812
      %v6814 = vrot.slane %v6813, 1
      %v6815 = vmax.f32 %v6813, %v6814
      %v6816 = vsel %vm5821, %v5086, -inf
      %v6817 = vrot.slane %v6816, 4
      %v6818 = vmax.f32 %v6816, %v6817
      %v6819 = vrot.slane %v6818, 2
      %v6820 = vmax.f32 %v6818, %v6819
      %v6821 = vrot.slane %v6820, 1
      %v6822 = vmax.f32 %v6820, %v6821
      %v6823 = vsel %vm5821, %v5088, -inf
      %v6824 = vrot.slane %v6823, 4
      %v6825 = vmax.f32 %v6823, %v6824
      %v6826 = vrot.slane %v6825, 2
      %v6827 = vmax.f32 %v6825, %v6826
      %v6828 = vrot.slane %v6827, 1
      %v6829 = vmax.f32 %v6827, %v6828
      %v6830 = vsel %vm5821, %v5096, -inf
      %v6831 = vrot.slane %v6830, 4
      %v6832 = vmax.f32 %v6830, %v6831
      %v6833 = vrot.slane %v6832, 2
      %v6834 = vmax.f32 %v6832, %v6833
      %v6835 = vrot.slane %v6834, 1
      %v6836 = vmax.f32 %v6834, %v6835
      %v6837 = vsel %vm5821, %v5104, -inf
      %v6838 = vrot.slane %v6837, 4
      %v6839 = vmax.f32 %v6837, %v6838
      %v6840 = vrot.slane %v6839, 2
      %v6841 = vmax.f32 %v6839, %v6840
      %v6842 = vrot.slane %v6841, 1
      %v6843 = vmax.f32 %v6841, %v6842
      %v6844 = vsel %vm5821, %v5103, -inf
      %v6845 = vrot.slane %v6844, 4
      %v6846 = vmax.f32 %v6844, %v6845
      %v6847 = vrot.slane %v6846, 2
      %v6848 = vmax.f32 %v6846, %v6847
      %v6849 = vrot.slane %v6848, 1
      %v6850 = vmax.f32 %v6848, %v6849
      %v6851 = vsel %vm5821, %v5105, -inf
      %v6852 = vrot.slane %v6851, 4
      %v6853 = vmax.f32 %v6851, %v6852
      %v6854 = vrot.slane %v6853, 2
      %v6855 = vmax.f32 %v6853, %v6854
      %v6856 = vrot.slane %v6855, 1
      %v6857 = vmax.f32 %v6855, %v6856
      %v6858 = vsel %vm5821, %v5113, -inf
      %v6859 = vrot.slane %v6858, 4
      %v6860 = vmax.f32 %v6858, %v6859
      %v6861 = vrot.slane %v6860, 2
      %v6862 = vmax.f32 %v6860, %v6861
      %v6863 = vrot.slane %v6862, 1
      %v6864 = vmax.f32 %v6862, %v6863
      %v6865 = vsel %vm5821, %v5121, -inf
      %v6866 = vrot.slane %v6865, 4
      %v6867 = vmax.f32 %v6865, %v6866
      %v6868 = vrot.slane %v6867, 2
      %v6869 = vmax.f32 %v6867, %v6868
      %v6870 = vrot.slane %v6869, 1
      %v6871 = vmax.f32 %v6869, %v6870
      %v6872 = vsel %vm5821, %v5120, -inf
      %v6873 = vrot.slane %v6872, 4
      %v6874 = vmax.f32 %v6872, %v6873
      %v6875 = vrot.slane %v6874, 2
      %v6876 = vmax.f32 %v6874, %v6875
      %v6877 = vrot.slane %v6876, 1
      %v6878 = vmax.f32 %v6876, %v6877
      %v6879 = vsel %vm5821, %v5122, -inf
      %v6880 = vrot.slane %v6879, 4
      %v6881 = vmax.f32 %v6879, %v6880
      %v6882 = vrot.slane %v6881, 2
      %v6883 = vmax.f32 %v6881, %v6882
      %v6884 = vrot.slane %v6883, 1
      %v6885 = vmax.f32 %v6883, %v6884
      %v6886 = vsel %vm5821, %v5130, -inf
      %v6887 = vrot.slane %v6886, 4
      %v6888 = vmax.f32 %v6886, %v6887
      %v6889 = vrot.slane %v6888, 2
      %v6890 = vmax.f32 %v6888, %v6889
      %v6891 = vrot.slane %v6890, 1
      %v6892 = vmax.f32 %v6890, %v6891
      %v6893 = vsel %vm5821, %v5138, -inf
      %v6894 = vrot.slane %v6893, 4
      %v6895 = vmax.f32 %v6893, %v6894
      %v6896 = vrot.slane %v6895, 2
      %v6897 = vmax.f32 %v6895, %v6896
      %v6898 = vrot.slane %v6897, 1
      %v6899 = vmax.f32 %v6897, %v6898
      %v6900 = vsel %vm5821, %v5137, -inf
      %v6901 = vrot.slane %v6900, 4
      %v6902 = vmax.f32 %v6900, %v6901
      %v6903 = vrot.slane %v6902, 2
      %v6904 = vmax.f32 %v6902, %v6903
      %v6905 = vrot.slane %v6904, 1
      %v6906 = vmax.f32 %v6904, %v6905
      %v6907 = vsel %vm5821, %v5139, -inf
      %v6908 = vrot.slane %v6907, 4
      %v6909 = vmax.f32 %v6907, %v6908
      %v6910 = vrot.slane %v6909, 2
      %v6911 = vmax.f32 %v6909, %v6910
      %v6912 = vrot.slane %v6911, 1
      %v6913 = vmax.f32 %v6911, %v6912
      %v6914 = vsel %vm5821, %v5147, -inf
      %v6915 = vrot.slane %v6914, 4
      %v6916 = vmax.f32 %v6914, %v6915
      %v6917 = vrot.slane %v6916, 2
      %v6918 = vmax.f32 %v6916, %v6917
      %v6919 = vrot.slane %v6918, 1
      %v6920 = vmax.f32 %v6918, %v6919
      %v6921 = vsel %vm5821, %v5155, -inf
      %v6922 = vrot.slane %v6921, 4
      %v6923 = vmax.f32 %v6921, %v6922
      %v6924 = vrot.slane %v6923, 2
      %v6925 = vmax.f32 %v6923, %v6924
      %v6926 = vrot.slane %v6925, 1
      %v6927 = vmax.f32 %v6925, %v6926
      %v6928 = vsel %vm5821, %v5154, -inf
      %v6929 = vrot.slane %v6928, 4
      %v6930 = vmax.f32 %v6928, %v6929
      %v6931 = vrot.slane %v6930, 2
      %v6932 = vmax.f32 %v6930, %v6931
      %v6933 = vrot.slane %v6932, 1
      %v6934 = vmax.f32 %v6932, %v6933
      %v6935 = vsel %vm5821, %v5156, -inf
      %v6936 = vrot.slane %v6935, 4
      %v6937 = vmax.f32 %v6935, %v6936
      %v6938 = vrot.slane %v6937, 2
      %v6939 = vmax.f32 %v6937, %v6938
      %v6940 = vrot.slane %v6939, 1
      %v6941 = vmax.f32 %v6939, %v6940
      %v6942 = vsel %vm5821, %v5164, -inf
      %v6943 = vrot.slane %v6942, 4
      %v6944 = vmax.f32 %v6942, %v6943
      %v6945 = vrot.slane %v6944, 2
      %v6946 = vmax.f32 %v6944, %v6945
      %v6947 = vrot.slane %v6946, 1
      %v6948 = vmax.f32 %v6946, %v6947
      %v6949 = vsel %vm5821, %v5172, -inf
      %v6950 = vrot.slane %v6949, 4
      %v6951 = vmax.f32 %v6949, %v6950
      %v6952 = vrot.slane %v6951, 2
      %v6953 = vmax.f32 %v6951, %v6952
      %v6954 = vrot.slane %v6953, 1
      %v6955 = vmax.f32 %v6953, %v6954
      %v6956 = vsel %vm5821, %v5171, -inf
      %v6957 = vrot.slane %v6956, 4
      %v6958 = vmax.f32 %v6956, %v6957
      %v6959 = vrot.slane %v6958, 2
      %v6960 = vmax.f32 %v6958, %v6959
      %v6961 = vrot.slane %v6960, 1
      %v6962 = vmax.f32 %v6960, %v6961
      %v6963 = vsel %vm5821, %v5173, -inf
      %v6964 = vrot.slane %v6963, 4
      %v6965 = vmax.f32 %v6963, %v6964
      %v6966 = vrot.slane %v6965, 2
      %v6967 = vmax.f32 %v6965, %v6966
      %v6968 = vrot.slane %v6967, 1
      %v6969 = vmax.f32 %v6967, %v6968
      %v6970 = vsel %vm5821, %v5181, -inf
      %v6971 = vrot.slane %v6970, 4
      %v6972 = vmax.f32 %v6970, %v6971
      %v6973 = vrot.slane %v6972, 2
      %v6974 = vmax.f32 %v6972, %v6973
      %v6975 = vrot.slane %v6974, 1
      %v6976 = vmax.f32 %v6974, %v6975
      %v6977 = vsel %vm5821, %v5189, -inf
      %v6978 = vrot.slane %v6977, 4
      %v6979 = vmax.f32 %v6977, %v6978
      %v6980 = vrot.slane %v6979, 2
      %v6981 = vmax.f32 %v6979, %v6980
      %v6982 = vrot.slane %v6981, 1
      %v6983 = vmax.f32 %v6981, %v6982
      %v6984 = vsel %vm5821, %v5188, -inf
      %v6985 = vrot.slane %v6984, 4
      %v6986 = vmax.f32 %v6984, %v6985
      %v6987 = vrot.slane %v6986, 2
      %v6988 = vmax.f32 %v6986, %v6987
      %v6989 = vrot.slane %v6988, 1
      %v6990 = vmax.f32 %v6988, %v6989
      %v6991 = vsel %vm5821, %v5190, -inf
      %v6992 = vrot.slane %v6991, 4
      %v6993 = vmax.f32 %v6991, %v6992
      %v6994 = vrot.slane %v6993, 2
      %v6995 = vmax.f32 %v6993, %v6994
      %v6996 = vrot.slane %v6995, 1
      %v6997 = vmax.f32 %v6995, %v6996
      %v6998 = vsel %vm5821, %v5198, -inf
      %v6999 = vrot.slane %v6998, 4
      %v7000 = vmax.f32 %v6998, %v6999
      %v7001 = vrot.slane %v7000, 2
      %v7002 = vmax.f32 %v7000, %v7001
      %v7003 = vrot.slane %v7002, 1
      %v7004 = vmax.f32 %v7002, %v7003
      %v7005 = vsel %vm5821, %v5206, -inf
      %v7006 = vrot.slane %v7005, 4
      %v7007 = vmax.f32 %v7005, %v7006
      %v7008 = vrot.slane %v7007, 2
      %v7009 = vmax.f32 %v7007, %v7008
      %v7010 = vrot.slane %v7009, 1
      %v7011 = vmax.f32 %v7009, %v7010
      %v7012 = vsel %vm5821, %v5205, -inf
      %v7013 = vrot.slane %v7012, 4
      %v7014 = vmax.f32 %v7012, %v7013
      %v7015 = vrot.slane %v7014, 2
      %v7016 = vmax.f32 %v7014, %v7015
      %v7017 = vrot.slane %v7016, 1
      %v7018 = vmax.f32 %v7016, %v7017
      %v7019 = vsel %vm5821, %v5207, -inf
      %v7020 = vrot.slane %v7019, 4
      %v7021 = vmax.f32 %v7019, %v7020
      %v7022 = vrot.slane %v7021, 2
      %v7023 = vmax.f32 %v7021, %v7022
      %v7024 = vrot.slane %v7023, 1
      %v7025 = vmax.f32 %v7023, %v7024
      %v7026 = vsel %vm5821, %v5215, -inf
      %v7027 = vrot.slane %v7026, 4
      %v7028 = vmax.f32 %v7026, %v7027
      %v7029 = vrot.slane %v7028, 2
      %v7030 = vmax.f32 %v7028, %v7029
      %v7031 = vrot.slane %v7030, 1
      %v7032 = vmax.f32 %v7030, %v7031
      %v7033 = vsel %vm5821, %v5223, -inf
      %v7034 = vrot.slane %v7033, 4
      %v7035 = vmax.f32 %v7033, %v7034
      %v7036 = vrot.slane %v7035, 2
      %v7037 = vmax.f32 %v7035, %v7036
      %v7038 = vrot.slane %v7037, 1
      %v7039 = vmax.f32 %v7037, %v7038
      %v7040 = vsel %vm5821, %v5222, -inf
      %v7041 = vrot.slane %v7040, 4
      %v7042 = vmax.f32 %v7040, %v7041
      %v7043 = vrot.slane %v7042, 2
      %v7044 = vmax.f32 %v7042, %v7043
      %v7045 = vrot.slane %v7044, 1
      %v7046 = vmax.f32 %v7044, %v7045
      %v7047 = vsel %vm5821, %v5224, -inf
      %v7048 = vrot.slane %v7047, 4
      %v7049 = vmax.f32 %v7047, %v7048
      %v7050 = vrot.slane %v7049, 2
      %v7051 = vmax.f32 %v7049, %v7050
      %v7052 = vrot.slane %v7051, 1
      %v7053 = vmax.f32 %v7051, %v7052
      %v7054 = vsel %vm5821, %v5232, -inf
      %v7055 = vrot.slane %v7054, 4
      %v7056 = vmax.f32 %v7054, %v7055
      %v7057 = vrot.slane %v7056, 2
      %v7058 = vmax.f32 %v7056, %v7057
      %v7059 = vrot.slane %v7058, 1
      %v7060 = vmax.f32 %v7058, %v7059
      %v7061 = vsel %vm5821, %v5240, -inf
      %v7062 = vrot.slane %v7061, 4
      %v7063 = vmax.f32 %v7061, %v7062
      %v7064 = vrot.slane %v7063, 2
      %v7065 = vmax.f32 %v7063, %v7064
      %v7066 = vrot.slane %v7065, 1
      %v7067 = vmax.f32 %v7065, %v7066
      %v7068 = vsel %vm5821, %v5239, -inf
      %v7069 = vrot.slane %v7068, 4
      %v7070 = vmax.f32 %v7068, %v7069
      %v7071 = vrot.slane %v7070, 2
      %v7072 = vmax.f32 %v7070, %v7071
      %v7073 = vrot.slane %v7072, 1
      %v7074 = vmax.f32 %v7072, %v7073
      %v7075 = vsel %vm5821, %v5241, -inf
      %v7076 = vrot.slane %v7075, 4
      %v7077 = vmax.f32 %v7075, %v7076
      %v7078 = vrot.slane %v7077, 2
      %v7079 = vmax.f32 %v7077, %v7078
      %v7080 = vrot.slane %v7079, 1
      %v7081 = vmax.f32 %v7079, %v7080
      %v7082 = vsel %vm5821, %v5249, -inf
      %v7083 = vrot.slane %v7082, 4
      %v7084 = vmax.f32 %v7082, %v7083
      %v7085 = vrot.slane %v7084, 2
      %v7086 = vmax.f32 %v7084, %v7085
      %v7087 = vrot.slane %v7086, 1
      %v7088 = vmax.f32 %v7086, %v7087
      %v7089 = vsel %vm5821, %v5257, -inf
      %v7090 = vrot.slane %v7089, 4
      %v7091 = vmax.f32 %v7089, %v7090
      %v7092 = vrot.slane %v7091, 2
      %v7093 = vmax.f32 %v7091, %v7092
      %v7094 = vrot.slane %v7093, 1
      %v7095 = vmax.f32 %v7093, %v7094
      %v7096 = vsel %vm5821, %v5256, -inf
      %v7097 = vrot.slane %v7096, 4
      %v7098 = vmax.f32 %v7096, %v7097
      %v7099 = vrot.slane %v7098, 2
      %v7100 = vmax.f32 %v7098, %v7099
      %v7101 = vrot.slane %v7100, 1
      %v7102 = vmax.f32 %v7100, %v7101
      %v7103 = vsel %vm5821, %v5258, -inf
      %v7104 = vrot.slane %v7103, 4
      %v7105 = vmax.f32 %v7103, %v7104
      %v7106 = vrot.slane %v7105, 2
      %v7107 = vmax.f32 %v7105, %v7106
      %v7108 = vrot.slane %v7107, 1
      %v7109 = vmax.f32 %v7107, %v7108
      %v7110 = vsel %vm5821, %v5266, -inf
      %v7111 = vrot.slane %v7110, 4
      %v7112 = vmax.f32 %v7110, %v7111
      %v7113 = vrot.slane %v7112, 2
      %v7114 = vmax.f32 %v7112, %v7113
      %v7115 = vrot.slane %v7114, 1
      %v7116 = vmax.f32 %v7114, %v7115
      %v7117 = vsel %vm5821, %v5274, -inf
      %v7118 = vrot.slane %v7117, 4
      %v7119 = vmax.f32 %v7117, %v7118
      %v7120 = vrot.slane %v7119, 2
      %v7121 = vmax.f32 %v7119, %v7120
      %v7122 = vrot.slane %v7121, 1
      %v7123 = vmax.f32 %v7121, %v7122
      %v7124 = vsel %vm5821, %v5273, -inf
      %v7125 = vrot.slane %v7124, 4
      %v7126 = vmax.f32 %v7124, %v7125
      %v7127 = vrot.slane %v7126, 2
      %v7128 = vmax.f32 %v7126, %v7127
      %v7129 = vrot.slane %v7128, 1
      %v7130 = vmax.f32 %v7128, %v7129
      %v7131 = vsel %vm5821, %v5275, -inf
      %v7132 = vrot.slane %v7131, 4
      %v7133 = vmax.f32 %v7131, %v7132
      %v7134 = vrot.slane %v7133, 2
      %v7135 = vmax.f32 %v7133, %v7134
      %v7136 = vrot.slane %v7135, 1
      %v7137 = vmax.f32 %v7135, %v7136
      %v7138 = vsel %vm5821, %v5283, -inf
      %v7139 = vrot.slane %v7138, 4
      %v7140 = vmax.f32 %v7138, %v7139
      %v7141 = vrot.slane %v7140, 2
      %v7142 = vmax.f32 %v7140, %v7141
      %v7143 = vrot.slane %v7142, 1
      %v7144 = vmax.f32 %v7142, %v7143
      %v7145 = vsel %vm5821, %v5291, -inf
      %v7146 = vrot.slane %v7145, 4
      %v7147 = vmax.f32 %v7145, %v7146
      %v7148 = vrot.slane %v7147, 2
      %v7149 = vmax.f32 %v7147, %v7148
      %v7150 = vrot.slane %v7149, 1
      %v7151 = vmax.f32 %v7149, %v7150
      %v7152 = vsel %vm5821, %v5290, -inf
      %v7153 = vrot.slane %v7152, 4
      %v7154 = vmax.f32 %v7152, %v7153
      %v7155 = vrot.slane %v7154, 2
      %v7156 = vmax.f32 %v7154, %v7155
      %v7157 = vrot.slane %v7156, 1
      %v7158 = vmax.f32 %v7156, %v7157
      %v7159 = vsel %vm5821, %v5292, -inf
      %v7160 = vrot.slane %v7159, 4
      %v7161 = vmax.f32 %v7159, %v7160
      %v7162 = vrot.slane %v7161, 2
      %v7163 = vmax.f32 %v7161, %v7162
      %v7164 = vrot.slane %v7163, 1
      %v7165 = vmax.f32 %v7163, %v7164
      %v7166 = vsel %vm5821, %v5300, -inf
      %v7167 = vrot.slane %v7166, 4
      %v7168 = vmax.f32 %v7166, %v7167
      %v7169 = vrot.slane %v7168, 2
      %v7170 = vmax.f32 %v7168, %v7169
      %v7171 = vrot.slane %v7170, 1
      %v7172 = vmax.f32 %v7170, %v7171
      %v7173 = vsel %vm5821, %v5308, -inf
      %v7174 = vrot.slane %v7173, 4
      %v7175 = vmax.f32 %v7173, %v7174
      %v7176 = vrot.slane %v7175, 2
      %v7177 = vmax.f32 %v7175, %v7176
      %v7178 = vrot.slane %v7177, 1
      %v7179 = vmax.f32 %v7177, %v7178
      %v7180 = vsel %vm5821, %v5307, -inf
      %v7181 = vrot.slane %v7180, 4
      %v7182 = vmax.f32 %v7180, %v7181
      %v7183 = vrot.slane %v7182, 2
      %v7184 = vmax.f32 %v7182, %v7183
      %v7185 = vrot.slane %v7184, 1
      %v7186 = vmax.f32 %v7184, %v7185
      %v7187 = vsel %vm5821, %v5309, -inf
      %v7188 = vrot.slane %v7187, 4
      %v7189 = vmax.f32 %v7187, %v7188
      %v7190 = vrot.slane %v7189, 2
      %v7191 = vmax.f32 %v7189, %v7190
      %v7192 = vrot.slane %v7191, 1
      %v7193 = vmax.f32 %v7191, %v7192
      %v7194 = vsel %vm5821, %v5317, -inf
      %v7195 = vrot.slane %v7194, 4
      %v7196 = vmax.f32 %v7194, %v7195
      %v7197 = vrot.slane %v7196, 2
      %v7198 = vmax.f32 %v7196, %v7197
      %v7199 = vrot.slane %v7198, 1
      %v7200 = vmax.f32 %v7198, %v7199
      %v7201 = vsel %vm5821, %v5325, -inf
      %v7202 = vrot.slane %v7201, 4
      %v7203 = vmax.f32 %v7201, %v7202
      %v7204 = vrot.slane %v7203, 2
      %v7205 = vmax.f32 %v7203, %v7204
      %v7206 = vrot.slane %v7205, 1
      %v7207 = vmax.f32 %v7205, %v7206
      %v7208 = vsel %vm5821, %v5324, -inf
      %v7209 = vrot.slane %v7208, 4
      %v7210 = vmax.f32 %v7208, %v7209
      %v7211 = vrot.slane %v7210, 2
      %v7212 = vmax.f32 %v7210, %v7211
      %v7213 = vrot.slane %v7212, 1
      %v7214 = vmax.f32 %v7212, %v7213
      %v7215 = vsel %vm5821, %v5326, -inf
      %v7216 = vrot.slane %v7215, 4
      %v7217 = vmax.f32 %v7215, %v7216
      %v7218 = vrot.slane %v7217, 2
      %v7219 = vmax.f32 %v7217, %v7218
      %v7220 = vrot.slane %v7219, 1
      %v7221 = vmax.f32 %v7219, %v7220
      %v7222 = vsel %vm5821, %v5334, -inf
      %v7223 = vrot.slane %v7222, 4
      %v7224 = vmax.f32 %v7222, %v7223
      %v7225 = vrot.slane %v7224, 2
      %v7226 = vmax.f32 %v7224, %v7225
      %v7227 = vrot.slane %v7226, 1
      %v7228 = vmax.f32 %v7226, %v7227
      %v7229 = vsel %vm5821, %v5342, -inf
      %v7230 = vrot.slane %v7229, 4
      %v7231 = vmax.f32 %v7229, %v7230
      %v7232 = vrot.slane %v7231, 2
      %v7233 = vmax.f32 %v7231, %v7232
      %v7234 = vrot.slane %v7233, 1
      %v7235 = vmax.f32 %v7233, %v7234
      %v7236 = vsel %vm5821, %v5341, -inf
      %v7237 = vrot.slane %v7236, 4
      %v7238 = vmax.f32 %v7236, %v7237
      %v7239 = vrot.slane %v7238, 2
      %v7240 = vmax.f32 %v7238, %v7239
      %v7241 = vrot.slane %v7240, 1
      %v7242 = vmax.f32 %v7240, %v7241
      %v7243 = vsel %vm5821, %v5343, -inf
      %v7244 = vrot.slane %v7243, 4
      %v7245 = vmax.f32 %v7243, %v7244
      %v7246 = vrot.slane %v7245, 2
      %v7247 = vmax.f32 %v7245, %v7246
      %v7248 = vrot.slane %v7247, 1
      %v7249 = vmax.f32 %v7247, %v7248
      %v7250 = vsel %vm5821, %v5351, -inf
      %v7251 = vrot.slane %v7250, 4
      %v7252 = vmax.f32 %v7250, %v7251
      %v7253 = vrot.slane %v7252, 2
      %v7254 = vmax.f32 %v7252, %v7253
      %v7255 = vrot.slane %v7254, 1
      %v7256 = vmax.f32 %v7254, %v7255
      %v7257 = vsel %vm5821, %v5359, -inf
      %v7258 = vrot.slane %v7257, 4
      %v7259 = vmax.f32 %v7257, %v7258
      %v7260 = vrot.slane %v7259, 2
      %v7261 = vmax.f32 %v7259, %v7260
      %v7262 = vrot.slane %v7261, 1
      %v7263 = vmax.f32 %v7261, %v7262
      %v7264 = vsel %vm5821, %v5358, -inf
      %v7265 = vrot.slane %v7264, 4
      %v7266 = vmax.f32 %v7264, %v7265
      %v7267 = vrot.slane %v7266, 2
      %v7268 = vmax.f32 %v7266, %v7267
      %v7269 = vrot.slane %v7268, 1
      %v7270 = vmax.f32 %v7268, %v7269
      %v7271 = vsel %vm5821, %v5360, -inf
      %v7272 = vrot.slane %v7271, 4
      %v7273 = vmax.f32 %v7271, %v7272
      %v7274 = vrot.slane %v7273, 2
      %v7275 = vmax.f32 %v7273, %v7274
      %v7276 = vrot.slane %v7275, 1
      %v7277 = vmax.f32 %v7275, %v7276
      %v7278 = vsel %vm5821, %v5368, -inf
      %v7279 = vrot.slane %v7278, 4
      %v7280 = vmax.f32 %v7278, %v7279
      %v7281 = vrot.slane %v7280, 2
      %v7282 = vmax.f32 %v7280, %v7281
      %v7283 = vrot.slane %v7282, 1
      %v7284 = vmax.f32 %v7282, %v7283
      %v7285 = vsel %vm5821, %v5376, -inf
      %v7286 = vrot.slane %v7285, 4
      %v7287 = vmax.f32 %v7285, %v7286
      %v7288 = vrot.slane %v7287, 2
      %v7289 = vmax.f32 %v7287, %v7288
      %v7290 = vrot.slane %v7289, 1
      %v7291 = vmax.f32 %v7289, %v7290
      %v7292 = vsel %vm5821, %v5375, -inf
      %v7293 = vrot.slane %v7292, 4
      %v7294 = vmax.f32 %v7292, %v7293
      %v7295 = vrot.slane %v7294, 2
      %v7296 = vmax.f32 %v7294, %v7295
      %v7297 = vrot.slane %v7296, 1
      %v7298 = vmax.f32 %v7296, %v7297
      %v7299 = vsel %vm5821, %v5377, -inf
      %v7300 = vrot.slane %v7299, 4
      %v7301 = vmax.f32 %v7299, %v7300
      %v7302 = vrot.slane %v7301, 2
      %v7303 = vmax.f32 %v7301, %v7302
      %v7304 = vrot.slane %v7303, 1
      %v7305 = vmax.f32 %v7303, %v7304
      %v7306 = vsel %vm5821, %v5385, -inf
      %v7307 = vrot.slane %v7306, 4
      %v7308 = vmax.f32 %v7306, %v7307
      %v7309 = vrot.slane %v7308, 2
      %v7310 = vmax.f32 %v7308, %v7309
      %v7311 = vrot.slane %v7310, 1
      %v7312 = vmax.f32 %v7310, %v7311
      %v7313 = vsel %vm5821, %v5393, -inf
      %v7314 = vrot.slane %v7313, 4
      %v7315 = vmax.f32 %v7313, %v7314
      %v7316 = vrot.slane %v7315, 2
      %v7317 = vmax.f32 %v7315, %v7316
      %v7318 = vrot.slane %v7317, 1
      %v7319 = vmax.f32 %v7317, %v7318
      %v7320 = vsel %vm5821, %v5392, -inf
      %v7321 = vrot.slane %v7320, 4
      %v7322 = vmax.f32 %v7320, %v7321
      %v7323 = vrot.slane %v7322, 2
      %v7324 = vmax.f32 %v7322, %v7323
      %v7325 = vrot.slane %v7324, 1
      %v7326 = vmax.f32 %v7324, %v7325
      %v7327 = vsel %vm5821, %v5394, -inf
      %v7328 = vrot.slane %v7327, 4
      %v7329 = vmax.f32 %v7327, %v7328
      %v7330 = vrot.slane %v7329, 2
      %v7331 = vmax.f32 %v7329, %v7330
      %v7332 = vrot.slane %v7331, 1
      %v7333 = vmax.f32 %v7331, %v7332
      %v7334 = vsel %vm5821, %v5402, -inf
      %v7335 = vrot.slane %v7334, 4
      %v7336 = vmax.f32 %v7334, %v7335
      %v7337 = vrot.slane %v7336, 2
      %v7338 = vmax.f32 %v7336, %v7337
      %v7339 = vrot.slane %v7338, 1
      %v7340 = vmax.f32 %v7338, %v7339
      %v7341 = vsel %vm5821, %v5410, -inf
      %v7342 = vrot.slane %v7341, 4
      %v7343 = vmax.f32 %v7341, %v7342
      %v7344 = vrot.slane %v7343, 2
      %v7345 = vmax.f32 %v7343, %v7344
      %v7346 = vrot.slane %v7345, 1
      %v7347 = vmax.f32 %v7345, %v7346
      %v7348 = vsel %vm5821, %v5409, -inf
      %v7349 = vrot.slane %v7348, 4
      %v7350 = vmax.f32 %v7348, %v7349
      %v7351 = vrot.slane %v7350, 2
      %v7352 = vmax.f32 %v7350, %v7351
      %v7353 = vrot.slane %v7352, 1
      %v7354 = vmax.f32 %v7352, %v7353
      %v7355 = vsel %vm5821, %v5411, -inf
      %v7356 = vrot.slane %v7355, 4
      %v7357 = vmax.f32 %v7355, %v7356
      %v7358 = vrot.slane %v7357, 2
      %v7359 = vmax.f32 %v7357, %v7358
      %v7360 = vrot.slane %v7359, 1
      %v7361 = vmax.f32 %v7359, %v7360
      %v7362 = vsel %vm5821, %v5419, -inf
      %v7363 = vrot.slane %v7362, 4
      %v7364 = vmax.f32 %v7362, %v7363
      %v7365 = vrot.slane %v7364, 2
      %v7366 = vmax.f32 %v7364, %v7365
      %v7367 = vrot.slane %v7366, 1
      %v7368 = vmax.f32 %v7366, %v7367
      %v7369 = vsel %vm5821, %v5427, -inf
      %v7370 = vrot.slane %v7369, 4
      %v7371 = vmax.f32 %v7369, %v7370
      %v7372 = vrot.slane %v7371, 2
      %v7373 = vmax.f32 %v7371, %v7372
      %v7374 = vrot.slane %v7373, 1
      %v7375 = vmax.f32 %v7373, %v7374
      %v7376 = vsel %vm5821, %v5426, -inf
      %v7377 = vrot.slane %v7376, 4
      %v7378 = vmax.f32 %v7376, %v7377
      %v7379 = vrot.slane %v7378, 2
      %v7380 = vmax.f32 %v7378, %v7379
      %v7381 = vrot.slane %v7380, 1
      %v7382 = vmax.f32 %v7380, %v7381
      %v7383 = vsel %vm5821, %v5428, -inf
      %v7384 = vrot.slane %v7383, 4
      %v7385 = vmax.f32 %v7383, %v7384
      %v7386 = vrot.slane %v7385, 2
      %v7387 = vmax.f32 %v7385, %v7386
      %v7388 = vrot.slane %v7387, 1
      %v7389 = vmax.f32 %v7387, %v7388
      %v7390 = vsel %vm5821, %v5436, -inf
      %v7391 = vrot.slane %v7390, 4
      %v7392 = vmax.f32 %v7390, %v7391
      %v7393 = vrot.slane %v7392, 2
      %v7394 = vmax.f32 %v7392, %v7393
      %v7395 = vrot.slane %v7394, 1
      %v7396 = vmax.f32 %v7394, %v7395
      %v7397 = vsel %vm5821, %v5444, -inf
      %v7398 = vrot.slane %v7397, 4
      %v7399 = vmax.f32 %v7397, %v7398
      %v7400 = vrot.slane %v7399, 2
      %v7401 = vmax.f32 %v7399, %v7400
      %v7402 = vrot.slane %v7401, 1
      %v7403 = vmax.f32 %v7401, %v7402
      %v7404 = vsel %vm5821, %v5443, -inf
      %v7405 = vrot.slane %v7404, 4
      %v7406 = vmax.f32 %v7404, %v7405
      %v7407 = vrot.slane %v7406, 2
      %v7408 = vmax.f32 %v7406, %v7407
      %v7409 = vrot.slane %v7408, 1
      %v7410 = vmax.f32 %v7408, %v7409
      %v7411 = vsel %vm5821, %v5445, -inf
      %v7412 = vrot.slane %v7411, 4
      %v7413 = vmax.f32 %v7411, %v7412
      %v7414 = vrot.slane %v7413, 2
      %v7415 = vmax.f32 %v7413, %v7414
      %v7416 = vrot.slane %v7415, 1
      %v7417 = vmax.f32 %v7415, %v7416
      %v7418 = vsel %vm5821, %v5453, -inf
      %v7419 = vrot.slane %v7418, 4
      %v7420 = vmax.f32 %v7418, %v7419
      %v7421 = vrot.slane %v7420, 2
      %v7422 = vmax.f32 %v7420, %v7421
      %v7423 = vrot.slane %v7422, 1
      %v7424 = vmax.f32 %v7422, %v7423
      %v7425 = vsel %vm5821, %v5461, -inf
      %v7426 = vrot.slane %v7425, 4
      %v7427 = vmax.f32 %v7425, %v7426
      %v7428 = vrot.slane %v7427, 2
      %v7429 = vmax.f32 %v7427, %v7428
      %v7430 = vrot.slane %v7429, 1
      %v7431 = vmax.f32 %v7429, %v7430
      %v7432 = vsel %vm5821, %v5460, -inf
      %v7433 = vrot.slane %v7432, 4
      %v7434 = vmax.f32 %v7432, %v7433
      %v7435 = vrot.slane %v7434, 2
      %v7436 = vmax.f32 %v7434, %v7435
      %v7437 = vrot.slane %v7436, 1
      %v7438 = vmax.f32 %v7436, %v7437
      %v7439 = vsel %vm5821, %v5462, -inf
      %v7440 = vrot.slane %v7439, 4
      %v7441 = vmax.f32 %v7439, %v7440
      %v7442 = vrot.slane %v7441, 2
      %v7443 = vmax.f32 %v7441, %v7442
      %v7444 = vrot.slane %v7443, 1
      %v7445 = vmax.f32 %v7443, %v7444
      %v7446 = vsel %vm5821, %v5470, -inf
      %v7447 = vrot.slane %v7446, 4
      %v7448 = vmax.f32 %v7446, %v7447
      %v7449 = vrot.slane %v7448, 2
      %v7450 = vmax.f32 %v7448, %v7449
      %v7451 = vrot.slane %v7450, 1
      %v7452 = vmax.f32 %v7450, %v7451
      %v7453 = vsel %vm5821, %v5478, -inf
      %v7454 = vrot.slane %v7453, 4
      %v7455 = vmax.f32 %v7453, %v7454
      %v7456 = vrot.slane %v7455, 2
      %v7457 = vmax.f32 %v7455, %v7456
      %v7458 = vrot.slane %v7457, 1
      %v7459 = vmax.f32 %v7457, %v7458
      %v7460 = vsel %vm5821, %v5477, -inf
      %v7461 = vrot.slane %v7460, 4
      %v7462 = vmax.f32 %v7460, %v7461
      %v7463 = vrot.slane %v7462, 2
      %v7464 = vmax.f32 %v7462, %v7463
      %v7465 = vrot.slane %v7464, 1
      %v7466 = vmax.f32 %v7464, %v7465
      %v7467 = vsel %vm5821, %v5479, -inf
      %v7468 = vrot.slane %v7467, 4
      %v7469 = vmax.f32 %v7467, %v7468
      %v7470 = vrot.slane %v7469, 2
      %v7471 = vmax.f32 %v7469, %v7470
      %v7472 = vrot.slane %v7471, 1
      %v7473 = vmax.f32 %v7471, %v7472
      %v7474 = vsel %vm5821, %v5487, -inf
      %v7475 = vrot.slane %v7474, 4
      %v7476 = vmax.f32 %v7474, %v7475
      %v7477 = vrot.slane %v7476, 2
      %v7478 = vmax.f32 %v7476, %v7477
      %v7479 = vrot.slane %v7478, 1
      %v7480 = vmax.f32 %v7478, %v7479
      %v7481 = vsel %vm5821, %v5495, -inf
      %v7482 = vrot.slane %v7481, 4
      %v7483 = vmax.f32 %v7481, %v7482
      %v7484 = vrot.slane %v7483, 2
      %v7485 = vmax.f32 %v7483, %v7484
      %v7486 = vrot.slane %v7485, 1
      %v7487 = vmax.f32 %v7485, %v7486
      %v7488 = vsel %vm5821, %v5494, -inf
      %v7489 = vrot.slane %v7488, 4
      %v7490 = vmax.f32 %v7488, %v7489
      %v7491 = vrot.slane %v7490, 2
      %v7492 = vmax.f32 %v7490, %v7491
      %v7493 = vrot.slane %v7492, 1
      %v7494 = vmax.f32 %v7492, %v7493
      %v7495 = vsel %vm5821, %v5496, -inf
      %v7496 = vrot.slane %v7495, 4
      %v7497 = vmax.f32 %v7495, %v7496
      %v7498 = vrot.slane %v7497, 2
      %v7499 = vmax.f32 %v7497, %v7498
      %v7500 = vrot.slane %v7499, 1
      %v7501 = vmax.f32 %v7499, %v7500
      %v7502 = vsel %vm5821, %v5504, -inf
      %v7503 = vrot.slane %v7502, 4
      %v7504 = vmax.f32 %v7502, %v7503
      %v7505 = vrot.slane %v7504, 2
      %v7506 = vmax.f32 %v7504, %v7505
      %v7507 = vrot.slane %v7506, 1
      %v7508 = vmax.f32 %v7506, %v7507
      %v7509 = vsel %vm5821, %v5512, -inf
      %v7510 = vrot.slane %v7509, 4
      %v7511 = vmax.f32 %v7509, %v7510
      %v7512 = vrot.slane %v7511, 2
      %v7513 = vmax.f32 %v7511, %v7512
      %v7514 = vrot.slane %v7513, 1
      %v7515 = vmax.f32 %v7513, %v7514
      %v7516 = vsel %vm5821, %v5511, -inf
      %v7517 = vrot.slane %v7516, 4
      %v7518 = vmax.f32 %v7516, %v7517
      %v7519 = vrot.slane %v7518, 2
      %v7520 = vmax.f32 %v7518, %v7519
      %v7521 = vrot.slane %v7520, 1
      %v7522 = vmax.f32 %v7520, %v7521
      %v7523 = vsel %vm5821, %v5513, -inf
      %v7524 = vrot.slane %v7523, 4
      %v7525 = vmax.f32 %v7523, %v7524
      %v7526 = vrot.slane %v7525, 2
      %v7527 = vmax.f32 %v7525, %v7526
      %v7528 = vrot.slane %v7527, 1
      %v7529 = vmax.f32 %v7527, %v7528
      %v7530 = vsel %vm5821, %v5521, -inf
      %v7531 = vrot.slane %v7530, 4
      %v7532 = vmax.f32 %v7530, %v7531
      %v7533 = vrot.slane %v7532, 2
      %v7534 = vmax.f32 %v7532, %v7533
      %v7535 = vrot.slane %v7534, 1
      %v7536 = vmax.f32 %v7534, %v7535
      %v7537 = vsel %vm5821, %v5529, -inf
      %v7538 = vrot.slane %v7537, 4
      %v7539 = vmax.f32 %v7537, %v7538
      %v7540 = vrot.slane %v7539, 2
      %v7541 = vmax.f32 %v7539, %v7540
      %v7542 = vrot.slane %v7541, 1
      %v7543 = vmax.f32 %v7541, %v7542
      %v7544 = vsel %vm5821, %v5528, -inf
      %v7545 = vrot.slane %v7544, 4
      %v7546 = vmax.f32 %v7544, %v7545
      %v7547 = vrot.slane %v7546, 2
      %v7548 = vmax.f32 %v7546, %v7547
      %v7549 = vrot.slane %v7548, 1
      %v7550 = vmax.f32 %v7548, %v7549
      %v7551 = vsel %vm5821, %v5530, -inf
      %v7552 = vrot.slane %v7551, 4
      %v7553 = vmax.f32 %v7551, %v7552
      %v7554 = vrot.slane %v7553, 2
      %v7555 = vmax.f32 %v7553, %v7554
      %v7556 = vrot.slane %v7555, 1
      %v7557 = vmax.f32 %v7555, %v7556
      %v7558 = vsel %vm5821, %v5538, -inf
      %v7559 = vrot.slane %v7558, 4
      %v7560 = vmax.f32 %v7558, %v7559
      %v7561 = vrot.slane %v7560, 2
      %v7562 = vmax.f32 %v7560, %v7561
      %v7563 = vrot.slane %v7562, 1
      %v7564 = vmax.f32 %v7562, %v7563
      %v7565 = vsel %vm5821, %v5546, -inf
      %v7566 = vrot.slane %v7565, 4
      %v7567 = vmax.f32 %v7565, %v7566
      %v7568 = vrot.slane %v7567, 2
      %v7569 = vmax.f32 %v7567, %v7568
      %v7570 = vrot.slane %v7569, 1
      %v7571 = vmax.f32 %v7569, %v7570
      %v7572 = vsel %vm5821, %v5545, -inf
      %v7573 = vrot.slane %v7572, 4
      %v7574 = vmax.f32 %v7572, %v7573
      %v7575 = vrot.slane %v7574, 2
      %v7576 = vmax.f32 %v7574, %v7575
      %v7577 = vrot.slane %v7576, 1
      %v7578 = vmax.f32 %v7576, %v7577
      %v7579 = vsel %vm5821, %v5547, -inf
      %v7580 = vrot.slane %v7579, 4
      %v7581 = vmax.f32 %v7579, %v7580
      %v7582 = vrot.slane %v7581, 2
      %v7583 = vmax.f32 %v7581, %v7582
      %v7584 = vrot.slane %v7583, 1
      %v7585 = vmax.f32 %v7583, %v7584
      %v7586 = vsel %vm5821, %v5555, -inf
      %v7587 = vrot.slane %v7586, 4
      %v7588 = vmax.f32 %v7586, %v7587
      %v7589 = vrot.slane %v7588, 2
      %v7590 = vmax.f32 %v7588, %v7589
      %v7591 = vrot.slane %v7590, 1
      %v7592 = vmax.f32 %v7590, %v7591
      %v7593 = vsel %vm5821, %v5563, -inf
      %v7594 = vrot.slane %v7593, 4
      %v7595 = vmax.f32 %v7593, %v7594
      %v7596 = vrot.slane %v7595, 2
      %v7597 = vmax.f32 %v7595, %v7596
      %v7598 = vrot.slane %v7597, 1
      %v7599 = vmax.f32 %v7597, %v7598
      %v7600 = vsel %vm5821, %v5562, -inf
      %v7601 = vrot.slane %v7600, 4
      %v7602 = vmax.f32 %v7600, %v7601
      %v7603 = vrot.slane %v7602, 2
      %v7604 = vmax.f32 %v7602, %v7603
      %v7605 = vrot.slane %v7604, 1
      %v7606 = vmax.f32 %v7604, %v7605
      %v7607 = vsel %vm5821, %v5564, -inf
      %v7608 = vrot.slane %v7607, 4
      %v7609 = vmax.f32 %v7607, %v7608
      %v7610 = vrot.slane %v7609, 2
      %v7611 = vmax.f32 %v7609, %v7610
      %v7612 = vrot.slane %v7611, 1
      %v7613 = vmax.f32 %v7611, %v7612
      %vm7614 = vcmask 64512
      %v7615 = vsel %vm7614, %v5828, -inf
      %v7616 = vsel %vm7614, %v5884, -inf
      %v7617 = vmax.f32 %v7615, %v7616
      %v7618 = vsel %vm7614, %v5835, -inf
      %v7619 = vsel %vm7614, %v5891, -inf
      %v7620 = vmax.f32 %v7618, %v7619
      %v7621 = vsel %vm7614, %v5842, -inf
      %v7622 = vsel %vm7614, %v5898, -inf
      %v7623 = vmax.f32 %v7621, %v7622
      %v7624 = vsel %vm7614, %v5849, -inf
      %v7625 = vsel %vm7614, %v5905, -inf
      %v7626 = vmax.f32 %v7624, %v7625
      %v7627 = vsel %vm7614, %v5856, -inf
      %v7628 = vsel %vm7614, %v5912, -inf
      %v7629 = vmax.f32 %v7627, %v7628
      %v7630 = vsel %vm7614, %v5863, -inf
      %v7631 = vsel %vm7614, %v5919, -inf
      %v7632 = vmax.f32 %v7630, %v7631
      %v7633 = vsel %vm7614, %v5870, -inf
      %v7634 = vsel %vm7614, %v5926, -inf
      %v7635 = vmax.f32 %v7633, %v7634
      %v7636 = vsel %vm7614, %v5877, -inf
      %v7637 = vsel %vm7614, %v5933, -inf
      %v7638 = vmax.f32 %v7636, %v7637
      %v7639 = vsel %vm7614, %v5940, -inf
      %v7640 = vsel %vm7614, %v5996, -inf
      %v7641 = vmax.f32 %v7639, %v7640
      %v7642 = vsel %vm7614, %v5947, -inf
      %v7643 = vsel %vm7614, %v6003, -inf
      %v7644 = vmax.f32 %v7642, %v7643
      %v7645 = vsel %vm7614, %v5954, -inf
      %v7646 = vsel %vm7614, %v6010, -inf
      %v7647 = vmax.f32 %v7645, %v7646
      %v7648 = vsel %vm7614, %v5961, -inf
      %v7649 = vsel %vm7614, %v6017, -inf
      %v7650 = vmax.f32 %v7648, %v7649
      %v7651 = vsel %vm7614, %v5968, -inf
      %v7652 = vsel %vm7614, %v6024, -inf
      %v7653 = vmax.f32 %v7651, %v7652
      %v7654 = vsel %vm7614, %v5975, -inf
      %v7655 = vsel %vm7614, %v6031, -inf
      %v7656 = vmax.f32 %v7654, %v7655
      %v7657 = vsel %vm7614, %v5982, -inf
      %v7658 = vsel %vm7614, %v6038, -inf
      %v7659 = vmax.f32 %v7657, %v7658
      %v7660 = vsel %vm7614, %v5989, -inf
      %v7661 = vsel %vm7614, %v6045, -inf
      %v7662 = vmax.f32 %v7660, %v7661
      %v7663 = vsel %vm7614, %v6052, -inf
      %v7664 = vsel %vm7614, %v6108, -inf
      %v7665 = vmax.f32 %v7663, %v7664
      %v7666 = vsel %vm7614, %v6059, -inf
      %v7667 = vsel %vm7614, %v6115, -inf
      %v7668 = vmax.f32 %v7666, %v7667
      %v7669 = vsel %vm7614, %v6066, -inf
      %v7670 = vsel %vm7614, %v6122, -inf
      %v7671 = vmax.f32 %v7669, %v7670
      %v7672 = vsel %vm7614, %v6073, -inf
      %v7673 = vsel %vm7614, %v6129, -inf
      %v7674 = vmax.f32 %v7672, %v7673
      %v7675 = vsel %vm7614, %v6080, -inf
      %v7676 = vsel %vm7614, %v6136, -inf
      %v7677 = vmax.f32 %v7675, %v7676
      %v7678 = vsel %vm7614, %v6087, -inf
      %v7679 = vsel %vm7614, %v6143, -inf
      %v7680 = vmax.f32 %v7678, %v7679
      %v7681 = vsel %vm7614, %v6094, -inf
      %v7682 = vsel %vm7614, %v6150, -inf
      %v7683 = vmax.f32 %v7681, %v7682
      %v7684 = vsel %vm7614, %v6101, -inf
      %v7685 = vsel %vm7614, %v6157, -inf
      %v7686 = vmax.f32 %v7684, %v7685
      %v7687 = vsel %vm7614, %v6164, -inf
      %v7688 = vsel %vm7614, %v6220, -inf
      %v7689 = vmax.f32 %v7687, %v7688
      %v7690 = vsel %vm7614, %v6171, -inf
      %v7691 = vsel %vm7614, %v6227, -inf
      %v7692 = vmax.f32 %v7690, %v7691
      %v7693 = vsel %vm7614, %v6178, -inf
      %v7694 = vsel %vm7614, %v6234, -inf
      %v7695 = vmax.f32 %v7693, %v7694
      %v7696 = vsel %vm7614, %v6185, -inf
      %v7697 = vsel %vm7614, %v6241, -inf
      %v7698 = vmax.f32 %v7696, %v7697
      %v7699 = vsel %vm7614, %v6192, -inf
      %v7700 = vsel %vm7614, %v6248, -inf
      %v7701 = vmax.f32 %v7699, %v7700
      %v7702 = vsel %vm7614, %v6199, -inf
      %v7703 = vsel %vm7614, %v6255, -inf
      %v7704 = vmax.f32 %v7702, %v7703
      %v7705 = vsel %vm7614, %v6206, -inf
      %v7706 = vsel %vm7614, %v6262, -inf
      %v7707 = vmax.f32 %v7705, %v7706
      %v7708 = vsel %vm7614, %v6213, -inf
      %v7709 = vsel %vm7614, %v6269, -inf
      %v7710 = vmax.f32 %v7708, %v7709
      %v7711 = vsel %vm7614, %v6276, -inf
      %v7712 = vsel %vm7614, %v6332, -inf
      %v7713 = vmax.f32 %v7711, %v7712
      %v7714 = vsel %vm7614, %v6283, -inf
      %v7715 = vsel %vm7614, %v6339, -inf
      %v7716 = vmax.f32 %v7714, %v7715
      %v7717 = vsel %vm7614, %v6290, -inf
      %v7718 = vsel %vm7614, %v6346, -inf
      %v7719 = vmax.f32 %v7717, %v7718
      %v7720 = vsel %vm7614, %v6297, -inf
      %v7721 = vsel %vm7614, %v6353, -inf
      %v7722 = vmax.f32 %v7720, %v7721
      %v7723 = vsel %vm7614, %v6304, -inf
      %v7724 = vsel %vm7614, %v6360, -inf
      %v7725 = vmax.f32 %v7723, %v7724
      %v7726 = vsel %vm7614, %v6311, -inf
      %v7727 = vsel %vm7614, %v6367, -inf
      %v7728 = vmax.f32 %v7726, %v7727
      %v7729 = vsel %vm7614, %v6318, -inf
      %v7730 = vsel %vm7614, %v6374, -inf
      %v7731 = vmax.f32 %v7729, %v7730
      %v7732 = vsel %vm7614, %v6325, -inf
      %v7733 = vsel %vm7614, %v6381, -inf
      %v7734 = vmax.f32 %v7732, %v7733
      %v7735 = vsel %vm7614, %v6388, -inf
      %v7736 = vsel %vm7614, %v6444, -inf
      %v7737 = vmax.f32 %v7735, %v7736
      %v7738 = vsel %vm7614, %v6395, -inf
      %v7739 = vsel %vm7614, %v6451, -inf
      %v7740 = vmax.f32 %v7738, %v7739
      %v7741 = vsel %vm7614, %v6402, -inf
      %v7742 = vsel %vm7614, %v6458, -inf
      %v7743 = vmax.f32 %v7741, %v7742
      %v7744 = vsel %vm7614, %v6409, -inf
      %v7745 = vsel %vm7614, %v6465, -inf
      %v7746 = vmax.f32 %v7744, %v7745
      %v7747 = vsel %vm7614, %v6416, -inf
      %v7748 = vsel %vm7614, %v6472, -inf
      %v7749 = vmax.f32 %v7747, %v7748
      %v7750 = vsel %vm7614, %v6423, -inf
      %v7751 = vsel %vm7614, %v6479, -inf
      %v7752 = vmax.f32 %v7750, %v7751
      %v7753 = vsel %vm7614, %v6430, -inf
      %v7754 = vsel %vm7614, %v6486, -inf
      %v7755 = vmax.f32 %v7753, %v7754
      %v7756 = vsel %vm7614, %v6437, -inf
      %v7757 = vsel %vm7614, %v6493, -inf
      %v7758 = vmax.f32 %v7756, %v7757
      %v7759 = vsel %vm7614, %v6500, -inf
      %v7760 = vsel %vm7614, %v6556, -inf
      %v7761 = vmax.f32 %v7759, %v7760
      %v7762 = vsel %vm7614, %v6507, -inf
      %v7763 = vsel %vm7614, %v6563, -inf
      %v7764 = vmax.f32 %v7762, %v7763
      %v7765 = vsel %vm7614, %v6514, -inf
      %v7766 = vsel %vm7614, %v6570, -inf
      %v7767 = vmax.f32 %v7765, %v7766
      %v7768 = vsel %vm7614, %v6521, -inf
      %v7769 = vsel %vm7614, %v6577, -inf
      %v7770 = vmax.f32 %v7768, %v7769
      %v7771 = vsel %vm7614, %v6528, -inf
      %v7772 = vsel %vm7614, %v6584, -inf
      %v7773 = vmax.f32 %v7771, %v7772
      %v7774 = vsel %vm7614, %v6535, -inf
      %v7775 = vsel %vm7614, %v6591, -inf
      %v7776 = vmax.f32 %v7774, %v7775
      %v7777 = vsel %vm7614, %v6542, -inf
      %v7778 = vsel %vm7614, %v6598, -inf
      %v7779 = vmax.f32 %v7777, %v7778
      %v7780 = vsel %vm7614, %v6549, -inf
      %v7781 = vsel %vm7614, %v6605, -inf
      %v7782 = vmax.f32 %v7780, %v7781
      %v7783 = vsel %vm7614, %v6612, -inf
      %v7784 = vsel %vm7614, %v6668, -inf
      %v7785 = vmax.f32 %v7783, %v7784
      %v7786 = vsel %vm7614, %v6619, -inf
      %v7787 = vsel %vm7614, %v6675, -inf
      %v7788 = vmax.f32 %v7786, %v7787
      %v7789 = vsel %vm7614, %v6626, -inf
      %v7790 = vsel %vm7614, %v6682, -inf
      %v7791 = vmax.f32 %v7789, %v7790
      %v7792 = vsel %vm7614, %v6633, -inf
      %v7793 = vsel %vm7614, %v6689, -inf
      %v7794 = vmax.f32 %v7792, %v7793
      %v7795 = vsel %vm7614, %v6640, -inf
      %v7796 = vsel %vm7614, %v6696, -inf
      %v7797 = vmax.f32 %v7795, %v7796
      %v7798 = vsel %vm7614, %v6647, -inf
      %v7799 = vsel %vm7614, %v6703, -inf
      %v7800 = vmax.f32 %v7798, %v7799
      %v7801 = vsel %vm7614, %v6654, -inf
      %v7802 = vsel %vm7614, %v6710, -inf
      %v7803 = vmax.f32 %v7801, %v7802
      %v7804 = vsel %vm7614, %v6661, -inf
      %v7805 = vsel %vm7614, %v6717, -inf
      %v7806 = vmax.f32 %v7804, %v7805
      %v7807 = vsel %vm7614, %v6724, -inf
      %v7808 = vsel %vm7614, %v6780, -inf
      %v7809 = vmax.f32 %v7807, %v7808
      %v7810 = vsel %vm7614, %v6731, -inf
      %v7811 = vsel %vm7614, %v6787, -inf
      %v7812 = vmax.f32 %v7810, %v7811
      %v7813 = vsel %vm7614, %v6738, -inf
      %v7814 = vsel %vm7614, %v6794, -inf
      %v7815 = vmax.f32 %v7813, %v7814
      %v7816 = vsel %vm7614, %v6745, -inf
      %v7817 = vsel %vm7614, %v6801, -inf
      %v7818 = vmax.f32 %v7816, %v7817
      %v7819 = vsel %vm7614, %v6752, -inf
      %v7820 = vsel %vm7614, %v6808, -inf
      %v7821 = vmax.f32 %v7819, %v7820
      %v7822 = vsel %vm7614, %v6759, -inf
      %v7823 = vsel %vm7614, %v6815, -inf
      %v7824 = vmax.f32 %v7822, %v7823
      %v7825 = vsel %vm7614, %v6766, -inf
      %v7826 = vsel %vm7614, %v6822, -inf
      %v7827 = vmax.f32 %v7825, %v7826
      %v7828 = vsel %vm7614, %v6773, -inf
      %v7829 = vsel %vm7614, %v6829, -inf
      %v7830 = vmax.f32 %v7828, %v7829
      %v7831 = vsel %vm7614, %v6836, -inf
      %v7832 = vsel %vm7614, %v6892, -inf
      %v7833 = vmax.f32 %v7831, %v7832
      %v7834 = vsel %vm7614, %v6843, -inf
      %v7835 = vsel %vm7614, %v6899, -inf
      %v7836 = vmax.f32 %v7834, %v7835
      %v7837 = vsel %vm7614, %v6850, -inf
      %v7838 = vsel %vm7614, %v6906, -inf
      %v7839 = vmax.f32 %v7837, %v7838
      %v7840 = vsel %vm7614, %v6857, -inf
      %v7841 = vsel %vm7614, %v6913, -inf
      %v7842 = vmax.f32 %v7840, %v7841
      %v7843 = vsel %vm7614, %v6864, -inf
      %v7844 = vsel %vm7614, %v6920, -inf
      %v7845 = vmax.f32 %v7843, %v7844
      %v7846 = vsel %vm7614, %v6871, -inf
      %v7847 = vsel %vm7614, %v6927, -inf
      %v7848 = vmax.f32 %v7846, %v7847
      %v7849 = vsel %vm7614, %v6878, -inf
      %v7850 = vsel %vm7614, %v6934, -inf
      %v7851 = vmax.f32 %v7849, %v7850
      %v7852 = vsel %vm7614, %v6885, -inf
      %v7853 = vsel %vm7614, %v6941, -inf
      %v7854 = vmax.f32 %v7852, %v7853
      %v7855 = vsel %vm7614, %v6948, -inf
      %v7856 = vsel %vm7614, %v7004, -inf
      %v7857 = vmax.f32 %v7855, %v7856
      %v7858 = vsel %vm7614, %v6955, -inf
      %v7859 = vsel %vm7614, %v7011, -inf
      %v7860 = vmax.f32 %v7858, %v7859
      %v7861 = vsel %vm7614, %v6962, -inf
      %v7862 = vsel %vm7614, %v7018, -inf
      %v7863 = vmax.f32 %v7861, %v7862
      %v7864 = vsel %vm7614, %v6969, -inf
      %v7865 = vsel %vm7614, %v7025, -inf
      %v7866 = vmax.f32 %v7864, %v7865
      %v7867 = vsel %vm7614, %v6976, -inf
      %v7868 = vsel %vm7614, %v7032, -inf
      %v7869 = vmax.f32 %v7867, %v7868
      %v7870 = vsel %vm7614, %v6983, -inf
      %v7871 = vsel %vm7614, %v7039, -inf
      %v7872 = vmax.f32 %v7870, %v7871
      %v7873 = vsel %vm7614, %v6990, -inf
      %v7874 = vsel %vm7614, %v7046, -inf
      %v7875 = vmax.f32 %v7873, %v7874
      %v7876 = vsel %vm7614, %v6997, -inf
      %v7877 = vsel %vm7614, %v7053, -inf
      %v7878 = vmax.f32 %v7876, %v7877
      %v7879 = vsel %vm7614, %v7060, -inf
      %v7880 = vsel %vm7614, %v7116, -inf
      %v7881 = vmax.f32 %v7879, %v7880
      %v7882 = vsel %vm7614, %v7067, -inf
      %v7883 = vsel %vm7614, %v7123, -inf
      %v7884 = vmax.f32 %v7882, %v7883
      %v7885 = vsel %vm7614, %v7074, -inf
      %v7886 = vsel %vm7614, %v7130, -inf
      %v7887 = vmax.f32 %v7885, %v7886
      %v7888 = vsel %vm7614, %v7081, -inf
      %v7889 = vsel %vm7614, %v7137, -inf
      %v7890 = vmax.f32 %v7888, %v7889
      %v7891 = vsel %vm7614, %v7088, -inf
      %v7892 = vsel %vm7614, %v7144, -inf
      %v7893 = vmax.f32 %v7891, %v7892
      %v7894 = vsel %vm7614, %v7095, -inf
      %v7895 = vsel %vm7614, %v7151, -inf
      %v7896 = vmax.f32 %v7894, %v7895
      %v7897 = vsel %vm7614, %v7102, -inf
      %v7898 = vsel %vm7614, %v7158, -inf
      %v7899 = vmax.f32 %v7897, %v7898
      %v7900 = vsel %vm7614, %v7109, -inf
      %v7901 = vsel %vm7614, %v7165, -inf
      %v7902 = vmax.f32 %v7900, %v7901
      %v7903 = vsel %vm7614, %v7172, -inf
      %v7904 = vsel %vm7614, %v7228, -inf
      %v7905 = vmax.f32 %v7903, %v7904
      %v7906 = vsel %vm7614, %v7179, -inf
      %v7907 = vsel %vm7614, %v7235, -inf
      %v7908 = vmax.f32 %v7906, %v7907
      %v7909 = vsel %vm7614, %v7186, -inf
      %v7910 = vsel %vm7614, %v7242, -inf
      %v7911 = vmax.f32 %v7909, %v7910
      %v7912 = vsel %vm7614, %v7193, -inf
      %v7913 = vsel %vm7614, %v7249, -inf
      %v7914 = vmax.f32 %v7912, %v7913
      %v7915 = vsel %vm7614, %v7200, -inf
      %v7916 = vsel %vm7614, %v7256, -inf
      %v7917 = vmax.f32 %v7915, %v7916
      %v7918 = vsel %vm7614, %v7207, -inf
      %v7919 = vsel %vm7614, %v7263, -inf
      %v7920 = vmax.f32 %v7918, %v7919
      %v7921 = vsel %vm7614, %v7214, -inf
      %v7922 = vsel %vm7614, %v7270, -inf
      %v7923 = vmax.f32 %v7921, %v7922
      %v7924 = vsel %vm7614, %v7221, -inf
      %v7925 = vsel %vm7614, %v7277, -inf
      %v7926 = vmax.f32 %v7924, %v7925
      %v7927 = vsel %vm7614, %v7284, -inf
      %v7928 = vsel %vm7614, %v7340, -inf
      %v7929 = vmax.f32 %v7927, %v7928
      %v7930 = vsel %vm7614, %v7291, -inf
      %v7931 = vsel %vm7614, %v7347, -inf
      %v7932 = vmax.f32 %v7930, %v7931
      %v7933 = vsel %vm7614, %v7298, -inf
      %v7934 = vsel %vm7614, %v7354, -inf
      %v7935 = vmax.f32 %v7933, %v7934
      %v7936 = vsel %vm7614, %v7305, -inf
      %v7937 = vsel %vm7614, %v7361, -inf
      %v7938 = vmax.f32 %v7936, %v7937
      %v7939 = vsel %vm7614, %v7312, -inf
      %v7940 = vsel %vm7614, %v7368, -inf
      %v7941 = vmax.f32 %v7939, %v7940
      %v7942 = vsel %vm7614, %v7319, -inf
      %v7943 = vsel %vm7614, %v7375, -inf
      %v7944 = vmax.f32 %v7942, %v7943
      %v7945 = vsel %vm7614, %v7326, -inf
      %v7946 = vsel %vm7614, %v7382, -inf
      %v7947 = vmax.f32 %v7945, %v7946
      %v7948 = vsel %vm7614, %v7333, -inf
      %v7949 = vsel %vm7614, %v7389, -inf
      %v7950 = vmax.f32 %v7948, %v7949
      %v7951 = vsel %vm7614, %v7396, -inf
      %v7952 = vsel %vm7614, %v7452, -inf
      %v7953 = vmax.f32 %v7951, %v7952
      %v7954 = vsel %vm7614, %v7403, -inf
      %v7955 = vsel %vm7614, %v7459, -inf
      %v7956 = vmax.f32 %v7954, %v7955
      %v7957 = vsel %vm7614, %v7410, -inf
      %v7958 = vsel %vm7614, %v7466, -inf
      %v7959 = vmax.f32 %v7957, %v7958
      %v7960 = vsel %vm7614, %v7417, -inf
      %v7961 = vsel %vm7614, %v7473, -inf
      %v7962 = vmax.f32 %v7960, %v7961
      %v7963 = vsel %vm7614, %v7424, -inf
      %v7964 = vsel %vm7614, %v7480, -inf
      %v7965 = vmax.f32 %v7963, %v7964
      %v7966 = vsel %vm7614, %v7431, -inf
      %v7967 = vsel %vm7614, %v7487, -inf
      %v7968 = vmax.f32 %v7966, %v7967
      %v7969 = vsel %vm7614, %v7438, -inf
      %v7970 = vsel %vm7614, %v7494, -inf
      %v7971 = vmax.f32 %v7969, %v7970
      %v7972 = vsel %vm7614, %v7445, -inf
      %v7973 = vsel %vm7614, %v7501, -inf
      %v7974 = vmax.f32 %v7972, %v7973
      %v7975 = vsel %vm7614, %v7508, -inf
      %v7976 = vsel %vm7614, %v7564, -inf
      %v7977 = vmax.f32 %v7975, %v7976
      %v7978 = vsel %vm7614, %v7515, -inf
      %v7979 = vsel %vm7614, %v7571, -inf
      %v7980 = vmax.f32 %v7978, %v7979
      %v7981 = vsel %vm7614, %v7522, -inf
      %v7982 = vsel %vm7614, %v7578, -inf
      %v7983 = vmax.f32 %v7981, %v7982
      %v7984 = vsel %vm7614, %v7529, -inf
      %v7985 = vsel %vm7614, %v7585, -inf
      %v7986 = vmax.f32 %v7984, %v7985
      %v7987 = vsel %vm7614, %v7536, -inf
      %v7988 = vsel %vm7614, %v7592, -inf
      %v7989 = vmax.f32 %v7987, %v7988
      %v7990 = vsel %vm7614, %v7543, -inf
      %v7991 = vsel %vm7614, %v7599, -inf
      %v7992 = vmax.f32 %v7990, %v7991
      %v7993 = vsel %vm7614, %v7550, -inf
      %v7994 = vsel %vm7614, %v7606, -inf
      %v7995 = vmax.f32 %v7993, %v7994
      %v7996 = vsel %vm7614, %v7557, -inf
      %v7997 = vsel %vm7614, %v7613, -inf
      %v7998 = vmax.f32 %v7996, %v7997
      %7999 = vst.msk [vmem:[#allocation3] sm:$0xff] %vm7614, 0.0
      %8000 = vst.msk [vmem:[#allocation3 + $0x8] sm:$0x3] %vm5821, 0.0
      %8001 = vst.msk [vmem:[#allocation3 + $0xa0] sm:$0xff] %vm7614, 0.0
      %8002 = vst.msk [vmem:[#allocation3 + $0xa8] sm:$0x3] %vm5821, 0.0
      %s8003 = scalar_lea.vmem [#allocation3], 144
      %8004 = vst.msk [vmem:[%s8003] sm:$0xff] %vm7614, 0.0
      %8005 = vst.msk [vmem:[%s8003 + $0x8] sm:$0x3] %vm5821, 0.0
      %8006 = vst.msk [vmem:[%s8003 + $0xa0] sm:$0xff] %vm7614, 0.0
      %8007 = vst.msk [vmem:[%s8003 + $0xa8] sm:$0x3] %vm5821, 0.0
      %vm8008 = vcmask 57344
      %8009 = vst.msk [vmem:[#allocation3] sm:$0x1] %vm8008, 0.0
      %8010 = vst.msk [vmem:[#allocation3 + $0x10] sm:$0x1] %vm8008, 0.0
      %8011 = vst.msk [vmem:[#allocation3 + $0x20] sm:$0x1] %vm8008, 0.0
      %8012 = vst.msk [vmem:[#allocation3 + $0x30] sm:$0x1] %vm8008, 0.0
      %8013 = vst.msk [vmem:[#allocation3 + $0x40] sm:$0x1] %vm8008, 0.0
      %8014 = vst.msk [vmem:[#allocation3 + $0x50] sm:$0x1] %vm8008, 0.0
      %8015 = vst.msk [vmem:[#allocation3 + $0x60] sm:$0x1] %vm8008, 0.0
      %8016 = vst.msk [vmem:[#allocation3 + $0x70] sm:$0x1] %vm8008, 0.0
      %8017 = vst.msk [vmem:[#allocation3 + $0x80] sm:$0x1] %vm8008, 0.0
      %8018 = vst.msk [vmem:[#allocation3 + $0x90] sm:$0x1] %vm8008, 0.0
      %8019 = vst.msk [vmem:[#allocation3 + $0xa0] sm:$0x1] %vm8008, 0.0
      %8020 = vst.msk [vmem:[#allocation3 + $0xb0] sm:$0x1] %vm8008, 0.0
      %8021 = vst.msk [vmem:[#allocation3 + $0xc0] sm:$0x1] %vm8008, 0.0
      %8022 = vst.msk [vmem:[#allocation3 + $0xd0] sm:$0x1] %vm8008, 0.0
      %8023 = vst.msk [vmem:[#allocation3 + $0xe0] sm:$0x1] %vm8008, 0.0
      %8024 = vst.msk [vmem:[#allocation3 + $0xf0] sm:$0x1] %vm8008, 0.0
      %8025 = vst.msk [vmem:[#allocation3 + $0x100] sm:$0x1] %vm8008, 0.0
      %8026 = vst.msk [vmem:[#allocation3 + $0x110] sm:$0x1] %vm8008, 0.0
      %8027 = vst.msk [vmem:[#allocation3 + $0x120] sm:$0x1] %vm8008, 0.0
      %8028 = vst.msk [vmem:[#allocation3 + $0x130] sm:$0x1] %vm8008, 0.0
      %8029 = vst.msk [vmem:[#allocation3 + $0x9] sm:$0x1] %vm8008, 0.0
      %8030 = vst.msk [vmem:[#allocation3 + $0x19] sm:$0x1] %vm8008, 0.0
      %8031 = vst.msk [vmem:[#allocation3 + $0x29] sm:$0x1] %vm8008, 0.0
      %8032 = vst.msk [vmem:[#allocation3 + $0x39] sm:$0x1] %vm8008, 0.0
      %8033 = vst.msk [vmem:[#allocation3 + $0x49] sm:$0x1] %vm8008, 0.0
      %8034 = vst.msk [vmem:[#allocation3 + $0x59] sm:$0x1] %vm8008, 0.0
      %8035 = vst.msk [vmem:[#allocation3 + $0x69] sm:$0x1] %vm8008, 0.0
      %8036 = vst.msk [vmem:[#allocation3 + $0x79] sm:$0x1] %vm8008, 0.0
      %8037 = vst.msk [vmem:[#allocation3 + $0x89] sm:$0x1] %vm8008, 0.0
      %8038 = vst.msk [vmem:[#allocation3 + $0x99] sm:$0x1] %vm8008, 0.0
      %8039 = vst.msk [vmem:[#allocation3 + $0xa9] sm:$0x1] %vm8008, 0.0
      %8040 = vst.msk [vmem:[#allocation3 + $0xb9] sm:$0x1] %vm8008, 0.0
      %8041 = vst.msk [vmem:[#allocation3 + $0xc9] sm:$0x1] %vm8008, 0.0
      %8042 = vst.msk [vmem:[#allocation3 + $0xd9] sm:$0x1] %vm8008, 0.0
      %8043 = vst.msk [vmem:[#allocation3 + $0xe9] sm:$0x1] %vm8008, 0.0
      %8044 = vst.msk [vmem:[#allocation3 + $0xf9] sm:$0x1] %vm8008, 0.0
      %8045 = vst.msk [vmem:[#allocation3 + $0x109] sm:$0x1] %vm8008, 0.0
      %8046 = vst.msk [vmem:[#allocation3 + $0x119] sm:$0x1] %vm8008, 0.0
      %8047 = vst.msk [vmem:[#allocation3 + $0x129] sm:$0x1] %vm8008, 0.0
      %8048 = vst.msk [vmem:[#allocation3 + $0x139] sm:$0x1] %vm8008, 0.0
      %vm8177 = vcmask 1041409
      %v8178 = vsel %vm8177, %v7620, %v7617
      %vm8179 = vcmask 1042434
      %v8180 = vsel %vm8179, %v7623, %v8178
      %vm8181 = vcmask 1043459
      %v8182 = vsel %vm8181, %v7626, %v8180
      %vm8183 = vcmask 1044484
      %v8184 = vsel %vm8183, %v7629, %v8182
      %vm8185 = vcmask 1045509
      %v8186 = vsel %vm8185, %v7632, %v8184
      %vm8187 = vcmask 1046534
      %v8188 = vsel %vm8187, %v7635, %v8186
      %vm8189 = vcmask 1047559
      %v8190 = vsel %vm8189, %v7638, %v8188
      %v8191 = vsel %vm8177, %v7644, %v7641
      %v8192 = vsel %vm8179, %v7647, %v8191
      %v8193 = vsel %vm8181, %v7650, %v8192
      %v8194 = vsel %vm8183, %v7653, %v8193
      %v8195 = vsel %vm8185, %v7656, %v8194
      %v8196 = vsel %vm8187, %v7659, %v8195
      %v8197 = vsel %vm8189, %v7662, %v8196
      %v8198 = vsel %vm8177, %v7668, %v7665
      %v8199 = vsel %vm8179, %v7671, %v8198
      %v8200 = vsel %vm8181, %v7674, %v8199
      %v8201 = vsel %vm8183, %v7677, %v8200
      %v8202 = vsel %vm8185, %v7680, %v8201
      %v8203 = vsel %vm8187, %v7683, %v8202
      %v8204 = vsel %vm8189, %v7686, %v8203
      %v8205 = vsel %vm8177, %v7692, %v7689
      %v8206 = vsel %vm8179, %v7695, %v8205
      %v8207 = vsel %vm8181, %v7698, %v8206
      %v8208 = vsel %vm8183, %v7701, %v8207
      %v8209 = vsel %vm8185, %v7704, %v8208
      %v8210 = vsel %vm8187, %v7707, %v8209
      %v8211 = vsel %vm8189, %v7710, %v8210
      %v8212 = vsel %vm8177, %v7716, %v7713
      %v8213 = vsel %vm8179, %v7719, %v8212
      %v8214 = vsel %vm8181, %v7722, %v8213
      %v8215 = vsel %vm8183, %v7725, %v8214
      %v8216 = vsel %vm8185, %v7728, %v8215
      %v8217 = vsel %vm8187, %v7731, %v8216
      %v8218 = vsel %vm8189, %v7734, %v8217
      %v8219 = vsel %vm8177, %v7740, %v7737
      %v8220 = vsel %vm8179, %v7743, %v8219
      %v8221 = vsel %vm8181, %v7746, %v8220
      %v8222 = vsel %vm8183, %v7749, %v8221
      %v8223 = vsel %vm8185, %v7752, %v8222
      %v8224 = vsel %vm8187, %v7755, %v8223
      %v8225 = vsel %vm8189, %v7758, %v8224
      %v8226 = vsel %vm8177, %v7764, %v7761
      %v8227 = vsel %vm8179, %v7767, %v8226
      %v8228 = vsel %vm8181, %v7770, %v8227
      %v8229 = vsel %vm8183, %v7773, %v8228
      %v8230 = vsel %vm8185, %v7776, %v8229
      %v8231 = vsel %vm8187, %v7779, %v8230
      %v8232 = vsel %vm8189, %v7782, %v8231
      %v8233 = vsel %vm8177, %v7788, %v7785
      %v8234 = vsel %vm8179, %v7791, %v8233
      %v8235 = vsel %vm8181, %v7794, %v8234
      %v8236 = vsel %vm8183, %v7797, %v8235
      %v8237 = vsel %vm8185, %v7800, %v8236
      %v8238 = vsel %vm8187, %v7803, %v8237
      %v8239 = vsel %vm8189, %v7806, %v8238
      %v8240 = vsel %vm8177, %v7812, %v7809
      %v8241 = vsel %vm8179, %v7815, %v8240
      %v8242 = vsel %vm8181, %v7818, %v8241
      %v8243 = vsel %vm8183, %v7821, %v8242
      %v8244 = vsel %vm8185, %v7824, %v8243
      %v8245 = vsel %vm8187, %v7827, %v8244
      %v8246 = vsel %vm8189, %v7830, %v8245
      %v8247 = vsel %vm8177, %v7836, %v7833
      %v8248 = vsel %vm8179, %v7839, %v8247
      %v8249 = vsel %vm8181, %v7842, %v8248
      %v8250 = vsel %vm8183, %v7845, %v8249
      %v8251 = vsel %vm8185, %v7848, %v8250
      %v8252 = vsel %vm8187, %v7851, %v8251
      %v8253 = vsel %vm8189, %v7854, %v8252
      %v8254 = vsel %vm8177, %v7860, %v7857
      %v8255 = vsel %vm8179, %v7863, %v8254
      %v8256 = vsel %vm8181, %v7866, %v8255
      %v8257 = vsel %vm8183, %v7869, %v8256
      %v8258 = vsel %vm8185, %v7872, %v8257
      %v8259 = vsel %vm8187, %v7875, %v8258
      %v8260 = vsel %vm8189, %v7878, %v8259
      %v8261 = vsel %vm8177, %v7884, %v7881
      %v8262 = vsel %vm8179, %v7887, %v8261
      %v8263 = vsel %vm8181, %v7890, %v8262
      %v8264 = vsel %vm8183, %v7893, %v8263
      %v8265 = vsel %vm8185, %v7896, %v8264
      %v8266 = vsel %vm8187, %v7899, %v8265
      %v8267 = vsel %vm8189, %v7902, %v8266
      %v8268 = vsel %vm8177, %v7908, %v7905
      %v8269 = vsel %vm8179, %v7911, %v8268
      %v8270 = vsel %vm8181, %v7914, %v8269
      %v8271 = vsel %vm8183, %v7917, %v8270
      %v8272 = vsel %vm8185, %v7920, %v8271
      %v8273 = vsel %vm8187, %v7923, %v8272
      %v8274 = vsel %vm8189, %v7926, %v8273
      %v8275 = vsel %vm8177, %v7932, %v7929
      %v8276 = vsel %vm8179, %v7935, %v8275
      %v8277 = vsel %vm8181, %v7938, %v8276
      %v8278 = vsel %vm8183, %v7941, %v8277
      %v8279 = vsel %vm8185, %v7944, %v8278
      %v8280 = vsel %vm8187, %v7947, %v8279
      %v8281 = vsel %vm8189, %v7950, %v8280
      %v8282 = vsel %vm8177, %v7956, %v7953
      %v8283 = vsel %vm8179, %v7959, %v8282
      %v8284 = vsel %vm8181, %v7962, %v8283
      %v8285 = vsel %vm8183, %v7965, %v8284
      %v8286 = vsel %vm8185, %v7968, %v8285
      %v8287 = vsel %vm8187, %v7971, %v8286
      %v8288 = vsel %vm8189, %v7974, %v8287
      %v8289 = vsel %vm8177, %v7980, %v7977
      %v8290 = vsel %vm8179, %v7983, %v8289
      %v8291 = vsel %vm8181, %v7986, %v8290
      %v8292 = vsel %vm8183, %v7989, %v8291
      %v8293 = vsel %vm8185, %v7992, %v8292
      %v8294 = vsel %vm8187, %v7995, %v8293
      %v8295 = vsel %vm8189, %v7998, %v8294
      %s8312 = scalar_lea.vmem [#allocation3], 16
      %8313 = vst.msk [vmem:[%s8312 + $0x1] sm:$0xff] %vm7614, %v8190
      %8314 = vst.msk [vmem:[%s8312 + $0x11] sm:$0xff] %vm7614, %v8197
      %8315 = vst.msk [vmem:[%s8312 + $0x21] sm:$0xff] %vm7614, %v8204
      %8316 = vst.msk [vmem:[%s8312 + $0x31] sm:$0xff] %vm7614, %v8211
      %8317 = vst.msk [vmem:[%s8312 + $0x41] sm:$0xff] %vm7614, %v8218
      %8318 = vst.msk [vmem:[%s8312 + $0x51] sm:$0xff] %vm7614, %v8225
      %8319 = vst.msk [vmem:[%s8312 + $0x61] sm:$0xff] %vm7614, %v8232
      %8320 = vst.msk [vmem:[%s8312 + $0x71] sm:$0xff] %vm7614, %v8239
      %8321 = vst.msk [vmem:[%s8312 + $0xa1] sm:$0xff] %vm7614, %v8246
      %8322 = vst.msk [vmem:[%s8312 + $0xb1] sm:$0xff] %vm7614, %v8253
      %8323 = vst.msk [vmem:[%s8312 + $0xc1] sm:$0xff] %vm7614, %v8260
      %8324 = vst.msk [vmem:[%s8312 + $0xd1] sm:$0xff] %vm7614, %v8267
      %8325 = vst.msk [vmem:[%s8312 + $0xe1] sm:$0xff] %vm7614, %v8274
      %8326 = vst.msk [vmem:[%s8312 + $0xf1] sm:$0xff] %vm7614, %v8281
      %8327 = vst.msk [vmem:[%s8312 + $0x101] sm:$0xff] %vm7614, %v8288
      %8328 = vst.msk [vmem:[%s8312 + $0x111] sm:$0xff] %vm7614, %v8295
      %v8329 = vld [vmem:[#allocation3] sm:$0xff]
      %v8330 = vld [vmem:[#allocation3 + $0x10] sm:$0xff]
      %v8331 = vld [vmem:[#allocation3 + $0x20] sm:$0xff]
      %v8332 = vld [vmem:[#allocation3 + $0x30] sm:$0xff]
      %v8333 = vld [vmem:[#allocation3 + $0x40] sm:$0xff]
      %v8334 = vld [vmem:[#allocation3 + $0x50] sm:$0xff]
      %v8335 = vld [vmem:[#allocation3 + $0x60] sm:$0xff]
      %v8336 = vld [vmem:[#allocation3 + $0x70] sm:$0xff]
      %v8337 = vld [vmem:[#allocation3 + $0xa0] sm:$0xff]
      %v8338 = vld [vmem:[#allocation3 + $0xb0] sm:$0xff]
      %v8339 = vld [vmem:[#allocation3 + $0xc0] sm:$0xff]
      %v8340 = vld [vmem:[#allocation3 + $0xd0] sm:$0xff]
      %v8341 = vld [vmem:[#allocation3 + $0xe0] sm:$0xff]
      %v8342 = vld [vmem:[#allocation3 + $0xf0] sm:$0xff]
      %v8343 = vld [vmem:[#allocation3 + $0x100] sm:$0xff]
      %v8344 = vld [vmem:[#allocation3 + $0x110] sm:$0xff]
      %v8345 = vld [vmem:[#allocation3 + $0x1] sm:$0xff]
      %v8346 = vld [vmem:[#allocation3 + $0x11] sm:$0xff]
      %v8347 = vld [vmem:[#allocation3 + $0x21] sm:$0xff]
      %v8348 = vld [vmem:[#allocation3 + $0x31] sm:$0xff]
      %v8349 = vld [vmem:[#allocation3 + $0x41] sm:$0xff]
      %v8350 = vld [vmem:[#allocation3 + $0x51] sm:$0xff]
      %v8351 = vld [vmem:[#allocation3 + $0x61] sm:$0xff]
      %v8352 = vld [vmem:[#allocation3 + $0x71] sm:$0xff]
      %v8353 = vld [vmem:[#allocation3 + $0xa1] sm:$0xff]
      %v8354 = vld [vmem:[#allocation3 + $0xb1] sm:$0xff]
      %v8355 = vld [vmem:[#allocation3 + $0xc1] sm:$0xff]
      %v8356 = vld [vmem:[#allocation3 + $0xd1] sm:$0xff]
      %v8357 = vld [vmem:[#allocation3 + $0xe1] sm:$0xff]
      %v8358 = vld [vmem:[#allocation3 + $0xf1] sm:$0xff]
      %v8359 = vld [vmem:[#allocation3 + $0x101] sm:$0xff]
      %v8360 = vld [vmem:[#allocation3 + $0x111] sm:$0xff]
      %v8361 = vld [vmem:[#allocation3 + $0x2] sm:$0xff]
      %v8362 = vld [vmem:[#allocation3 + $0x12] sm:$0xff]
      %v8363 = vld [vmem:[#allocation3 + $0x22] sm:$0xff]
      %v8364 = vld [vmem:[#allocation3 + $0x32] sm:$0xff]
      %v8365 = vld [vmem:[#allocation3 + $0x42] sm:$0xff]
      %v8366 = vld [vmem:[#allocation3 + $0x52] sm:$0xff]
      %v8367 = vld [vmem:[#allocation3 + $0x62] sm:$0xff]
      %v8368 = vld [vmem:[#allocation3 + $0x72] sm:$0xff]
      %v8369 = vld [vmem:[#allocation3 + $0xa2] sm:$0xff]
      %v8370 = vld [vmem:[#allocation3 + $0xb2] sm:$0xff]
      %v8371 = vld [vmem:[#allocation3 + $0xc2] sm:$0xff]
      %v8372 = vld [vmem:[#allocation3 + $0xd2] sm:$0xff]
      %v8373 = vld [vmem:[#allocation3 + $0xe2] sm:$0xff]
      %v8374 = vld [vmem:[#allocation3 + $0xf2] sm:$0xff]
      %v8375 = vld [vmem:[#allocation3 + $0x102] sm:$0xff]
      %v8376 = vld [vmem:[#allocation3 + $0x112] sm:$0xff]
      %v8377 = vld [vmem:[%s8312] sm:$0xff]
      %v8378 = vld [vmem:[%s8312 + $0x10] sm:$0xff]
      %v8379 = vld [vmem:[%s8312 + $0x20] sm:$0xff]
      %v8380 = vld [vmem:[%s8312 + $0x30] sm:$0xff]
      %v8381 = vld [vmem:[%s8312 + $0x40] sm:$0xff]
      %v8382 = vld [vmem:[%s8312 + $0x50] sm:$0xff]
      %v8383 = vld [vmem:[%s8312 + $0x60] sm:$0xff]
      %v8384 = vld [vmem:[%s8312 + $0x70] sm:$0xff]
      %v8385 = vld [vmem:[%s8312 + $0xa0] sm:$0xff]
      %v8386 = vld [vmem:[%s8312 + $0xb0] sm:$0xff]
      %v8387 = vld [vmem:[%s8312 + $0xc0] sm:$0xff]
      %v8388 = vld [vmem:[%s8312 + $0xd0] sm:$0xff]
      %v8389 = vld [vmem:[%s8312 + $0xe0] sm:$0xff]
      %v8390 = vld [vmem:[%s8312 + $0xf0] sm:$0xff]
      %v8391 = vld [vmem:[%s8312 + $0x100] sm:$0xff]
      %v8392 = vld [vmem:[%s8312 + $0x110] sm:$0xff]
      %v8393 = vld [vmem:[%s8312 + $0x1] sm:$0xff]
      %v8394 = vld [vmem:[%s8312 + $0x11] sm:$0xff]
      %v8395 = vld [vmem:[%s8312 + $0x21] sm:$0xff]
      %v8396 = vld [vmem:[%s8312 + $0x31] sm:$0xff]
      %v8397 = vld [vmem:[%s8312 + $0x41] sm:$0xff]
      %v8398 = vld [vmem:[%s8312 + $0x51] sm:$0xff]
      %v8399 = vld [vmem:[%s8312 + $0x61] sm:$0xff]
      %v8400 = vld [vmem:[%s8312 + $0x71] sm:$0xff]
      %v8401 = vld [vmem:[%s8312 + $0xa1] sm:$0xff]
      %v8402 = vld [vmem:[%s8312 + $0xb1] sm:$0xff]
      %v8403 = vld [vmem:[%s8312 + $0xc1] sm:$0xff]
      %v8404 = vld [vmem:[%s8312 + $0xd1] sm:$0xff]
      %v8405 = vld [vmem:[%s8312 + $0xe1] sm:$0xff]
      %v8406 = vld [vmem:[%s8312 + $0xf1] sm:$0xff]
      %v8407 = vld [vmem:[%s8312 + $0x101] sm:$0xff]
      %v8408 = vld [vmem:[%s8312 + $0x111] sm:$0xff]
      %v8409 = vld [vmem:[%s8312 + $0x2] sm:$0xff]
      %v8410 = vld [vmem:[%s8312 + $0x12] sm:$0xff]
      %v8411 = vld [vmem:[%s8312 + $0x22] sm:$0xff]
      %v8412 = vld [vmem:[%s8312 + $0x32] sm:$0xff]
      %v8413 = vld [vmem:[%s8312 + $0x42] sm:$0xff]
      %v8414 = vld [vmem:[%s8312 + $0x52] sm:$0xff]
      %v8415 = vld [vmem:[%s8312 + $0x62] sm:$0xff]
      %v8416 = vld [vmem:[%s8312 + $0x72] sm:$0xff]
      %v8417 = vld [vmem:[%s8312 + $0xa2] sm:$0xff]
      %v8418 = vld [vmem:[%s8312 + $0xb2] sm:$0xff]
      %v8419 = vld [vmem:[%s8312 + $0xc2] sm:$0xff]
      %v8420 = vld [vmem:[%s8312 + $0xd2] sm:$0xff]
      %v8421 = vld [vmem:[%s8312 + $0xe2] sm:$0xff]
      %v8422 = vld [vmem:[%s8312 + $0xf2] sm:$0xff]
      %v8423 = vld [vmem:[%s8312 + $0x102] sm:$0xff]
      %v8424 = vld [vmem:[%s8312 + $0x112] sm:$0xff]
      %s8425 = scalar_lea.vmem [#allocation3], 32
      %v8426 = vld [vmem:[%s8425] sm:$0xff]
      %v8427 = vld [vmem:[%s8425 + $0x10] sm:$0xff]
      %v8428 = vld [vmem:[%s8425 + $0x20] sm:$0xff]
      %v8429 = vld [vmem:[%s8425 + $0x30] sm:$0xff]
      %v8430 = vld [vmem:[%s8425 + $0x40] sm:$0xff]
      %v8431 = vld [vmem:[%s8425 + $0x50] sm:$0xff]
      %v8432 = vld [vmem:[%s8425 + $0x60] sm:$0xff]
      %v8433 = vld [vmem:[%s8425 + $0x70] sm:$0xff]
      %v8434 = vld [vmem:[%s8425 + $0xa0] sm:$0xff]
      %v8435 = vld [vmem:[%s8425 + $0xb0] sm:$0xff]
      %v8436 = vld [vmem:[%s8425 + $0xc0] sm:$0xff]
      %v8437 = vld [vmem:[%s8425 + $0xd0] sm:$0xff]
      %v8438 = vld [vmem:[%s8425 + $0xe0] sm:$0xff]
      %v8439 = vld [vmem:[%s8425 + $0xf0] sm:$0xff]
      %v8440 = vld [vmem:[%s8425 + $0x100] sm:$0xff]
      %v8441 = vld [vmem:[%s8425 + $0x110] sm:$0xff]
      %v8442 = vld [vmem:[%s8425 + $0x1] sm:$0xff]
      %v8443 = vld [vmem:[%s8425 + $0x11] sm:$0xff]
      %v8444 = vld [vmem:[%s8425 + $0x21] sm:$0xff]
      %v8445 = vld [vmem:[%s8425 + $0x31] sm:$0xff]
      %v8446 = vld [vmem:[%s8425 + $0x41] sm:$0xff]
      %v8447 = vld [vmem:[%s8425 + $0x51] sm:$0xff]
      %v8448 = vld [vmem:[%s8425 + $0x61] sm:$0xff]
      %v8449 = vld [vmem:[%s8425 + $0x71] sm:$0xff]
      %v8450 = vld [vmem:[%s8425 + $0xa1] sm:$0xff]
      %v8451 = vld [vmem:[%s8425 + $0xb1] sm:$0xff]
      %v8452 = vld [vmem:[%s8425 + $0xc1] sm:$0xff]
      %v8453 = vld [vmem:[%s8425 + $0xd1] sm:$0xff]
      %v8454 = vld [vmem:[%s8425 + $0xe1] sm:$0xff]
      %v8455 = vld [vmem:[%s8425 + $0xf1] sm:$0xff]
      %v8456 = vld [vmem:[%s8425 + $0x101] sm:$0xff]
      %v8457 = vld [vmem:[%s8425 + $0x111] sm:$0xff]
      %v8458 = vld [vmem:[%s8425 + $0x2] sm:$0xff]
      %v8459 = vld [vmem:[%s8425 + $0x12] sm:$0xff]
      %v8460 = vld [vmem:[%s8425 + $0x22] sm:$0xff]
      %v8461 = vld [vmem:[%s8425 + $0x32] sm:$0xff]
      %v8462 = vld [vmem:[%s8425 + $0x42] sm:$0xff]
      %v8463 = vld [vmem:[%s8425 + $0x52] sm:$0xff]
      %v8464 = vld [vmem:[%s8425 + $0x62] sm:$0xff]
      %v8465 = vld [vmem:[%s8425 + $0x72] sm:$0xff]
      %v8466 = vld [vmem:[%s8425 + $0xa2] sm:$0xff]
      %v8467 = vld [vmem:[%s8425 + $0xb2] sm:$0xff]
      %v8468 = vld [vmem:[%s8425 + $0xc2] sm:$0xff]
      %v8469 = vld [vmem:[%s8425 + $0xd2] sm:$0xff]
      %v8470 = vld [vmem:[%s8425 + $0xe2] sm:$0xff]
      %v8471 = vld [vmem:[%s8425 + $0xf2] sm:$0xff]
      %v8472 = vld [vmem:[%s8425 + $0x102] sm:$0xff]
      %v8473 = vld [vmem:[%s8425 + $0x112] sm:$0xff]
      %8490 = vrot.lane.b32.xlu0 %v8345, 8
      %v8491 = vpop.permute.xlu0 %8490
      %8492 = vrot.lane.b32.xlu0 %v8346, 8
      %v8493 = vpop.permute.xlu0 %8492
      %8494 = vrot.lane.b32.xlu0 %v8347, 8
      %v8495 = vpop.permute.xlu0 %8494
      %8496 = vrot.lane.b32.xlu0 %v8348, 8
      %v8497 = vpop.permute.xlu0 %8496
      %8498 = vrot.lane.b32.xlu0 %v8349, 8
      %v8499 = vpop.permute.xlu0 %8498
      %8500 = vrot.lane.b32.xlu0 %v8350, 8
      %v8501 = vpop.permute.xlu0 %8500
      %8502 = vrot.lane.b32.xlu0 %v8351, 8
      %v8503 = vpop.permute.xlu0 %8502
      %8504 = vrot.lane.b32.xlu0 %v8352, 8
      %v8505 = vpop.permute.xlu0 %8504
      %8506 = vrot.lane.b32.xlu0 %v8353, 8
      %v8507 = vpop.permute.xlu0 %8506
      %8508 = vrot.lane.b32.xlu0 %v8354, 8
      %v8509 = vpop.permute.xlu0 %8508
      %8510 = vrot.lane.b32.xlu0 %v8355, 8
      %v8511 = vpop.permute.xlu0 %8510
      %8512 = vrot.lane.b32.xlu0 %v8356, 8
      %v8513 = vpop.permute.xlu0 %8512
      %8514 = vrot.lane.b32.xlu0 %v8357, 8
      %v8515 = vpop.permute.xlu0 %8514
      %8516 = vrot.lane.b32.xlu0 %v8358, 8
      %v8517 = vpop.permute.xlu0 %8516
      %8518 = vrot.lane.b32.xlu0 %v8359, 8
      %v8519 = vpop.permute.xlu0 %8518
      %8520 = vrot.lane.b32.xlu0 %v8360, 8
      %v8521 = vpop.permute.xlu0 %8520
      %8554 = vrot.lane.b32.xlu0 %v8361, 16
      %v8555 = vpop.permute.xlu0 %8554
      %8556 = vrot.lane.b32.xlu0 %v8362, 16
      %v8557 = vpop.permute.xlu0 %8556
      %8558 = vrot.lane.b32.xlu0 %v8363, 16
      %v8559 = vpop.permute.xlu0 %8558
      %8560 = vrot.lane.b32.xlu0 %v8364, 16
      %v8561 = vpop.permute.xlu0 %8560
      %8562 = vrot.lane.b32.xlu0 %v8365, 16
      %v8563 = vpop.permute.xlu0 %8562
      %8564 = vrot.lane.b32.xlu0 %v8366, 16
      %v8565 = vpop.permute.xlu0 %8564
      %8566 = vrot.lane.b32.xlu0 %v8367, 16
      %v8567 = vpop.permute.xlu0 %8566
      %8568 = vrot.lane.b32.xlu0 %v8368, 16
      %v8569 = vpop.permute.xlu0 %8568
      %8570 = vrot.lane.b32.xlu0 %v8369, 16
      %v8571 = vpop.permute.xlu0 %8570
      %8572 = vrot.lane.b32.xlu0 %v8370, 16
      %v8573 = vpop.permute.xlu0 %8572
      %8574 = vrot.lane.b32.xlu0 %v8371, 16
      %v8575 = vpop.permute.xlu0 %8574
      %8576 = vrot.lane.b32.xlu0 %v8372, 16
      %v8577 = vpop.permute.xlu0 %8576
      %8578 = vrot.lane.b32.xlu0 %v8373, 16
      %v8579 = vpop.permute.xlu0 %8578
      %8580 = vrot.lane.b32.xlu0 %v8374, 16
      %v8581 = vpop.permute.xlu0 %8580
      %8582 = vrot.lane.b32.xlu0 %v8375, 16
      %v8583 = vpop.permute.xlu0 %8582
      %8584 = vrot.lane.b32.xlu0 %v8376, 16
      %v8585 = vpop.permute.xlu0 %8584
      %8618 = vrot.lane.b32.xlu0 %v8377, 24
      %v8619 = vpop.permute.xlu0 %8618
      %8620 = vrot.lane.b32.xlu0 %v8378, 24
      %v8621 = vpop.permute.xlu0 %8620
      %8622 = vrot.lane.b32.xlu0 %v8379, 24
      %v8623 = vpop.permute.xlu0 %8622
      %8624 = vrot.lane.b32.xlu0 %v8380, 24
      %v8625 = vpop.permute.xlu0 %8624
      %8626 = vrot.lane.b32.xlu0 %v8381, 24
      %v8627 = vpop.permute.xlu0 %8626
      %8628 = vrot.lane.b32.xlu0 %v8382, 24
      %v8629 = vpop.permute.xlu0 %8628
      %8630 = vrot.lane.b32.xlu0 %v8383, 24
      %v8631 = vpop.permute.xlu0 %8630
      %8632 = vrot.lane.b32.xlu0 %v8384, 24
      %v8633 = vpop.permute.xlu0 %8632
      %8634 = vrot.lane.b32.xlu0 %v8385, 24
      %v8635 = vpop.permute.xlu0 %8634
      %8636 = vrot.lane.b32.xlu0 %v8386, 24
      %v8637 = vpop.permute.xlu0 %8636
      %8638 = vrot.lane.b32.xlu0 %v8387, 24
      %v8639 = vpop.permute.xlu0 %8638
      %8640 = vrot.lane.b32.xlu0 %v8388, 24
      %v8641 = vpop.permute.xlu0 %8640
      %8642 = vrot.lane.b32.xlu0 %v8389, 24
      %v8643 = vpop.permute.xlu0 %8642
      %8644 = vrot.lane.b32.xlu0 %v8390, 24
      %v8645 = vpop.permute.xlu0 %8644
      %8646 = vrot.lane.b32.xlu0 %v8391, 24
      %v8647 = vpop.permute.xlu0 %8646
      %8648 = vrot.lane.b32.xlu0 %v8392, 24
      %v8649 = vpop.permute.xlu0 %8648
      %8682 = vrot.lane.b32.xlu0 %v8393, 32
      %v8683 = vpop.permute.xlu0 %8682
      %8684 = vrot.lane.b32.xlu0 %v8394, 32
      %v8685 = vpop.permute.xlu0 %8684
      %8686 = vrot.lane.b32.xlu0 %v8395, 32
      %v8687 = vpop.permute.xlu0 %8686
      %8688 = vrot.lane.b32.xlu0 %v8396, 32
      %v8689 = vpop.permute.xlu0 %8688
      %8690 = vrot.lane.b32.xlu0 %v8397, 32
      %v8691 = vpop.permute.xlu0 %8690
      %8692 = vrot.lane.b32.xlu0 %v8398, 32
      %v8693 = vpop.permute.xlu0 %8692
      %8694 = vrot.lane.b32.xlu0 %v8399, 32
      %v8695 = vpop.permute.xlu0 %8694
      %8696 = vrot.lane.b32.xlu0 %v8400, 32
      %v8697 = vpop.permute.xlu0 %8696
      %8698 = vrot.lane.b32.xlu0 %v8401, 32
      %v8699 = vpop.permute.xlu0 %8698
      %8700 = vrot.lane.b32.xlu0 %v8402, 32
      %v8701 = vpop.permute.xlu0 %8700
      %8702 = vrot.lane.b32.xlu0 %v8403, 32
      %v8703 = vpop.permute.xlu0 %8702
      %8704 = vrot.lane.b32.xlu0 %v8404, 32
      %v8705 = vpop.permute.xlu0 %8704
      %8706 = vrot.lane.b32.xlu0 %v8405, 32
      %v8707 = vpop.permute.xlu0 %8706
      %8708 = vrot.lane.b32.xlu0 %v8406, 32
      %v8709 = vpop.permute.xlu0 %8708
      %8710 = vrot.lane.b32.xlu0 %v8407, 32
      %v8711 = vpop.permute.xlu0 %8710
      %8712 = vrot.lane.b32.xlu0 %v8408, 32
      %v8713 = vpop.permute.xlu0 %8712
      %8746 = vrot.lane.b32.xlu0 %v8409, 40
      %v8747 = vpop.permute.xlu0 %8746
      %8748 = vrot.lane.b32.xlu0 %v8410, 40
      %v8749 = vpop.permute.xlu0 %8748
      %8750 = vrot.lane.b32.xlu0 %v8411, 40
      %v8751 = vpop.permute.xlu0 %8750
      %8752 = vrot.lane.b32.xlu0 %v8412, 40
      %v8753 = vpop.permute.xlu0 %8752
      %8754 = vrot.lane.b32.xlu0 %v8413, 40
      %v8755 = vpop.permute.xlu0 %8754
      %8756 = vrot.lane.b32.xlu0 %v8414, 40
      %v8757 = vpop.permute.xlu0 %8756
      %8758 = vrot.lane.b32.xlu0 %v8415, 40
      %v8759 = vpop.permute.xlu0 %8758
      %8760 = vrot.lane.b32.xlu0 %v8416, 40
      %v8761 = vpop.permute.xlu0 %8760
      %8762 = vrot.lane.b32.xlu0 %v8417, 40
      %v8763 = vpop.permute.xlu0 %8762
      %8764 = vrot.lane.b32.xlu0 %v8418, 40
      %v8765 = vpop.permute.xlu0 %8764
      %8766 = vrot.lane.b32.xlu0 %v8419, 40
      %v8767 = vpop.permute.xlu0 %8766
      %8768 = vrot.lane.b32.xlu0 %v8420, 40
      %v8769 = vpop.permute.xlu0 %8768
      %8770 = vrot.lane.b32.xlu0 %v8421, 40
      %v8771 = vpop.permute.xlu0 %8770
      %8772 = vrot.lane.b32.xlu0 %v8422, 40
      %v8773 = vpop.permute.xlu0 %8772
      %8774 = vrot.lane.b32.xlu0 %v8423, 40
      %v8775 = vpop.permute.xlu0 %8774
      %8776 = vrot.lane.b32.xlu0 %v8424, 40
      %v8777 = vpop.permute.xlu0 %8776
      %8810 = vrot.lane.b32.xlu0 %v8426, 48
      %v8811 = vpop.permute.xlu0 %8810
      %8812 = vrot.lane.b32.xlu0 %v8427, 48
      %v8813 = vpop.permute.xlu0 %8812
      %8814 = vrot.lane.b32.xlu0 %v8428, 48
      %v8815 = vpop.permute.xlu0 %8814
      %8816 = vrot.lane.b32.xlu0 %v8429, 48
      %v8817 = vpop.permute.xlu0 %8816
      %8818 = vrot.lane.b32.xlu0 %v8430, 48
      %v8819 = vpop.permute.xlu0 %8818
      %8820 = vrot.lane.b32.xlu0 %v8431, 48
      %v8821 = vpop.permute.xlu0 %8820
      %8822 = vrot.lane.b32.xlu0 %v8432, 48
      %v8823 = vpop.permute.xlu0 %8822
      %8824 = vrot.lane.b32.xlu0 %v8433, 48
      %v8825 = vpop.permute.xlu0 %8824
      %8826 = vrot.lane.b32.xlu0 %v8434, 48
      %v8827 = vpop.permute.xlu0 %8826
      %8828 = vrot.lane.b32.xlu0 %v8435, 48
      %v8829 = vpop.permute.xlu0 %8828
      %8830 = vrot.lane.b32.xlu0 %v8436, 48
      %v8831 = vpop.permute.xlu0 %8830
      %8832 = vrot.lane.b32.xlu0 %v8437, 48
      %v8833 = vpop.permute.xlu0 %8832
      %8834 = vrot.lane.b32.xlu0 %v8438, 48
      %v8835 = vpop.permute.xlu0 %8834
      %8836 = vrot.lane.b32.xlu0 %v8439, 48
      %v8837 = vpop.permute.xlu0 %8836
      %8838 = vrot.lane.b32.xlu0 %v8440, 48
      %v8839 = vpop.permute.xlu0 %8838
      %8840 = vrot.lane.b32.xlu0 %v8441, 48
      %v8841 = vpop.permute.xlu0 %8840
      %8874 = vrot.lane.b32.xlu0 %v8442, 56
      %v8875 = vpop.permute.xlu0 %8874
      %8876 = vrot.lane.b32.xlu0 %v8443, 56
      %v8877 = vpop.permute.xlu0 %8876
      %8878 = vrot.lane.b32.xlu0 %v8444, 56
      %v8879 = vpop.permute.xlu0 %8878
      %8880 = vrot.lane.b32.xlu0 %v8445, 56
      %v8881 = vpop.permute.xlu0 %8880
      %8882 = vrot.lane.b32.xlu0 %v8446, 56
      %v8883 = vpop.permute.xlu0 %8882
      %8884 = vrot.lane.b32.xlu0 %v8447, 56
      %v8885 = vpop.permute.xlu0 %8884
      %8886 = vrot.lane.b32.xlu0 %v8448, 56
      %v8887 = vpop.permute.xlu0 %8886
      %8888 = vrot.lane.b32.xlu0 %v8449, 56
      %v8889 = vpop.permute.xlu0 %8888
      %8890 = vrot.lane.b32.xlu0 %v8450, 56
      %v8891 = vpop.permute.xlu0 %8890
      %8892 = vrot.lane.b32.xlu0 %v8451, 56
      %v8893 = vpop.permute.xlu0 %8892
      %8894 = vrot.lane.b32.xlu0 %v8452, 56
      %v8895 = vpop.permute.xlu0 %8894
      %8896 = vrot.lane.b32.xlu0 %v8453, 56
      %v8897 = vpop.permute.xlu0 %8896
      %8898 = vrot.lane.b32.xlu0 %v8454, 56
      %v8899 = vpop.permute.xlu0 %8898
      %8900 = vrot.lane.b32.xlu0 %v8455, 56
      %v8901 = vpop.permute.xlu0 %8900
      %8902 = vrot.lane.b32.xlu0 %v8456, 56
      %v8903 = vpop.permute.xlu0 %8902
      %8904 = vrot.lane.b32.xlu0 %v8457, 56
      %v8905 = vpop.permute.xlu0 %8904
      %8938 = vrot.lane.b32.xlu0 %v8458, 64
      %v8939 = vpop.permute.xlu0 %8938
      %8940 = vrot.lane.b32.xlu0 %v8459, 64
      %v8941 = vpop.permute.xlu0 %8940
      %8942 = vrot.lane.b32.xlu0 %v8460, 64
      %v8943 = vpop.permute.xlu0 %8942
      %8944 = vrot.lane.b32.xlu0 %v8461, 64
      %v8945 = vpop.permute.xlu0 %8944
      %8946 = vrot.lane.b32.xlu0 %v8462, 64
      %v8947 = vpop.permute.xlu0 %8946
      %8948 = vrot.lane.b32.xlu0 %v8463, 64
      %v8949 = vpop.permute.xlu0 %8948
      %8950 = vrot.lane.b32.xlu0 %v8464, 64
      %v8951 = vpop.permute.xlu0 %8950
      %8952 = vrot.lane.b32.xlu0 %v8465, 64
      %v8953 = vpop.permute.xlu0 %8952
      %8954 = vrot.lane.b32.xlu0 %v8466, 64
      %v8955 = vpop.permute.xlu0 %8954
      %8956 = vrot.lane.b32.xlu0 %v8467, 64
      %v8957 = vpop.permute.xlu0 %8956
      %8958 = vrot.lane.b32.xlu0 %v8468, 64
      %v8959 = vpop.permute.xlu0 %8958
      %8960 = vrot.lane.b32.xlu0 %v8469, 64
      %v8961 = vpop.permute.xlu0 %8960
      %8962 = vrot.lane.b32.xlu0 %v8470, 64
      %v8963 = vpop.permute.xlu0 %8962
      %8964 = vrot.lane.b32.xlu0 %v8471, 64
      %v8965 = vpop.permute.xlu0 %8964
      %8966 = vrot.lane.b32.xlu0 %v8472, 64
      %v8967 = vpop.permute.xlu0 %8966
      %8968 = vrot.lane.b32.xlu0 %v8473, 64
      %v8969 = vpop.permute.xlu0 %8968
      %v8986 = vsel %vm7614, %v8329, %v8491
      %v8987 = vsel %vm7614, %v8330, %v8493
      %v8988 = vsel %vm7614, %v8331, %v8495
      %v8989 = vsel %vm7614, %v8332, %v8497
      %v8990 = vsel %vm7614, %v8333, %v8499
      %v8991 = vsel %vm7614, %v8334, %v8501
      %v8992 = vsel %vm7614, %v8335, %v8503
      %v8993 = vsel %vm7614, %v8336, %v8505
      %v8994 = vsel %vm7614, %v8337, %v8507
      %v8995 = vsel %vm7614, %v8338, %v8509
      %v8996 = vsel %vm7614, %v8339, %v8511
      %v8997 = vsel %vm7614, %v8340, %v8513
      %v8998 = vsel %vm7614, %v8341, %v8515
      %v8999 = vsel %vm7614, %v8342, %v8517
      %v9000 = vsel %vm7614, %v8343, %v8519
      %v9001 = vsel %vm7614, %v8344, %v8521
      %vm9002 = vcmask 130048
      %v9003 = vsel %vm9002, %v8986, %v8555
      %v9004 = vsel %vm9002, %v8987, %v8557
      %v9005 = vsel %vm9002, %v8988, %v8559
      %v9006 = vsel %vm9002, %v8989, %v8561
      %v9007 = vsel %vm9002, %v8990, %v8563
      %v9008 = vsel %vm9002, %v8991, %v8565
      %v9009 = vsel %vm9002, %v8992, %v8567
      %v9010 = vsel %vm9002, %v8993, %v8569
      %v9011 = vsel %vm9002, %v8994, %v8571
      %v9012 = vsel %vm9002, %v8995, %v8573
      %v9013 = vsel %vm9002, %v8996, %v8575
      %v9014 = vsel %vm9002, %v8997, %v8577
      %v9015 = vsel %vm9002, %v8998, %v8579
      %v9016 = vsel %vm9002, %v8999, %v8581
      %v9017 = vsel %vm9002, %v9000, %v8583
      %v9018 = vsel %vm9002, %v9001, %v8585
      %v9019 = vsel %vm3691, %v9003, %v8619
      %v9020 = vsel %vm3691, %v9004, %v8621
      %v9021 = vsel %vm3691, %v9005, %v8623
      %v9022 = vsel %vm3691, %v9006, %v8625
      %v9023 = vsel %vm3691, %v9007, %v8627
      %v9024 = vsel %vm3691, %v9008, %v8629
      %v9025 = vsel %vm3691, %v9009, %v8631
      %v9026 = vsel %vm3691, %v9010, %v8633
      %v9027 = vsel %vm3691, %v9011, %v8635
      %v9028 = vsel %vm3691, %v9012, %v8637
      %v9029 = vsel %vm3691, %v9013, %v8639
      %v9030 = vsel %vm3691, %v9014, %v8641
      %v9031 = vsel %vm3691, %v9015, %v8643
      %v9032 = vsel %vm3691, %v9016, %v8645
      %v9033 = vsel %vm3691, %v9017, %v8647
      %v9034 = vsel %vm3691, %v9018, %v8649
      %vm9035 = vcmask 261120
      %v9036 = vsel %vm9035, %v9019, %v8683
      %v9037 = vsel %vm9035, %v9020, %v8685
      %v9038 = vsel %vm9035, %v9021, %v8687
      %v9039 = vsel %vm9035, %v9022, %v8689
      %v9040 = vsel %vm9035, %v9023, %v8691
      %v9041 = vsel %vm9035, %v9024, %v8693
      %v9042 = vsel %vm9035, %v9025, %v8695
      %v9043 = vsel %vm9035, %v9026, %v8697
      %v9044 = vsel %vm9035, %v9027, %v8699
      %v9045 = vsel %vm9035, %v9028, %v8701
      %v9046 = vsel %vm9035, %v9029, %v8703
      %v9047 = vsel %vm9035, %v9030, %v8705
      %v9048 = vsel %vm9035, %v9031, %v8707
      %v9049 = vsel %vm9035, %v9032, %v8709
      %v9050 = vsel %vm9035, %v9033, %v8711
      %v9051 = vsel %vm9035, %v9034, %v8713
      %vm9052 = vcmask 326656
      %v9053 = vsel %vm9052, %v9036, %v8747
      %v9054 = vsel %vm9052, %v9037, %v8749
      %v9055 = vsel %vm9052, %v9038, %v8751
      %v9056 = vsel %vm9052, %v9039, %v8753
      %v9057 = vsel %vm9052, %v9040, %v8755
      %v9058 = vsel %vm9052, %v9041, %v8757
      %v9059 = vsel %vm9052, %v9042, %v8759
      %v9060 = vsel %vm9052, %v9043, %v8761
      %v9061 = vsel %vm9052, %v9044, %v8763
      %v9062 = vsel %vm9052, %v9045, %v8765
      %v9063 = vsel %vm9052, %v9046, %v8767
      %v9064 = vsel %vm9052, %v9047, %v8769
      %v9065 = vsel %vm9052, %v9048, %v8771
      %v9066 = vsel %vm9052, %v9049, %v8773
      %v9067 = vsel %vm9052, %v9050, %v8775
      %v9068 = vsel %vm9052, %v9051, %v8777
      %vm9069 = vcmask 392192
      %v9070 = vsel %vm9069, %v9053, %v8811
      %v9071 = vsel %vm9069, %v9054, %v8813
      %v9072 = vsel %vm9069, %v9055, %v8815
      %v9073 = vsel %vm9069, %v9056, %v8817
      %v9074 = vsel %vm9069, %v9057, %v8819
      %v9075 = vsel %vm9069, %v9058, %v8821
      %v9076 = vsel %vm9069, %v9059, %v8823
      %v9077 = vsel %vm9069, %v9060, %v8825
      %v9078 = vsel %vm9069, %v9061, %v8827
      %v9079 = vsel %vm9069, %v9062, %v8829
      %v9080 = vsel %vm9069, %v9063, %v8831
      %v9081 = vsel %vm9069, %v9064, %v8833
      %v9082 = vsel %vm9069, %v9065, %v8835
      %v9083 = vsel %vm9069, %v9066, %v8837
      %v9084 = vsel %vm9069, %v9067, %v8839
      %v9085 = vsel %vm9069, %v9068, %v8841
      %vm9086 = vcmask 457728
      %v9087 = vsel %vm9086, %v9070, %v8875
      %v9088 = vsel %vm9086, %v9071, %v8877
      %v9089 = vsel %vm9086, %v9072, %v8879
      %v9090 = vsel %vm9086, %v9073, %v8881
      %v9091 = vsel %vm9086, %v9074, %v8883
      %v9092 = vsel %vm9086, %v9075, %v8885
      %v9093 = vsel %vm9086, %v9076, %v8887
      %v9094 = vsel %vm9086, %v9077, %v8889
      %v9095 = vsel %vm9086, %v9078, %v8891
      %v9096 = vsel %vm9086, %v9079, %v8893
      %v9097 = vsel %vm9086, %v9080, %v8895
      %v9098 = vsel %vm9086, %v9081, %v8897
      %v9099 = vsel %vm9086, %v9082, %v8899
      %v9100 = vsel %vm9086, %v9083, %v8901
      %v9101 = vsel %vm9086, %v9084, %v8903
      %v9102 = vsel %vm9086, %v9085, %v8905
      %vm9103 = vcmask 523264
      %v9104 = vsel %vm9103, %v9087, %v8939
      %v9105 = vsel %vm9103, %v9088, %v8941
      %v9106 = vsel %vm9103, %v9089, %v8943
      %v9107 = vsel %vm9103, %v9090, %v8945
      %v9108 = vsel %vm9103, %v9091, %v8947
      %v9109 = vsel %vm9103, %v9092, %v8949
      %v9110 = vsel %vm9103, %v9093, %v8951
      %v9111 = vsel %vm9103, %v9094, %v8953
      %v9112 = vsel %vm9103, %v9095, %v8955
      %v9113 = vsel %vm9103, %v9096, %v8957
      %v9114 = vsel %vm9103, %v9097, %v8959
      %v9115 = vsel %vm9103, %v9098, %v8961
      %v9116 = vsel %vm9103, %v9099, %v8963
      %v9117 = vsel %vm9103, %v9100, %v8965
      %v9118 = vsel %vm9103, %v9101, %v8967
      %v9119 = vsel %vm9103, %v9102, %v8969
      %v9120 = vld [vmem:[%s3] sm:$0xff]
      %v9121 = vld [vmem:[%s3 + $0x8] sm:$0xff]
      %v9122 = vld [vmem:[%s3 + $0x10] sm:$0xff]
      %v9123 = vld [vmem:[%s3 + $0x18] sm:$0xff]
      %v9124 = vld [vmem:[%s3 + $0x20] sm:$0xff]
      %v9125 = vld [vmem:[%s3 + $0x28] sm:$0xff]
      %v9126 = vld [vmem:[%s3 + $0x30] sm:$0xff]
      %v9127 = vld [vmem:[%s3 + $0x38] sm:$0xff]
      %v9128 = vld [vmem:[%s3 + $0x40] sm:$0xff]
      %v9129 = vld [vmem:[%s4] sm:$0x1]
      %v9131 = vlaneseq
      %v9132 = vshrl.u32 %v9131, 7
      %v9133 = vsub.s32 0, %v9132
      %v9134 = vrot.slane %v9129, %v9133
      %vm9136 = vcmask 588800
      %v9138 = vsel %vm9136, %v9104, 0
      %v9141 = vsel %vm9136, %v9105, 0
      %v9144 = vsel %vm9136, %v9106, 0
      %v9147 = vsel %vm9136, %v9107, 0
      %v9150 = vsel %vm9136, %v9108, 0
      %v9153 = vsel %vm9136, %v9109, 0
      %v9156 = vsel %vm9136, %v9110, 0
      %v9159 = vsel %vm9136, %v9111, 0
      %v9162 = vsel %vm9136, %v9112, 0
      %v9165 = vsel %vm9136, %v9113, 0
      %v9168 = vsel %vm9136, %v9114, 0
      %v9171 = vsel %vm9136, %v9115, 0
      %v9174 = vsel %vm9136, %v9116, 0
      %v9177 = vsel %vm9136, %v9117, 0
      %v9180 = vsel %vm9136, %v9118, 0
      %v9183 = vsel %vm9136, %v9119, 0
      %9185 = vmatprep.subr.mxu0 0.0
      %9186 = vmatpush1.msra.mxu0 %v9120
      %9187 = vmatprep.subr.mxu0 0.0
      %9188 = vmatpush1.msra.mxu0 %v9121
      %9189 = vmatprep.subr.mxu0 0.0
      %9190 = vmatpush1.msra.mxu0 %v9122
      %9191 = vmatprep.subr.mxu0 0.0
      %9192 = vmatpush1.msra.mxu0 %v9123
      %9193 = vmatprep.subr.mxu0 0.0
      %9194 = vmatpush1.msra.mxu0 %v9124
      %9195 = vmatprep.subr.mxu0 0.0
      %9196 = vmatpush1.msra.mxu0 %v9125
      %9197 = vmatprep.subr.mxu0 0.0
      %9198 = vmatpush1.msra.mxu0 %v9126
      %9199 = vmatprep.subr.mxu0 0.0
      %9200 = vmatpush1.msra.mxu0 %v9127
      %9201 = vmatprep.subr.mxu0 0.0
      %9202 = vmatpush1.msra.mxu0 %v9128
      %9203 = vmatprep.subr.mxu0 0.0
      %9204 = vmatpush1.msra.mxu0 0.0
      %9205 = vmatprep.subr.mxu0 0.0
      %9206 = vmatpush1.msra.mxu0 0.0
      %9207 = vmatprep.subr.mxu0 0.0
      %9208 = vmatpush1.msra.mxu0 0.0
      %9209 = vmatprep.subr.mxu0 0.0
      %9210 = vmatpush1.msra.mxu0 0.0
      %9211 = vmatprep.subr.mxu0 0.0
      %9212 = vmatpush1.msra.mxu0 0.0
      %9213 = vmatprep.subr.mxu0 0.0
      %9214 = vmatpush1.msra.mxu0 0.0
      %9215 = vmatprep.subr.mxu0 0.0
      %9216 = vmatpush1.msra.mxu0 0.0
      %9217 = vmatprep.subr.mxu0 0.0
      %9218 = vmatpush1.msra.mxu0 0.0
      %9219 = vmatprep.subr.mxu0 0.0
      %9220 = vmatpush1.msra.mxu0 0.0
      %9221 = vmatprep.subr.mxu0 0.0
      %9222 = vmatpush1.msra.mxu0 0.0
      %9223 = vmatprep.subr.mxu0 0.0
      %9224 = vmatpush1.msra.mxu0 0.0
      %9225 = vmatprep.subr.mxu0 0.0
      %9226 = vmatpush1.msra.mxu0 0.0
      %9227 = vmatprep.subr.mxu0 0.0
      %9228 = vmatpush1.msra.mxu0 0.0
      %9229 = vmatprep.subr.mxu0 0.0
      %9230 = vmatpush1.msra.mxu0 0.0
      %9231 = vmatprep.subr.mxu0 0.0
      %9232 = vmatpush1.msra.mxu0 0.0
      %9233 = vmatprep.subr.mxu0 0.0
      %9234 = vmatpush1.msra.mxu0 0.0
      %9235 = vmatprep.subr.mxu0 0.0
      %9236 = vmatpush1.msra.mxu0 0.0
      %9237 = vmatprep.subr.mxu0 0.0
      %9238 = vmatpush1.msra.mxu0 0.0
      %9239 = vmatprep.subr.mxu0 0.0
      %9240 = vmatpush1.msra.mxu0 0.0
      %9241 = vmatprep.subr.mxu0 0.0
      %9242 = vmatpush1.msra.mxu0 0.0
      %9243 = vmatprep.subr.mxu0 0.0
      %9244 = vmatpush1.msra.mxu0 0.0
      %9245 = vmatprep.subr.mxu0 0.0
      %9246 = vmatpush1.msra.mxu0 0.0
      %9247 = vmatprep.subr.mxu0 0.0
      %9248 = vmatpush1.msra.mxu0 0.0
      %9249 = vmatprep.mubr.f32.mxu0 0.0
      %9250 = vmatmul.mubr.f32.gmra.mrb[0].mxu0 %v9138
      %v9251 = vpop.f32.mrb[0].mxu0
      %v9252 = vadd.f32 %v9134, %v9251
      %v9253 = vpop.f32.mrb[0].mxu0
      %9254 = vmatprep.mubr.f32.mxu0 0.0
      %9255 = vmatmul.mubr.f32.gmra.mrb[0].mxu0 %v9141
      %v9256 = vpop.f32.mrb[0].mxu0
      %v9257 = vadd.f32 %v9134, %v9256
      %v9258 = vpop.f32.mrb[0].mxu0
      %9259 = vmatprep.mubr.f32.mxu0 0.0
      %9260 = vmatmul.mubr.f32.gmra.mrb[0].mxu0 %v9144
      %v9261 = vpop.f32.mrb[0].mxu0
      %v9262 = vadd.f32 %v9134, %v9261
      %v9263 = vpop.f32.mrb[0].mxu0
      %9264 = vmatprep.mubr.f32.mxu0 0.0
      %9265 = vmatmul.mubr.f32.gmra.mrb[0].mxu0 %v9147
      %v9266 = vpop.f32.mrb[0].mxu0
      %v9267 = vadd.f32 %v9134, %v9266
      %v9268 = vpop.f32.mrb[0].mxu0
      %9269 = vmatprep.mubr.f32.mxu0 0.0
      %9270 = vmatmul.mubr.f32.gmra.mrb[0].mxu0 %v9150
      %v9271 = vpop.f32.mrb[0].mxu0
      %v9272 = vadd.f32 %v9134, %v9271
      %v9273 = vpop.f32.mrb[0].mxu0
      %9274 = vmatprep.mubr.f32.mxu0 0.0
      %9275 = vmatmul.mubr.f32.gmra.mrb[0].mxu0 %v9153
      %v9276 = vpop.f32.mrb[0].mxu0
      %v9277 = vadd.f32 %v9134, %v9276
      %v9278 = vpop.f32.mrb[0].mxu0
      %9279 = vmatprep.mubr.f32.mxu0 0.0
      %9280 = vmatmul.mubr.f32.gmra.mrb[0].mxu0 %v9156
      %v9281 = vpop.f32.mrb[0].mxu0
      %v9282 = vadd.f32 %v9134, %v9281
      %v9283 = vpop.f32.mrb[0].mxu0
      %9284 = vmatprep.mubr.f32.mxu0 0.0
      %9285 = vmatmul.mubr.f32.gmra.mrb[0].mxu0 %v9159
      %v9286 = vpop.f32.mrb[0].mxu0
      %v9287 = vadd.f32 %v9134, %v9286
      %v9288 = vpop.f32.mrb[0].mxu0
      %9289 = vmatprep.mubr.f32.mxu0 0.0
      %9290 = vmatmul.mubr.f32.gmra.mrb[0].mxu0 %v9162
      %v9291 = vpop.f32.mrb[0].mxu0
      %v9292 = vadd.f32 %v9134, %v9291
      %v9293 = vpop.f32.mrb[0].mxu0
      %9294 = vmatprep.mubr.f32.mxu0 0.0
      %9295 = vmatmul.mubr.f32.gmra.mrb[0].mxu0 %v9165
      %v9296 = vpop.f32.mrb[0].mxu0
      %v9297 = vadd.f32 %v9134, %v9296
      %v9298 = vpop.f32.mrb[0].mxu0
      %9299 = vmatprep.mubr.f32.mxu0 0.0
      %9300 = vmatmul.mubr.f32.gmra.mrb[0].mxu0 %v9168
      %v9301 = vpop.f32.mrb[0].mxu0
      %v9302 = vadd.f32 %v9134, %v9301
      %v9303 = vpop.f32.mrb[0].mxu0
      %9304 = vmatprep.mubr.f32.mxu0 0.0
      %9305 = vmatmul.mubr.f32.gmra.mrb[0].mxu0 %v9171
      %v9306 = vpop.f32.mrb[0].mxu0
      %v9307 = vadd.f32 %v9134, %v9306
      %v9308 = vpop.f32.mrb[0].mxu0
      %9309 = vmatprep.mubr.f32.mxu0 0.0
      %9310 = vmatmul.mubr.f32.gmra.mrb[0].mxu0 %v9174
      %v9311 = vpop.f32.mrb[0].mxu0
      %v9312 = vadd.f32 %v9134, %v9311
      %v9313 = vpop.f32.mrb[0].mxu0
      %9314 = vmatprep.mubr.f32.mxu0 0.0
      %9315 = vmatmul.mubr.f32.gmra.mrb[0].mxu0 %v9177
      %v9316 = vpop.f32.mrb[0].mxu0
      %v9317 = vadd.f32 %v9134, %v9316
      %v9318 = vpop.f32.mrb[0].mxu0
      %9319 = vmatprep.mubr.f32.mxu0 0.0
      %9320 = vmatmul.mubr.f32.gmra.mrb[0].mxu0 %v9180
      %v9321 = vpop.f32.mrb[0].mxu0
      %v9322 = vadd.f32 %v9134, %v9321
      %v9323 = vpop.f32.mrb[0].mxu0
      %9324 = vmatprep.mubr.f32.mxu0 0.0
      %9325 = vmatmul.mubr.f32.gmra.mrb[0].mxu0 %v9183
      %v9326 = vpop.f32.mrb[0].mxu0
      %v9327 = vadd.f32 %v9134, %v9326
      %v9328 = vpop.f32.mrb[0].mxu0
      %9329 = vdwg.mxu0
      %v9330 = vmax.f32 %v9252, 0.0
      %v9331 = vmax.f32 %v9257, 0.0
      %v9332 = vmax.f32 %v9262, 0.0
      %v9333 = vmax.f32 %v9267, 0.0
      %v9334 = vmax.f32 %v9272, 0.0
      %v9335 = vmax.f32 %v9277, 0.0
      %v9336 = vmax.f32 %v9282, 0.0
      %v9337 = vmax.f32 %v9287, 0.0
      %v9338 = vmax.f32 %v9292, 0.0
      %v9339 = vmax.f32 %v9297, 0.0
      %v9340 = vmax.f32 %v9302, 0.0
      %v9341 = vmax.f32 %v9307, 0.0
      %v9342 = vmax.f32 %v9312, 0.0
      %v9343 = vmax.f32 %v9317, 0.0
      %v9344 = vmax.f32 %v9322, 0.0
      %v9345 = vmax.f32 %v9327, 0.0
      %v9362 = vcombine.high %v9330, %v9330
      %v9364 = vunpack.c.l.s4 1983009808
      %v9365 = vunpack.c.0.s8 %v9364
      %v9366 = vlaneseq
      %v9367 = vshrl.u32 %v9366, 7
      %v9368 = vsub.s32 %v9365, %v9367
      %v9369 = vrot.slane %v9330, %v9368
      %v9371 = vunpack.c.l.s4 1983009808
      %v9372 = vunpack.c.0.s8 %v9371
      %v9373 = vlaneseq
      %v9374 = vshrl.u32 %v9373, 7
      %v9375 = vsub.s32 %v9372, %v9374
      %v9376 = vrot.slane %v9362, %v9375
      %v9377 = vcombine.high %v9369, %v9369
      %v9378 = vcombine.high %v9376, %v9376
      %v9379 = vcombine.high %v9331, %v9331
      %v9381 = vunpack.c.l.s4 1983009808
      %v9382 = vunpack.c.0.s8 %v9381
      %v9383 = vlaneseq
      %v9384 = vshrl.u32 %v9383, 7
      %v9385 = vsub.s32 %v9382, %v9384
      %v9386 = vrot.slane %v9331, %v9385
      %v9388 = vunpack.c.l.s4 1983009808
      %v9389 = vunpack.c.0.s8 %v9388
      %v9390 = vlaneseq
      %v9391 = vshrl.u32 %v9390, 7
      %v9392 = vsub.s32 %v9389, %v9391
      %v9393 = vrot.slane %v9379, %v9392
      %v9394 = vcombine.high %v9386, %v9386
      %v9395 = vcombine.high %v9393, %v9393
      %v9396 = vcombine.high %v9332, %v9332
      %v9398 = vunpack.c.l.s4 1983009808
      %v9399 = vunpack.c.0.s8 %v9398
      %v9400 = vlaneseq
      %v9401 = vshrl.u32 %v9400, 7
      %v9402 = vsub.s32 %v9399, %v9401
      %v9403 = vrot.slane %v9332, %v9402
      %v9405 = vunpack.c.l.s4 1983009808
      %v9406 = vunpack.c.0.s8 %v9405
      %v9407 = vlaneseq
      %v9408 = vshrl.u32 %v9407, 7
      %v9409 = vsub.s32 %v9406, %v9408
      %v9410 = vrot.slane %v9396, %v9409
      %v9411 = vcombine.high %v9403, %v9403
      %v9412 = vcombine.high %v9410, %v9410
      %v9413 = vcombine.high %v9333, %v9333
      %v9415 = vunpack.c.l.s4 1983009808
      %v9416 = vunpack.c.0.s8 %v9415
      %v9417 = vlaneseq
      %v9418 = vshrl.u32 %v9417, 7
      %v9419 = vsub.s32 %v9416, %v9418
      %v9420 = vrot.slane %v9333, %v9419
      %v9422 = vunpack.c.l.s4 1983009808
      %v9423 = vunpack.c.0.s8 %v9422
      %v9424 = vlaneseq
      %v9425 = vshrl.u32 %v9424, 7
      %v9426 = vsub.s32 %v9423, %v9425
      %v9427 = vrot.slane %v9413, %v9426
      %v9428 = vcombine.high %v9420, %v9420
      %v9429 = vcombine.high %v9427, %v9427
      %v9430 = vcombine.high %v9334, %v9334
      %v9432 = vunpack.c.l.s4 1983009808
      %v9433 = vunpack.c.0.s8 %v9432
      %v9434 = vlaneseq
      %v9435 = vshrl.u32 %v9434, 7
      %v9436 = vsub.s32 %v9433, %v9435
      %v9437 = vrot.slane %v9334, %v9436
      %v9439 = vunpack.c.l.s4 1983009808
      %v9440 = vunpack.c.0.s8 %v9439
      %v9441 = vlaneseq
      %v9442 = vshrl.u32 %v9441, 7
      %v9443 = vsub.s32 %v9440, %v9442
      %v9444 = vrot.slane %v9430, %v9443
      %v9445 = vcombine.high %v9437, %v9437
      %v9446 = vcombine.high %v9444, %v9444
      %v9447 = vcombine.high %v9335, %v9335
      %v9449 = vunpack.c.l.s4 1983009808
      %v9450 = vunpack.c.0.s8 %v9449
      %v9451 = vlaneseq
      %v9452 = vshrl.u32 %v9451, 7
      %v9453 = vsub.s32 %v9450, %v9452
      %v9454 = vrot.slane %v9335, %v9453
      %v9456 = vunpack.c.l.s4 1983009808
      %v9457 = vunpack.c.0.s8 %v9456
      %v9458 = vlaneseq
      %v9459 = vshrl.u32 %v9458, 7
      %v9460 = vsub.s32 %v9457, %v9459
      %v9461 = vrot.slane %v9447, %v9460
      %v9462 = vcombine.high %v9454, %v9454
      %v9463 = vcombine.high %v9461, %v9461
      %v9464 = vcombine.high %v9336, %v9336
      %v9466 = vunpack.c.l.s4 1983009808
      %v9467 = vunpack.c.0.s8 %v9466
      %v9468 = vlaneseq
      %v9469 = vshrl.u32 %v9468, 7
      %v9470 = vsub.s32 %v9467, %v9469
      %v9471 = vrot.slane %v9336, %v9470
      %v9473 = vunpack.c.l.s4 1983009808
      %v9474 = vunpack.c.0.s8 %v9473
      %v9475 = vlaneseq
      %v9476 = vshrl.u32 %v9475, 7
      %v9477 = vsub.s32 %v9474, %v9476
      %v9478 = vrot.slane %v9464, %v9477
      %v9479 = vcombine.high %v9471, %v9471
      %v9480 = vcombine.high %v9478, %v9478
      %v9481 = vcombine.high %v9337, %v9337
      %v9483 = vunpack.c.l.s4 1983009808
      %v9484 = vunpack.c.0.s8 %v9483
      %v9485 = vlaneseq
      %v9486 = vshrl.u32 %v9485, 7
      %v9487 = vsub.s32 %v9484, %v9486
      %v9488 = vrot.slane %v9337, %v9487
      %v9490 = vunpack.c.l.s4 1983009808
      %v9491 = vunpack.c.0.s8 %v9490
      %v9492 = vlaneseq
      %v9493 = vshrl.u32 %v9492, 7
      %v9494 = vsub.s32 %v9491, %v9493
      %v9495 = vrot.slane %v9481, %v9494
      %v9496 = vcombine.high %v9488, %v9488
      %v9497 = vcombine.high %v9495, %v9495
      %v9498 = vcombine.high %v9338, %v9338
      %v9500 = vunpack.c.l.s4 1983009808
      %v9501 = vunpack.c.0.s8 %v9500
      %v9502 = vlaneseq
      %v9503 = vshrl.u32 %v9502, 7
      %v9504 = vsub.s32 %v9501, %v9503
      %v9505 = vrot.slane %v9338, %v9504
      %v9507 = vunpack.c.l.s4 1983009808
      %v9508 = vunpack.c.0.s8 %v9507
      %v9509 = vlaneseq
      %v9510 = vshrl.u32 %v9509, 7
      %v9511 = vsub.s32 %v9508, %v9510
      %v9512 = vrot.slane %v9498, %v9511
      %v9513 = vcombine.high %v9505, %v9505
      %v9514 = vcombine.high %v9512, %v9512
      %v9515 = vcombine.high %v9339, %v9339
      %v9517 = vunpack.c.l.s4 1983009808
      %v9518 = vunpack.c.0.s8 %v9517
      %v9519 = vlaneseq
      %v9520 = vshrl.u32 %v9519, 7
      %v9521 = vsub.s32 %v9518, %v9520
      %v9522 = vrot.slane %v9339, %v9521
      %v9524 = vunpack.c.l.s4 1983009808
      %v9525 = vunpack.c.0.s8 %v9524
      %v9526 = vlaneseq
      %v9527 = vshrl.u32 %v9526, 7
      %v9528 = vsub.s32 %v9525, %v9527
      %v9529 = vrot.slane %v9515, %v9528
      %v9530 = vcombine.high %v9522, %v9522
      %v9531 = vcombine.high %v9529, %v9529
      %v9532 = vcombine.high %v9340, %v9340
      %v9534 = vunpack.c.l.s4 1983009808
      %v9535 = vunpack.c.0.s8 %v9534
      %v9536 = vlaneseq
      %v9537 = vshrl.u32 %v9536, 7
      %v9538 = vsub.s32 %v9535, %v9537
      %v9539 = vrot.slane %v9340, %v9538
      %v9541 = vunpack.c.l.s4 1983009808
      %v9542 = vunpack.c.0.s8 %v9541
      %v9543 = vlaneseq
      %v9544 = vshrl.u32 %v9543, 7
      %v9545 = vsub.s32 %v9542, %v9544
      %v9546 = vrot.slane %v9532, %v9545
      %v9547 = vcombine.high %v9539, %v9539
      %v9548 = vcombine.high %v9546, %v9546
      %v9549 = vcombine.high %v9341, %v9341
      %v9551 = vunpack.c.l.s4 1983009808
      %v9552 = vunpack.c.0.s8 %v9551
      %v9553 = vlaneseq
      %v9554 = vshrl.u32 %v9553, 7
      %v9555 = vsub.s32 %v9552, %v9554
      %v9556 = vrot.slane %v9341, %v9555
      %v9558 = vunpack.c.l.s4 1983009808
      %v9559 = vunpack.c.0.s8 %v9558
      %v9560 = vlaneseq
      %v9561 = vshrl.u32 %v9560, 7
      %v9562 = vsub.s32 %v9559, %v9561
      %v9563 = vrot.slane %v9549, %v9562
      %v9564 = vcombine.high %v9556, %v9556
      %v9565 = vcombine.high %v9563, %v9563
      %v9566 = vcombine.high %v9342, %v9342
      %v9568 = vunpack.c.l.s4 1983009808
      %v9569 = vunpack.c.0.s8 %v9568
      %v9570 = vlaneseq
      %v9571 = vshrl.u32 %v9570, 7
      %v9572 = vsub.s32 %v9569, %v9571
      %v9573 = vrot.slane %v9342, %v9572
      %v9575 = vunpack.c.l.s4 1983009808
      %v9576 = vunpack.c.0.s8 %v9575
      %v9577 = vlaneseq
      %v9578 = vshrl.u32 %v9577, 7
      %v9579 = vsub.s32 %v9576, %v9578
      %v9580 = vrot.slane %v9566, %v9579
      %v9581 = vcombine.high %v9573, %v9573
      %v9582 = vcombine.high %v9580, %v9580
      %v9583 = vcombine.high %v9343, %v9343
      %v9585 = vunpack.c.l.s4 1983009808
      %v9586 = vunpack.c.0.s8 %v9585
      %v9587 = vlaneseq
      %v9588 = vshrl.u32 %v9587, 7
      %v9589 = vsub.s32 %v9586, %v9588
      %v9590 = vrot.slane %v9343, %v9589
      %v9592 = vunpack.c.l.s4 1983009808
      %v9593 = vunpack.c.0.s8 %v9592
      %v9594 = vlaneseq
      %v9595 = vshrl.u32 %v9594, 7
      %v9596 = vsub.s32 %v9593, %v9595
      %v9597 = vrot.slane %v9583, %v9596
      %v9598 = vcombine.high %v9590, %v9590
      %v9599 = vcombine.high %v9597, %v9597
      %v9600 = vcombine.high %v9344, %v9344
      %v9602 = vunpack.c.l.s4 1983009808
      %v9603 = vunpack.c.0.s8 %v9602
      %v9604 = vlaneseq
      %v9605 = vshrl.u32 %v9604, 7
      %v9606 = vsub.s32 %v9603, %v9605
      %v9607 = vrot.slane %v9344, %v9606
      %v9609 = vunpack.c.l.s4 1983009808
      %v9610 = vunpack.c.0.s8 %v9609
      %v9611 = vlaneseq
      %v9612 = vshrl.u32 %v9611, 7
      %v9613 = vsub.s32 %v9610, %v9612
      %v9614 = vrot.slane %v9600, %v9613
      %v9615 = vcombine.high %v9607, %v9607
      %v9616 = vcombine.high %v9614, %v9614
      %v9617 = vcombine.high %v9345, %v9345
      %v9619 = vunpack.c.l.s4 1983009808
      %v9620 = vunpack.c.0.s8 %v9619
      %v9621 = vlaneseq
      %v9622 = vshrl.u32 %v9621, 7
      %v9623 = vsub.s32 %v9620, %v9622
      %v9624 = vrot.slane %v9345, %v9623
      %v9626 = vunpack.c.l.s4 1983009808
      %v9627 = vunpack.c.0.s8 %v9626
      %v9628 = vlaneseq
      %v9629 = vshrl.u32 %v9628, 7
      %v9630 = vsub.s32 %v9627, %v9629
      %v9631 = vrot.slane %v9617, %v9630
      %v9632 = vcombine.high %v9624, %v9624
      %v9633 = vcombine.high %v9631, %v9631
      %vm9698 = vcmask 123904
      %v9699 = vsel %vm9698, %v9369, -inf
      %v9700 = vrot.slane %v9699, 4
      %v9701 = vmax.f32 %v9699, %v9700
      %v9702 = vrot.slane %v9701, 2
      %v9703 = vmax.f32 %v9701, %v9702
      %v9704 = vrot.slane %v9703, 1
      %v9705 = vmax.f32 %v9703, %v9704
      %v9706 = vsel %vm9698, %v9377, -inf
      %v9707 = vrot.slane %v9706, 4
      %v9708 = vmax.f32 %v9706, %v9707
      %v9709 = vrot.slane %v9708, 2
      %v9710 = vmax.f32 %v9708, %v9709
      %v9711 = vrot.slane %v9710, 1
      %v9712 = vmax.f32 %v9710, %v9711
      %v9713 = vsel %vm9698, %v9376, -inf
      %v9714 = vrot.slane %v9713, 4
      %v9715 = vmax.f32 %v9713, %v9714
      %v9716 = vrot.slane %v9715, 2
      %v9717 = vmax.f32 %v9715, %v9716
      %v9718 = vrot.slane %v9717, 1
      %v9719 = vmax.f32 %v9717, %v9718
      %v9720 = vsel %vm9698, %v9378, -inf
      %v9721 = vrot.slane %v9720, 4
      %v9722 = vmax.f32 %v9720, %v9721
      %v9723 = vrot.slane %v9722, 2
      %v9724 = vmax.f32 %v9722, %v9723
      %v9725 = vrot.slane %v9724, 1
      %v9726 = vmax.f32 %v9724, %v9725
      %v9727 = vsel %vm9698, %v9386, -inf
      %v9728 = vrot.slane %v9727, 4
      %v9729 = vmax.f32 %v9727, %v9728
      %v9730 = vrot.slane %v9729, 2
      %v9731 = vmax.f32 %v9729, %v9730
      %v9732 = vrot.slane %v9731, 1
      %v9733 = vmax.f32 %v9731, %v9732
      %v9734 = vsel %vm9698, %v9394, -inf
      %v9735 = vrot.slane %v9734, 4
      %v9736 = vmax.f32 %v9734, %v9735
      %v9737 = vrot.slane %v9736, 2
      %v9738 = vmax.f32 %v9736, %v9737
      %v9739 = vrot.slane %v9738, 1
      %v9740 = vmax.f32 %v9738, %v9739
      %v9741 = vsel %vm9698, %v9393, -inf
      %v9742 = vrot.slane %v9741, 4
      %v9743 = vmax.f32 %v9741, %v9742
      %v9744 = vrot.slane %v9743, 2
      %v9745 = vmax.f32 %v9743, %v9744
      %v9746 = vrot.slane %v9745, 1
      %v9747 = vmax.f32 %v9745, %v9746
      %v9748 = vsel %vm9698, %v9395, -inf
      %v9749 = vrot.slane %v9748, 4
      %v9750 = vmax.f32 %v9748, %v9749
      %v9751 = vrot.slane %v9750, 2
      %v9752 = vmax.f32 %v9750, %v9751
      %v9753 = vrot.slane %v9752, 1
      %v9754 = vmax.f32 %v9752, %v9753
      %v9755 = vsel %vm9698, %v9403, -inf
      %v9756 = vrot.slane %v9755, 4
      %v9757 = vmax.f32 %v9755, %v9756
      %v9758 = vrot.slane %v9757, 2
      %v9759 = vmax.f32 %v9757, %v9758
      %v9760 = vrot.slane %v9759, 1
      %v9761 = vmax.f32 %v9759, %v9760
      %v9762 = vsel %vm9698, %v9411, -inf
      %v9763 = vrot.slane %v9762, 4
      %v9764 = vmax.f32 %v9762, %v9763
      %v9765 = vrot.slane %v9764, 2
      %v9766 = vmax.f32 %v9764, %v9765
      %v9767 = vrot.slane %v9766, 1
      %v9768 = vmax.f32 %v9766, %v9767
      %v9769 = vsel %vm9698, %v9410, -inf
      %v9770 = vrot.slane %v9769, 4
      %v9771 = vmax.f32 %v9769, %v9770
      %v9772 = vrot.slane %v9771, 2
      %v9773 = vmax.f32 %v9771, %v9772
      %v9774 = vrot.slane %v9773, 1
      %v9775 = vmax.f32 %v9773, %v9774
      %v9776 = vsel %vm9698, %v9412, -inf
      %v9777 = vrot.slane %v9776, 4
      %v9778 = vmax.f32 %v9776, %v9777
      %v9779 = vrot.slane %v9778, 2
      %v9780 = vmax.f32 %v9778, %v9779
      %v9781 = vrot.slane %v9780, 1
      %v9782 = vmax.f32 %v9780, %v9781
      %v9783 = vsel %vm9698, %v9420, -inf
      %v9784 = vrot.slane %v9783, 4
      %v9785 = vmax.f32 %v9783, %v9784
      %v9786 = vrot.slane %v9785, 2
      %v9787 = vmax.f32 %v9785, %v9786
      %v9788 = vrot.slane %v9787, 1
      %v9789 = vmax.f32 %v9787, %v9788
      %v9790 = vsel %vm9698, %v9428, -inf
      %v9791 = vrot.slane %v9790, 4
      %v9792 = vmax.f32 %v9790, %v9791
      %v9793 = vrot.slane %v9792, 2
      %v9794 = vmax.f32 %v9792, %v9793
      %v9795 = vrot.slane %v9794, 1
      %v9796 = vmax.f32 %v9794, %v9795
      %v9797 = vsel %vm9698, %v9427, -inf
      %v9798 = vrot.slane %v9797, 4
      %v9799 = vmax.f32 %v9797, %v9798
      %v9800 = vrot.slane %v9799, 2
      %v9801 = vmax.f32 %v9799, %v9800
      %v9802 = vrot.slane %v9801, 1
      %v9803 = vmax.f32 %v9801, %v9802
      %v9804 = vsel %vm9698, %v9429, -inf
      %v9805 = vrot.slane %v9804, 4
      %v9806 = vmax.f32 %v9804, %v9805
      %v9807 = vrot.slane %v9806, 2
      %v9808 = vmax.f32 %v9806, %v9807
      %v9809 = vrot.slane %v9808, 1
      %v9810 = vmax.f32 %v9808, %v9809
      %v9811 = vsel %vm9698, %v9437, -inf
      %v9812 = vrot.slane %v9811, 4
      %v9813 = vmax.f32 %v9811, %v9812
      %v9814 = vrot.slane %v9813, 2
      %v9815 = vmax.f32 %v9813, %v9814
      %v9816 = vrot.slane %v9815, 1
      %v9817 = vmax.f32 %v9815, %v9816
      %v9818 = vsel %vm9698, %v9445, -inf
      %v9819 = vrot.slane %v9818, 4
      %v9820 = vmax.f32 %v9818, %v9819
      %v9821 = vrot.slane %v9820, 2
      %v9822 = vmax.f32 %v9820, %v9821
      %v9823 = vrot.slane %v9822, 1
      %v9824 = vmax.f32 %v9822, %v9823
      %v9825 = vsel %vm9698, %v9444, -inf
      %v9826 = vrot.slane %v9825, 4
      %v9827 = vmax.f32 %v9825, %v9826
      %v9828 = vrot.slane %v9827, 2
      %v9829 = vmax.f32 %v9827, %v9828
      %v9830 = vrot.slane %v9829, 1
      %v9831 = vmax.f32 %v9829, %v9830
      %v9832 = vsel %vm9698, %v9446, -inf
      %v9833 = vrot.slane %v9832, 4
      %v9834 = vmax.f32 %v9832, %v9833
      %v9835 = vrot.slane %v9834, 2
      %v9836 = vmax.f32 %v9834, %v9835
      %v9837 = vrot.slane %v9836, 1
      %v9838 = vmax.f32 %v9836, %v9837
      %v9839 = vsel %vm9698, %v9454, -inf
      %v9840 = vrot.slane %v9839, 4
      %v9841 = vmax.f32 %v9839, %v9840
      %v9842 = vrot.slane %v9841, 2
      %v9843 = vmax.f32 %v9841, %v9842
      %v9844 = vrot.slane %v9843, 1
      %v9845 = vmax.f32 %v9843, %v9844
      %v9846 = vsel %vm9698, %v9462, -inf
      %v9847 = vrot.slane %v9846, 4
      %v9848 = vmax.f32 %v9846, %v9847
      %v9849 = vrot.slane %v9848, 2
      %v9850 = vmax.f32 %v9848, %v9849
      %v9851 = vrot.slane %v9850, 1
      %v9852 = vmax.f32 %v9850, %v9851
      %v9853 = vsel %vm9698, %v9461, -inf
      %v9854 = vrot.slane %v9853, 4
      %v9855 = vmax.f32 %v9853, %v9854
      %v9856 = vrot.slane %v9855, 2
      %v9857 = vmax.f32 %v9855, %v9856
      %v9858 = vrot.slane %v9857, 1
      %v9859 = vmax.f32 %v9857, %v9858
      %v9860 = vsel %vm9698, %v9463, -inf
      %v9861 = vrot.slane %v9860, 4
      %v9862 = vmax.f32 %v9860, %v9861
      %v9863 = vrot.slane %v9862, 2
      %v9864 = vmax.f32 %v9862, %v9863
      %v9865 = vrot.slane %v9864, 1
      %v9866 = vmax.f32 %v9864, %v9865
      %v9867 = vsel %vm9698, %v9471, -inf
      %v9868 = vrot.slane %v9867, 4
      %v9869 = vmax.f32 %v9867, %v9868
      %v9870 = vrot.slane %v9869, 2
      %v9871 = vmax.f32 %v9869, %v9870
      %v9872 = vrot.slane %v9871, 1
      %v9873 = vmax.f32 %v9871, %v9872
      %v9874 = vsel %vm9698, %v9479, -inf
      %v9875 = vrot.slane %v9874, 4
      %v9876 = vmax.f32 %v9874, %v9875
      %v9877 = vrot.slane %v9876, 2
      %v9878 = vmax.f32 %v9876, %v9877
      %v9879 = vrot.slane %v9878, 1
      %v9880 = vmax.f32 %v9878, %v9879
      %v9881 = vsel %vm9698, %v9478, -inf
      %v9882 = vrot.slane %v9881, 4
      %v9883 = vmax.f32 %v9881, %v9882
      %v9884 = vrot.slane %v9883, 2
      %v9885 = vmax.f32 %v9883, %v9884
      %v9886 = vrot.slane %v9885, 1
      %v9887 = vmax.f32 %v9885, %v9886
      %v9888 = vsel %vm9698, %v9480, -inf
      %v9889 = vrot.slane %v9888, 4
      %v9890 = vmax.f32 %v9888, %v9889
      %v9891 = vrot.slane %v9890, 2
      %v9892 = vmax.f32 %v9890, %v9891
      %v9893 = vrot.slane %v9892, 1
      %v9894 = vmax.f32 %v9892, %v9893
      %v9895 = vsel %vm9698, %v9488, -inf
      %v9896 = vrot.slane %v9895, 4
      %v9897 = vmax.f32 %v9895, %v9896
      %v9898 = vrot.slane %v9897, 2
      %v9899 = vmax.f32 %v9897, %v9898
      %v9900 = vrot.slane %v9899, 1
      %v9901 = vmax.f32 %v9899, %v9900
      %v9902 = vsel %vm9698, %v9496, -inf
      %v9903 = vrot.slane %v9902, 4
      %v9904 = vmax.f32 %v9902, %v9903
      %v9905 = vrot.slane %v9904, 2
      %v9906 = vmax.f32 %v9904, %v9905
      %v9907 = vrot.slane %v9906, 1
      %v9908 = vmax.f32 %v9906, %v9907
      %v9909 = vsel %vm9698, %v9495, -inf
      %v9910 = vrot.slane %v9909, 4
      %v9911 = vmax.f32 %v9909, %v9910
      %v9912 = vrot.slane %v9911, 2
      %v9913 = vmax.f32 %v9911, %v9912
      %v9914 = vrot.slane %v9913, 1
      %v9915 = vmax.f32 %v9913, %v9914
      %v9916 = vsel %vm9698, %v9497, -inf
      %v9917 = vrot.slane %v9916, 4
      %v9918 = vmax.f32 %v9916, %v9917
      %v9919 = vrot.slane %v9918, 2
      %v9920 = vmax.f32 %v9918, %v9919
      %v9921 = vrot.slane %v9920, 1
      %v9922 = vmax.f32 %v9920, %v9921
      %v9923 = vsel %vm9698, %v9505, -inf
      %v9924 = vrot.slane %v9923, 4
      %v9925 = vmax.f32 %v9923, %v9924
      %v9926 = vrot.slane %v9925, 2
      %v9927 = vmax.f32 %v9925, %v9926
      %v9928 = vrot.slane %v9927, 1
      %v9929 = vmax.f32 %v9927, %v9928
      %v9930 = vsel %vm9698, %v9513, -inf
      %v9931 = vrot.slane %v9930, 4
      %v9932 = vmax.f32 %v9930, %v9931
      %v9933 = vrot.slane %v9932, 2
      %v9934 = vmax.f32 %v9932, %v9933
      %v9935 = vrot.slane %v9934, 1
      %v9936 = vmax.f32 %v9934, %v9935
      %v9937 = vsel %vm9698, %v9512, -inf
      %v9938 = vrot.slane %v9937, 4
      %v9939 = vmax.f32 %v9937, %v9938
      %v9940 = vrot.slane %v9939, 2
      %v9941 = vmax.f32 %v9939, %v9940
      %v9942 = vrot.slane %v9941, 1
      %v9943 = vmax.f32 %v9941, %v9942
      %v9944 = vsel %vm9698, %v9514, -inf
      %v9945 = vrot.slane %v9944, 4
      %v9946 = vmax.f32 %v9944, %v9945
      %v9947 = vrot.slane %v9946, 2
      %v9948 = vmax.f32 %v9946, %v9947
      %v9949 = vrot.slane %v9948, 1
      %v9950 = vmax.f32 %v9948, %v9949
      %v9951 = vsel %vm9698, %v9522, -inf
      %v9952 = vrot.slane %v9951, 4
      %v9953 = vmax.f32 %v9951, %v9952
      %v9954 = vrot.slane %v9953, 2
      %v9955 = vmax.f32 %v9953, %v9954
      %v9956 = vrot.slane %v9955, 1
      %v9957 = vmax.f32 %v9955, %v9956
      %v9958 = vsel %vm9698, %v9530, -inf
      %v9959 = vrot.slane %v9958, 4
      %v9960 = vmax.f32 %v9958, %v9959
      %v9961 = vrot.slane %v9960, 2
      %v9962 = vmax.f32 %v9960, %v9961
      %v9963 = vrot.slane %v9962, 1
      %v9964 = vmax.f32 %v9962, %v9963
      %v9965 = vsel %vm9698, %v9529, -inf
      %v9966 = vrot.slane %v9965, 4
      %v9967 = vmax.f32 %v9965, %v9966
      %v9968 = vrot.slane %v9967, 2
      %v9969 = vmax.f32 %v9967, %v9968
      %v9970 = vrot.slane %v9969, 1
      %v9971 = vmax.f32 %v9969, %v9970
      %v9972 = vsel %vm9698, %v9531, -inf
      %v9973 = vrot.slane %v9972, 4
      %v9974 = vmax.f32 %v9972, %v9973
      %v9975 = vrot.slane %v9974, 2
      %v9976 = vmax.f32 %v9974, %v9975
      %v9977 = vrot.slane %v9976, 1
      %v9978 = vmax.f32 %v9976, %v9977
      %v9979 = vsel %vm9698, %v9539, -inf
      %v9980 = vrot.slane %v9979, 4
      %v9981 = vmax.f32 %v9979, %v9980
      %v9982 = vrot.slane %v9981, 2
      %v9983 = vmax.f32 %v9981, %v9982
      %v9984 = vrot.slane %v9983, 1
      %v9985 = vmax.f32 %v9983, %v9984
      %v9986 = vsel %vm9698, %v9547, -inf
      %v9987 = vrot.slane %v9986, 4
      %v9988 = vmax.f32 %v9986, %v9987
      %v9989 = vrot.slane %v9988, 2
      %v9990 = vmax.f32 %v9988, %v9989
      %v9991 = vrot.slane %v9990, 1
      %v9992 = vmax.f32 %v9990, %v9991
      %v9993 = vsel %vm9698, %v9546, -inf
      %v9994 = vrot.slane %v9993, 4
      %v9995 = vmax.f32 %v9993, %v9994
      %v9996 = vrot.slane %v9995, 2
      %v9997 = vmax.f32 %v9995, %v9996
      %v9998 = vrot.slane %v9997, 1
      %v9999 = vmax.f32 %v9997, %v9998
      %v10000 = vsel %vm9698, %v9548, -inf
      %v10001 = vrot.slane %v10000, 4
      %v10002 = vmax.f32 %v10000, %v10001
      %v10003 = vrot.slane %v10002, 2
      %v10004 = vmax.f32 %v10002, %v10003
      %v10005 = vrot.slane %v10004, 1
      %v10006 = vmax.f32 %v10004, %v10005
      %v10007 = vsel %vm9698, %v9556, -inf
      %v10008 = vrot.slane %v10007, 4
      %v10009 = vmax.f32 %v10007, %v10008
      %v10010 = vrot.slane %v10009, 2
      %v10011 = vmax.f32 %v10009, %v10010
      %v10012 = vrot.slane %v10011, 1
      %v10013 = vmax.f32 %v10011, %v10012
      %v10014 = vsel %vm9698, %v9564, -inf
      %v10015 = vrot.slane %v10014, 4
      %v10016 = vmax.f32 %v10014, %v10015
      %v10017 = vrot.slane %v10016, 2
      %v10018 = vmax.f32 %v10016, %v10017
      %v10019 = vrot.slane %v10018, 1
      %v10020 = vmax.f32 %v10018, %v10019
      %v10021 = vsel %vm9698, %v9563, -inf
      %v10022 = vrot.slane %v10021, 4
      %v10023 = vmax.f32 %v10021, %v10022
      %v10024 = vrot.slane %v10023, 2
      %v10025 = vmax.f32 %v10023, %v10024
      %v10026 = vrot.slane %v10025, 1
      %v10027 = vmax.f32 %v10025, %v10026
      %v10028 = vsel %vm9698, %v9565, -inf
      %v10029 = vrot.slane %v10028, 4
      %v10030 = vmax.f32 %v10028, %v10029
      %v10031 = vrot.slane %v10030, 2
      %v10032 = vmax.f32 %v10030, %v10031
      %v10033 = vrot.slane %v10032, 1
      %v10034 = vmax.f32 %v10032, %v10033
      %v10035 = vsel %vm9698, %v9573, -inf
      %v10036 = vrot.slane %v10035, 4
      %v10037 = vmax.f32 %v10035, %v10036
      %v10038 = vrot.slane %v10037, 2
      %v10039 = vmax.f32 %v10037, %v10038
      %v10040 = vrot.slane %v10039, 1
      %v10041 = vmax.f32 %v10039, %v10040
      %v10042 = vsel %vm9698, %v9581, -inf
      %v10043 = vrot.slane %v10042, 4
      %v10044 = vmax.f32 %v10042, %v10043
      %v10045 = vrot.slane %v10044, 2
      %v10046 = vmax.f32 %v10044, %v10045
      %v10047 = vrot.slane %v10046, 1
      %v10048 = vmax.f32 %v10046, %v10047
      %v10049 = vsel %vm9698, %v9580, -inf
      %v10050 = vrot.slane %v10049, 4
      %v10051 = vmax.f32 %v10049, %v10050
      %v10052 = vrot.slane %v10051, 2
      %v10053 = vmax.f32 %v10051, %v10052
      %v10054 = vrot.slane %v10053, 1
      %v10055 = vmax.f32 %v10053, %v10054
      %v10056 = vsel %vm9698, %v9582, -inf
      %v10057 = vrot.slane %v10056, 4
      %v10058 = vmax.f32 %v10056, %v10057
      %v10059 = vrot.slane %v10058, 2
      %v10060 = vmax.f32 %v10058, %v10059
      %v10061 = vrot.slane %v10060, 1
      %v10062 = vmax.f32 %v10060, %v10061
      %v10063 = vsel %vm9698, %v9590, -inf
      %v10064 = vrot.slane %v10063, 4
      %v10065 = vmax.f32 %v10063, %v10064
      %v10066 = vrot.slane %v10065, 2
      %v10067 = vmax.f32 %v10065, %v10066
      %v10068 = vrot.slane %v10067, 1
      %v10069 = vmax.f32 %v10067, %v10068
      %v10070 = vsel %vm9698, %v9598, -inf
      %v10071 = vrot.slane %v10070, 4
      %v10072 = vmax.f32 %v10070, %v10071
      %v10073 = vrot.slane %v10072, 2
      %v10074 = vmax.f32 %v10072, %v10073
      %v10075 = vrot.slane %v10074, 1
      %v10076 = vmax.f32 %v10074, %v10075
      %v10077 = vsel %vm9698, %v9597, -inf
      %v10078 = vrot.slane %v10077, 4
      %v10079 = vmax.f32 %v10077, %v10078
      %v10080 = vrot.slane %v10079, 2
      %v10081 = vmax.f32 %v10079, %v10080
      %v10082 = vrot.slane %v10081, 1
      %v10083 = vmax.f32 %v10081, %v10082
      %v10084 = vsel %vm9698, %v9599, -inf
      %v10085 = vrot.slane %v10084, 4
      %v10086 = vmax.f32 %v10084, %v10085
      %v10087 = vrot.slane %v10086, 2
      %v10088 = vmax.f32 %v10086, %v10087
      %v10089 = vrot.slane %v10088, 1
      %v10090 = vmax.f32 %v10088, %v10089
      %v10091 = vsel %vm9698, %v9607, -inf
      %v10092 = vrot.slane %v10091, 4
      %v10093 = vmax.f32 %v10091, %v10092
      %v10094 = vrot.slane %v10093, 2
      %v10095 = vmax.f32 %v10093, %v10094
      %v10096 = vrot.slane %v10095, 1
      %v10097 = vmax.f32 %v10095, %v10096
      %v10098 = vsel %vm9698, %v9615, -inf
      %v10099 = vrot.slane %v10098, 4
      %v10100 = vmax.f32 %v10098, %v10099
      %v10101 = vrot.slane %v10100, 2
      %v10102 = vmax.f32 %v10100, %v10101
      %v10103 = vrot.slane %v10102, 1
      %v10104 = vmax.f32 %v10102, %v10103
      %v10105 = vsel %vm9698, %v9614, -inf
      %v10106 = vrot.slane %v10105, 4
      %v10107 = vmax.f32 %v10105, %v10106
      %v10108 = vrot.slane %v10107, 2
      %v10109 = vmax.f32 %v10107, %v10108
      %v10110 = vrot.slane %v10109, 1
      %v10111 = vmax.f32 %v10109, %v10110
      %v10112 = vsel %vm9698, %v9616, -inf
      %v10113 = vrot.slane %v10112, 4
      %v10114 = vmax.f32 %v10112, %v10113
      %v10115 = vrot.slane %v10114, 2
      %v10116 = vmax.f32 %v10114, %v10115
      %v10117 = vrot.slane %v10116, 1
      %v10118 = vmax.f32 %v10116, %v10117
      %v10119 = vsel %vm9698, %v9624, -inf
      %v10120 = vrot.slane %v10119, 4
      %v10121 = vmax.f32 %v10119, %v10120
      %v10122 = vrot.slane %v10121, 2
      %v10123 = vmax.f32 %v10121, %v10122
      %v10124 = vrot.slane %v10123, 1
      %v10125 = vmax.f32 %v10123, %v10124
      %v10126 = vsel %vm9698, %v9632, -inf
      %v10127 = vrot.slane %v10126, 4
      %v10128 = vmax.f32 %v10126, %v10127
      %v10129 = vrot.slane %v10128, 2
      %v10130 = vmax.f32 %v10128, %v10129
      %v10131 = vrot.slane %v10130, 1
      %v10132 = vmax.f32 %v10130, %v10131
      %v10133 = vsel %vm9698, %v9631, -inf
      %v10134 = vrot.slane %v10133, 4
      %v10135 = vmax.f32 %v10133, %v10134
      %v10136 = vrot.slane %v10135, 2
      %v10137 = vmax.f32 %v10135, %v10136
      %v10138 = vrot.slane %v10137, 1
      %v10139 = vmax.f32 %v10137, %v10138
      %v10140 = vsel %vm9698, %v9633, -inf
      %v10141 = vrot.slane %v10140, 4
      %v10142 = vmax.f32 %v10140, %v10141
      %v10143 = vrot.slane %v10142, 2
      %v10144 = vmax.f32 %v10142, %v10143
      %v10145 = vrot.slane %v10144, 1
      %v10146 = vmax.f32 %v10144, %v10145
      %v10147 = vsel %vm9002, %v9705, -inf
      %v10148 = vsel %vm9002, %v9733, -inf
      %v10149 = vmax.f32 %v10147, %v10148
      %v10150 = vsel %vm9002, %v9712, -inf
      %v10151 = vsel %vm9002, %v9740, -inf
      %v10152 = vmax.f32 %v10150, %v10151
      %v10153 = vsel %vm9002, %v9719, -inf
      %v10154 = vsel %vm9002, %v9747, -inf
      %v10155 = vmax.f32 %v10153, %v10154
      %v10156 = vsel %vm9002, %v9726, -inf
      %v10157 = vsel %vm9002, %v9754, -inf
      %v10158 = vmax.f32 %v10156, %v10157
      %v10159 = vsel %vm9002, %v9761, -inf
      %v10160 = vsel %vm9002, %v9789, -inf
      %v10161 = vmax.f32 %v10159, %v10160
      %v10162 = vsel %vm9002, %v9768, -inf
      %v10163 = vsel %vm9002, %v9796, -inf
      %v10164 = vmax.f32 %v10162, %v10163
      %v10165 = vsel %vm9002, %v9775, -inf
      %v10166 = vsel %vm9002, %v9803, -inf
      %v10167 = vmax.f32 %v10165, %v10166
      %v10168 = vsel %vm9002, %v9782, -inf
      %v10169 = vsel %vm9002, %v9810, -inf
      %v10170 = vmax.f32 %v10168, %v10169
      %v10171 = vsel %vm9002, %v9817, -inf
      %v10172 = vsel %vm9002, %v9845, -inf
      %v10173 = vmax.f32 %v10171, %v10172
      %v10174 = vsel %vm9002, %v9824, -inf
      %v10175 = vsel %vm9002, %v9852, -inf
      %v10176 = vmax.f32 %v10174, %v10175
      %v10177 = vsel %vm9002, %v9831, -inf
      %v10178 = vsel %vm9002, %v9859, -inf
      %v10179 = vmax.f32 %v10177, %v10178
      %v10180 = vsel %vm9002, %v9838, -inf
      %v10181 = vsel %vm9002, %v9866, -inf
      %v10182 = vmax.f32 %v10180, %v10181
      %v10183 = vsel %vm9002, %v9873, -inf
      %v10184 = vsel %vm9002, %v9901, -inf
      %v10185 = vmax.f32 %v10183, %v10184
      %v10186 = vsel %vm9002, %v9880, -inf
      %v10187 = vsel %vm9002, %v9908, -inf
      %v10188 = vmax.f32 %v10186, %v10187
      %v10189 = vsel %vm9002, %v9887, -inf
      %v10190 = vsel %vm9002, %v9915, -inf
      %v10191 = vmax.f32 %v10189, %v10190
      %v10192 = vsel %vm9002, %v9894, -inf
      %v10193 = vsel %vm9002, %v9922, -inf
      %v10194 = vmax.f32 %v10192, %v10193
      %v10195 = vsel %vm9002, %v9929, -inf
      %v10196 = vsel %vm9002, %v9957, -inf
      %v10197 = vmax.f32 %v10195, %v10196
      %v10198 = vsel %vm9002, %v9936, -inf
      %v10199 = vsel %vm9002, %v9964, -inf
      %v10200 = vmax.f32 %v10198, %v10199
      %v10201 = vsel %vm9002, %v9943, -inf
      %v10202 = vsel %vm9002, %v9971, -inf
      %v10203 = vmax.f32 %v10201, %v10202
      %v10204 = vsel %vm9002, %v9950, -inf
      %v10205 = vsel %vm9002, %v9978, -inf
      %v10206 = vmax.f32 %v10204, %v10205
      %v10207 = vsel %vm9002, %v9985, -inf
      %v10208 = vsel %vm9002, %v10013, -inf
      %v10209 = vmax.f32 %v10207, %v10208
      %v10210 = vsel %vm9002, %v9992, -inf
      %v10211 = vsel %vm9002, %v10020, -inf
      %v10212 = vmax.f32 %v10210, %v10211
      %v10213 = vsel %vm9002, %v9999, -inf
      %v10214 = vsel %vm9002, %v10027, -inf
      %v10215 = vmax.f32 %v10213, %v10214
      %v10216 = vsel %vm9002, %v10006, -inf
      %v10217 = vsel %vm9002, %v10034, -inf
      %v10218 = vmax.f32 %v10216, %v10217
      %v10219 = vsel %vm9002, %v10041, -inf
      %v10220 = vsel %vm9002, %v10069, -inf
      %v10221 = vmax.f32 %v10219, %v10220
      %v10222 = vsel %vm9002, %v10048, -inf
      %v10223 = vsel %vm9002, %v10076, -inf
      %v10224 = vmax.f32 %v10222, %v10223
      %v10225 = vsel %vm9002, %v10055, -inf
      %v10226 = vsel %vm9002, %v10083, -inf
      %v10227 = vmax.f32 %v10225, %v10226
      %v10228 = vsel %vm9002, %v10062, -inf
      %v10229 = vsel %vm9002, %v10090, -inf
      %v10230 = vmax.f32 %v10228, %v10229
      %v10231 = vsel %vm9002, %v10097, -inf
      %v10232 = vsel %vm9002, %v10125, -inf
      %v10233 = vmax.f32 %v10231, %v10232
      %v10234 = vsel %vm9002, %v10104, -inf
      %v10235 = vsel %vm9002, %v10132, -inf
      %v10236 = vmax.f32 %v10234, %v10235
      %v10237 = vsel %vm9002, %v10111, -inf
      %v10238 = vsel %vm9002, %v10139, -inf
      %v10239 = vmax.f32 %v10237, %v10238
      %v10240 = vsel %vm9002, %v10118, -inf
      %v10241 = vsel %vm9002, %v10146, -inf
      %v10242 = vmax.f32 %v10240, %v10241
      %vm10243 = vcmask 128000
      %10244 = vst.msk [vmem:[#allocation4] sm:$0x3f] %vm10243, 0.0
      %10245 = vst.msk [vmem:[#allocation4 + $0x30] sm:$0x3f] %vm10243, 0.0
      %s10246 = scalar_lea.vmem [#allocation4], 40
      %10247 = vst.msk [vmem:[%s10246] sm:$0x3f] %vm10243, 0.0
      %10248 = vst.msk [vmem:[%s10246 + $0x30] sm:$0x3f] %vm10243, 0.0
      %vm10249 = vcmask 122880
      %10250 = vst.msk [vmem:[#allocation4] sm:$0x1] %vm10249, 0.0
      %10251 = vst.msk [vmem:[#allocation4 + $0x8] sm:$0x1] %vm10249, 0.0
      %10252 = vst.msk [vmem:[#allocation4 + $0x10] sm:$0x1] %vm10249, 0.0
      %10253 = vst.msk [vmem:[#allocation4 + $0x18] sm:$0x1] %vm10249, 0.0
      %10254 = vst.msk [vmem:[#allocation4 + $0x20] sm:$0x1] %vm10249, 0.0
      %10255 = vst.msk [vmem:[#allocation4 + $0x28] sm:$0x1] %vm10249, 0.0
      %10256 = vst.msk [vmem:[#allocation4 + $0x30] sm:$0x1] %vm10249, 0.0
      %10257 = vst.msk [vmem:[#allocation4 + $0x38] sm:$0x1] %vm10249, 0.0
      %10258 = vst.msk [vmem:[#allocation4 + $0x40] sm:$0x1] %vm10249, 0.0
      %10259 = vst.msk [vmem:[#allocation4 + $0x48] sm:$0x1] %vm10249, 0.0
      %10260 = vst.msk [vmem:[#allocation4 + $0x50] sm:$0x1] %vm10249, 0.0
      %10261 = vst.msk [vmem:[#allocation4 + $0x58] sm:$0x1] %vm10249, 0.0
      %10262 = vst.msk [vmem:[#allocation4 + $0x5] sm:$0x1] %vm10249, 0.0
      %10263 = vst.msk [vmem:[#allocation4 + $0xd] sm:$0x1] %vm10249, 0.0
      %10264 = vst.msk [vmem:[#allocation4 + $0x15] sm:$0x1] %vm10249, 0.0
      %10265 = vst.msk [vmem:[#allocation4 + $0x1d] sm:$0x1] %vm10249, 0.0
      %10266 = vst.msk [vmem:[#allocation4 + $0x25] sm:$0x1] %vm10249, 0.0
      %10267 = vst.msk [vmem:[#allocation4 + $0x2d] sm:$0x1] %vm10249, 0.0
      %10268 = vst.msk [vmem:[#allocation4 + $0x35] sm:$0x1] %vm10249, 0.0
      %10269 = vst.msk [vmem:[#allocation4 + $0x3d] sm:$0x1] %vm10249, 0.0
      %10270 = vst.msk [vmem:[#allocation4 + $0x45] sm:$0x1] %vm10249, 0.0
      %10271 = vst.msk [vmem:[#allocation4 + $0x4d] sm:$0x1] %vm10249, 0.0
      %10272 = vst.msk [vmem:[#allocation4 + $0x55] sm:$0x1] %vm10249, 0.0
      %10273 = vst.msk [vmem:[#allocation4 + $0x5d] sm:$0x1] %vm10249, 0.0
      %v10306 = vsel %vm8177, %v10152, %v10149
      %v10307 = vsel %vm8179, %v10155, %v10306
      %v10308 = vsel %vm8181, %v10158, %v10307
      %v10309 = vsel %vm8177, %v10164, %v10161
      %v10310 = vsel %vm8179, %v10167, %v10309
      %v10311 = vsel %vm8181, %v10170, %v10310
      %v10312 = vsel %vm8177, %v10176, %v10173
      %v10313 = vsel %vm8179, %v10179, %v10312
      %v10314 = vsel %vm8181, %v10182, %v10313
      %v10315 = vsel %vm8177, %v10188, %v10185
      %v10316 = vsel %vm8179, %v10191, %v10315
      %v10317 = vsel %vm8181, %v10194, %v10316
      %v10318 = vsel %vm8177, %v10200, %v10197
      %v10319 = vsel %vm8179, %v10203, %v10318
      %v10320 = vsel %vm8181, %v10206, %v10319
      %v10321 = vsel %vm8177, %v10212, %v10209
      %v10322 = vsel %vm8179, %v10215, %v10321
      %v10323 = vsel %vm8181, %v10218, %v10322
      %v10324 = vsel %vm8177, %v10224, %v10221
      %v10325 = vsel %vm8179, %v10227, %v10324
      %v10326 = vsel %vm8181, %v10230, %v10325
      %v10327 = vsel %vm8177, %v10236, %v10233
      %v10328 = vsel %vm8179, %v10239, %v10327
      %v10329 = vsel %vm8181, %v10242, %v10328
      %s10338 = scalar_lea.vmem [#allocation4], 8
      %vm10339 = vcmask 125952
      %10340 = vst.msk [vmem:[%s10338 + $0x1] sm:$0xf] %vm10339, %v10308
      %10341 = vst.msk [vmem:[%s10338 + $0x9] sm:$0xf] %vm10339, %v10311
      %10342 = vst.msk [vmem:[%s10338 + $0x11] sm:$0xf] %vm10339, %v10314
      %10343 = vst.msk [vmem:[%s10338 + $0x19] sm:$0xf] %vm10339, %v10317
      %10344 = vst.msk [vmem:[%s10338 + $0x31] sm:$0xf] %vm10339, %v10320
      %10345 = vst.msk [vmem:[%s10338 + $0x39] sm:$0xf] %vm10339, %v10323
      %10346 = vst.msk [vmem:[%s10338 + $0x41] sm:$0xf] %vm10339, %v10326
      %10347 = vst.msk [vmem:[%s10338 + $0x49] sm:$0xf] %vm10339, %v10329
      %v10348 = vld [vmem:[#allocation4] sm:$0xf]
      %v10349 = vld [vmem:[#allocation4 + $0x8] sm:$0xf]
      %v10350 = vld [vmem:[#allocation4 + $0x10] sm:$0xf]
      %v10351 = vld [vmem:[#allocation4 + $0x18] sm:$0xf]
      %v10352 = vld [vmem:[#allocation4 + $0x30] sm:$0xf]
      %v10353 = vld [vmem:[#allocation4 + $0x38] sm:$0xf]
      %v10354 = vld [vmem:[#allocation4 + $0x40] sm:$0xf]
      %v10355 = vld [vmem:[#allocation4 + $0x48] sm:$0xf]
      %v10356 = vld [vmem:[#allocation4 + $0x1] sm:$0xf]
      %v10357 = vld [vmem:[#allocation4 + $0x9] sm:$0xf]
      %v10358 = vld [vmem:[#allocation4 + $0x11] sm:$0xf]
      %v10359 = vld [vmem:[#allocation4 + $0x19] sm:$0xf]
      %v10360 = vld [vmem:[#allocation4 + $0x31] sm:$0xf]
      %v10361 = vld [vmem:[#allocation4 + $0x39] sm:$0xf]
      %v10362 = vld [vmem:[#allocation4 + $0x41] sm:$0xf]
      %v10363 = vld [vmem:[#allocation4 + $0x49] sm:$0xf]
      %v10364 = vld [vmem:[#allocation4 + $0x2] sm:$0xf]
      %v10365 = vld [vmem:[#allocation4 + $0xa] sm:$0xf]
      %v10366 = vld [vmem:[#allocation4 + $0x12] sm:$0xf]
      %v10367 = vld [vmem:[#allocation4 + $0x1a] sm:$0xf]
      %v10368 = vld [vmem:[#allocation4 + $0x32] sm:$0xf]
      %v10369 = vld [vmem:[#allocation4 + $0x3a] sm:$0xf]
      %v10370 = vld [vmem:[#allocation4 + $0x42] sm:$0xf]
      %v10371 = vld [vmem:[#allocation4 + $0x4a] sm:$0xf]
      %v10372 = vld [vmem:[%s10338] sm:$0xf]
      %v10373 = vld [vmem:[%s10338 + $0x8] sm:$0xf]
      %v10374 = vld [vmem:[%s10338 + $0x10] sm:$0xf]
      %v10375 = vld [vmem:[%s10338 + $0x18] sm:$0xf]
      %v10376 = vld [vmem:[%s10338 + $0x30] sm:$0xf]
      %v10377 = vld [vmem:[%s10338 + $0x38] sm:$0xf]
      %v10378 = vld [vmem:[%s10338 + $0x40] sm:$0xf]
      %v10379 = vld [vmem:[%s10338 + $0x48] sm:$0xf]
      %v10380 = vld [vmem:[%s10338 + $0x1] sm:$0xf]
      %v10381 = vld [vmem:[%s10338 + $0x9] sm:$0xf]
      %v10382 = vld [vmem:[%s10338 + $0x11] sm:$0xf]
      %v10383 = vld [vmem:[%s10338 + $0x19] sm:$0xf]
      %v10384 = vld [vmem:[%s10338 + $0x31] sm:$0xf]
      %v10385 = vld [vmem:[%s10338 + $0x39] sm:$0xf]
      %v10386 = vld [vmem:[%s10338 + $0x41] sm:$0xf]
      %v10387 = vld [vmem:[%s10338 + $0x49] sm:$0xf]
      %v10388 = vld [vmem:[%s10338 + $0x2] sm:$0xf]
      %v10389 = vld [vmem:[%s10338 + $0xa] sm:$0xf]
      %v10390 = vld [vmem:[%s10338 + $0x12] sm:$0xf]
      %v10391 = vld [vmem:[%s10338 + $0x1a] sm:$0xf]
      %v10392 = vld [vmem:[%s10338 + $0x32] sm:$0xf]
      %v10393 = vld [vmem:[%s10338 + $0x3a] sm:$0xf]
      %v10394 = vld [vmem:[%s10338 + $0x42] sm:$0xf]
      %v10395 = vld [vmem:[%s10338 + $0x4a] sm:$0xf]
      %s10396 = scalar_lea.vmem [#allocation4], 16
      %v10397 = vld [vmem:[%s10396] sm:$0xf]
      %v10398 = vld [vmem:[%s10396 + $0x8] sm:$0xf]
      %v10399 = vld [vmem:[%s10396 + $0x10] sm:$0xf]
      %v10400 = vld [vmem:[%s10396 + $0x18] sm:$0xf]
      %v10401 = vld [vmem:[%s10396 + $0x30] sm:$0xf]
      %v10402 = vld [vmem:[%s10396 + $0x38] sm:$0xf]
      %v10403 = vld [vmem:[%s10396 + $0x40] sm:$0xf]
      %v10404 = vld [vmem:[%s10396 + $0x48] sm:$0xf]
      %v10405 = vld [vmem:[%s10396 + $0x1] sm:$0xf]
      %v10406 = vld [vmem:[%s10396 + $0x9] sm:$0xf]
      %v10407 = vld [vmem:[%s10396 + $0x11] sm:$0xf]
      %v10408 = vld [vmem:[%s10396 + $0x19] sm:$0xf]
      %v10409 = vld [vmem:[%s10396 + $0x31] sm:$0xf]
      %v10410 = vld [vmem:[%s10396 + $0x39] sm:$0xf]
      %v10411 = vld [vmem:[%s10396 + $0x41] sm:$0xf]
      %v10412 = vld [vmem:[%s10396 + $0x49] sm:$0xf]
      %v10413 = vld [vmem:[%s10396 + $0x2] sm:$0xf]
      %v10414 = vld [vmem:[%s10396 + $0xa] sm:$0xf]
      %v10415 = vld [vmem:[%s10396 + $0x12] sm:$0xf]
      %v10416 = vld [vmem:[%s10396 + $0x1a] sm:$0xf]
      %v10417 = vld [vmem:[%s10396 + $0x32] sm:$0xf]
      %v10418 = vld [vmem:[%s10396 + $0x3a] sm:$0xf]
      %v10419 = vld [vmem:[%s10396 + $0x42] sm:$0xf]
      %v10420 = vld [vmem:[%s10396 + $0x4a] sm:$0xf]
      %10429 = vrot.lane.b32.xlu0 %v10356, 16
      %v10430 = vpop.permute.xlu0 %10429
      %10431 = vrot.lane.b32.xlu0 %v10357, 16
      %v10432 = vpop.permute.xlu0 %10431
      %10433 = vrot.lane.b32.xlu0 %v10358, 16
      %v10434 = vpop.permute.xlu0 %10433
      %10435 = vrot.lane.b32.xlu0 %v10359, 16
      %v10436 = vpop.permute.xlu0 %10435
      %10437 = vrot.lane.b32.xlu0 %v10360, 16
      %v10438 = vpop.permute.xlu0 %10437
      %10439 = vrot.lane.b32.xlu0 %v10361, 16
      %v10440 = vpop.permute.xlu0 %10439
      %10441 = vrot.lane.b32.xlu0 %v10362, 16
      %v10442 = vpop.permute.xlu0 %10441
      %10443 = vrot.lane.b32.xlu0 %v10363, 16
      %v10444 = vpop.permute.xlu0 %10443
      %10461 = vrot.lane.b32.xlu0 %v10364, 32
      %v10462 = vpop.permute.xlu0 %10461
      %10463 = vrot.lane.b32.xlu0 %v10365, 32
      %v10464 = vpop.permute.xlu0 %10463
      %10465 = vrot.lane.b32.xlu0 %v10366, 32
      %v10466 = vpop.permute.xlu0 %10465
      %10467 = vrot.lane.b32.xlu0 %v10367, 32
      %v10468 = vpop.permute.xlu0 %10467
      %10469 = vrot.lane.b32.xlu0 %v10368, 32
      %v10470 = vpop.permute.xlu0 %10469
      %10471 = vrot.lane.b32.xlu0 %v10369, 32
      %v10472 = vpop.permute.xlu0 %10471
      %10473 = vrot.lane.b32.xlu0 %v10370, 32
      %v10474 = vpop.permute.xlu0 %10473
      %10475 = vrot.lane.b32.xlu0 %v10371, 32
      %v10476 = vpop.permute.xlu0 %10475
      %10493 = vrot.lane.b32.xlu0 %v10372, 48
      %v10494 = vpop.permute.xlu0 %10493
      %10495 = vrot.lane.b32.xlu0 %v10373, 48
      %v10496 = vpop.permute.xlu0 %10495
      %10497 = vrot.lane.b32.xlu0 %v10374, 48
      %v10498 = vpop.permute.xlu0 %10497
      %10499 = vrot.lane.b32.xlu0 %v10375, 48
      %v10500 = vpop.permute.xlu0 %10499
      %10501 = vrot.lane.b32.xlu0 %v10376, 48
      %v10502 = vpop.permute.xlu0 %10501
      %10503 = vrot.lane.b32.xlu0 %v10377, 48
      %v10504 = vpop.permute.xlu0 %10503
      %10505 = vrot.lane.b32.xlu0 %v10378, 48
      %v10506 = vpop.permute.xlu0 %10505
      %10507 = vrot.lane.b32.xlu0 %v10379, 48
      %v10508 = vpop.permute.xlu0 %10507
      %10525 = vrot.lane.b32.xlu0 %v10380, 64
      %v10526 = vpop.permute.xlu0 %10525
      %10527 = vrot.lane.b32.xlu0 %v10381, 64
      %v10528 = vpop.permute.xlu0 %10527
      %10529 = vrot.lane.b32.xlu0 %v10382, 64
      %v10530 = vpop.permute.xlu0 %10529
      %10531 = vrot.lane.b32.xlu0 %v10383, 64
      %v10532 = vpop.permute.xlu0 %10531
      %10533 = vrot.lane.b32.xlu0 %v10384, 64
      %v10534 = vpop.permute.xlu0 %10533
      %10535 = vrot.lane.b32.xlu0 %v10385, 64
      %v10536 = vpop.permute.xlu0 %10535
      %10537 = vrot.lane.b32.xlu0 %v10386, 64
      %v10538 = vpop.permute.xlu0 %10537
      %10539 = vrot.lane.b32.xlu0 %v10387, 64
      %v10540 = vpop.permute.xlu0 %10539
      %10557 = vrot.lane.b32.xlu0 %v10388, 80
      %v10558 = vpop.permute.xlu0 %10557
      %10559 = vrot.lane.b32.xlu0 %v10389, 80
      %v10560 = vpop.permute.xlu0 %10559
      %10561 = vrot.lane.b32.xlu0 %v10390, 80
      %v10562 = vpop.permute.xlu0 %10561
      %10563 = vrot.lane.b32.xlu0 %v10391, 80
      %v10564 = vpop.permute.xlu0 %10563
      %10565 = vrot.lane.b32.xlu0 %v10392, 80
      %v10566 = vpop.permute.xlu0 %10565
      %10567 = vrot.lane.b32.xlu0 %v10393, 80
      %v10568 = vpop.permute.xlu0 %10567
      %10569 = vrot.lane.b32.xlu0 %v10394, 80
      %v10570 = vpop.permute.xlu0 %10569
      %10571 = vrot.lane.b32.xlu0 %v10395, 80
      %v10572 = vpop.permute.xlu0 %10571
      %10589 = vrot.lane.b32.xlu0 %v10397, 96
      %v10590 = vpop.permute.xlu0 %10589
      %10591 = vrot.lane.b32.xlu0 %v10398, 96
      %v10592 = vpop.permute.xlu0 %10591
      %10593 = vrot.lane.b32.xlu0 %v10399, 96
      %v10594 = vpop.permute.xlu0 %10593
      %10595 = vrot.lane.b32.xlu0 %v10400, 96
      %v10596 = vpop.permute.xlu0 %10595
      %10597 = vrot.lane.b32.xlu0 %v10401, 96
      %v10598 = vpop.permute.xlu0 %10597
      %10599 = vrot.lane.b32.xlu0 %v10402, 96
      %v10600 = vpop.permute.xlu0 %10599
      %10601 = vrot.lane.b32.xlu0 %v10403, 96
      %v10602 = vpop.permute.xlu0 %10601
      %10603 = vrot.lane.b32.xlu0 %v10404, 96
      %v10604 = vpop.permute.xlu0 %10603
      %10621 = vrot.lane.b32.xlu0 %v10405, 112
      %v10622 = vpop.permute.xlu0 %10621
      %10623 = vrot.lane.b32.xlu0 %v10406, 112
      %v10624 = vpop.permute.xlu0 %10623
      %10625 = vrot.lane.b32.xlu0 %v10407, 112
      %v10626 = vpop.permute.xlu0 %10625
      %10627 = vrot.lane.b32.xlu0 %v10408, 112
      %v10628 = vpop.permute.xlu0 %10627
      %10629 = vrot.lane.b32.xlu0 %v10409, 112
      %v10630 = vpop.permute.xlu0 %10629
      %10631 = vrot.lane.b32.xlu0 %v10410, 112
      %v10632 = vpop.permute.xlu0 %10631
      %10633 = vrot.lane.b32.xlu0 %v10411, 112
      %v10634 = vpop.permute.xlu0 %10633
      %10635 = vrot.lane.b32.xlu0 %v10412, 112
      %v10636 = vpop.permute.xlu0 %10635
      %v10645 = vsel %vm9002, %v10348, %v10430
      %v10646 = vsel %vm9002, %v10349, %v10432
      %v10647 = vsel %vm9002, %v10350, %v10434
      %v10648 = vsel %vm9002, %v10351, %v10436
      %v10649 = vsel %vm9002, %v10352, %v10438
      %v10650 = vsel %vm9002, %v10353, %v10440
      %v10651 = vsel %vm9002, %v10354, %v10442
      %v10652 = vsel %vm9002, %v10355, %v10444
      %v10653 = vsel %vm9035, %v10645, %v10462
      %v10654 = vsel %vm9035, %v10646, %v10464
      %v10655 = vsel %vm9035, %v10647, %v10466
      %v10656 = vsel %vm9035, %v10648, %v10468
      %v10657 = vsel %vm9035, %v10649, %v10470
      %v10658 = vsel %vm9035, %v10650, %v10472
      %v10659 = vsel %vm9035, %v10651, %v10474
      %v10660 = vsel %vm9035, %v10652, %v10476
      %v10661 = vsel %vm9069, %v10653, %v10494
      %v10662 = vsel %vm9069, %v10654, %v10496
      %v10663 = vsel %vm9069, %v10655, %v10498
      %v10664 = vsel %vm9069, %v10656, %v10500
      %v10665 = vsel %vm9069, %v10657, %v10502
      %v10666 = vsel %vm9069, %v10658, %v10504
      %v10667 = vsel %vm9069, %v10659, %v10506
      %v10668 = vsel %vm9069, %v10660, %v10508
      %v10669 = vsel %vm9103, %v10661, %v10526
      %v10670 = vsel %vm9103, %v10662, %v10528
      %v10671 = vsel %vm9103, %v10663, %v10530
      %v10672 = vsel %vm9103, %v10664, %v10532
      %v10673 = vsel %vm9103, %v10665, %v10534
      %v10674 = vsel %vm9103, %v10666, %v10536
      %v10675 = vsel %vm9103, %v10667, %v10538
      %v10676 = vsel %vm9103, %v10668, %v10540
      %vm10677 = vcmask 654336
      %v10678 = vsel %vm10677, %v10669, %v10558
      %v10679 = vsel %vm10677, %v10670, %v10560
      %v10680 = vsel %vm10677, %v10671, %v10562
      %v10681 = vsel %vm10677, %v10672, %v10564
      %v10682 = vsel %vm10677, %v10673, %v10566
      %v10683 = vsel %vm10677, %v10674, %v10568
      %v10684 = vsel %vm10677, %v10675, %v10570
      %v10685 = vsel %vm10677, %v10676, %v10572
      %vm10686 = vcmask 785408
      %v10687 = vsel %vm10686, %v10678, %v10590
      %v10688 = vsel %vm10686, %v10679, %v10592
      %v10689 = vsel %vm10686, %v10680, %v10594
      %v10690 = vsel %vm10686, %v10681, %v10596
      %v10691 = vsel %vm10686, %v10682, %v10598
      %v10692 = vsel %vm10686, %v10683, %v10600
      %v10693 = vsel %vm10686, %v10684, %v10602
      %v10694 = vsel %vm10686, %v10685, %v10604
      %vm10695 = vcmask 916480
      %v10696 = vsel %vm10695, %v10687, %v10622
      %v10697 = vsel %vm10695, %v10688, %v10624
      %v10698 = vsel %vm10695, %v10689, %v10626
      %v10699 = vsel %vm10695, %v10690, %v10628
      %v10700 = vsel %vm10695, %v10691, %v10630
      %v10701 = vsel %vm10695, %v10692, %v10632
      %v10702 = vsel %vm10695, %v10693, %v10634
      %v10703 = vsel %vm10695, %v10694, %v10636
      %v10720 = vcombine.low %v10696, %v10413
      %v10721 = vcombine.low %v10697, %v10414
      %v10722 = vcombine.low %v10698, %v10415
      %v10723 = vcombine.low %v10699, %v10416
      %v10724 = vcombine.low %v10700, %v10417
      %v10725 = vcombine.low %v10701, %v10418
      %v10726 = vcombine.low %v10702, %v10419
      %v10727 = vcombine.low %v10703, %v10420
      %v10728 = vld [vmem:[%s5] sm:$0xff]
      %v10729 = vld [vmem:[%s5 + $0x8] sm:$0xff]
      %v10730 = vld [vmem:[%s5 + $0x10] sm:$0xff]
      %v10731 = vld [vmem:[%s5 + $0x18] sm:$0xff]
      %v10732 = vld [vmem:[%s5 + $0x20] sm:$0xff]
      %v10733 = vld [vmem:[%s5 + $0x28] sm:$0xff]
      %v10734 = vld [vmem:[%s5 + $0x30] sm:$0xff]
      %v10735 = vld [vmem:[%s5 + $0x38] sm:$0xff]
      %v10736 = vld [vmem:[%s5 + $0x40] sm:$0xff]
      %v10737 = vld [vmem:[%s5 + $0x48] sm:$0xff]
      %v10738 = vld [vmem:[%s5 + $0x50] sm:$0xff]
      %v10739 = vld [vmem:[%s5 + $0x58] sm:$0xff]
      %v10740 = vld [vmem:[%s5 + $0x60] sm:$0xff]
      %v10741 = vld [vmem:[%s5 + $0x68] sm:$0xff]
      %v10742 = vld [vmem:[%s5 + $0x70] sm:$0xff]
      %v10743 = vld [vmem:[%s5 + $0x78] sm:$0xff]
      %v10744 = vld [vmem:[%s5 + $0x80] sm:$0xff]
      %v10745 = vld [vmem:[%s5 + $0x88] sm:$0xff]
      %v10746 = vld [vmem:[%s6] sm:$0x1]
      %v10748 = vlaneseq
      %v10749 = vshrl.u32 %v10748, 7
      %v10750 = vsub.s32 0, %v10749
      %v10751 = vrot.slane %v10746, %v10750
      %v10753 = vcombine.low %v10720, %v10721
      %v10754 = vcombine.high %v10720, %v10721
      %v10755 = vcombine.low %v10722, %v10723
      %v10756 = vcombine.high %v10722, %v10723
      %v10757 = vcombine.low %v10724, %v10725
      %v10758 = vcombine.high %v10724, %v10725
      %v10759 = vcombine.low %v10726, %v10727
      %v10760 = vcombine.high %v10726, %v10727
      %v10765 = vsel %vm9002, %v10754, 0
      %v10767 = vsel %vm9002, %v10756, 0
      %v10769 = vsel %vm9002, %v10758, 0
      %v10771 = vsel %vm9002, %v10760, 0
      %10773 = vmatprep.subr.mxu0 0.0
      %10774 = vmatpush1.msra.mxu0 %v10728
      %10775 = vmatprep.subr.mxu0 0.0
      %10776 = vmatpush1.msra.mxu0 %v10729
      %10777 = vmatprep.subr.mxu0 0.0
      %10778 = vmatpush1.msra.mxu0 %v10730
      %10779 = vmatprep.subr.mxu0 0.0
      %10780 = vmatpush1.msra.mxu0 %v10731
      %10781 = vmatprep.subr.mxu0 0.0
      %10782 = vmatpush1.msra.mxu0 %v10732
      %10783 = vmatprep.subr.mxu0 0.0
      %10784 = vmatpush1.msra.mxu0 %v10733
      %10785 = vmatprep.subr.mxu0 0.0
      %10786 = vmatpush1.msra.mxu0 %v10734
      %10787 = vmatprep.subr.mxu0 0.0
      %10788 = vmatpush1.msra.mxu0 %v10735
      %10789 = vmatprep.subr.mxu0 0.0
      %10790 = vmatpush1.msra.mxu0 %v10736
      %10791 = vmatprep.subr.mxu0 0.0
      %10792 = vmatpush1.msra.mxu0 %v10737
      %10793 = vmatprep.subr.mxu0 0.0
      %10794 = vmatpush1.msra.mxu0 %v10738
      %10795 = vmatprep.subr.mxu0 0.0
      %10796 = vmatpush1.msra.mxu0 %v10739
      %10797 = vmatprep.subr.mxu0 0.0
      %10798 = vmatpush1.msra.mxu0 %v10740
      %10799 = vmatprep.subr.mxu0 0.0
      %10800 = vmatpush1.msra.mxu0 %v10741
      %10801 = vmatprep.subr.mxu0 0.0
      %10802 = vmatpush1.msra.mxu0 %v10742
      %10803 = vmatprep.subr.mxu0 0.0
      %10804 = vmatpush1.msra.mxu0 %v10743
      %10805 = vmatprep.subr.mxu0 0.0
      %10806 = vmatpush1.msra.mxu0 %v10744
      %10807 = vmatprep.subr.mxu0 0.0
      %10808 = vmatpush1.msra.mxu0 %v10745
      %10809 = vmatprep.subr.mxu0 0.0
      %10810 = vmatpush1.msra.mxu0 0.0
      %10811 = vmatprep.subr.mxu0 0.0
      %10812 = vmatpush1.msra.mxu0 0.0
      %10813 = vmatprep.subr.mxu0 0.0
      %10814 = vmatpush1.msra.mxu0 0.0
      %10815 = vmatprep.subr.mxu0 0.0
      %10816 = vmatpush1.msra.mxu0 0.0
      %10817 = vmatprep.subr.mxu0 0.0
      %10818 = vmatpush1.msra.mxu0 0.0
      %10819 = vmatprep.subr.mxu0 0.0
      %10820 = vmatpush1.msra.mxu0 0.0
      %10821 = vmatprep.subr.mxu0 0.0
      %10822 = vmatpush1.msra.mxu0 0.0
      %10823 = vmatprep.subr.mxu0 0.0
      %10824 = vmatpush1.msra.mxu0 0.0
      %10825 = vmatprep.subr.mxu0 0.0
      %10826 = vmatpush1.msra.mxu0 0.0
      %10827 = vmatprep.subr.mxu0 0.0
      %10828 = vmatpush1.msra.mxu0 0.0
      %10829 = vmatprep.subr.mxu0 0.0
      %10830 = vmatpush1.msra.mxu0 0.0
      %10831 = vmatprep.subr.mxu0 0.0
      %10832 = vmatpush1.msra.mxu0 0.0
      %10833 = vmatprep.subr.mxu0 0.0
      %10834 = vmatpush1.msra.mxu0 0.0
      %10835 = vmatprep.subr.mxu0 0.0
      %10836 = vmatpush1.msra.mxu0 0.0
      %10837 = vmatprep.mubr.f32.mxu0 %v10765
      %10838 = vmatmul.mubr.f32.gmra.mrb[0].mxu0 %v10753
      %v10839 = vpop.f32.mrb[0].mxu0
      %v10840 = vadd.f32 %v10751, %v10839
      %v10841 = vpop.f32.mrb[0].mxu0
      %10842 = vmatprep.mubr.f32.mxu0 %v10767
      %10843 = vmatmul.mubr.f32.gmra.mrb[0].mxu0 %v10755
      %v10844 = vpop.f32.mrb[0].mxu0
      %v10845 = vadd.f32 %v10751, %v10844
      %v10846 = vpop.f32.mrb[0].mxu0
      %10847 = vmatprep.mubr.f32.mxu0 %v10769
      %10848 = vmatmul.mubr.f32.gmra.mrb[0].mxu0 %v10757
      %v10849 = vpop.f32.mrb[0].mxu0
      %v10850 = vadd.f32 %v10751, %v10849
      %v10851 = vpop.f32.mrb[0].mxu0
      %10852 = vmatprep.mubr.f32.mxu0 %v10771
      %10853 = vmatmul.mubr.f32.gmra.mrb[0].mxu0 %v10759
      %v10854 = vpop.f32.mrb[0].mxu0
      %v10855 = vadd.f32 %v10751, %v10854
      %v10856 = vpop.f32.mrb[0].mxu0
      %10857 = vdwg.mxu0
      %v10858 = vmax.f32 %v10840, 0.0
      %v10859 = vmax.f32 %v10845, 0.0
      %v10860 = vmax.f32 %v10850, 0.0
      %v10861 = vmax.f32 %v10855, 0.0
      %v10866 = vcombine.high %v10858, %v10858
      %v10868 = vunpack.c.l.s4 1983009808
      %v10869 = vunpack.c.0.s8 %v10868
      %v10870 = vlaneseq
      %v10871 = vshrl.u32 %v10870, 7
      %v10872 = vsub.s32 %v10869, %v10871
      %v10873 = vrot.slane %v10858, %v10872
      %v10875 = vunpack.c.l.s4 1983009808
      %v10876 = vunpack.c.0.s8 %v10875
      %v10877 = vlaneseq
      %v10878 = vshrl.u32 %v10877, 7
      %v10879 = vsub.s32 %v10876, %v10878
      %v10880 = vrot.slane %v10866, %v10879
      %v10881 = vcombine.high %v10873, %v10873
      %v10882 = vcombine.high %v10880, %v10880
      %v10883 = vcombine.high %v10859, %v10859
      %v10885 = vunpack.c.l.s4 1983009808
      %v10886 = vunpack.c.0.s8 %v10885
      %v10887 = vlaneseq
      %v10888 = vshrl.u32 %v10887, 7
      %v10889 = vsub.s32 %v10886, %v10888
      %v10890 = vrot.slane %v10859, %v10889
      %v10892 = vunpack.c.l.s4 1983009808
      %v10893 = vunpack.c.0.s8 %v10892
      %v10894 = vlaneseq
      %v10895 = vshrl.u32 %v10894, 7
      %v10896 = vsub.s32 %v10893, %v10895
      %v10897 = vrot.slane %v10883, %v10896
      %v10898 = vcombine.high %v10890, %v10890
      %v10899 = vcombine.high %v10897, %v10897
      %v10900 = vcombine.high %v10860, %v10860
      %v10902 = vunpack.c.l.s4 1983009808
      %v10903 = vunpack.c.0.s8 %v10902
      %v10904 = vlaneseq
      %v10905 = vshrl.u32 %v10904, 7
      %v10906 = vsub.s32 %v10903, %v10905
      %v10907 = vrot.slane %v10860, %v10906
      %v10909 = vunpack.c.l.s4 1983009808
      %v10910 = vunpack.c.0.s8 %v10909
      %v10911 = vlaneseq
      %v10912 = vshrl.u32 %v10911, 7
      %v10913 = vsub.s32 %v10910, %v10912
      %v10914 = vrot.slane %v10900, %v10913
      %v10915 = vcombine.high %v10907, %v10907
      %v10916 = vcombine.high %v10914, %v10914
      %v10917 = vcombine.high %v10861, %v10861
      %v10919 = vunpack.c.l.s4 1983009808
      %v10920 = vunpack.c.0.s8 %v10919
      %v10921 = vlaneseq
      %v10922 = vshrl.u32 %v10921, 7
      %v10923 = vsub.s32 %v10920, %v10922
      %v10924 = vrot.slane %v10861, %v10923
      %v10926 = vunpack.c.l.s4 1983009808
      %v10927 = vunpack.c.0.s8 %v10926
      %v10928 = vlaneseq
      %v10929 = vshrl.u32 %v10928, 7
      %v10930 = vsub.s32 %v10927, %v10929
      %v10931 = vrot.slane %v10917, %v10930
      %v10932 = vcombine.high %v10924, %v10924
      %v10933 = vcombine.high %v10931, %v10931
      %vm10950 = vcmask 254976
      %v10951 = vsel %vm10950, %v10873, -inf
      %v10952 = vrot.slane %v10951, 4
      %v10953 = vmax.f32 %v10951, %v10952
      %v10954 = vrot.slane %v10953, 2
      %v10955 = vmax.f32 %v10953, %v10954
      %v10956 = vrot.slane %v10955, 1
      %v10957 = vmax.f32 %v10955, %v10956
      %v10958 = vsel %vm10950, %v10881, -inf
      %v10959 = vrot.slane %v10958, 4
      %v10960 = vmax.f32 %v10958, %v10959
      %v10961 = vrot.slane %v10960, 2
      %v10962 = vmax.f32 %v10960, %v10961
      %v10963 = vrot.slane %v10962, 1
      %v10964 = vmax.f32 %v10962, %v10963
      %v10965 = vsel %vm10950, %v10880, -inf
      %v10966 = vrot.slane %v10965, 4
      %v10967 = vmax.f32 %v10965, %v10966
      %v10968 = vrot.slane %v10967, 2
      %v10969 = vmax.f32 %v10967, %v10968
      %v10970 = vrot.slane %v10969, 1
      %v10971 = vmax.f32 %v10969, %v10970
      %v10972 = vsel %vm10950, %v10882, -inf
      %v10973 = vrot.slane %v10972, 4
      %v10974 = vmax.f32 %v10972, %v10973
      %v10975 = vrot.slane %v10974, 2
      %v10976 = vmax.f32 %v10974, %v10975
      %v10977 = vrot.slane %v10976, 1
      %v10978 = vmax.f32 %v10976, %v10977
      %v10979 = vsel %vm10950, %v10890, -inf
      %v10980 = vrot.slane %v10979, 4
      %v10981 = vmax.f32 %v10979, %v10980
      %v10982 = vrot.slane %v10981, 2
      %v10983 = vmax.f32 %v10981, %v10982
      %v10984 = vrot.slane %v10983, 1
      %v10985 = vmax.f32 %v10983, %v10984
      %v10986 = vsel %vm10950, %v10898, -inf
      %v10987 = vrot.slane %v10986, 4
      %v10988 = vmax.f32 %v10986, %v10987
      %v10989 = vrot.slane %v10988, 2
      %v10990 = vmax.f32 %v10988, %v10989
      %v10991 = vrot.slane %v10990, 1
      %v10992 = vmax.f32 %v10990, %v10991
      %v10993 = vsel %vm10950, %v10897, -inf
      %v10994 = vrot.slane %v10993, 4
      %v10995 = vmax.f32 %v10993, %v10994
      %v10996 = vrot.slane %v10995, 2
      %v10997 = vmax.f32 %v10995, %v10996
      %v10998 = vrot.slane %v10997, 1
      %v10999 = vmax.f32 %v10997, %v10998
      %v11000 = vsel %vm10950, %v10899, -inf
      %v11001 = vrot.slane %v11000, 4
      %v11002 = vmax.f32 %v11000, %v11001
      %v11003 = vrot.slane %v11002, 2
      %v11004 = vmax.f32 %v11002, %v11003
      %v11005 = vrot.slane %v11004, 1
      %v11006 = vmax.f32 %v11004, %v11005
      %v11007 = vsel %vm10950, %v10907, -inf
      %v11008 = vrot.slane %v11007, 4
      %v11009 = vmax.f32 %v11007, %v11008
      %v11010 = vrot.slane %v11009, 2
      %v11011 = vmax.f32 %v11009, %v11010
      %v11012 = vrot.slane %v11011, 1
      %v11013 = vmax.f32 %v11011, %v11012
      %v11014 = vsel %vm10950, %v10915, -inf
      %v11015 = vrot.slane %v11014, 4
      %v11016 = vmax.f32 %v11014, %v11015
      %v11017 = vrot.slane %v11016, 2
      %v11018 = vmax.f32 %v11016, %v11017
      %v11019 = vrot.slane %v11018, 1
      %v11020 = vmax.f32 %v11018, %v11019
      %v11021 = vsel %vm10950, %v10914, -inf
      %v11022 = vrot.slane %v11021, 4
      %v11023 = vmax.f32 %v11021, %v11022
      %v11024 = vrot.slane %v11023, 2
      %v11025 = vmax.f32 %v11023, %v11024
      %v11026 = vrot.slane %v11025, 1
      %v11027 = vmax.f32 %v11025, %v11026
      %v11028 = vsel %vm10950, %v10916, -inf
      %v11029 = vrot.slane %v11028, 4
      %v11030 = vmax.f32 %v11028, %v11029
      %v11031 = vrot.slane %v11030, 2
      %v11032 = vmax.f32 %v11030, %v11031
      %v11033 = vrot.slane %v11032, 1
      %v11034 = vmax.f32 %v11032, %v11033
      %v11035 = vsel %vm10950, %v10924, -inf
      %v11036 = vrot.slane %v11035, 4
      %v11037 = vmax.f32 %v11035, %v11036
      %v11038 = vrot.slane %v11037, 2
      %v11039 = vmax.f32 %v11037, %v11038
      %v11040 = vrot.slane %v11039, 1
      %v11041 = vmax.f32 %v11039, %v11040
      %v11042 = vsel %vm10950, %v10932, -inf
      %v11043 = vrot.slane %v11042, 4
      %v11044 = vmax.f32 %v11042, %v11043
      %v11045 = vrot.slane %v11044, 2
      %v11046 = vmax.f32 %v11044, %v11045
      %v11047 = vrot.slane %v11046, 1
      %v11048 = vmax.f32 %v11046, %v11047
      %v11049 = vsel %vm10950, %v10931, -inf
      %v11050 = vrot.slane %v11049, 4
      %v11051 = vmax.f32 %v11049, %v11050
      %v11052 = vrot.slane %v11051, 2
      %v11053 = vmax.f32 %v11051, %v11052
      %v11054 = vrot.slane %v11053, 1
      %v11055 = vmax.f32 %v11053, %v11054
      %v11056 = vsel %vm10950, %v10933, -inf
      %v11057 = vrot.slane %v11056, 4
      %v11058 = vmax.f32 %v11056, %v11057
      %v11059 = vrot.slane %v11058, 2
      %v11060 = vmax.f32 %v11058, %v11059
      %v11061 = vrot.slane %v11060, 1
      %v11062 = vmax.f32 %v11060, %v11061
      %v11063 = vsel %vm9035, %v10957, -inf
      %v11064 = vsel %vm9035, %v10971, -inf
      %v11065 = vmax.f32 %v11063, %v11064
      %v11066 = vsel %vm9035, %v10964, -inf
      %v11067 = vsel %vm9035, %v10978, -inf
      %v11068 = vmax.f32 %v11066, %v11067
      %v11069 = vsel %vm9035, %v10985, -inf
      %v11070 = vsel %vm9035, %v10999, -inf
      %v11071 = vmax.f32 %v11069, %v11070
      %v11072 = vsel %vm9035, %v10992, -inf
      %v11073 = vsel %vm9035, %v11006, -inf
      %v11074 = vmax.f32 %v11072, %v11073
      %v11075 = vsel %vm9035, %v11013, -inf
      %v11076 = vsel %vm9035, %v11027, -inf
      %v11077 = vmax.f32 %v11075, %v11076
      %v11078 = vsel %vm9035, %v11020, -inf
      %v11079 = vsel %vm9035, %v11034, -inf
      %v11080 = vmax.f32 %v11078, %v11079
      %v11081 = vsel %vm9035, %v11041, -inf
      %v11082 = vsel %vm9035, %v11055, -inf
      %v11083 = vmax.f32 %v11081, %v11082
      %v11084 = vsel %vm9035, %v11048, -inf
      %v11085 = vsel %vm9035, %v11062, -inf
      %v11086 = vmax.f32 %v11084, %v11085
      %vm11087 = vcmask 257024
      %11088 = vst.msk [vmem:[#allocation5] sm:$0xf] %vm11087, 0.0
      %11089 = vst.msk [vmem:[#allocation5 + $0x10] sm:$0xf] %vm11087, 0.0
      %s11090 = scalar_lea.vmem [#allocation5], 12
      %11091 = vst.msk [vmem:[%s11090] sm:$0xf] %vm11087, 0.0
      %11092 = vst.msk [vmem:[%s11090 + $0x10] sm:$0xf] %vm11087, 0.0
      %vm11093 = vcmask 253952
      %11094 = vst.msk [vmem:[#allocation5] sm:$0x1] %vm11093, 0.0
      %11095 = vst.msk [vmem:[#allocation5 + $0x4] sm:$0x1] %vm11093, 0.0
      %11096 = vst.msk [vmem:[#allocation5 + $0x8] sm:$0x1] %vm11093, 0.0
      %11097 = vst.msk [vmem:[#allocation5 + $0xc] sm:$0x1] %vm11093, 0.0
      %11098 = vst.msk [vmem:[#allocation5 + $0x10] sm:$0x1] %vm11093, 0.0
      %11099 = vst.msk [vmem:[#allocation5 + $0x14] sm:$0x1] %vm11093, 0.0
      %11100 = vst.msk [vmem:[#allocation5 + $0x18] sm:$0x1] %vm11093, 0.0
      %11101 = vst.msk [vmem:[#allocation5 + $0x1c] sm:$0x1] %vm11093, 0.0
      %11102 = vst.msk [vmem:[#allocation5 + $0x3] sm:$0x1] %vm11093, 0.0
      %11103 = vst.msk [vmem:[#allocation5 + $0x7] sm:$0x1] %vm11093, 0.0
      %11104 = vst.msk [vmem:[#allocation5 + $0xb] sm:$0x1] %vm11093, 0.0
      %11105 = vst.msk [vmem:[#allocation5 + $0xf] sm:$0x1] %vm11093, 0.0
      %11106 = vst.msk [vmem:[#allocation5 + $0x13] sm:$0x1] %vm11093, 0.0
      %11107 = vst.msk [vmem:[#allocation5 + $0x17] sm:$0x1] %vm11093, 0.0
      %11108 = vst.msk [vmem:[#allocation5 + $0x1b] sm:$0x1] %vm11093, 0.0
      %11109 = vst.msk [vmem:[#allocation5 + $0x1f] sm:$0x1] %vm11093, 0.0
      %v11118 = vsel %vm8177, %v11068, %v11065
      %v11119 = vsel %vm8177, %v11074, %v11071
      %v11120 = vsel %vm8177, %v11080, %v11077
      %v11121 = vsel %vm8177, %v11086, %v11083
      %s11126 = scalar_lea.vmem [#allocation5], 4
      %11127 = vst.msk [vmem:[%s11126 + $0x1] sm:$0x3] %vm10950, %v11118
      %11128 = vst.msk [vmem:[%s11126 + $0x5] sm:$0x3] %vm10950, %v11119
      %11129 = vst.msk [vmem:[%s11126 + $0x11] sm:$0x3] %vm10950, %v11120
      %11130 = vst.msk [vmem:[%s11126 + $0x15] sm:$0x3] %vm10950, %v11121
      %v11131 = vld [vmem:[#allocation5] sm:$0x3]
      %v11132 = vld [vmem:[#allocation5 + $0x4] sm:$0x3]
      %v11133 = vld [vmem:[#allocation5 + $0x10] sm:$0x3]
      %v11134 = vld [vmem:[#allocation5 + $0x14] sm:$0x3]
      %v11135 = vld [vmem:[#allocation5 + $0x1] sm:$0x3]
      %v11136 = vld [vmem:[#allocation5 + $0x5] sm:$0x3]
      %v11137 = vld [vmem:[#allocation5 + $0x11] sm:$0x3]
      %v11138 = vld [vmem:[#allocation5 + $0x15] sm:$0x3]
      %v11139 = vld [vmem:[#allocation5 + $0x2] sm:$0x3]
      %v11140 = vld [vmem:[#allocation5 + $0x6] sm:$0x3]
      %v11141 = vld [vmem:[#allocation5 + $0x12] sm:$0x3]
      %v11142 = vld [vmem:[#allocation5 + $0x16] sm:$0x3]
      %v11143 = vld [vmem:[%s11126] sm:$0x3]
      %v11144 = vld [vmem:[%s11126 + $0x4] sm:$0x3]
      %v11145 = vld [vmem:[%s11126 + $0x10] sm:$0x3]
      %v11146 = vld [vmem:[%s11126 + $0x14] sm:$0x3]
      %v11147 = vld [vmem:[%s11126 + $0x1] sm:$0x3]
      %v11148 = vld [vmem:[%s11126 + $0x5] sm:$0x3]
      %v11149 = vld [vmem:[%s11126 + $0x11] sm:$0x3]
      %v11150 = vld [vmem:[%s11126 + $0x15] sm:$0x3]
      %v11151 = vld [vmem:[%s11126 + $0x2] sm:$0x3]
      %v11152 = vld [vmem:[%s11126 + $0x6] sm:$0x3]
      %v11153 = vld [vmem:[%s11126 + $0x12] sm:$0x3]
      %v11154 = vld [vmem:[%s11126 + $0x16] sm:$0x3]
      %s11155 = scalar_lea.vmem [#allocation5], 8
      %v11156 = vld [vmem:[%s11155] sm:$0x3]
      %v11157 = vld [vmem:[%s11155 + $0x4] sm:$0x3]
      %v11158 = vld [vmem:[%s11155 + $0x10] sm:$0x3]
      %v11159 = vld [vmem:[%s11155 + $0x14] sm:$0x3]
      %v11160 = vld [vmem:[%s11155 + $0x1] sm:$0x3]
      %v11161 = vld [vmem:[%s11155 + $0x5] sm:$0x3]
      %v11162 = vld [vmem:[%s11155 + $0x11] sm:$0x3]
      %v11163 = vld [vmem:[%s11155 + $0x15] sm:$0x3]
      %v11164 = vld [vmem:[%s11155 + $0x2] sm:$0x3]
      %v11165 = vld [vmem:[%s11155 + $0x6] sm:$0x3]
      %v11166 = vld [vmem:[%s11155 + $0x12] sm:$0x3]
      %v11167 = vld [vmem:[%s11155 + $0x16] sm:$0x3]
      %11172 = vrot.lane.b32.xlu0 %v11135, 32
      %v11173 = vpop.permute.xlu0 %11172
      %11174 = vrot.lane.b32.xlu0 %v11136, 32
      %v11175 = vpop.permute.xlu0 %11174
      %11176 = vrot.lane.b32.xlu0 %v11137, 32
      %v11177 = vpop.permute.xlu0 %11176
      %11178 = vrot.lane.b32.xlu0 %v11138, 32
      %v11179 = vpop.permute.xlu0 %11178
      %11188 = vrot.lane.b32.xlu0 %v11139, 64
      %v11189 = vpop.permute.xlu0 %11188
      %11190 = vrot.lane.b32.xlu0 %v11140, 64
      %v11191 = vpop.permute.xlu0 %11190
      %11192 = vrot.lane.b32.xlu0 %v11141, 64
      %v11193 = vpop.permute.xlu0 %11192
      %11194 = vrot.lane.b32.xlu0 %v11142, 64
      %v11195 = vpop.permute.xlu0 %11194
      %11204 = vrot.lane.b32.xlu0 %v11143, 96
      %v11205 = vpop.permute.xlu0 %11204
      %11206 = vrot.lane.b32.xlu0 %v11144, 96
      %v11207 = vpop.permute.xlu0 %11206
      %11208 = vrot.lane.b32.xlu0 %v11145, 96
      %v11209 = vpop.permute.xlu0 %11208
      %11210 = vrot.lane.b32.xlu0 %v11146, 96
      %v11211 = vpop.permute.xlu0 %11210
      %11220 = vrot.lane.b32.xlu0 %v11151, 32
      %v11221 = vpop.permute.xlu0 %11220
      %11222 = vrot.lane.b32.xlu0 %v11152, 32
      %v11223 = vpop.permute.xlu0 %11222
      %11224 = vrot.lane.b32.xlu0 %v11153, 32
      %v11225 = vpop.permute.xlu0 %11224
      %11226 = vrot.lane.b32.xlu0 %v11154, 32
      %v11227 = vpop.permute.xlu0 %11226
      %11236 = vrot.lane.b32.xlu0 %v11156, 64
      %v11237 = vpop.permute.xlu0 %11236
      %11238 = vrot.lane.b32.xlu0 %v11157, 64
      %v11239 = vpop.permute.xlu0 %11238
      %11240 = vrot.lane.b32.xlu0 %v11158, 64
      %v11241 = vpop.permute.xlu0 %11240
      %11242 = vrot.lane.b32.xlu0 %v11159, 64
      %v11243 = vpop.permute.xlu0 %11242
      %11252 = vrot.lane.b32.xlu0 %v11160, 96
      %v11253 = vpop.permute.xlu0 %11252
      %11254 = vrot.lane.b32.xlu0 %v11161, 96
      %v11255 = vpop.permute.xlu0 %11254
      %11256 = vrot.lane.b32.xlu0 %v11162, 96
      %v11257 = vpop.permute.xlu0 %11256
      %11258 = vrot.lane.b32.xlu0 %v11163, 96
      %v11259 = vpop.permute.xlu0 %11258
      %v11264 = vsel %vm9035, %v11131, %v11173
      %v11265 = vsel %vm9035, %v11132, %v11175
      %v11266 = vsel %vm9035, %v11133, %v11177
      %v11267 = vsel %vm9035, %v11134, %v11179
      %v11268 = vsel %vm9103, %v11264, %v11189
      %v11269 = vsel %vm9103, %v11265, %v11191
      %v11270 = vsel %vm9103, %v11266, %v11193
      %v11271 = vsel %vm9103, %v11267, %v11195
      %v11272 = vsel %vm10686, %v11268, %v11205
      %v11273 = vsel %vm10686, %v11269, %v11207
      %v11274 = vsel %vm10686, %v11270, %v11209
      %v11275 = vsel %vm10686, %v11271, %v11211
      %v11276 = vsel %vm9035, %v11147, %v11221
      %v11277 = vsel %vm9035, %v11148, %v11223
      %v11278 = vsel %vm9035, %v11149, %v11225
      %v11279 = vsel %vm9035, %v11150, %v11227
      %v11280 = vsel %vm9103, %v11276, %v11237
      %v11281 = vsel %vm9103, %v11277, %v11239
      %v11282 = vsel %vm9103, %v11278, %v11241
      %v11283 = vsel %vm9103, %v11279, %v11243
      %v11284 = vsel %vm10686, %v11280, %v11253
      %v11285 = vsel %vm10686, %v11281, %v11255
      %v11286 = vsel %vm10686, %v11282, %v11257
      %v11287 = vsel %vm10686, %v11283, %v11259
      %v11300 = vcombine.low %v11272, %v11284
      %v11302 = vunpack.c.l.s4 1983009808
      %v11303 = vunpack.c.0.s8 %v11302
      %v11304 = vlaneseq
      %v11305 = vshrl.u32 %v11304, 7
      %v11306 = vsub.s32 %v11303, %v11305
      %v11307 = vrot.slane %v11300, %v11306
      %v11309 = vunpack.c.l.s4 1983009808
      %v11310 = vunpack.c.0.s8 %v11309
      %v11311 = vlaneseq
      %v11312 = vshrl.u32 %v11311, 7
      %v11313 = vsub.s32 %v11310, %v11312
      %v11314 = vrot.slane %v11164, %v11313
      %v11315 = vcombine.low %v11307, %v11314
      %v11316 = vcombine.low %v11273, %v11285
      %v11318 = vunpack.c.l.s4 1983009808
      %v11319 = vunpack.c.0.s8 %v11318
      %v11320 = vlaneseq
      %v11321 = vshrl.u32 %v11320, 7
      %v11322 = vsub.s32 %v11319, %v11321
      %v11323 = vrot.slane %v11316, %v11322
      %v11325 = vunpack.c.l.s4 1983009808
      %v11326 = vunpack.c.0.s8 %v11325
      %v11327 = vlaneseq
      %v11328 = vshrl.u32 %v11327, 7
      %v11329 = vsub.s32 %v11326, %v11328
      %v11330 = vrot.slane %v11165, %v11329
      %v11331 = vcombine.low %v11323, %v11330
      %v11332 = vcombine.low %v11274, %v11286
      %v11334 = vunpack.c.l.s4 1983009808
      %v11335 = vunpack.c.0.s8 %v11334
      %v11336 = vlaneseq
      %v11337 = vshrl.u32 %v11336, 7
      %v11338 = vsub.s32 %v11335, %v11337
      %v11339 = vrot.slane %v11332, %v11338
      %v11341 = vunpack.c.l.s4 1983009808
      %v11342 = vunpack.c.0.s8 %v11341
      %v11343 = vlaneseq
      %v11344 = vshrl.u32 %v11343, 7
      %v11345 = vsub.s32 %v11342, %v11344
      %v11346 = vrot.slane %v11166, %v11345
      %v11347 = vcombine.low %v11339, %v11346
      %v11348 = vcombine.low %v11275, %v11287
      %v11350 = vunpack.c.l.s4 1983009808
      %v11351 = vunpack.c.0.s8 %v11350
      %v11352 = vlaneseq
      %v11353 = vshrl.u32 %v11352, 7
      %v11354 = vsub.s32 %v11351, %v11353
      %v11355 = vrot.slane %v11348, %v11354
      %v11357 = vunpack.c.l.s4 1983009808
      %v11358 = vunpack.c.0.s8 %v11357
      %v11359 = vlaneseq
      %v11360 = vshrl.u32 %v11359, 7
      %v11361 = vsub.s32 %v11358, %v11360
      %v11362 = vrot.slane %v11167, %v11361
      %v11363 = vcombine.low %v11355, %v11362
      %v11364 = vld [vmem:[%s7] sm:$0xff]
      %v11365 = vld [vmem:[%s7 + $0x8] sm:$0xff]
      %v11366 = vld [vmem:[%s7 + $0x10] sm:$0xff]
      %v11367 = vld [vmem:[%s7 + $0x18] sm:$0xff]
      %v11368 = vld [vmem:[%s7 + $0x20] sm:$0xff]
      %v11369 = vld [vmem:[%s7 + $0x28] sm:$0xff]
      %v11370 = vld [vmem:[%s7 + $0x30] sm:$0xff]
      %v11371 = vld [vmem:[%s7 + $0x38] sm:$0xff]
      %v11372 = vld [vmem:[%s7 + $0x40] sm:$0xff]
      %v11373 = vld [vmem:[%s7 + $0x48] sm:$0xff]
      %v11374 = vld [vmem:[%s7 + $0x50] sm:$0xff]
      %v11375 = vld [vmem:[%s7 + $0x58] sm:$0xff]
      %v11376 = vld [vmem:[%s7 + $0x60] sm:$0xff]
      %v11377 = vld [vmem:[%s7 + $0x68] sm:$0xff]
      %v11378 = vld [vmem:[%s7 + $0x70] sm:$0xff]
      %v11379 = vld [vmem:[%s7 + $0x78] sm:$0xff]
      %v11380 = vld [vmem:[%s7 + $0x80] sm:$0xff]
      %v11381 = vld [vmem:[%s7 + $0x88] sm:$0xff]
      %v11382 = vld [vmem:[%s7 + $0x90] sm:$0xff]
      %v11383 = vld [vmem:[%s7 + $0x98] sm:$0xff]
      %v11384 = vld [vmem:[%s7 + $0xa0] sm:$0xff]
      %v11385 = vld [vmem:[%s7 + $0xa8] sm:$0xff]
      %v11386 = vld [vmem:[%s7 + $0xb0] sm:$0xff]
      %v11387 = vld [vmem:[%s7 + $0xb8] sm:$0xff]
      %v11388 = vld [vmem:[%s7 + $0xc0] sm:$0xff]
      %v11389 = vld [vmem:[%s7 + $0xc8] sm:$0xff]
      %v11390 = vld [vmem:[%s7 + $0xd0] sm:$0xff]
      %v11391 = vld [vmem:[%s7 + $0xd8] sm:$0xff]
      %v11392 = vld [vmem:[%s7 + $0xe0] sm:$0xff]
      %v11393 = vld [vmem:[%s7 + $0xe8] sm:$0xff]
      %v11394 = vld [vmem:[%s7 + $0xf0] sm:$0xff]
      %v11395 = vld [vmem:[%s7 + $0xf8] sm:$0xff]
      %v11396 = vld [vmem:[%s7 + $0x100] sm:$0xff]
      %v11397 = vld [vmem:[%s7 + $0x108] sm:$0xff]
      %v11398 = vld [vmem:[%s7 + $0x110] sm:$0xff]
      %v11399 = vld [vmem:[%s7 + $0x118] sm:$0xff]
      %v11400 = vld [vmem:[%s8] sm:$0x1]
      %v11402 = vlaneseq
      %v11403 = vshrl.u32 %v11402, 7
      %v11404 = vsub.s32 0, %v11403
      %v11405 = vrot.slane %v11400, %v11404
      %v11407 = vcombine.low %v11315, %v11331
      %v11408 = vcombine.high %v11315, %v11331
      %v11409 = vcombine.low %v11347, %v11363
      %v11410 = vcombine.high %v11347, %v11363
      %v11412 = vunpack.c.l.s4 1983009808
      %v11413 = vunpack.c.0.s8 %v11412
      %v11414 = vlaneseq
      %v11415 = vshrl.u32 %v11414, 7
      %v11416 = vsub.s32 %v11413, %v11415
      %v11417 = vrot.slane %v11407, %v11416
      %v11419 = vunpack.c.l.s4 1983009808
      %v11420 = vunpack.c.0.s8 %v11419
      %v11421 = vlaneseq
      %v11422 = vshrl.u32 %v11421, 7
      %v11423 = vsub.s32 %v11420, %v11422
      %v11424 = vrot.slane %v11408, %v11423
      %v11426 = vunpack.c.l.s4 1983009808
      %v11427 = vunpack.c.0.s8 %v11426
      %v11428 = vlaneseq
      %v11429 = vshrl.u32 %v11428, 7
      %v11430 = vsub.s32 %v11427, %v11429
      %v11431 = vrot.slane %v11409, %v11430
      %v11433 = vunpack.c.l.s4 1983009808
      %v11434 = vunpack.c.0.s8 %v11433
      %v11435 = vlaneseq
      %v11436 = vshrl.u32 %v11435, 7
      %v11437 = vsub.s32 %v11434, %v11436
      %v11438 = vrot.slane %v11410, %v11437
      %v11439 = vcombine.low %v11417, %v11431
      %v11440 = vcombine.high %v11417, %v11431
      %v11441 = vcombine.low %v11424, %v11438
      %v11444 = vsel %vm9035, %v11441, 0
      %11446 = vmatprep.subr.mxu0 0.0
      %11447 = vmatpush1.msra.mxu0 %v11364
      %11448 = vmatprep.subr.mxu0 0.0
      %11449 = vmatpush1.msra.mxu0 %v11365
      %11450 = vmatprep.subr.mxu0 0.0
      %11451 = vmatpush1.msra.mxu0 %v11366
      %11452 = vmatprep.subr.mxu0 0.0
      %11453 = vmatpush1.msra.mxu0 %v11367
      %11454 = vmatprep.subr.mxu0 0.0
      %11455 = vmatpush1.msra.mxu0 %v11368
      %11456 = vmatprep.subr.mxu0 0.0
      %11457 = vmatpush1.msra.mxu0 %v11369
      %11458 = vmatprep.subr.mxu0 0.0
      %11459 = vmatpush1.msra.mxu0 %v11370
      %11460 = vmatprep.subr.mxu0 0.0
      %11461 = vmatpush1.msra.mxu0 %v11371
      %11462 = vmatprep.subr.mxu0 0.0
      %11463 = vmatpush1.msra.mxu0 %v11372
      %11464 = vmatprep.subr.mxu0 0.0
      %11465 = vmatpush1.msra.mxu0 %v11373
      %11466 = vmatprep.subr.mxu0 0.0
      %11467 = vmatpush1.msra.mxu0 %v11374
      %11468 = vmatprep.subr.mxu0 0.0
      %11469 = vmatpush1.msra.mxu0 %v11375
      %11470 = vmatprep.subr.mxu0 0.0
      %11471 = vmatpush1.msra.mxu0 %v11376
      %11472 = vmatprep.subr.mxu0 0.0
      %11473 = vmatpush1.msra.mxu0 %v11377
      %11474 = vmatprep.subr.mxu0 0.0
      %11475 = vmatpush1.msra.mxu0 %v11378
      %11476 = vmatprep.subr.mxu0 0.0
      %11477 = vmatpush1.msra.mxu0 %v11379
      %11478 = vmatprep.subr.mxu0 0.0
      %11479 = vmatpush1.msra.mxu0 %v11380
      %11480 = vmatprep.subr.mxu0 0.0
      %11481 = vmatpush1.msra.mxu0 %v11381
      %11482 = vmatprep.subr.mxu0 0.0
      %11483 = vmatpush1.msra.mxu0 %v11382
      %11484 = vmatprep.subr.mxu0 0.0
      %11485 = vmatpush1.msra.mxu0 %v11383
      %11486 = vmatprep.subr.mxu0 0.0
      %11487 = vmatpush1.msra.mxu0 %v11384
      %11488 = vmatprep.subr.mxu0 0.0
      %11489 = vmatpush1.msra.mxu0 %v11385
      %11490 = vmatprep.subr.mxu0 0.0
      %11491 = vmatpush1.msra.mxu0 %v11386
      %11492 = vmatprep.subr.mxu0 0.0
      %11493 = vmatpush1.msra.mxu0 %v11387
      %11494 = vmatprep.subr.mxu0 0.0
      %11495 = vmatpush1.msra.mxu0 %v11388
      %11496 = vmatprep.subr.mxu0 0.0
      %11497 = vmatpush1.msra.mxu0 %v11389
      %11498 = vmatprep.subr.mxu0 0.0
      %11499 = vmatpush1.msra.mxu0 %v11390
      %11500 = vmatprep.subr.mxu0 0.0
      %11501 = vmatpush1.msra.mxu0 %v11391
      %11502 = vmatprep.subr.mxu0 0.0
      %11503 = vmatpush1.msra.mxu0 %v11392
      %11504 = vmatprep.subr.mxu0 0.0
      %11505 = vmatpush1.msra.mxu0 %v11393
      %11506 = vmatprep.subr.mxu0 0.0
      %11507 = vmatpush1.msra.mxu0 %v11394
      %11508 = vmatprep.subr.mxu0 0.0
      %11509 = vmatpush1.msra.mxu0 %v11395
      %11510 = vmatprep.mubr.f32.mxu0 %v11440
      %11511 = vmatmul.mubr.f32.gmra.mrb[0].mxu0 %v11439
      %v11512 = vpop.f32.mrb[0].mxu0
      %v11513 = vadd.f32 %v11405, %v11512
      %v11514 = vpop.f32.mrb[0].mxu0
      %11515 = vdwg.mxu0
      %11516 = vmatprep.subr.mxu0 0.0
      %11517 = vmatpush1.msra.mxu0 %v11396
      %11518 = vmatprep.subr.mxu0 0.0
      %11519 = vmatpush1.msra.mxu0 %v11397
      %11520 = vmatprep.subr.mxu0 0.0
      %11521 = vmatpush1.msra.mxu0 %v11398
      %11522 = vmatprep.subr.mxu0 0.0
      %11523 = vmatpush1.msra.mxu0 %v11399
      %11524 = vmatprep.subr.mxu0 0.0
      %11525 = vmatpush1.msra.mxu0 0.0
      %11526 = vmatprep.subr.mxu0 0.0
      %11527 = vmatpush1.msra.mxu0 0.0
      %11528 = vmatprep.subr.mxu0 0.0
      %11529 = vmatpush1.msra.mxu0 0.0
      %11530 = vmatprep.subr.mxu0 0.0
      %11531 = vmatpush1.msra.mxu0 0.0
      %11532 = vmatprep.subr.mxu0 0.0
      %11533 = vmatpush1.msra.mxu0 0.0
      %11534 = vmatprep.subr.mxu0 0.0
      %11535 = vmatpush1.msra.mxu0 0.0
      %11536 = vmatprep.subr.mxu0 0.0
      %11537 = vmatpush1.msra.mxu0 0.0
      %11538 = vmatprep.subr.mxu0 0.0
      %11539 = vmatpush1.msra.mxu0 0.0
      %11540 = vmatprep.subr.mxu0 0.0
      %11541 = vmatpush1.msra.mxu0 0.0
      %11542 = vmatprep.subr.mxu0 0.0
      %11543 = vmatpush1.msra.mxu0 0.0
      %11544 = vmatprep.subr.mxu0 0.0
      %11545 = vmatpush1.msra.mxu0 0.0
      %11546 = vmatprep.subr.mxu0 0.0
      %11547 = vmatpush1.msra.mxu0 0.0
      %11548 = vmatprep.subr.mxu0 0.0
      %11549 = vmatpush1.msra.mxu0 0.0
      %11550 = vmatprep.subr.mxu0 0.0
      %11551 = vmatpush1.msra.mxu0 0.0
      %11552 = vmatprep.subr.mxu0 0.0
      %11553 = vmatpush1.msra.mxu0 0.0
      %11554 = vmatprep.subr.mxu0 0.0
      %11555 = vmatpush1.msra.mxu0 0.0
      %11556 = vmatprep.subr.mxu0 0.0
      %11557 = vmatpush1.msra.mxu0 0.0
      %11558 = vmatprep.subr.mxu0 0.0
      %11559 = vmatpush1.msra.mxu0 0.0
      %11560 = vmatprep.subr.mxu0 0.0
      %11561 = vmatpush1.msra.mxu0 0.0
      %11562 = vmatprep.subr.mxu0 0.0
      %11563 = vmatpush1.msra.mxu0 0.0
      %11564 = vmatprep.subr.mxu0 0.0
      %11565 = vmatpush1.msra.mxu0 0.0
      %11566 = vmatprep.subr.mxu0 0.0
      %11567 = vmatpush1.msra.mxu0 0.0
      %11568 = vmatprep.subr.mxu0 0.0
      %11569 = vmatpush1.msra.mxu0 0.0
      %11570 = vmatprep.subr.mxu0 0.0
      %11571 = vmatpush1.msra.mxu0 0.0
      %11572 = vmatprep.subr.mxu0 0.0
      %11573 = vmatpush1.msra.mxu0 0.0
      %11574 = vmatprep.subr.mxu0 0.0
      %11575 = vmatpush1.msra.mxu0 0.0
      %11576 = vmatprep.subr.mxu0 0.0
      %11577 = vmatpush1.msra.mxu0 0.0
      %11578 = vmatprep.subr.mxu0 0.0
      %11579 = vmatpush1.msra.mxu0 0.0
      %11580 = vmatprep.mubr.f32.mxu0 0.0
      %11581 = vmatmul.mubr.f32.gmra.mrb[0].mxu0 %v11444
      %v11582 = vpop.f32.mrb[0].mxu0
      %v11583 = vadd.f32 %v11513, %v11582
      %v11584 = vpop.f32.mrb[0].mxu0
      %11585 = vdwg.mxu0
      %v11586 = vmax.f32 %v11583, 0.0
      %v11588 = vcombine.high %v11586, %v11586
      %v11590 = vunpack.c.l.s4 1983009808
      %v11591 = vunpack.c.0.s8 %v11590
      %v11592 = vlaneseq
      %v11593 = vshrl.u32 %v11592, 7
      %v11594 = vsub.s32 %v11591, %v11593
      %v11595 = vrot.slane %v11586, %v11594
      %v11597 = vunpack.c.l.s4 1983009808
      %v11598 = vunpack.c.0.s8 %v11597
      %v11599 = vlaneseq
      %v11600 = vshrl.u32 %v11599, 7
      %v11601 = vsub.s32 %v11598, %v11600
      %v11602 = vrot.slane %v11588, %v11601
      %v11603 = vcombine.high %v11595, %v11595
      %v11604 = vcombine.high %v11602, %v11602
      %vm11609 = vcmask 519168
      %11610 = vst.msk [vmem:[#allocation6] sm:$0xf] %vm11609, 0.0
      %11611 = vst.msk [vmem:[#allocation6 + $0x10] sm:$0xf] %vm11609, 0.0
      %s11612 = scalar_lea.vmem [#allocation6], 12
      %11613 = vst.msk [vmem:[%s11612] sm:$0xf] %vm11609, 0.0
      %11614 = vst.msk [vmem:[%s11612 + $0x10] sm:$0xf] %vm11609, 0.0
      %vm11615 = vcmask 516096
      %11616 = vst.msk [vmem:[#allocation6] sm:$0x1] %vm11615, 0.0
      %11617 = vst.msk [vmem:[#allocation6 + $0x4] sm:$0x1] %vm11615, 0.0
      %11618 = vst.msk [vmem:[#allocation6 + $0x8] sm:$0x1] %vm11615, 0.0
      %11619 = vst.msk [vmem:[#allocation6 + $0xc] sm:$0x1] %vm11615, 0.0
      %11620 = vst.msk [vmem:[#allocation6 + $0x10] sm:$0x1] %vm11615, 0.0
      %11621 = vst.msk [vmem:[#allocation6 + $0x14] sm:$0x1] %vm11615, 0.0
      %11622 = vst.msk [vmem:[#allocation6 + $0x18] sm:$0x1] %vm11615, 0.0
      %11623 = vst.msk [vmem:[#allocation6 + $0x1c] sm:$0x1] %vm11615, 0.0
      %11624 = vst.msk [vmem:[#allocation6 + $0x3] sm:$0x1] %vm11615, 0.0
      %11625 = vst.msk [vmem:[#allocation6 + $0x7] sm:$0x1] %vm11615, 0.0
      %11626 = vst.msk [vmem:[#allocation6 + $0xb] sm:$0x1] %vm11615, 0.0
      %11627 = vst.msk [vmem:[#allocation6 + $0xf] sm:$0x1] %vm11615, 0.0
      %11628 = vst.msk [vmem:[#allocation6 + $0x13] sm:$0x1] %vm11615, 0.0
      %11629 = vst.msk [vmem:[#allocation6 + $0x17] sm:$0x1] %vm11615, 0.0
      %11630 = vst.msk [vmem:[#allocation6 + $0x1b] sm:$0x1] %vm11615, 0.0
      %11631 = vst.msk [vmem:[#allocation6 + $0x1f] sm:$0x1] %vm11615, 0.0
      %s11632 = scalar_lea.vmem [#allocation6], 4
      %vm11633 = vcmask 517120
      %11634 = vst.msk [vmem:[%s11632 + $0x1] sm:$0x3] %vm11633, %v11595
      %11635 = vst.msk [vmem:[%s11632 + $0x5] sm:$0x3] %vm11633, %v11603
      %11636 = vst.msk [vmem:[%s11632 + $0x11] sm:$0x3] %vm11633, %v11602
      %11637 = vst.msk [vmem:[%s11632 + $0x15] sm:$0x3] %vm11633, %v11604
      %v11638 = vld [vmem:[#allocation6] sm:$0x3]
      %v11639 = vld [vmem:[#allocation6 + $0x4] sm:$0x3]
      %v11640 = vld [vmem:[#allocation6 + $0x10] sm:$0x3]
      %v11641 = vld [vmem:[#allocation6 + $0x14] sm:$0x3]
      %v11642 = vld [vmem:[#allocation6 + $0x1] sm:$0x3]
      %v11643 = vld [vmem:[#allocation6 + $0x5] sm:$0x3]
      %v11644 = vld [vmem:[#allocation6 + $0x11] sm:$0x3]
      %v11645 = vld [vmem:[#allocation6 + $0x15] sm:$0x3]
      %v11646 = vld [vmem:[#allocation6 + $0x2] sm:$0x3]
      %v11647 = vld [vmem:[#allocation6 + $0x6] sm:$0x3]
      %v11648 = vld [vmem:[#allocation6 + $0x12] sm:$0x3]
      %v11649 = vld [vmem:[#allocation6 + $0x16] sm:$0x3]
      %v11650 = vld [vmem:[%s11632] sm:$0x3]
      %v11651 = vld [vmem:[%s11632 + $0x4] sm:$0x3]
      %v11652 = vld [vmem:[%s11632 + $0x10] sm:$0x3]
      %v11653 = vld [vmem:[%s11632 + $0x14] sm:$0x3]
      %v11654 = vld [vmem:[%s11632 + $0x1] sm:$0x3]
      %v11655 = vld [vmem:[%s11632 + $0x5] sm:$0x3]
      %v11656 = vld [vmem:[%s11632 + $0x11] sm:$0x3]
      %v11657 = vld [vmem:[%s11632 + $0x15] sm:$0x3]
      %v11658 = vld [vmem:[%s11632 + $0x2] sm:$0x3]
      %v11659 = vld [vmem:[%s11632 + $0x6] sm:$0x3]
      %v11660 = vld [vmem:[%s11632 + $0x12] sm:$0x3]
      %v11661 = vld [vmem:[%s11632 + $0x16] sm:$0x3]
      %s11662 = scalar_lea.vmem [#allocation6], 8
      %v11663 = vld [vmem:[%s11662] sm:$0x3]
      %v11664 = vld [vmem:[%s11662 + $0x4] sm:$0x3]
      %v11665 = vld [vmem:[%s11662 + $0x10] sm:$0x3]
      %v11666 = vld [vmem:[%s11662 + $0x14] sm:$0x3]
      %v11667 = vld [vmem:[%s11662 + $0x1] sm:$0x3]
      %v11668 = vld [vmem:[%s11662 + $0x5] sm:$0x3]
      %v11669 = vld [vmem:[%s11662 + $0x11] sm:$0x3]
      %v11670 = vld [vmem:[%s11662 + $0x15] sm:$0x3]
      %v11671 = vld [vmem:[%s11662 + $0x2] sm:$0x3]
      %v11672 = vld [vmem:[%s11662 + $0x6] sm:$0x3]
      %v11673 = vld [vmem:[%s11662 + $0x12] sm:$0x3]
      %v11674 = vld [vmem:[%s11662 + $0x16] sm:$0x3]
      %11679 = vrot.lane.b32.xlu0 %v11642, 64
      %v11680 = vpop.permute.xlu0 %11679
      %11681 = vrot.lane.b32.xlu0 %v11643, 64
      %v11682 = vpop.permute.xlu0 %11681
      %11683 = vrot.lane.b32.xlu0 %v11644, 64
      %v11684 = vpop.permute.xlu0 %11683
      %11685 = vrot.lane.b32.xlu0 %v11645, 64
      %v11686 = vpop.permute.xlu0 %11685
      %11695 = vrot.lane.b32.xlu0 %v11650, 64
      %v11696 = vpop.permute.xlu0 %11695
      %11697 = vrot.lane.b32.xlu0 %v11651, 64
      %v11698 = vpop.permute.xlu0 %11697
      %11699 = vrot.lane.b32.xlu0 %v11652, 64
      %v11700 = vpop.permute.xlu0 %11699
      %11701 = vrot.lane.b32.xlu0 %v11653, 64
      %v11702 = vpop.permute.xlu0 %11701
      %11711 = vrot.lane.b32.xlu0 %v11658, 64
      %v11712 = vpop.permute.xlu0 %11711
      %11713 = vrot.lane.b32.xlu0 %v11659, 64
      %v11714 = vpop.permute.xlu0 %11713
      %11715 = vrot.lane.b32.xlu0 %v11660, 64
      %v11716 = vpop.permute.xlu0 %11715
      %11717 = vrot.lane.b32.xlu0 %v11661, 64
      %v11718 = vpop.permute.xlu0 %11717
      %11727 = vrot.lane.b32.xlu0 %v11667, 64
      %v11728 = vpop.permute.xlu0 %11727
      %11729 = vrot.lane.b32.xlu0 %v11668, 64
      %v11730 = vpop.permute.xlu0 %11729
      %11731 = vrot.lane.b32.xlu0 %v11669, 64
      %v11732 = vpop.permute.xlu0 %11731
      %11733 = vrot.lane.b32.xlu0 %v11670, 64
      %v11734 = vpop.permute.xlu0 %11733
      %v11739 = vsel %vm9103, %v11638, %v11680
      %v11740 = vsel %vm9103, %v11639, %v11682
      %v11741 = vsel %vm9103, %v11640, %v11684
      %v11742 = vsel %vm9103, %v11641, %v11686
      %v11743 = vsel %vm9103, %v11646, %v11696
      %v11744 = vsel %vm9103, %v11647, %v11698
      %v11745 = vsel %vm9103, %v11648, %v11700
      %v11746 = vsel %vm9103, %v11649, %v11702
      %v11747 = vsel %vm9103, %v11654, %v11712
      %v11748 = vsel %vm9103, %v11655, %v11714
      %v11749 = vsel %vm9103, %v11656, %v11716
      %v11750 = vsel %vm9103, %v11657, %v11718
      %v11751 = vsel %vm9103, %v11663, %v11728
      %v11752 = vsel %vm9103, %v11664, %v11730
      %v11753 = vsel %vm9103, %v11665, %v11732
      %v11754 = vsel %vm9103, %v11666, %v11734
      %v11775 = vcombine.low %v11739, %v11743
      %v11776 = vcombine.low %v11747, %v11751
      %v11778 = vunpack.c.l.s4 1983009808
      %v11779 = vunpack.c.0.s8 %v11778
      %v11780 = vlaneseq
      %v11781 = vshrl.u32 %v11780, 7
      %v11782 = vsub.s32 %v11779, %v11781
      %v11783 = vrot.slane %v11775, %v11782
      %v11785 = vunpack.c.l.s4 1983009808
      %v11786 = vunpack.c.0.s8 %v11785
      %v11787 = vlaneseq
      %v11788 = vshrl.u32 %v11787, 7
      %v11789 = vsub.s32 %v11786, %v11788
      %v11790 = vrot.slane %v11776, %v11789
      %v11791 = vcombine.low %v11783, %v11790
      %v11793 = vunpack.c.l.s4 1983009808
      %v11794 = vunpack.c.0.s8 %v11793
      %v11795 = vlaneseq
      %v11796 = vshrl.u32 %v11795, 7
      %v11797 = vsub.s32 %v11794, %v11796
      %v11798 = vrot.slane %v11671, %v11797
      %v11799 = vcombine.low %v11740, %v11744
      %v11800 = vcombine.low %v11748, %v11752
      %v11802 = vunpack.c.l.s4 1983009808
      %v11803 = vunpack.c.0.s8 %v11802
      %v11804 = vlaneseq
      %v11805 = vshrl.u32 %v11804, 7
      %v11806 = vsub.s32 %v11803, %v11805
      %v11807 = vrot.slane %v11799, %v11806
      %v11809 = vunpack.c.l.s4 1983009808
      %v11810 = vunpack.c.0.s8 %v11809
      %v11811 = vlaneseq
      %v11812 = vshrl.u32 %v11811, 7
      %v11813 = vsub.s32 %v11810, %v11812
      %v11814 = vrot.slane %v11800, %v11813
      %v11815 = vcombine.low %v11807, %v11814
      %v11817 = vunpack.c.l.s4 1983009808
      %v11818 = vunpack.c.0.s8 %v11817
      %v11819 = vlaneseq
      %v11820 = vshrl.u32 %v11819, 7
      %v11821 = vsub.s32 %v11818, %v11820
      %v11822 = vrot.slane %v11672, %v11821
      %v11823 = vcombine.low %v11741, %v11745
      %v11824 = vcombine.low %v11749, %v11753
      %v11826 = vunpack.c.l.s4 1983009808
      %v11827 = vunpack.c.0.s8 %v11826
      %v11828 = vlaneseq
      %v11829 = vshrl.u32 %v11828, 7
      %v11830 = vsub.s32 %v11827, %v11829
      %v11831 = vrot.slane %v11823, %v11830
      %v11833 = vunpack.c.l.s4 1983009808
      %v11834 = vunpack.c.0.s8 %v11833
      %v11835 = vlaneseq
      %v11836 = vshrl.u32 %v11835, 7
      %v11837 = vsub.s32 %v11834, %v11836
      %v11838 = vrot.slane %v11824, %v11837
      %v11839 = vcombine.low %v11831, %v11838
      %v11841 = vunpack.c.l.s4 1983009808
      %v11842 = vunpack.c.0.s8 %v11841
      %v11843 = vlaneseq
      %v11844 = vshrl.u32 %v11843, 7
      %v11845 = vsub.s32 %v11842, %v11844
      %v11846 = vrot.slane %v11673, %v11845
      %v11847 = vcombine.low %v11742, %v11746
      %v11848 = vcombine.low %v11750, %v11754
      %v11850 = vunpack.c.l.s4 1983009808
      %v11851 = vunpack.c.0.s8 %v11850
      %v11852 = vlaneseq
      %v11853 = vshrl.u32 %v11852, 7
      %v11854 = vsub.s32 %v11851, %v11853
      %v11855 = vrot.slane %v11847, %v11854
      %v11857 = vunpack.c.l.s4 1983009808
      %v11858 = vunpack.c.0.s8 %v11857
      %v11859 = vlaneseq
      %v11860 = vshrl.u32 %v11859, 7
      %v11861 = vsub.s32 %v11858, %v11860
      %v11862 = vrot.slane %v11848, %v11861
      %v11863 = vcombine.low %v11855, %v11862
      %v11865 = vunpack.c.l.s4 1983009808
      %v11866 = vunpack.c.0.s8 %v11865
      %v11867 = vlaneseq
      %v11868 = vshrl.u32 %v11867, 7
      %v11869 = vsub.s32 %v11866, %v11868
      %v11870 = vrot.slane %v11674, %v11869
      %v11871 = vld [vmem:[%s9] sm:$0xff]
      %v11872 = vld [vmem:[%s9 + $0x8] sm:$0xff]
      %v11873 = vld [vmem:[%s9 + $0x10] sm:$0xff]
      %v11874 = vld [vmem:[%s9 + $0x18] sm:$0xff]
      %v11875 = vld [vmem:[%s9 + $0x20] sm:$0xff]
      %v11876 = vld [vmem:[%s9 + $0x28] sm:$0xff]
      %v11877 = vld [vmem:[%s9 + $0x30] sm:$0xff]
      %v11878 = vld [vmem:[%s9 + $0x38] sm:$0xff]
      %v11879 = vld [vmem:[%s9 + $0x40] sm:$0xff]
      %v11880 = vld [vmem:[%s9 + $0x48] sm:$0xff]
      %v11881 = vld [vmem:[%s9 + $0x50] sm:$0xff]
      %v11882 = vld [vmem:[%s9 + $0x58] sm:$0xff]
      %v11883 = vld [vmem:[%s9 + $0x60] sm:$0xff]
      %v11884 = vld [vmem:[%s9 + $0x68] sm:$0xff]
      %v11885 = vld [vmem:[%s9 + $0x70] sm:$0xff]
      %v11886 = vld [vmem:[%s9 + $0x78] sm:$0xff]
      %v11887 = vld [vmem:[%s9 + $0x80] sm:$0xff]
      %v11888 = vld [vmem:[%s9 + $0x88] sm:$0xff]
      %v11889 = vld [vmem:[%s9 + $0x90] sm:$0xff]
      %v11890 = vld [vmem:[%s9 + $0x98] sm:$0xff]
      %v11891 = vld [vmem:[%s9 + $0xa0] sm:$0xff]
      %v11892 = vld [vmem:[%s9 + $0xa8] sm:$0xff]
      %v11893 = vld [vmem:[%s9 + $0xb0] sm:$0xff]
      %v11894 = vld [vmem:[%s9 + $0xb8] sm:$0xff]
      %v11895 = vld [vmem:[%s9 + $0xc0] sm:$0xff]
      %v11896 = vld [vmem:[%s9 + $0xc8] sm:$0xff]
      %v11897 = vld [vmem:[%s9 + $0xd0] sm:$0xff]
      %v11898 = vld [vmem:[%s9 + $0xd8] sm:$0xff]
      %v11899 = vld [vmem:[%s9 + $0xe0] sm:$0xff]
      %v11900 = vld [vmem:[%s9 + $0xe8] sm:$0xff]
      %v11901 = vld [vmem:[%s9 + $0xf0] sm:$0xff]
      %v11902 = vld [vmem:[%s9 + $0xf8] sm:$0xff]
      %v11903 = vld [vmem:[%s9 + $0x100] sm:$0xff]
      %v11904 = vld [vmem:[%s9 + $0x108] sm:$0xff]
      %v11905 = vld [vmem:[%s9 + $0x110] sm:$0xff]
      %v11906 = vld [vmem:[%s9 + $0x118] sm:$0xff]
      %v11907 = vld [vmem:[%s9 + $0x120] sm:$0xff]
      %v11908 = vld [vmem:[%s9 + $0x128] sm:$0xff]
      %v11909 = vld [vmem:[%s9 + $0x130] sm:$0xff]
      %v11910 = vld [vmem:[%s9 + $0x138] sm:$0xff]
      %v11911 = vld [vmem:[%s9 + $0x140] sm:$0xff]
      %v11912 = vld [vmem:[%s9 + $0x148] sm:$0xff]
      %v11913 = vld [vmem:[%s9 + $0x150] sm:$0xff]
      %v11914 = vld [vmem:[%s9 + $0x158] sm:$0xff]
      %v11915 = vld [vmem:[%s9 + $0x160] sm:$0xff]
      %v11916 = vld [vmem:[%s9 + $0x168] sm:$0xff]
      %v11917 = vld [vmem:[%s9 + $0x170] sm:$0xff]
      %v11918 = vld [vmem:[%s9 + $0x178] sm:$0xff]
      %v11919 = vld [vmem:[%s9 + $0x180] sm:$0xff]
      %v11920 = vld [vmem:[%s9 + $0x188] sm:$0xff]
      %v11921 = vld [vmem:[%s9 + $0x190] sm:$0xff]
      %v11922 = vld [vmem:[%s9 + $0x198] sm:$0xff]
      %v11923 = vld [vmem:[%s9 + $0x1a0] sm:$0xff]
      %v11924 = vld [vmem:[%s9 + $0x1a8] sm:$0xff]
      %v11925 = vld [vmem:[%s9 + $0x1b0] sm:$0xff]
      %v11926 = vld [vmem:[%s9 + $0x1b8] sm:$0xff]
      %v11927 = vld [vmem:[%s9 + $0x1c0] sm:$0xff]
      %v11928 = vld [vmem:[%s9 + $0x1c8] sm:$0xff]
      %v11929 = vld [vmem:[%s9 + $0x1d0] sm:$0xff]
      %v11930 = vld [vmem:[%s9 + $0x1d8] sm:$0xff]
      %v11931 = vld [vmem:[%s9 + $0x1e0] sm:$0xff]
      %v11932 = vld [vmem:[%s9 + $0x1e8] sm:$0xff]
      %v11933 = vld [vmem:[%s9 + $0x1f0] sm:$0xff]
      %v11934 = vld [vmem:[%s9 + $0x1f8] sm:$0xff]
      %v11935 = vld [vmem:[%s9 + $0x200] sm:$0xff]
      %v11936 = vld [vmem:[%s9 + $0x208] sm:$0xff]
      %v11937 = vld [vmem:[%s9 + $0x210] sm:$0xff]
      %v11938 = vld [vmem:[%s9 + $0x218] sm:$0xff]
      %v11939 = vld [vmem:[%s9 + $0x220] sm:$0xff]
      %v11940 = vld [vmem:[%s9 + $0x228] sm:$0xff]
      %v11941 = vld [vmem:[%s9 + $0x230] sm:$0xff]
      %v11942 = vld [vmem:[%s9 + $0x238] sm:$0xff]
      %v11943 = vld [vmem:[%s10] sm:$0x1]
      %v11945 = vlaneseq
      %v11946 = vshrl.u32 %v11945, 7
      %v11947 = vsub.s32 0, %v11946
      %v11948 = vrot.slane %v11943, %v11947
      %v11950 = vcombine.low %v11791, %v11815
      %v11951 = vcombine.high %v11791, %v11815
      %v11952 = vcombine.low %v11839, %v11863
      %v11953 = vcombine.high %v11839, %v11863
      %v11955 = vunpack.c.l.s4 1983009808
      %v11956 = vunpack.c.0.s8 %v11955
      %v11957 = vlaneseq
      %v11958 = vshrl.u32 %v11957, 7
      %v11959 = vsub.s32 %v11956, %v11958
      %v11960 = vrot.slane %v11950, %v11959
      %v11962 = vunpack.c.l.s4 1983009808
      %v11963 = vunpack.c.0.s8 %v11962
      %v11964 = vlaneseq
      %v11965 = vshrl.u32 %v11964, 7
      %v11966 = vsub.s32 %v11963, %v11965
      %v11967 = vrot.slane %v11951, %v11966
      %v11969 = vunpack.c.l.s4 1983009808
      %v11970 = vunpack.c.0.s8 %v11969
      %v11971 = vlaneseq
      %v11972 = vshrl.u32 %v11971, 7
      %v11973 = vsub.s32 %v11970, %v11972
      %v11974 = vrot.slane %v11952, %v11973
      %v11976 = vunpack.c.l.s4 1983009808
      %v11977 = vunpack.c.0.s8 %v11976
      %v11978 = vlaneseq
      %v11979 = vshrl.u32 %v11978, 7
      %v11980 = vsub.s32 %v11977, %v11979
      %v11981 = vrot.slane %v11953, %v11980
      %v11982 = vcombine.low %v11960, %v11974
      %v11983 = vcombine.high %v11960, %v11974
      %v11984 = vcombine.low %v11967, %v11981
      %v11985 = vcombine.high %v11967, %v11981
      %v11986 = vcombine.low %v11798, %v11822
      %v11987 = vcombine.low %v11846, %v11870
      %v11989 = vunpack.c.l.s4 1983009808
      %v11990 = vunpack.c.0.s8 %v11989
      %v11991 = vlaneseq
      %v11992 = vshrl.u32 %v11991, 7
      %v11993 = vsub.s32 %v11990, %v11992
      %v11994 = vrot.slane %v11986, %v11993
      %v11996 = vunpack.c.l.s4 1983009808
      %v11997 = vunpack.c.0.s8 %v11996
      %v11998 = vlaneseq
      %v11999 = vshrl.u32 %v11998, 7
      %v12000 = vsub.s32 %v11997, %v11999
      %v12001 = vrot.slane %v11987, %v12000
      %v12002 = vcombine.low %v11994, %v12001
      %v12007 = vsel %vm9103, %v12002, 0
      %12009 = vmatprep.subr.mxu0 0.0
      %12010 = vmatpush1.msra.mxu0 %v11871
      %12011 = vmatprep.subr.mxu0 0.0
      %12012 = vmatpush1.msra.mxu0 %v11872
      %12013 = vmatprep.subr.mxu0 0.0
      %12014 = vmatpush1.msra.mxu0 %v11873
      %12015 = vmatprep.subr.mxu0 0.0
      %12016 = vmatpush1.msra.mxu0 %v11874
      %12017 = vmatprep.subr.mxu0 0.0
      %12018 = vmatpush1.msra.mxu0 %v11875
      %12019 = vmatprep.subr.mxu0 0.0
      %12020 = vmatpush1.msra.mxu0 %v11876
      %12021 = vmatprep.subr.mxu0 0.0
      %12022 = vmatpush1.msra.mxu0 %v11877
      %12023 = vmatprep.subr.mxu0 0.0
      %12024 = vmatpush1.msra.mxu0 %v11878
      %12025 = vmatprep.subr.mxu0 0.0
      %12026 = vmatpush1.msra.mxu0 %v11879
      %12027 = vmatprep.subr.mxu0 0.0
      %12028 = vmatpush1.msra.mxu0 %v11880
      %12029 = vmatprep.subr.mxu0 0.0
      %12030 = vmatpush1.msra.mxu0 %v11881
      %12031 = vmatprep.subr.mxu0 0.0
      %12032 = vmatpush1.msra.mxu0 %v11882
      %12033 = vmatprep.subr.mxu0 0.0
      %12034 = vmatpush1.msra.mxu0 %v11883
      %12035 = vmatprep.subr.mxu0 0.0
      %12036 = vmatpush1.msra.mxu0 %v11884
      %12037 = vmatprep.subr.mxu0 0.0
      %12038 = vmatpush1.msra.mxu0 %v11885
      %12039 = vmatprep.subr.mxu0 0.0
      %12040 = vmatpush1.msra.mxu0 %v11886
      %12041 = vmatprep.subr.mxu0 0.0
      %12042 = vmatpush1.msra.mxu0 %v11887
      %12043 = vmatprep.subr.mxu0 0.0
      %12044 = vmatpush1.msra.mxu0 %v11888
      %12045 = vmatprep.subr.mxu0 0.0
      %12046 = vmatpush1.msra.mxu0 %v11889
      %12047 = vmatprep.subr.mxu0 0.0
      %12048 = vmatpush1.msra.mxu0 %v11890
      %12049 = vmatprep.subr.mxu0 0.0
      %12050 = vmatpush1.msra.mxu0 %v11891
      %12051 = vmatprep.subr.mxu0 0.0
      %12052 = vmatpush1.msra.mxu0 %v11892
      %12053 = vmatprep.subr.mxu0 0.0
      %12054 = vmatpush1.msra.mxu0 %v11893
      %12055 = vmatprep.subr.mxu0 0.0
      %12056 = vmatpush1.msra.mxu0 %v11894
      %12057 = vmatprep.subr.mxu0 0.0
      %12058 = vmatpush1.msra.mxu0 %v11895
      %12059 = vmatprep.subr.mxu0 0.0
      %12060 = vmatpush1.msra.mxu0 %v11896
      %12061 = vmatprep.subr.mxu0 0.0
      %12062 = vmatpush1.msra.mxu0 %v11897
      %12063 = vmatprep.subr.mxu0 0.0
      %12064 = vmatpush1.msra.mxu0 %v11898
      %12065 = vmatprep.subr.mxu0 0.0
      %12066 = vmatpush1.msra.mxu0 %v11899
      %12067 = vmatprep.subr.mxu0 0.0
      %12068 = vmatpush1.msra.mxu0 %v11900
      %12069 = vmatprep.subr.mxu0 0.0
      %12070 = vmatpush1.msra.mxu0 %v11901
      %12071 = vmatprep.subr.mxu0 0.0
      %12072 = vmatpush1.msra.mxu0 %v11902
      %12073 = vmatprep.mubr.f32.mxu0 %v11983
      %12074 = vmatmul.mubr.f32.gmra.mrb[0].mxu0 %v11982
      %v12075 = vpop.f32.mrb[0].mxu0
      %v12076 = vadd.f32 %v11948, %v12075
      %v12077 = vpop.f32.mrb[0].mxu0
      %12078 = vdwg.mxu0
      %12079 = vmatprep.subr.mxu0 0.0
      %12080 = vmatpush1.msra.mxu0 %v11903
      %12081 = vmatprep.subr.mxu0 0.0
      %12082 = vmatpush1.msra.mxu0 %v11904
      %12083 = vmatprep.subr.mxu0 0.0
      %12084 = vmatpush1.msra.mxu0 %v11905
      %12085 = vmatprep.subr.mxu0 0.0
      %12086 = vmatpush1.msra.mxu0 %v11906
      %12087 = vmatprep.subr.mxu0 0.0
      %12088 = vmatpush1.msra.mxu0 %v11907
      %12089 = vmatprep.subr.mxu0 0.0
      %12090 = vmatpush1.msra.mxu0 %v11908
      %12091 = vmatprep.subr.mxu0 0.0
      %12092 = vmatpush1.msra.mxu0 %v11909
      %12093 = vmatprep.subr.mxu0 0.0
      %12094 = vmatpush1.msra.mxu0 %v11910
      %12095 = vmatprep.subr.mxu0 0.0
      %12096 = vmatpush1.msra.mxu0 %v11911
      %12097 = vmatprep.subr.mxu0 0.0
      %12098 = vmatpush1.msra.mxu0 %v11912
      %12099 = vmatprep.subr.mxu0 0.0
      %12100 = vmatpush1.msra.mxu0 %v11913
      %12101 = vmatprep.subr.mxu0 0.0
      %12102 = vmatpush1.msra.mxu0 %v11914
      %12103 = vmatprep.subr.mxu0 0.0
      %12104 = vmatpush1.msra.mxu0 %v11915
      %12105 = vmatprep.subr.mxu0 0.0
      %12106 = vmatpush1.msra.mxu0 %v11916
      %12107 = vmatprep.subr.mxu0 0.0
      %12108 = vmatpush1.msra.mxu0 %v11917
      %12109 = vmatprep.subr.mxu0 0.0
      %12110 = vmatpush1.msra.mxu0 %v11918
      %12111 = vmatprep.subr.mxu0 0.0
      %12112 = vmatpush1.msra.mxu0 %v11919
      %12113 = vmatprep.subr.mxu0 0.0
      %12114 = vmatpush1.msra.mxu0 %v11920
      %12115 = vmatprep.subr.mxu0 0.0
      %12116 = vmatpush1.msra.mxu0 %v11921
      %12117 = vmatprep.subr.mxu0 0.0
      %12118 = vmatpush1.msra.mxu0 %v11922
      %12119 = vmatprep.subr.mxu0 0.0
      %12120 = vmatpush1.msra.mxu0 %v11923
      %12121 = vmatprep.subr.mxu0 0.0
      %12122 = vmatpush1.msra.mxu0 %v11924
      %12123 = vmatprep.subr.mxu0 0.0
      %12124 = vmatpush1.msra.mxu0 %v11925
      %12125 = vmatprep.subr.mxu0 0.0
      %12126 = vmatpush1.msra.mxu0 %v11926
      %12127 = vmatprep.subr.mxu0 0.0
      %12128 = vmatpush1.msra.mxu0 %v11927
      %12129 = vmatprep.subr.mxu0 0.0
      %12130 = vmatpush1.msra.mxu0 %v11928
      %12131 = vmatprep.subr.mxu0 0.0
      %12132 = vmatpush1.msra.mxu0 %v11929
      %12133 = vmatprep.subr.mxu0 0.0
      %12134 = vmatpush1.msra.mxu0 %v11930
      %12135 = vmatprep.subr.mxu0 0.0
      %12136 = vmatpush1.msra.mxu0 %v11931
      %12137 = vmatprep.subr.mxu0 0.0
      %12138 = vmatpush1.msra.mxu0 %v11932
      %12139 = vmatprep.subr.mxu0 0.0
      %12140 = vmatpush1.msra.mxu0 %v11933
      %12141 = vmatprep.subr.mxu0 0.0
      %12142 = vmatpush1.msra.mxu0 %v11934
      %12143 = vmatprep.mubr.f32.mxu0 %v11985
      %12144 = vmatmul.mubr.f32.gmra.mrb[0].mxu0 %v11984
      %v12145 = vpop.f32.mrb[0].mxu0
      %v12146 = vadd.f32 %v12076, %v12145
      %v12147 = vpop.f32.mrb[0].mxu0
      %12148 = vdwg.mxu0
      %12149 = vmatprep.subr.mxu0 0.0
      %12150 = vmatpush1.msra.mxu0 %v11935
      %12151 = vmatprep.subr.mxu0 0.0
      %12152 = vmatpush1.msra.mxu0 %v11936
      %12153 = vmatprep.subr.mxu0 0.0
      %12154 = vmatpush1.msra.mxu0 %v11937
      %12155 = vmatprep.subr.mxu0 0.0
      %12156 = vmatpush1.msra.mxu0 %v11938
      %12157 = vmatprep.subr.mxu0 0.0
      %12158 = vmatpush1.msra.mxu0 %v11939
      %12159 = vmatprep.subr.mxu0 0.0
      %12160 = vmatpush1.msra.mxu0 %v11940
      %12161 = vmatprep.subr.mxu0 0.0
      %12162 = vmatpush1.msra.mxu0 %v11941
      %12163 = vmatprep.subr.mxu0 0.0
      %12164 = vmatpush1.msra.mxu0 %v11942
      %12165 = vmatprep.subr.mxu0 0.0
      %12166 = vmatpush1.msra.mxu0 0.0
      %12167 = vmatprep.subr.mxu0 0.0
      %12168 = vmatpush1.msra.mxu0 0.0
      %12169 = vmatprep.subr.mxu0 0.0
      %12170 = vmatpush1.msra.mxu0 0.0
      %12171 = vmatprep.subr.mxu0 0.0
      %12172 = vmatpush1.msra.mxu0 0.0
      %12173 = vmatprep.subr.mxu0 0.0
      %12174 = vmatpush1.msra.mxu0 0.0
      %12175 = vmatprep.subr.mxu0 0.0
      %12176 = vmatpush1.msra.mxu0 0.0
      %12177 = vmatprep.subr.mxu0 0.0
      %12178 = vmatpush1.msra.mxu0 0.0
      %12179 = vmatprep.subr.mxu0 0.0
      %12180 = vmatpush1.msra.mxu0 0.0
      %12181 = vmatprep.subr.mxu0 0.0
      %12182 = vmatpush1.msra.mxu0 0.0
      %12183 = vmatprep.subr.mxu0 0.0
      %12184 = vmatpush1.msra.mxu0 0.0
      %12185 = vmatprep.subr.mxu0 0.0
      %12186 = vmatpush1.msra.mxu0 0.0
      %12187 = vmatprep.subr.mxu0 0.0
      %12188 = vmatpush1.msra.mxu0 0.0
      %12189 = vmatprep.subr.mxu0 0.0
      %12190 = vmatpush1.msra.mxu0 0.0
      %12191 = vmatprep.subr.mxu0 0.0
      %12192 = vmatpush1.msra.mxu0 0.0
      %12193 = vmatprep.subr.mxu0 0.0
      %12194 = vmatpush1.msra.mxu0 0.0
      %12195 = vmatprep.subr.mxu0 0.0
      %12196 = vmatpush1.msra.mxu0 0.0
      %12197 = vmatprep.subr.mxu0 0.0
      %12198 = vmatpush1.msra.mxu0 0.0
      %12199 = vmatprep.subr.mxu0 0.0
      %12200 = vmatpush1.msra.mxu0 0.0
      %12201 = vmatprep.subr.mxu0 0.0
      %12202 = vmatpush1.msra.mxu0 0.0
      %12203 = vmatprep.subr.mxu0 0.0
      %12204 = vmatpush1.msra.mxu0 0.0
      %12205 = vmatprep.subr.mxu0 0.0
      %12206 = vmatpush1.msra.mxu0 0.0
      %12207 = vmatprep.subr.mxu0 0.0
      %12208 = vmatpush1.msra.mxu0 0.0
      %12209 = vmatprep.subr.mxu0 0.0
      %12210 = vmatpush1.msra.mxu0 0.0
      %12211 = vmatprep.subr.mxu0 0.0
      %12212 = vmatpush1.msra.mxu0 0.0
      %12213 = vmatprep.mubr.f32.mxu0 0.0
      %12214 = vmatmul.mubr.f32.gmra.mrb[0].mxu0 %v12007
      %v12215 = vpop.f32.mrb[0].mxu0
      %v12216 = vadd.f32 %v12146, %v12215
      %v12217 = vpop.f32.mrb[0].mxu0
      %12218 = vdwg.mxu0
      %v12220 = vcombine.high %v12216, %v12216
      %v12222 = vunpack.c.l.s4 1983009808
      %v12223 = vunpack.c.0.s8 %v12222
      %v12224 = vlaneseq
      %v12225 = vshrl.u32 %v12224, 7
      %v12226 = vsub.s32 %v12223, %v12225
      %v12227 = vrot.slane %v12216, %v12226
      %v12229 = vunpack.c.l.s4 1983009808
      %v12230 = vunpack.c.0.s8 %v12229
      %v12231 = vlaneseq
      %v12232 = vshrl.u32 %v12231, 7
      %v12233 = vsub.s32 %v12230, %v12232
      %v12234 = vrot.slane %v12220, %v12233
      %v12235 = vcombine.high %v12227, %v12227
      %v12236 = vcombine.high %v12234, %v12234
      %12241 = vst.msk [vmem:[%s393] sm:$0x3] %vm462, %v12227
      %12242 = vst.msk [vmem:[%s393 + $0x2] sm:$0x3] %vm462, %v12235
      %12243 = vst.msk [vmem:[%s393 + $0x4] sm:$0x3] %vm462, %v12234
      %12244 = vst.msk [vmem:[%s393 + $0x6] sm:$0x3] %vm462, %v12236
      %s12245 = smul.u32 2, %s22
      %p12246 = scmp.lt.s32.totalorder %s12245, 3
      %s12247 = scalar_select %p12246, %s12245, 3
      %s12248 = smul.addr %s12247, 2
      %s12249 = smul.addr %s12248, 2
      %s12250 = scalar_lea.vmem %s11, %s12249
      // Predicated region
      $region65: #{attribute_net_forward.1} parent=63 // pred_check
        %p12251 = pneg %p276
      $region66: #{attribute_net_forward.1} parent=63 // pred_check_branch
        %12253 = sbr.rel (%p12251) target = $region68
      $region67: #{attribute_net_forward.1} parent=63 // pred_region
        %s12254 = smul.u32 2, %s22
      $region68: #{attribute_net_forward.1} parent=63 // pred_fallthru
        _
    $region64: #{attribute_net_forward.1} parent=5 // pred_fallthru
      _
    %p12255 = scmp.le.s32.totalorder 2, %s17
    // Predicated region
    $region69: #{attribute_net_forward.1} parent=5 // pred_check
      %p12256 = pneg %p12255
    $region70: #{attribute_net_forward.1} parent=5 // pred_check_branch
      %12258 = sbr.rel (%p12256) target = $region72
    $region71: #{attribute_net_forward.1} parent=5 // pred_region
      %s12259 = ssub.s32 %s17, 2
      // Predicated region
      $region73: #{attribute_net_forward.1} parent=71 // pred_check
        %p12260 = pneg %p282
      $region74: #{attribute_net_forward.1} parent=71 // pred_check_branch
        %12262 = sbr.rel (%p12260) target = $region76
      $region75: #{attribute_net_forward.1} parent=71 // pred_region
        %s12263 = smul.u32 2, %s23
        %p12264 = scmp.lt.s32.totalorder %s12263, 3
        %s12265 = scalar_select %p12264, %s12263, 3
        %s12266 = smul.addr %s12265, 2
        %s12267 = smul.addr %s12266, 2
        %s12268 = scalar_lea.vmem %s11, %s12267
      $region76: #{attribute_net_forward.1} parent=71 // pred_fallthru
        _
    $region72: #{attribute_net_forward.1} parent=5 // pred_fallthru
      _
  $region6: #{attribute_net_forward.1} parent=0 // loop_footer
    %s21 = sadd.s32 1, %s17
  $region7: #{attribute_net_forward.1} parent=0 // loop_footer_branch
    %16 = sbr.rel target = $region3
  $region8: #{attribute_net_forward.1} parent=0 // loop_exit
    _

</llo_original>
